<compile_context>
chip_gen: v6e
topology: v6e:2x2x1
jax: 0.10.0
libtpu: 0.0.40
codegen_flags: <defaults>
</compile_context>

<pallas_src>
import jax
import jax.numpy as jnp
from jax import lax
from jax.experimental import pallas as pl
from jax.experimental.pallas import tpu as pltpu

LANES = 128  # TPU vreg lane width; channels padded to this for lane density.


def bottleneck_kernel(x_ref, w1_ref, s1_ref, b1_ref, w2_ref, s2_ref, b2_ref,
                      w3_ref, s3_ref, b3_ref, o_ref, hc_ref, hl_ref, hr_ref):
    _, H, W, C = x_ref.shape
    HW = H * W
    PAD = (hc_ref.shape[0] - HW) // 2          # flattened zero halo rows
    # Trace-time halo-size check (dh=+/-1 windows span [PAD - W, PAD + W + HW)).
    assert PAD >= W and PAD >= 1, (PAD, W)

    # Residual kept in f32; matmul operands cast to bf16 (native MXU path).
    x2d = x_ref[0].reshape(HW, C)                                   # (HW, C) f32

    # ---- conv1 (1x1) + bn1 + relu -------------------------------------------
    h1 = jnp.dot(x2d.astype(jnp.bfloat16), w1_ref[...],
                 preferred_element_type=jnp.float32)
    h1 = jnp.maximum(h1 * s1_ref[...] + b1_ref[...], 0.0)           # (HW, C) f32

    # ---- conv2 (3x3, pad=1, stride=1, groups folded to block-diagonal) ------
    # Stage h1 (bf16) into three flattened buffers with zero halos:
    #   hc[PAD+j] = h1[j]
    #   hl[PAD+j] = h1[j-1] if col(j) >= 1     else 0   (left-neighbour source)
    #   hr[PAD+j] = h1[j+1] if col(j) <= W-2   else 0   (right-neighbour source)
    # Tap (dh, dw) is then a dh-row window of the dw buffer starting at
    # PAD + dh*W (multiple of W -> sublane-aligned); H boundary handled by the
    # zero halo, W boundary baked in at staging time.  Halos are re-zeroed each
    # grid step (required under megacore "parallel"; cheap).
    zero_halo = jnp.zeros((PAD, C), jnp.bfloat16)
    hc_ref[:PAD, :] = zero_halo
    hc_ref[PAD + HW:, :] = zero_halo
    hc_ref[PAD:PAD + HW, :] = h1.astype(jnp.bfloat16)

    wcol = lax.broadcasted_iota(jnp.int32, (HW, 1), 0) % W
    tL = hc_ref[PAD - 1:PAD - 1 + HW, :]       # value at flattened index j-1
    hl_ref[:PAD, :] = zero_halo
    hl_ref[PAD + HW:, :] = zero_halo
    hl_ref[PAD:PAD + HW, :] = jnp.where(wcol >= 1, tL, jnp.zeros_like(tL))

    tR = hc_ref[PAD + 1:PAD + 1 + HW, :]       # value at flattened index j+1
    hr_ref[:PAD, :] = zero_halo
    hr_ref[PAD + HW:, :] = zero_halo
    hr_ref[PAD:PAD + HW, :] = jnp.where(wcol <= W - 2, tR, jnp.zeros_like(tR))

    bufs = {-1: hl_ref, 0: hc_ref, 1: hr_ref}

    # Nine accumulating MXU matmuls (no 9-tap concat temporary).
    h2 = None
    for dh in (-1, 0, 1):
        base = PAD + dh * W                    # multiple of W -> aligned window
        for dw in (-1, 0, 1):
            k = (dh + 1) * 3 + (dw + 1)        # matches w2 packing (kh*3 + kw)
            tap = bufs[dw][base:base + HW, :]                       # bf16 view
            p = jnp.dot(tap, w2_ref[k * C:(k + 1) * C, :],
                        preferred_element_type=jnp.float32)
            h2 = p if h2 is None else h2 + p
    h2 = jnp.maximum(h2 * s2_ref[...] + b2_ref[...], 0.0)           # (HW, C) f32

    # ---- conv3 (1x1) + bn3 + residual + relu --------------------------------
    h3 = jnp.dot(h2.astype(jnp.bfloat16), w3_ref[...],
                 preferred_element_type=jnp.float32)
    out = jnp.maximum(h3 * s3_ref[...] + b3_ref[...] + x2d, 0.0)
    # TODO(synk): emit bf16 output if downstream tolerates it (halves writeback).
    o_ref[...] = out.reshape(1, H, W, C).astype(o_ref.dtype)


def bn_fold(gamma, beta, mean, var, eps=1e-5):
    scale = gamma / jnp.sqrt(var + eps)
    return scale, beta - mean * scale


def prepare_params(w1_t, w2_t, w3_t, bn1, bn2, bn3, groups, cpad, eps=1e-5):
    """Fold eval-mode BN and pack conv weights into lane-dense bf16 matrices."""
    width = w1_t.shape[0]

    def pad_mat(m):
        out = jnp.zeros((cpad, cpad), jnp.float32)
        return out.at[:m.shape[0], :m.shape[1]].set(m)

    def pad_vec(v):
        return jnp.zeros((1, cpad), jnp.float32).at[0, :v.shape[0]].set(v)

    s1, b1 = bn_fold(*bn1, eps)
    s2, b2 = bn_fold(*bn2, eps)
    s3, b3 = bn_fold(*bn3, eps)

    w1 = pad_mat(w1_t[:, :, 0, 0].T).astype(jnp.bfloat16)           # (cpad, cpad)
    w3 = pad_mat(w3_t[:, :, 0, 0].T).astype(jnp.bfloat16)           # (cpad, cpad)

    # Grouped 3x3 conv -> per-tap block-diagonal dense weight, stacked along K.
    cpg = width // groups
    w2 = jnp.zeros((9, cpad, cpad), jnp.float32)
    for k in range(9):
        kh, kw = divmod(k, 3)
        for g in range(groups):
            blk = w2_t[g * cpg:(g + 1) * cpg, :, kh, kw]            # (cpg_out, cpg_in)
            w2 = w2.at[k, g * cpg:(g + 1) * cpg, g * cpg:(g + 1) * cpg].set(blk.T)
    w2 = w2.reshape(9 * cpad, cpad).astype(jnp.bfloat16)            # (9*cpad, cpad)

    return (w1, pad_vec(s1), pad_vec(b1), w2, pad_vec(s2), pad_vec(b2),
            w3, pad_vec(s3), pad_vec(b3))


def bottleneck_forward(x_nchw, params, cout):
    N, cin, H, W = x_nchw.shape
    w1, s1, b1, w2, s2, b2, w3, s3, b3 = params
    cpad = w1.shape[0]
    hw = H * W
    pad = ((W + 15) // 16) * 16                # flattened halo; >= W, bf16-aligned
    assert pad >= W

    # NCHW -> NHWC, channels zero-padded to the 128-lane vreg width so every
    # kernel load/store is lane-dense and the matmuls are 128 wide.
    x = jnp.transpose(x_nchw, (0, 2, 3, 1))
    x = jnp.pad(x, ((0, 0), (0, 0), (0, 0), (0, cpad - cin)))

    # Advisory cost estimate (3 convs ~ 11 * HW * C^2 MACs per batch element).
    flops = 2 * 11 * N * hw * cpad * cpad
    bytes_accessed = (N * hw * cpad * 4 * 2          # input + output blocks
                      + (w1.size + w2.size + w3.size) * 2
                      + (s1.size + b1.size + s2.size + b2.size
                         + s3.size + b3.size) * 4)

    out = pl.pallas_call(
        bottleneck_kernel,
        out_shape=jax.ShapeDtypeStruct((N, H, W, cpad), jnp.float32),
        grid_spec=pltpu.PrefetchScalarGridSpec(
            num_scalar_prefetch=0,
            grid=(N,),
            in_specs=[
                pl.BlockSpec((1, H, W, cpad), lambda b: (b, 0, 0, 0)),
                pl.BlockSpec(w1.shape, lambda b: (0, 0)),
                pl.BlockSpec(s1.shape, lambda b: (0, 0)),
                pl.BlockSpec(b1.shape, lambda b: (0, 0)),
                pl.BlockSpec(w2.shape, lambda b: (0, 0)),
                pl.BlockSpec(s2.shape, lambda b: (0, 0)),
                pl.BlockSpec(b2.shape, lambda b: (0, 0)),
                pl.BlockSpec(w3.shape, lambda b: (0, 0)),
                pl.BlockSpec(s3.shape, lambda b: (0, 0)),
                pl.BlockSpec(b3.shape, lambda b: (0, 0)),
            ],
            out_specs=pl.BlockSpec((1, H, W, cpad), lambda b: (b, 0, 0, 0)),
            scratch_shapes=[
                pltpu.VMEM((hw + 2 * pad, cpad), jnp.bfloat16),   # center (dw=0)
                pltpu.VMEM((hw + 2 * pad, cpad), jnp.bfloat16),   # left  (dw=-1)
                pltpu.VMEM((hw + 2 * pad, cpad), jnp.bfloat16),   # right (dw=+1)
            ],
        ),
        # Batch axis is parallel (megacore: extent >= 2 and even).
        compiler_params=pltpu.CompilerParams(dimension_semantics=("parallel",)),
        cost_estimate=pl.CostEstimate(flops=flops, transcendentals=0,
                                      bytes_accessed=bytes_accessed),
    )(x, w1, s1, b1, w2, s2, b2, w3, s3, b3)

    out = out[:, :, :, :cout]                # drop lane padding
    return jnp.transpose(out, (0, 3, 1, 2))  # NHWC -> NCHW


def reference_forward(x, w1_t, w2_t, w3_t, s1, b1, s2, b2, s3, b3, groups):
    """Pure-JAX reference of the PyTorch forward (eval-mode BN folded).

    Conv operands are cast to bf16 with f32 accumulation so the reference uses
    the same numerics as the kernel's MXU path; BN/ReLU/residual are f32.
    """
    dn = ("NCHW", "OIHW", "NCHW")

    def conv(a, w, padding, fgc=1):
        return lax.conv_general_dilated(
            a.astype(jnp.bfloat16), w.astype(jnp.bfloat16), (1, 1), padding,
            dimension_numbers=dn, feature_group_count=fgc,
            preferred_element_type=jnp.float32)

    def affine(y, s, b):
        return y * s.reshape(1, -1, 1, 1) + b.reshape(1, -1, 1, 1)

    y = jnp.maximum(affine(conv(x, w1_t, "VALID"), s1, b1), 0.0)
    y = jnp.maximum(affine(conv(y, w2_t, ((1, 1), (1, 1)), groups), s2, b2), 0.0)
    y = affine(conv(y, w3_t, "VALID"), s3, b3)
    return jnp.maximum(y + x, 0.0)


if __name__ == "__main__":
    # Small config where the shortcut is the identity (downsample=None, stride=1):
    # in_channel == out_channel * expansion.
    N, H, W = 2, 16, 16
    in_channel, out_channel = 16, 4
    groups, width_per_group = 2, 64
    expansion = 4
    width = int(out_channel * (width_per_group / 64.0)) * groups   # 8
    cout = out_channel * expansion                                 # 16
    assert cout == in_channel

    key = jax.random.PRNGKey(0)
    ks = jax.random.split(key, 8)

    # Input in PyTorch layout (NCHW).
    x = jax.random.normal(ks[0], (N, in_channel, H, W), jnp.float32)

    # Conv weights in PyTorch layout (bias=False everywhere).
    w1_t = 0.1 * jax.random.normal(ks[1], (width, in_channel, 1, 1), jnp.float32)
    w2_t = 0.1 * jax.random.normal(ks[2], (width, width // groups, 3, 3), jnp.float32)
    w3_t = 0.1 * jax.random.normal(ks[3], (cout, width, 1, 1), jnp.float32)

    # BatchNorm parameters + running statistics (eval mode).
    def bn_params(k, c):
        k1, k2, k3, k4 = jax.random.split(k, 4)
        return (1.0 + 0.1 * jax.random.normal(k1, (c,), jnp.float32),
                0.1 * jax.random.normal(k2, (c,), jnp.float32),
                0.05 * jax.random.normal(k3, (c,), jnp.float32),
                0.5 + jnp.abs(jax.random.normal(k4, (c,), jnp.float32)))

    bn1 = bn_params(ks[4], width)
    bn2 = bn_params(ks[5], width)
    bn3 = bn_params(ks[6], cout)

    cpad = LANES * ((max(in_channel, width, cout) + LANES - 1) // LANES)
    params = prepare_params(w1_t, w2_t, w3_t, bn1, bn2, bn3, groups, cpad)

    out = bottleneck_forward(x, params, cout)
    out = jax.block_until_ready(out)
    assert out.shape == (N, cout, H, W)

    s1, b1 = bn_fold(*bn1)
    s2, b2 = bn_fold(*bn2)
    s3, b3 = bn_fold(*bn3)
    ref = reference_forward(x, w1_t, w2_t, w3_t, s1, b1, s2, b2, s3, b3, groups)
    ref = jax.block_until_ready(ref)

    max_err = float(jnp.max(jnp.abs(out - ref)))
    assert jnp.allclose(out, ref, atol=2e-2, rtol=2e-2), max_err

    print("KERNEL_OK")
</pallas_src>

<mosaic_0001>
module attributes {stable_mosaic.version = 11 : i64} {
  func.func @bottleneck_kernel(%arg0: i32, %arg1: memref<1x16x16x128xf32, #tpu.memory_space<vmem>>, %arg2: memref<128x128xbf16, #tpu.memory_space<vmem>>, %arg3: memref<1x128xf32, #tpu.memory_space<vmem>>, %arg4: memref<1x128xf32, #tpu.memory_space<vmem>>, %arg5: memref<1152x128xbf16, #tpu.memory_space<vmem>>, %arg6: memref<1x128xf32, #tpu.memory_space<vmem>>, %arg7: memref<1x128xf32, #tpu.memory_space<vmem>>, %arg8: memref<128x128xbf16, #tpu.memory_space<vmem>>, %arg9: memref<1x128xf32, #tpu.memory_space<vmem>>, %arg10: memref<1x128xf32, #tpu.memory_space<vmem>>, %arg11: memref<1x16x16x128xf32, #tpu.memory_space<vmem>>, %arg12: memref<288x128xbf16, #tpu.memory_space<vmem>>, %arg13: memref<288x128xbf16, #tpu.memory_space<vmem>>, %arg14: memref<288x128xbf16, #tpu.memory_space<vmem>>) attributes {dimension_semantics = [#tpu.dimension_semantics<parallel>], iteration_bounds = array<i64: 2>, scalar_prefetch = 0 : i64, scratch_operands = 3 : i64, tpu.core_type = #tpu.core_type<tc>, window_params = [{transform_indices = @transform_0, window_bounds = array<i64: 1, 16, 16, 128>}, {pipeline_mode = #tpu.pipeline_mode<synchronous>, transform_indices = @transform_1, window_bounds = array<i64: 128, 128>}, {pipeline_mode = #tpu.pipeline_mode<synchronous>, transform_indices = @transform_2, window_bounds = array<i64: 1, 128>}, {pipeline_mode = #tpu.pipeline_mode<synchronous>, transform_indices = @transform_3, window_bounds = array<i64: 1, 128>}, {pipeline_mode = #tpu.pipeline_mode<synchronous>, transform_indices = @transform_4, window_bounds = array<i64: 1152, 128>}, {pipeline_mode = #tpu.pipeline_mode<synchronous>, transform_indices = @transform_5, window_bounds = array<i64: 1, 128>}, {pipeline_mode = #tpu.pipeline_mode<synchronous>, transform_indices = @transform_6, window_bounds = array<i64: 1, 128>}, {pipeline_mode = #tpu.pipeline_mode<synchronous>, transform_indices = @transform_7, window_bounds = array<i64: 128, 128>}, {pipeline_mode = #tpu.pipeline_mode<synchronous>, transform_indices = @transform_8, window_bounds = array<i64: 1, 128>}, {pipeline_mode = #tpu.pipeline_mode<synchronous>, transform_indices = @transform_9, window_bounds = array<i64: 1, 128>}, {transform_indices = @transform_10, window_bounds = array<i64: 1, 16, 16, 128>}]} {
    %c0 = arith.constant 0 : index
    %c0_0 = arith.constant 0 : index
    %c0_1 = arith.constant 0 : index
    %c0_2 = arith.constant 0 : index
    %0 = vector.load %arg1[%c0, %c0_0, %c0_1, %c0_2] : memref<1x16x16x128xf32, #tpu.memory_space<vmem>>, vector<1x16x16x128xf32>
    %1 = vector.shape_cast %0 : vector<1x16x16x128xf32> to vector<16x16x128xf32>
    %2 = vector.shape_cast %1 : vector<16x16x128xf32> to vector<256x128xf32>
    %3 = arith.truncf %2 : vector<256x128xf32> to vector<256x128xbf16>
    %c0_3 = arith.constant 0 : index
    %c0_4 = arith.constant 0 : index
    %4 = vector.load %arg2[%c0_3, %c0_4] : memref<128x128xbf16, #tpu.memory_space<vmem>>, vector<128x128xbf16>
    %cst = arith.constant dense<0.000000e+00> : vector<256x128xf32>
    %5 = tpu.matmul %3, %4, %cst {dimension_numbers = #tpu.dot_dimension_numbers<[1], [0], [0], [1], [0, 0, 1, 1], [], []>} : vector<256x128xbf16>, vector<128x128xbf16>, vector<256x128xf32> -> vector<256x128xf32>
    %c0_5 = arith.constant 0 : index
    %c0_6 = arith.constant 0 : index
    %6 = vector.load %arg3[%c0_5, %c0_6] : memref<1x128xf32, #tpu.memory_space<vmem>>, vector<1x128xf32>
    %7 = vector.broadcast %6 : vector<1x128xf32> to vector<256x128xf32>
    %8 = arith.mulf %5, %7 : vector<256x128xf32>
    %c0_7 = arith.constant 0 : index
    %c0_8 = arith.constant 0 : index
    %9 = vector.load %arg4[%c0_7, %c0_8] : memref<1x128xf32, #tpu.memory_space<vmem>>, vector<1x128xf32>
    %10 = vector.broadcast %9 : vector<1x128xf32> to vector<256x128xf32>
    %11 = arith.addf %8, %10 : vector<256x128xf32>
    %cst_9 = arith.constant 0.000000e+00 : f32
    %12 = vector.broadcast %cst_9 : f32 to vector<256x128xf32>
    %13 = arith.maximumf %11, %12 : vector<256x128xf32>
    %cst_10 = arith.constant 0.000000e+00 : bf16
    %14 = vector.broadcast %cst_10 : bf16 to vector<16x128xbf16>
    %c0_11 = arith.constant 0 : index
    %c0_12 = arith.constant 0 : index
    %15 = vector.load %arg12[%c0_11, %c0_12] : memref<288x128xbf16, #tpu.memory_space<vmem>>, vector<16x128xbf16>
    tpu.vector_store %arg12[%c0_11, %c0_12], %14 {strides = array<i32>} : memref<288x128xbf16, #tpu.memory_space<vmem>>, vector<16x128xbf16>,
    %c272 = arith.constant 272 : index
    %c0_13 = arith.constant 0 : index
    %16 = vector.load %arg12[%c272, %c0_13] : memref<288x128xbf16, #tpu.memory_space<vmem>>, vector<16x128xbf16>
    tpu.vector_store %arg12[%c272, %c0_13], %14 {strides = array<i32>} : memref<288x128xbf16, #tpu.memory_space<vmem>>, vector<16x128xbf16>,
    %17 = arith.truncf %13 : vector<256x128xf32> to vector<256x128xbf16>
    %c16 = arith.constant 16 : index
    %c0_14 = arith.constant 0 : index
    %18 = vector.load %arg12[%c16, %c0_14] : memref<288x128xbf16, #tpu.memory_space<vmem>>, vector<256x128xbf16>
    tpu.vector_store %arg12[%c16, %c0_14], %17 {strides = array<i32>} : memref<288x128xbf16, #tpu.memory_space<vmem>>, vector<256x128xbf16>,
    %19 = tpu.iota {dimensions = array<i32: 0>} : vector<256x1xi32>
    %c16_i32 = arith.constant 16 : i32
    %c0_i32 = arith.constant 0 : i32
    %20 = arith.cmpi eq, %c16_i32, %c0_i32 : i32
    %c1_i32 = arith.constant 1 : i32
    %21 = arith.select %20, %c1_i32, %c16_i32 : i32
    %22 = vector.broadcast %21 : i32 to vector<256x1xi32>
    %23 = arith.remsi %19, %22 : vector<256x1xi32>
    %c0_i32_15 = arith.constant 0 : i32
    %24 = vector.broadcast %c0_i32_15 : i32 to vector<256x1xi32>
    %25 = arith.cmpi ne, %23, %24 : vector<256x1xi32>
    %c0_i32_16 = arith.constant 0 : i32
    %26 = vector.broadcast %c0_i32_16 : i32 to vector<256x1xi32>
    %27 = arith.cmpi slt, %23, %26 : vector<256x1xi32>
    %c0_i32_17 = arith.constant 0 : i32
    %28 = arith.cmpi slt, %21, %c0_i32_17 : i32
    %29 = vector.broadcast %28 : i1 to vector<256x1xi1>
    %30 = vector.broadcast %29 : vector<256x1xi1> to vector<256x1xi1>
    %31 = arith.xori %27, %30 : vector<256x1xi1>
    %32 = arith.andi %31, %25 : vector<256x1xi1>
    %33 = vector.broadcast %21 : i32 to vector<256x1xi32>
    %34 = arith.addi %23, %33 : vector<256x1xi32>
    %35 = arith.select %32, %34, %23 : vector<256x1xi1>, vector<256x1xi32>
    %c15 = arith.constant 15 : index
    %c0_18 = arith.constant 0 : index
    %36 = vector.load %arg12[%c15, %c0_18] : memref<288x128xbf16, #tpu.memory_space<vmem>>, vector<256x128xbf16>
    %c0_19 = arith.constant 0 : index
    %c0_20 = arith.constant 0 : index
    %37 = vector.load %arg13[%c0_19, %c0_20] : memref<288x128xbf16, #tpu.memory_space<vmem>>, vector<16x128xbf16>
    tpu.vector_store %arg13[%c0_19, %c0_20], %14 {strides = array<i32>} : memref<288x128xbf16, #tpu.memory_space<vmem>>, vector<16x128xbf16>,
    %c272_21 = arith.constant 272 : index
    %c0_22 = arith.constant 0 : index
    %38 = vector.load %arg13[%c272_21, %c0_22] : memref<288x128xbf16, #tpu.memory_space<vmem>>, vector<16x128xbf16>
    tpu.vector_store %arg13[%c272_21, %c0_22], %14 {strides = array<i32>} : memref<288x128xbf16, #tpu.memory_space<vmem>>, vector<16x128xbf16>,
    %c1_i32_23 = arith.constant 1 : i32
    %39 = vector.broadcast %c1_i32_23 : i32 to vector<256x1xi32>
    %40 = arith.cmpi sge, %35, %39 : vector<256x1xi32>
    %cst_24 = arith.constant 0.000000e+00 : bf16
    %41 = vector.broadcast %cst_24 : bf16 to vector<256x128xbf16>
    %42 = vector.shape_cast %40 : vector<256x1xi1> to vector<256x1xi1>
    %43 = vector.broadcast %42 : vector<256x1xi1> to vector<256x128xi1>
    %44 = arith.select %43, %36, %41 : vector<256x128xi1>, vector<256x128xbf16>
    %c16_25 = arith.constant 16 : index
    %c0_26 = arith.constant 0 : index
    %45 = vector.load %arg13[%c16_25, %c0_26] : memref<288x128xbf16, #tpu.memory_space<vmem>>, vector<256x128xbf16>
    tpu.vector_store %arg13[%c16_25, %c0_26], %44 {strides = array<i32>} : memref<288x128xbf16, #tpu.memory_space<vmem>>, vector<256x128xbf16>,
    %c17 = arith.constant 17 : index
    %c0_27 = arith.constant 0 : index
    %46 = vector.load %arg12[%c17, %c0_27] : memref<288x128xbf16, #tpu.memory_space<vmem>>, vector<256x128xbf16>
    %c0_28 = arith.constant 0 : index
    %c0_29 = arith.constant 0 : index
    %47 = vector.load %arg14[%c0_28, %c0_29] : memref<288x128xbf16, #tpu.memory_space<vmem>>, vector<16x128xbf16>
    tpu.vector_store %arg14[%c0_28, %c0_29], %14 {strides = array<i32>} : memref<288x128xbf16, #tpu.memory_space<vmem>>, vector<16x128xbf16>,
    %c272_30 = arith.constant 272 : index
    %c0_31 = arith.constant 0 : index
    %48 = vector.load %arg14[%c272_30, %c0_31] : memref<288x128xbf16, #tpu.memory_space<vmem>>, vector<16x128xbf16>
    tpu.vector_store %arg14[%c272_30, %c0_31], %14 {strides = array<i32>} : memref<288x128xbf16, #tpu.memory_space<vmem>>, vector<16x128xbf16>,
    %c14_i32 = arith.constant 14 : i32
    %49 = vector.broadcast %c14_i32 : i32 to vector<256x1xi32>
    %50 = arith.cmpi sle, %35, %49 : vector<256x1xi32>
    %cst_32 = arith.constant 0.000000e+00 : bf16
    %51 = vector.broadcast %cst_32 : bf16 to vector<256x128xbf16>
    %52 = vector.shape_cast %50 : vector<256x1xi1> to vector<256x1xi1>
    %53 = vector.broadcast %52 : vector<256x1xi1> to vector<256x128xi1>
    %54 = arith.select %53, %46, %51 : vector<256x128xi1>, vector<256x128xbf16>
    %c16_33 = arith.constant 16 : index
    %c0_34 = arith.constant 0 : index
    %55 = vector.load %arg14[%c16_33, %c0_34] : memref<288x128xbf16, #tpu.memory_space<vmem>>, vector<256x128xbf16>
    tpu.vector_store %arg14[%c16_33, %c0_34], %54 {strides = array<i32>} : memref<288x128xbf16, #tpu.memory_space<vmem>>, vector<256x128xbf16>,
    %c0_35 = arith.constant 0 : index
    %c0_36 = arith.constant 0 : index
    %56 = vector.load %arg13[%c0_35, %c0_36] : memref<288x128xbf16, #tpu.memory_space<vmem>>, vector<256x128xbf16>
    %c0_37 = arith.constant 0 : index
    %c0_38 = arith.constant 0 : index
    %57 = vector.load %arg5[%c0_37, %c0_38] : memref<1152x128xbf16, #tpu.memory_space<vmem>>, vector<128x128xbf16>
    %cst_39 = arith.constant dense<0.000000e+00> : vector<256x128xf32>
    %58 = tpu.matmul %56, %57, %cst_39 {dimension_numbers = #tpu.dot_dimension_numbers<[1], [0], [0], [1], [0, 0, 1, 1], [], []>} : vector<256x128xbf16>, vector<128x128xbf16>, vector<256x128xf32> -> vector<256x128xf32>
    %c0_40 = arith.constant 0 : index
    %c0_41 = arith.constant 0 : index
    %59 = vector.load %arg12[%c0_40, %c0_41] : memref<288x128xbf16, #tpu.memory_space<vmem>>, vector<256x128xbf16>
    %c128 = arith.constant 128 : index
    %c0_42 = arith.constant 0 : index
    %60 = vector.load %arg5[%c128, %c0_42] : memref<1152x128xbf16, #tpu.memory_space<vmem>>, vector<128x128xbf16>
    %cst_43 = arith.constant dense<0.000000e+00> : vector<256x128xf32>
    %61 = tpu.matmul %59, %60, %cst_43 {dimension_numbers = #tpu.dot_dimension_numbers<[1], [0], [0], [1], [0, 0, 1, 1], [], []>} : vector<256x128xbf16>, vector<128x128xbf16>, vector<256x128xf32> -> vector<256x128xf32>
    %62 = arith.addf %58, %61 : vector<256x128xf32>
    %c0_44 = arith.constant 0 : index
    %c0_45 = arith.constant 0 : index
    %63 = vector.load %arg14[%c0_44, %c0_45] : memref<288x128xbf16, #tpu.memory_space<vmem>>, vector<256x128xbf16>
    %c256 = arith.constant 256 : index
    %c0_46 = arith.constant 0 : index
    %64 = vector.load %arg5[%c256, %c0_46] : memref<1152x128xbf16, #tpu.memory_space<vmem>>, vector<128x128xbf16>
    %cst_47 = arith.constant dense<0.000000e+00> : vector<256x128xf32>
    %65 = tpu.matmul %63, %64, %cst_47 {dimension_numbers = #tpu.dot_dimension_numbers<[1], [0], [0], [1], [0, 0, 1, 1], [], []>} : vector<256x128xbf16>, vector<128x128xbf16>, vector<256x128xf32> -> vector<256x128xf32>
    %66 = arith.addf %62, %65 : vector<256x128xf32>
    %c16_48 = arith.constant 16 : index
    %c0_49 = arith.constant 0 : index
    %67 = vector.load %arg13[%c16_48, %c0_49] : memref<288x128xbf16, #tpu.memory_space<vmem>>, vector<256x128xbf16>
    %c384 = arith.constant 384 : index
    %c0_50 = arith.constant 0 : index
    %68 = vector.load %arg5[%c384, %c0_50] : memref<1152x128xbf16, #tpu.memory_space<vmem>>, vector<128x128xbf16>
    %cst_51 = arith.constant dense<0.000000e+00> : vector<256x128xf32>
    %69 = tpu.matmul %67, %68, %cst_51 {dimension_numbers = #tpu.dot_dimension_numbers<[1], [0], [0], [1], [0, 0, 1, 1], [], []>} : vector<256x128xbf16>, vector<128x128xbf16>, vector<256x128xf32> -> vector<256x128xf32>
    %70 = arith.addf %66, %69 : vector<256x128xf32>
    %c16_52 = arith.constant 16 : index
    %c0_53 = arith.constant 0 : index
    %71 = vector.load %arg12[%c16_52, %c0_53] : memref<288x128xbf16, #tpu.memory_space<vmem>>, vector<256x128xbf16>
    %c512 = arith.constant 512 : index
    %c0_54 = arith.constant 0 : index
    %72 = vector.load %arg5[%c512, %c0_54] : memref<1152x128xbf16, #tpu.memory_space<vmem>>, vector<128x128xbf16>
    %cst_55 = arith.constant dense<0.000000e+00> : vector<256x128xf32>
    %73 = tpu.matmul %71, %72, %cst_55 {dimension_numbers = #tpu.dot_dimension_numbers<[1], [0], [0], [1], [0, 0, 1, 1], [], []>} : vector<256x128xbf16>, vector<128x128xbf16>, vector<256x128xf32> -> vector<256x128xf32>
    %74 = arith.addf %70, %73 : vector<256x128xf32>
    %c16_56 = arith.constant 16 : index
    %c0_57 = arith.constant 0 : index
    %75 = vector.load %arg14[%c16_56, %c0_57] : memref<288x128xbf16, #tpu.memory_space<vmem>>, vector<256x128xbf16>
    %c640 = arith.constant 640 : index
    %c0_58 = arith.constant 0 : index
    %76 = vector.load %arg5[%c640, %c0_58] : memref<1152x128xbf16, #tpu.memory_space<vmem>>, vector<128x128xbf16>
    %cst_59 = arith.constant dense<0.000000e+00> : vector<256x128xf32>
    %77 = tpu.matmul %75, %76, %cst_59 {dimension_numbers = #tpu.dot_dimension_numbers<[1], [0], [0], [1], [0, 0, 1, 1], [], []>} : vector<256x128xbf16>, vector<128x128xbf16>, vector<256x128xf32> -> vector<256x128xf32>
    %78 = arith.addf %74, %77 : vector<256x128xf32>
    %c32 = arith.constant 32 : index
    %c0_60 = arith.constant 0 : index
    %79 = vector.load %arg13[%c32, %c0_60] : memref<288x128xbf16, #tpu.memory_space<vmem>>, vector<256x128xbf16>
    %c768 = arith.constant 768 : index
    %c0_61 = arith.constant 0 : index
    %80 = vector.load %arg5[%c768, %c0_61] : memref<1152x128xbf16, #tpu.memory_space<vmem>>, vector<128x128xbf16>
    %cst_62 = arith.constant dense<0.000000e+00> : vector<256x128xf32>
    %81 = tpu.matmul %79, %80, %cst_62 {dimension_numbers = #tpu.dot_dimension_numbers<[1], [0], [0], [1], [0, 0, 1, 1], [], []>} : vector<256x128xbf16>, vector<128x128xbf16>, vector<256x128xf32> -> vector<256x128xf32>
    %82 = arith.addf %78, %81 : vector<256x128xf32>
    %c32_63 = arith.constant 32 : index
    %c0_64 = arith.constant 0 : index
    %83 = vector.load %arg12[%c32_63, %c0_64] : memref<288x128xbf16, #tpu.memory_space<vmem>>, vector<256x128xbf16>
    %c896 = arith.constant 896 : index
    %c0_65 = arith.constant 0 : index
    %84 = vector.load %arg5[%c896, %c0_65] : memref<1152x128xbf16, #tpu.memory_space<vmem>>, vector<128x128xbf16>
    %cst_66 = arith.constant dense<0.000000e+00> : vector<256x128xf32>
    %85 = tpu.matmul %83, %84, %cst_66 {dimension_numbers = #tpu.dot_dimension_numbers<[1], [0], [0], [1], [0, 0, 1, 1], [], []>} : vector<256x128xbf16>, vector<128x128xbf16>, vector<256x128xf32> -> vector<256x128xf32>
    %86 = arith.addf %82, %85 : vector<256x128xf32>
    %c32_67 = arith.constant 32 : index
    %c0_68 = arith.constant 0 : index
    %87 = vector.load %arg14[%c32_67, %c0_68] : memref<288x128xbf16, #tpu.memory_space<vmem>>, vector<256x128xbf16>
    %c1024 = arith.constant 1024 : index
    %c0_69 = arith.constant 0 : index
    %88 = vector.load %arg5[%c1024, %c0_69] : memref<1152x128xbf16, #tpu.memory_space<vmem>>, vector<128x128xbf16>
    %cst_70 = arith.constant dense<0.000000e+00> : vector<256x128xf32>
    %89 = tpu.matmul %87, %88, %cst_70 {dimension_numbers = #tpu.dot_dimension_numbers<[1], [0], [0], [1], [0, 0, 1, 1], [], []>} : vector<256x128xbf16>, vector<128x128xbf16>, vector<256x128xf32> -> vector<256x128xf32>
    %90 = arith.addf %86, %89 : vector<256x128xf32>
    %c0_71 = arith.constant 0 : index
    %c0_72 = arith.constant 0 : index
    %91 = vector.load %arg6[%c0_71, %c0_72] : memref<1x128xf32, #tpu.memory_space<vmem>>, vector<1x128xf32>
    %92 = vector.broadcast %91 : vector<1x128xf32> to vector<256x128xf32>
    %93 = arith.mulf %90, %92 : vector<256x128xf32>
    %c0_73 = arith.constant 0 : index
    %c0_74 = arith.constant 0 : index
    %94 = vector.load %arg7[%c0_73, %c0_74] : memref<1x128xf32, #tpu.memory_space<vmem>>, vector<1x128xf32>
    %95 = vector.broadcast %94 : vector<1x128xf32> to vector<256x128xf32>
    %96 = arith.addf %93, %95 : vector<256x128xf32>
    %cst_75 = arith.constant 0.000000e+00 : f32
    %97 = vector.broadcast %cst_75 : f32 to vector<256x128xf32>
    %98 = arith.maximumf %96, %97 : vector<256x128xf32>
    %99 = arith.truncf %98 : vector<256x128xf32> to vector<256x128xbf16>
    %c0_76 = arith.constant 0 : index
    %c0_77 = arith.constant 0 : index
    %100 = vector.load %arg8[%c0_76, %c0_77] : memref<128x128xbf16, #tpu.memory_space<vmem>>, vector<128x128xbf16>
    %cst_78 = arith.constant dense<0.000000e+00> : vector<256x128xf32>
    %101 = tpu.matmul %99, %100, %cst_78 {dimension_numbers = #tpu.dot_dimension_numbers<[1], [0], [0], [1], [0, 0, 1, 1], [], []>} : vector<256x128xbf16>, vector<128x128xbf16>, vector<256x128xf32> -> vector<256x128xf32>
    %c0_79 = arith.constant 0 : index
    %c0_80 = arith.constant 0 : index
    %102 = vector.load %arg9[%c0_79, %c0_80] : memref<1x128xf32, #tpu.memory_space<vmem>>, vector<1x128xf32>
    %103 = vector.broadcast %102 : vector<1x128xf32> to vector<256x128xf32>
    %104 = arith.mulf %101, %103 : vector<256x128xf32>
    %c0_81 = arith.constant 0 : index
    %c0_82 = arith.constant 0 : index
    %105 = vector.load %arg10[%c0_81, %c0_82] : memref<1x128xf32, #tpu.memory_space<vmem>>, vector<1x128xf32>
    %106 = vector.broadcast %105 : vector<1x128xf32> to vector<256x128xf32>
    %107 = arith.addf %104, %106 : vector<256x128xf32>
    %108 = arith.addf %107, %2 : vector<256x128xf32>
    %cst_83 = arith.constant 0.000000e+00 : f32
    %109 = vector.broadcast %cst_83 : f32 to vector<256x128xf32>
    %110 = arith.maximumf %108, %109 : vector<256x128xf32>
    %111 = vector.shape_cast %110 : vector<256x128xf32> to vector<1x16x16x128xf32>
    %c0_84 = arith.constant 0 : index
    %c0_85 = arith.constant 0 : index
    %c0_86 = arith.constant 0 : index
    %c0_87 = arith.constant 0 : index
    %112 = vector.load %arg11[%c0_84, %c0_85, %c0_86, %c0_87] : memref<1x16x16x128xf32, #tpu.memory_space<vmem>>, vector<1x16x16x128xf32>
    tpu.vector_store %arg11[%c0_84, %c0_85, %c0_86, %c0_87], %111 {strides = array<i32>} : memref<1x16x16x128xf32, #tpu.memory_space<vmem>>, vector<1x16x16x128xf32>,
    return
  }
  func.func @transform_0(%arg0: i32) -> (i32, i32, i32, i32) {
    %c0_i32 = arith.constant 0 : i32
    %c0_i32_0 = arith.constant 0 : i32
    %c0_i32_1 = arith.constant 0 : i32
    %c0_i32_2 = arith.constant 0 : i32
    return %arg0, %c0_i32, %c0_i32_0, %c0_i32_1 : i32, i32, i32, i32
  }
  func.func @transform_1(%arg0: i32) -> (i32, i32) {
    %c0_i32 = arith.constant 0 : i32
    %c0_i32_0 = arith.constant 0 : i32
    %c0_i32_1 = arith.constant 0 : i32
    return %c0_i32, %c0_i32_0 : i32, i32
  }
  func.func @transform_2(%arg0: i32) -> (i32, i32) {
    %c0_i32 = arith.constant 0 : i32
    %c0_i32_0 = arith.constant 0 : i32
    %c0_i32_1 = arith.constant 0 : i32
    return %c0_i32, %c0_i32_0 : i32, i32
  }
  func.func @transform_3(%arg0: i32) -> (i32, i32) {
    %c0_i32 = arith.constant 0 : i32
    %c0_i32_0 = arith.constant 0 : i32
    %c0_i32_1 = arith.constant 0 : i32
    return %c0_i32, %c0_i32_0 : i32, i32
  }
  func.func @transform_4(%arg0: i32) -> (i32, i32) {
    %c0_i32 = arith.constant 0 : i32
    %c0_i32_0 = arith.constant 0 : i32
    %c0_i32_1 = arith.constant 0 : i32
    return %c0_i32, %c0_i32_0 : i32, i32
  }
  func.func @transform_5(%arg0: i32) -> (i32, i32) {
    %c0_i32 = arith.constant 0 : i32
    %c0_i32_0 = arith.constant 0 : i32
    %c0_i32_1 = arith.constant 0 : i32
    return %c0_i32, %c0_i32_0 : i32, i32
  }
  func.func @transform_6(%arg0: i32) -> (i32, i32) {
    %c0_i32 = arith.constant 0 : i32
    %c0_i32_0 = arith.constant 0 : i32
    %c0_i32_1 = arith.constant 0 : i32
    return %c0_i32, %c0_i32_0 : i32, i32
  }
  func.func @transform_7(%arg0: i32) -> (i32, i32) {
    %c0_i32 = arith.constant 0 : i32
    %c0_i32_0 = arith.constant 0 : i32
    %c0_i32_1 = arith.constant 0 : i32
    return %c0_i32, %c0_i32_0 : i32, i32
  }
  func.func @transform_8(%arg0: i32) -> (i32, i32) {
    %c0_i32 = arith.constant 0 : i32
    %c0_i32_0 = arith.constant 0 : i32
    %c0_i32_1 = arith.constant 0 : i32
    return %c0_i32, %c0_i32_0 : i32, i32
  }
  func.func @transform_9(%arg0: i32) -> (i32, i32) {
    %c0_i32 = arith.constant 0 : i32
    %c0_i32_0 = arith.constant 0 : i32
    %c0_i32_1 = arith.constant 0 : i32
    return %c0_i32, %c0_i32_0 : i32, i32
  }
  func.func @transform_10(%arg0: i32) -> (i32, i32, i32, i32) {
    %c0_i32 = arith.constant 0 : i32
    %c0_i32_0 = arith.constant 0 : i32
    %c0_i32_1 = arith.constant 0 : i32
    %c0_i32_2 = arith.constant 0 : i32
    return %arg0, %c0_i32, %c0_i32_0, %c0_i32_1 : i32, i32, i32, i32
  }
}

</mosaic_0001>

<llo_original>
// kernel: tpu_custom_call.1
$region0: #{tpu_custom_call.1}
  #allocation0 [shape = 'u32[]', space=smem, size = 0x4, offset = 0x4, fixed_abs, tag = 'smem constant byte address 0x4 - core index']
  #allocation1 [shape = 'u32[144,128]{1,0:T(1,128)}', space=vmem, size = 0x12000, scoped, tag = 'internal scratch']
  #allocation2 [shape = 'bf16[288,128]{1,0:T(8,128)(2,1)}', space=vmem, size = 0x12000, scoped, tag = 'scratch operand']
  #allocation3 [shape = 'bf16[288,128]{1,0:T(8,128)(2,1)}', space=vmem, size = 0x12000, scoped, tag = 'scratch operand']
  #allocation4 [shape = 'bf16[288,128]{1,0:T(8,128)(2,1)}', space=vmem, size = 0x12000, scoped, tag = 'scratch operand']
  %s0 = inlined_call_operand.hbm [shape: f32[2,16,16,128], index: 0, kind: input, shape index: {}]
  %s1 = inlined_call_operand.hbm [shape: bf16[128,128], index: 1, kind: input, shape index: {}]
  %s2 = inlined_call_operand.vmem [shape: f32[1,128], index: 2, kind: input, shape index: {}]
  %s3 = inlined_call_operand.vmem [shape: f32[1,128], index: 3, kind: input, shape index: {}]
  %s4 = inlined_call_operand.hbm [shape: bf16[1152,128], index: 4, kind: input, shape index: {}]
  %s5 = inlined_call_operand.vmem [shape: f32[1,128], index: 5, kind: input, shape index: {}]
  %s6 = inlined_call_operand.vmem [shape: f32[1,128], index: 6, kind: input, shape index: {}]
  %s7 = inlined_call_operand.hbm [shape: bf16[128,128], index: 7, kind: input, shape index: {}]
  %s8 = inlined_call_operand.vmem [shape: f32[1,128], index: 8, kind: input, shape index: {}]
  %s9 = inlined_call_operand.vmem [shape: f32[1,128], index: 9, kind: input, shape index: {}]
  %s10 = inlined_call_operand.hbm [shape: f32[2,16,16,128], index: 10, kind: output, shape index: {}]
  %s11 = sld [smem:[#allocation0]]
  $region89: #{tpu_custom_call.1} parent=0
    _
  %s13 = ssub.s32 1, %s11
  %s14 = scalar_select 0, %s13, %s11
  $region1: #{tpu_custom_call.1} parent=0
    #allocation5 [shape = 'u8[262144]{0}', space=vmem, size = 0x40000, scoped, tag = 'input window, operand 0']
    #allocation6 [shape = 's32[2]{0}', space=sflag, size = 0x8, scoped, tag = 'scoped memory for tpu_custom_call.1']
    #allocation7 [shape = 's32[2]{0}', space=sflag, size = 0x8, scoped, tag = 'scoped memory for tpu_custom_call.1']
    #allocation8 [shape = 'u8[32768]{0}', space=vmem, size = 0x8000, scoped, tag = 'input window, operand 1, single buffered']
    #allocation9 [shape = 's32[1]{0}', space=sflag, size = 0x4, scoped, tag = 'scoped memory for tpu_custom_call.1']
    #allocation10 [shape = 'u8[294912]{0}', space=vmem, size = 0x48000, scoped, tag = 'input window, operand 4, single buffered']
    #allocation11 [shape = 'u8[32768]{0}', space=vmem, size = 0x8000, scoped, tag = 'input window, operand 7, single buffered']
    #allocation12 [shape = 's32[1]{0}', space=sflag, size = 0x4, scoped, tag = 'scoped memory for tpu_custom_call.1']
    #allocation13 [shape = 'u8[262144]{0}', space=vmem, size = 0x40000, scoped, tag = 'output window, operand 0']
    %15 = vsyncpa [#allocation6], 0
    %s16 = scalar_lea.sflag [#allocation6], 1
    %17 = vsyncpa %s16, 0
    %18 = vsyncpa [#allocation9], 0
    %19 = vsyncpa [#allocation12], 0
    %20 = vsyncpa [#allocation7], 0
    %s21 = scalar_lea.sflag [#allocation7], 1
    %22 = vsyncpa %s21, 0
    loop: start=0, step=1, limit=4
    $region2: #{tpu_custom_call.1} parent=1 // loop_pre_header
      _
    $region3: #{tpu_custom_call.1} parent=1 // loop_header
      %s24 = sphi 0, %s28
      %p25 = scmp.ge.s32.totalorder %s24, 4
      %s34 = sphi 0, %s36
      %s37 = sphi 0, %s34
      %s38 = sphi 0, %s37
      %s54 = sphi 0, %s38
      %s58 = sphi 0, %s58
      %s60 = sphi 0, %s58
      %s61 = sphi 0, %s60
      %s75 = sphi 0, %s61
      %s79 = sphi 0, %s79
      %s81 = sphi 0, %s79
      %s82 = sphi 0, %s81
      %s96 = sphi 0, %s82
      %s100 = sphi 0, %s100
      %s102 = sphi 0, %s100
      %s103 = sphi 0, %s102
      %s117 = sphi 0, %s103
      %s121 = sphi 0, %s121
      %s123 = sphi 0, %s121
      %s124 = sphi 0, %s123
      %s138 = sphi 0, %s124
      %s142 = sphi 0, %s142
      %s144 = sphi 0, %s142
      %s145 = sphi 0, %s144
      %s159 = sphi 0, %s145
      %s163 = sphi 0, %s163
      %s165 = sphi 0, %s163
      %s166 = sphi 0, %s165
      %s180 = sphi 0, %s166
      %s184 = sphi 0, %s184
      %s186 = sphi 0, %s184
      %s187 = sphi 0, %s186
      %s201 = sphi 0, %s187
      %s205 = sphi 0, %s205
      %s207 = sphi 0, %s205
      %s208 = sphi 0, %s207
      %s222 = sphi 0, %s208
      %s226 = sphi 0, %s226
      %s228 = sphi 0, %s226
      %s229 = sphi 0, %s228
      %s243 = sphi 0, %s229
      %s249 = sphi 0, %s251
      %s252 = sphi 0, %s249
      %s253 = sphi 0, %s252
      %s269 = sphi 0, %s253
    $region4: #{tpu_custom_call.1} parent=1 // loop_header_branch
      %27 = sbr.rel (%p25) target = $region8
    $region5: #{tpu_custom_call.1} parent=1 // loop_body
      %s29 = ssub.s32 %s24, 1
      %s30 = ssub.s32 %s24, 2
      %s31 = sadd.s32 %s24, 1
      %s32 = ssub.s32 %s24, %s31
      %p33 = scmp.eq.s32.totalorder %s32, 0
      %s35 = sadd.s32 %s34, 1
      %s36 = scalar_select %p33, %s34, %s35
      %p39 = pneg %p33
      %p40 = scmp.eq.s32.totalorder %s24, 1
      %p41 = por %p39, %p40
      %p42 = scmp.ne.s32.totalorder %s34, %s37
      %p43 = scmp.eq.s32.totalorder %s24, 0
      %p44 = por %p42, %p43
      %p45 = scmp.ne.s32.totalorder %s34, %s37
      %p46 = scmp.eq.s32.totalorder %s29, 1
      %p47 = por %p45, %p46
      %p48 = scmp.ne.s32.totalorder %s37, %s38
      %p49 = scmp.eq.s32.totalorder %s29, 0
      %p50 = por %p48, %p49
      %p51 = scmp.ne.s32.totalorder %s37, %s38
      %p52 = scmp.eq.s32.totalorder %s30, 1
      %p53 = por %p51, %p52
      %p55 = scmp.ne.s32.totalorder %s38, %s54
      %p56 = scmp.eq.s32.totalorder %s30, 0
      %p57 = por %p55, %p56
      %s59 = sadd.s32 %s58, 1
      %p62 = scmp.eq.s32.totalorder %s24, 1
      %p63 = scmp.ne.s32.totalorder %s58, %s60
      %p64 = scmp.eq.s32.totalorder %s24, 0
      %p65 = por %p63, %p64
      %p66 = scmp.ne.s32.totalorder %s58, %s60
      %p67 = scmp.eq.s32.totalorder %s29, 1
      %p68 = por %p66, %p67
      %p69 = scmp.ne.s32.totalorder %s60, %s61
      %p70 = scmp.eq.s32.totalorder %s29, 0
      %p71 = por %p69, %p70
      %p72 = scmp.ne.s32.totalorder %s60, %s61
      %p73 = scmp.eq.s32.totalorder %s30, 1
      %p74 = por %p72, %p73
      %p76 = scmp.ne.s32.totalorder %s61, %s75
      %p77 = scmp.eq.s32.totalorder %s30, 0
      %p78 = por %p76, %p77
      %s80 = sadd.s32 %s79, 1
      %p83 = scmp.eq.s32.totalorder %s24, 1
      %p84 = scmp.ne.s32.totalorder %s79, %s81
      %p85 = scmp.eq.s32.totalorder %s24, 0
      %p86 = por %p84, %p85
      %p87 = scmp.ne.s32.totalorder %s79, %s81
      %p88 = scmp.eq.s32.totalorder %s29, 1
      %p89 = por %p87, %p88
      %p90 = scmp.ne.s32.totalorder %s81, %s82
      %p91 = scmp.eq.s32.totalorder %s29, 0
      %p92 = por %p90, %p91
      %p93 = scmp.ne.s32.totalorder %s81, %s82
      %p94 = scmp.eq.s32.totalorder %s30, 1
      %p95 = por %p93, %p94
      %p97 = scmp.ne.s32.totalorder %s82, %s96
      %p98 = scmp.eq.s32.totalorder %s30, 0
      %p99 = por %p97, %p98
      %s101 = sadd.s32 %s100, 1
      %p104 = scmp.eq.s32.totalorder %s24, 1
      %p105 = scmp.ne.s32.totalorder %s100, %s102
      %p106 = scmp.eq.s32.totalorder %s24, 0
      %p107 = por %p105, %p106
      %p108 = scmp.ne.s32.totalorder %s100, %s102
      %p109 = scmp.eq.s32.totalorder %s29, 1
      %p110 = por %p108, %p109
      %p111 = scmp.ne.s32.totalorder %s102, %s103
      %p112 = scmp.eq.s32.totalorder %s29, 0
      %p113 = por %p111, %p112
      %p114 = scmp.ne.s32.totalorder %s102, %s103
      %p115 = scmp.eq.s32.totalorder %s30, 1
      %p116 = por %p114, %p115
      %p118 = scmp.ne.s32.totalorder %s103, %s117
      %p119 = scmp.eq.s32.totalorder %s30, 0
      %p120 = por %p118, %p119
      %s122 = sadd.s32 %s121, 1
      %p125 = scmp.eq.s32.totalorder %s24, 1
      %p126 = scmp.ne.s32.totalorder %s121, %s123
      %p127 = scmp.eq.s32.totalorder %s24, 0
      %p128 = por %p126, %p127
      %p129 = scmp.ne.s32.totalorder %s121, %s123
      %p130 = scmp.eq.s32.totalorder %s29, 1
      %p131 = por %p129, %p130
      %p132 = scmp.ne.s32.totalorder %s123, %s124
      %p133 = scmp.eq.s32.totalorder %s29, 0
      %p134 = por %p132, %p133
      %p135 = scmp.ne.s32.totalorder %s123, %s124
      %p136 = scmp.eq.s32.totalorder %s30, 1
      %p137 = por %p135, %p136
      %p139 = scmp.ne.s32.totalorder %s124, %s138
      %p140 = scmp.eq.s32.totalorder %s30, 0
      %p141 = por %p139, %p140
      %s143 = sadd.s32 %s142, 1
      %p146 = scmp.eq.s32.totalorder %s24, 1
      %p147 = scmp.ne.s32.totalorder %s142, %s144
      %p148 = scmp.eq.s32.totalorder %s24, 0
      %p149 = por %p147, %p148
      %p150 = scmp.ne.s32.totalorder %s142, %s144
      %p151 = scmp.eq.s32.totalorder %s29, 1
      %p152 = por %p150, %p151
      %p153 = scmp.ne.s32.totalorder %s144, %s145
      %p154 = scmp.eq.s32.totalorder %s29, 0
      %p155 = por %p153, %p154
      %p156 = scmp.ne.s32.totalorder %s144, %s145
      %p157 = scmp.eq.s32.totalorder %s30, 1
      %p158 = por %p156, %p157
      %p160 = scmp.ne.s32.totalorder %s145, %s159
      %p161 = scmp.eq.s32.totalorder %s30, 0
      %p162 = por %p160, %p161
      %s164 = sadd.s32 %s163, 1
      %p167 = scmp.eq.s32.totalorder %s24, 1
      %p168 = scmp.ne.s32.totalorder %s163, %s165
      %p169 = scmp.eq.s32.totalorder %s24, 0
      %p170 = por %p168, %p169
      %p171 = scmp.ne.s32.totalorder %s163, %s165
      %p172 = scmp.eq.s32.totalorder %s29, 1
      %p173 = por %p171, %p172
      %p174 = scmp.ne.s32.totalorder %s165, %s166
      %p175 = scmp.eq.s32.totalorder %s29, 0
      %p176 = por %p174, %p175
      %p177 = scmp.ne.s32.totalorder %s165, %s166
      %p178 = scmp.eq.s32.totalorder %s30, 1
      %p179 = por %p177, %p178
      %p181 = scmp.ne.s32.totalorder %s166, %s180
      %p182 = scmp.eq.s32.totalorder %s30, 0
      %p183 = por %p181, %p182
      %s185 = sadd.s32 %s184, 1
      %p188 = scmp.eq.s32.totalorder %s24, 1
      %p189 = scmp.ne.s32.totalorder %s184, %s186
      %p190 = scmp.eq.s32.totalorder %s24, 0
      %p191 = por %p189, %p190
      %p192 = scmp.ne.s32.totalorder %s184, %s186
      %p193 = scmp.eq.s32.totalorder %s29, 1
      %p194 = por %p192, %p193
      %p195 = scmp.ne.s32.totalorder %s186, %s187
      %p196 = scmp.eq.s32.totalorder %s29, 0
      %p197 = por %p195, %p196
      %p198 = scmp.ne.s32.totalorder %s186, %s187
      %p199 = scmp.eq.s32.totalorder %s30, 1
      %p200 = por %p198, %p199
      %p202 = scmp.ne.s32.totalorder %s187, %s201
      %p203 = scmp.eq.s32.totalorder %s30, 0
      %p204 = por %p202, %p203
      %s206 = sadd.s32 %s205, 1
      %p209 = scmp.eq.s32.totalorder %s24, 1
      %p210 = scmp.ne.s32.totalorder %s205, %s207
      %p211 = scmp.eq.s32.totalorder %s24, 0
      %p212 = por %p210, %p211
      %p213 = scmp.ne.s32.totalorder %s205, %s207
      %p214 = scmp.eq.s32.totalorder %s29, 1
      %p215 = por %p213, %p214
      %p216 = scmp.ne.s32.totalorder %s207, %s208
      %p217 = scmp.eq.s32.totalorder %s29, 0
      %p218 = por %p216, %p217
      %p219 = scmp.ne.s32.totalorder %s207, %s208
      %p220 = scmp.eq.s32.totalorder %s30, 1
      %p221 = por %p219, %p220
      %p223 = scmp.ne.s32.totalorder %s208, %s222
      %p224 = scmp.eq.s32.totalorder %s30, 0
      %p225 = por %p223, %p224
      %s227 = sadd.s32 %s226, 1
      %p230 = scmp.eq.s32.totalorder %s24, 1
      %p231 = scmp.ne.s32.totalorder %s226, %s228
      %p232 = scmp.eq.s32.totalorder %s24, 0
      %p233 = por %p231, %p232
      %p234 = scmp.ne.s32.totalorder %s226, %s228
      %p235 = scmp.eq.s32.totalorder %s29, 1
      %p236 = por %p234, %p235
      %p237 = scmp.ne.s32.totalorder %s228, %s229
      %p238 = scmp.eq.s32.totalorder %s29, 0
      %p239 = por %p237, %p238
      %p240 = scmp.ne.s32.totalorder %s228, %s229
      %p241 = scmp.eq.s32.totalorder %s30, 1
      %p242 = por %p240, %p241
      %p244 = scmp.ne.s32.totalorder %s229, %s243
      %p245 = scmp.eq.s32.totalorder %s30, 0
      %p246 = por %p244, %p245
      %s247 = ssub.s32 %s24, %s31
      %p248 = scmp.eq.s32.totalorder %s247, 0
      %s250 = sadd.s32 %s249, 1
      %s251 = scalar_select %p248, %s249, %s250
      %p254 = pneg %p248
      %p255 = scmp.eq.s32.totalorder %s24, 1
      %p256 = por %p254, %p255
      %p257 = scmp.ne.s32.totalorder %s249, %s252
      %p258 = scmp.eq.s32.totalorder %s24, 0
      %p259 = por %p257, %p258
      %p260 = scmp.ne.s32.totalorder %s249, %s252
      %p261 = scmp.eq.s32.totalorder %s29, 1
      %p262 = por %p260, %p261
      %p263 = scmp.ne.s32.totalorder %s252, %s253
      %p264 = scmp.eq.s32.totalorder %s29, 0
      %p265 = por %p263, %p264
      %p266 = scmp.ne.s32.totalorder %s252, %s253
      %p267 = scmp.eq.s32.totalorder %s30, 1
      %p268 = por %p266, %p267
      %p270 = scmp.ne.s32.totalorder %s253, %s269
      %p271 = scmp.eq.s32.totalorder %s30, 0
      %p272 = por %p270, %p271
      %p273 = scmp.le.s32.totalorder 1, %s24
      %p274 = scmp.lt.s32.totalorder %s24, 3
      %p275 = pnand %p273, %p274
      %p276 = pneg %p275
      // Predicated region
      $region9: #{tpu_custom_call.1} parent=5 // pred_check
        _
      $region10: #{tpu_custom_call.1} parent=5 // pred_check_branch
        %278 = sbr.rel (%p275) target = $region12
      $region11: #{tpu_custom_call.1} parent=5 // pred_region
        %s279 = ssub.s32 %s24, 1
        // Predicated region
        $region13: #{tpu_custom_call.1} parent=11 // pred_check
          %p280 = pneg %p71
        $region14: #{tpu_custom_call.1} parent=11 // pred_check_branch
          %282 = sbr.rel (%p280) target = $region16
        $region15: #{tpu_custom_call.1} parent=11 // pred_region
          %s284 = ssub.s32 1024, 1024
          %285 = vsyncadd [#allocation9], %s284
          %s286 = sshll.u32 [#allocation8], 4
          %s287 = int_to_ptr.vmem [resolvable:$true] %s286
          %292 = dma.hbm_to_vmem [thread:$0]  %s1, 1024, %s287, [#allocation9], 64, 64, 4
        $region16: #{tpu_custom_call.1} parent=11 // pred_fallthru
          _
        // Predicated region
        $region17: #{tpu_custom_call.1} parent=11 // pred_check
          %p293 = pneg %p92
        $region18: #{tpu_custom_call.1} parent=11 // pred_check_branch
          %295 = sbr.rel (%p293) target = $region20
        $region19: #{tpu_custom_call.1} parent=11 // pred_region
          _
        $region20: #{tpu_custom_call.1} parent=11 // pred_fallthru
          _
        // Predicated region
        $region21: #{tpu_custom_call.1} parent=11 // pred_check
          %p296 = pneg %p113
        $region22: #{tpu_custom_call.1} parent=11 // pred_check_branch
          %298 = sbr.rel (%p296) target = $region24
        $region23: #{tpu_custom_call.1} parent=11 // pred_region
          _
        $region24: #{tpu_custom_call.1} parent=11 // pred_fallthru
          _
        // Predicated region
        $region25: #{tpu_custom_call.1} parent=11 // pred_check
          %p299 = pneg %p134
        $region26: #{tpu_custom_call.1} parent=11 // pred_check_branch
          %301 = sbr.rel (%p299) target = $region28
        $region27: #{tpu_custom_call.1} parent=11 // pred_region
          %s303 = ssub.s32 9216, 9216
          %304 = vsyncadd [#allocation9], %s303
          %s305 = sshll.u32 [#allocation10], 4
          %s306 = int_to_ptr.vmem [resolvable:$true] %s305
          %311 = dma.hbm_to_vmem [thread:$0]  %s4, 9216, %s306, [#allocation9], 64, 64, 4
        $region28: #{tpu_custom_call.1} parent=11 // pred_fallthru
          _
        // Predicated region
        $region29: #{tpu_custom_call.1} parent=11 // pred_check
          %p312 = pneg %p155
        $region30: #{tpu_custom_call.1} parent=11 // pred_check_branch
          %314 = sbr.rel (%p312) target = $region32
        $region31: #{tpu_custom_call.1} parent=11 // pred_region
          _
        $region32: #{tpu_custom_call.1} parent=11 // pred_fallthru
          _
        // Predicated region
        $region33: #{tpu_custom_call.1} parent=11 // pred_check
          %p315 = pneg %p176
        $region34: #{tpu_custom_call.1} parent=11 // pred_check_branch
          %317 = sbr.rel (%p315) target = $region36
        $region35: #{tpu_custom_call.1} parent=11 // pred_region
          _
        $region36: #{tpu_custom_call.1} parent=11 // pred_fallthru
          _
        // Predicated region
        $region37: #{tpu_custom_call.1} parent=11 // pred_check
          %p318 = pneg %p197
        $region38: #{tpu_custom_call.1} parent=11 // pred_check_branch
          %320 = sbr.rel (%p318) target = $region40
        $region39: #{tpu_custom_call.1} parent=11 // pred_region
          %s322 = ssub.s32 1024, 1024
          %323 = vsyncadd [#allocation12], %s322
          %s324 = sshll.u32 [#allocation11], 4
          %s325 = int_to_ptr.vmem [resolvable:$true] %s324
          %330 = dma.hbm_to_vmem [thread:$0]  %s7, 1024, %s325, [#allocation12], 64, 64, 4
        $region40: #{tpu_custom_call.1} parent=11 // pred_fallthru
          _
        // Predicated region
        $region41: #{tpu_custom_call.1} parent=11 // pred_check
          %p331 = pneg %p218
        $region42: #{tpu_custom_call.1} parent=11 // pred_check_branch
          %333 = sbr.rel (%p331) target = $region44
        $region43: #{tpu_custom_call.1} parent=11 // pred_region
          _
        $region44: #{tpu_custom_call.1} parent=11 // pred_fallthru
          _
        // Predicated region
        $region45: #{tpu_custom_call.1} parent=11 // pred_check
          %p334 = pneg %p239
        $region46: #{tpu_custom_call.1} parent=11 // pred_check_branch
          %336 = sbr.rel (%p334) target = $region48
        $region47: #{tpu_custom_call.1} parent=11 // pred_region
          _
        $region48: #{tpu_custom_call.1} parent=11 // pred_fallthru
          _
      $region12: #{tpu_custom_call.1} parent=5 // pred_fallthru
        _
      %p337 = scmp.lt.s32.totalorder %s24, 2
      // Predicated region
      $region49: #{tpu_custom_call.1} parent=5 // pred_check
        %p338 = pneg %p337
      $region50: #{tpu_custom_call.1} parent=5 // pred_check_branch
        %340 = sbr.rel (%p338) target = $region52
      $region51: #{tpu_custom_call.1} parent=5 // pred_region
        // Predicated region
        $region53: #{tpu_custom_call.1} parent=51 // pred_check
          %p341 = pneg %p44
        $region54: #{tpu_custom_call.1} parent=51 // pred_check_branch
          %343 = sbr.rel (%p341) target = $region56
        $region55: #{tpu_custom_call.1} parent=51 // pred_region
          %s344 = sand.u32 %s34, 1
          %s345 = scalar_lea.sflag [#allocation6], %s344
          %s346 = sand.u32 %s34, 1
          %s347 = smul.addr %s346, 256
          %s348 = scalar_lea.vmem [#allocation5], %s347
          %s350 = ssub.s32 4096, 4096
          %351 = vsyncadd %s345, %s350
          %s352 = smul.addr %s24, 32
          %s353 = smul.addr %s352, 128
          %s354 = scalar_lea.hbm %s0, %s353
          %s355 = sshll.u32 %s348, 4
          %s356 = int_to_ptr.vmem [resolvable:$true] %s355
          %361 = dma.hbm_to_vmem [thread:$0]  %s354, 4096, %s356, %s345, 128, 128, 8
        $region56: #{tpu_custom_call.1} parent=51 // pred_fallthru
          _
      $region52: #{tpu_custom_call.1} parent=5 // pred_fallthru
        _
      %p362 = scmp.le.s32.totalorder 1, %s24
      %p363 = scmp.lt.s32.totalorder %s24, 3
      %p364 = pnand %p362, %p363
      %p365 = pneg %p364
      // Predicated region
      $region57: #{tpu_custom_call.1} parent=5 // pred_check
        _
      $region58: #{tpu_custom_call.1} parent=5 // pred_check_branch
        %367 = sbr.rel (%p364) target = $region60
      $region59: #{tpu_custom_call.1} parent=5 // pred_region
        %s368 = ssub.s32 %s24, 1
        %s369 = sand.u32 %s37, 1
        %s370 = scalar_lea.sflag [#allocation6], %s369
        %s371 = sand.u32 %s37, 1
        %s372 = smul.addr %s371, 256
        %s373 = scalar_lea.vmem [#allocation5], %s372
        // Predicated region
        $region61: #{tpu_custom_call.1} parent=59 // pred_check
          %p374 = pneg %p50
        $region62: #{tpu_custom_call.1} parent=59 // pred_check_branch
          %376 = sbr.rel (%p374) target = $region64
        $region63: #{tpu_custom_call.1} parent=59 // pred_region
          %377 = dma.done %s370, 4096
        $region64: #{tpu_custom_call.1} parent=59 // pred_fallthru
          _
        // Predicated region
        $region65: #{tpu_custom_call.1} parent=59 // pred_check
          %p378 = pneg %p71
        $region66: #{tpu_custom_call.1} parent=59 // pred_check_branch
          %380 = sbr.rel (%p378) target = $region68
        $region67: #{tpu_custom_call.1} parent=59 // pred_region
          %381 = dma.done [#allocation9], 1024
        $region68: #{tpu_custom_call.1} parent=59 // pred_fallthru
          _
        // Predicated region
        $region69: #{tpu_custom_call.1} parent=59 // pred_check
          %p382 = pneg %p134
        $region70: #{tpu_custom_call.1} parent=59 // pred_check_branch
          %384 = sbr.rel (%p382) target = $region72
        $region71: #{tpu_custom_call.1} parent=59 // pred_region
          %385 = dma.done [#allocation9], 9216
        $region72: #{tpu_custom_call.1} parent=59 // pred_fallthru
          _
        // Predicated region
        $region73: #{tpu_custom_call.1} parent=59 // pred_check
          %p386 = pneg %p197
        $region74: #{tpu_custom_call.1} parent=59 // pred_check_branch
          %388 = sbr.rel (%p386) target = $region76
        $region75: #{tpu_custom_call.1} parent=59 // pred_region
          %389 = dma.done [#allocation12], 1024
        $region76: #{tpu_custom_call.1} parent=59 // pred_fallthru
          _
        %s390 = sand.u32 %s37, 1
        %s391 = scalar_lea.sflag [#allocation6], %s390
        %s392 = sand.u32 %s37, 1
        %s393 = smul.addr %s392, 256
        %s394 = scalar_lea.vmem [#allocation5], %s393
        %p395 = pneg %p50
        %p396 = pneg %p47
        %p397 = pneg %p71
        %p398 = pneg %p68
        %p399 = pneg %p92
        %p400 = pneg %p89
        %p401 = pneg %p113
        %p402 = pneg %p110
        %p403 = pneg %p134
        %p404 = pneg %p131
        %p405 = pneg %p155
        %p406 = pneg %p152
        %p407 = pneg %p176
        %p408 = pneg %p173
        %p409 = pneg %p197
        %p410 = pneg %p194
        %p411 = pneg %p218
        %p412 = pneg %p215
        %p413 = pneg %p239
        %p414 = pneg %p236
        %p415 = pneg %p265
        %p416 = pneg %p262
        %s417 = sand.u32 %s252, 1
        %s418 = scalar_lea.sflag [#allocation7], %s417
        %s419 = sand.u32 %s252, 1
        %s420 = smul.addr %s419, 256
        %s421 = scalar_lea.vmem [#allocation13], %s420
        %v425 = vld [vmem:[%s373] sm:$0xff]
        %v426 = vld [vmem:[%s373 + $0x8] sm:$0xff]
        %v427 = vld [vmem:[%s373 + $0x10] sm:$0xff]
        %v428 = vld [vmem:[%s373 + $0x18] sm:$0xff]
        %v429 = vld [vmem:[%s373 + $0x20] sm:$0xff]
        %v430 = vld [vmem:[%s373 + $0x28] sm:$0xff]
        %v431 = vld [vmem:[%s373 + $0x30] sm:$0xff]
        %v432 = vld [vmem:[%s373 + $0x38] sm:$0xff]
        %v433 = vld [vmem:[%s373 + $0x40] sm:$0xff]
        %v434 = vld [vmem:[%s373 + $0x48] sm:$0xff]
        %v435 = vld [vmem:[%s373 + $0x50] sm:$0xff]
        %v436 = vld [vmem:[%s373 + $0x58] sm:$0xff]
        %v437 = vld [vmem:[%s373 + $0x60] sm:$0xff]
        %v438 = vld [vmem:[%s373 + $0x68] sm:$0xff]
        %v439 = vld [vmem:[%s373 + $0x70] sm:$0xff]
        %v440 = vld [vmem:[%s373 + $0x78] sm:$0xff]
        %v441 = vld [vmem:[%s373 + $0x80] sm:$0xff]
        %v442 = vld [vmem:[%s373 + $0x88] sm:$0xff]
        %v443 = vld [vmem:[%s373 + $0x90] sm:$0xff]
        %v444 = vld [vmem:[%s373 + $0x98] sm:$0xff]
        %v445 = vld [vmem:[%s373 + $0xa0] sm:$0xff]
        %v446 = vld [vmem:[%s373 + $0xa8] sm:$0xff]
        %v447 = vld [vmem:[%s373 + $0xb0] sm:$0xff]
        %v448 = vld [vmem:[%s373 + $0xb8] sm:$0xff]
        %v449 = vld [vmem:[%s373 + $0xc0] sm:$0xff]
        %v450 = vld [vmem:[%s373 + $0xc8] sm:$0xff]
        %v451 = vld [vmem:[%s373 + $0xd0] sm:$0xff]
        %v452 = vld [vmem:[%s373 + $0xd8] sm:$0xff]
        %v453 = vld [vmem:[%s373 + $0xe0] sm:$0xff]
        %v454 = vld [vmem:[%s373 + $0xe8] sm:$0xff]
        %v455 = vld [vmem:[%s373 + $0xf0] sm:$0xff]
        %v456 = vld [vmem:[%s373 + $0xf8] sm:$0xff]
        %v457 = vpack.c.bf16 %v426, %v425
        %v458 = vpack.c.bf16 %v428, %v427
        %v459 = vpack.c.bf16 %v430, %v429
        %v460 = vpack.c.bf16 %v432, %v431
        %v461 = vpack.c.bf16 %v434, %v433
        %v462 = vpack.c.bf16 %v436, %v435
        %v463 = vpack.c.bf16 %v438, %v437
        %v464 = vpack.c.bf16 %v440, %v439
        %v465 = vpack.c.bf16 %v442, %v441
        %v466 = vpack.c.bf16 %v444, %v443
        %v467 = vpack.c.bf16 %v446, %v445
        %v468 = vpack.c.bf16 %v448, %v447
        %v469 = vpack.c.bf16 %v450, %v449
        %v470 = vpack.c.bf16 %v452, %v451
        %v471 = vpack.c.bf16 %v454, %v453
        %v472 = vpack.c.bf16 %v456, %v455
        %v473 = vld [vmem:[#allocation8] sm:$0xf]
        %v474 = vld [vmem:[#allocation8 + $0x4] sm:$0xf]
        %v475 = vld [vmem:[#allocation8 + $0x8] sm:$0xf]
        %v476 = vld [vmem:[#allocation8 + $0xc] sm:$0xf]
        %v477 = vld [vmem:[#allocation8 + $0x10] sm:$0xf]
        %v478 = vld [vmem:[#allocation8 + $0x14] sm:$0xf]
        %v479 = vld [vmem:[#allocation8 + $0x18] sm:$0xf]
        %v480 = vld [vmem:[#allocation8 + $0x1c] sm:$0xf]
        %v481 = vld [vmem:[#allocation8 + $0x20] sm:$0xf]
        %v482 = vld [vmem:[#allocation8 + $0x24] sm:$0xf]
        %v483 = vld [vmem:[#allocation8 + $0x28] sm:$0xf]
        %v484 = vld [vmem:[#allocation8 + $0x2c] sm:$0xf]
        %v485 = vld [vmem:[#allocation8 + $0x30] sm:$0xf]
        %v486 = vld [vmem:[#allocation8 + $0x34] sm:$0xf]
        %v487 = vld [vmem:[#allocation8 + $0x38] sm:$0xf]
        %v488 = vld [vmem:[#allocation8 + $0x3c] sm:$0xf]
        %v505 = vunpack.c.l.b16 %v473
        %v506 = vunpack.c.l.b16 %v474
        %v507 = vunpack.c.l.b16 %v475
        %v508 = vunpack.c.l.b16 %v476
        %v509 = vunpack.c.l.b16 %v477
        %v510 = vunpack.c.l.b16 %v478
        %v511 = vunpack.c.l.b16 %v479
        %v512 = vunpack.c.l.b16 %v480
        %v513 = vunpack.c.l.b16 %v481
        %v514 = vunpack.c.l.b16 %v482
        %v515 = vunpack.c.l.b16 %v483
        %v516 = vunpack.c.l.b16 %v484
        %v517 = vunpack.c.l.b16 %v485
        %v518 = vunpack.c.l.b16 %v486
        %v519 = vunpack.c.l.b16 %v487
        %v520 = vunpack.c.l.b16 %v488
        %v521 = vpack.c.b16 %v506, %v505
        %v522 = vpack.c.b16 %v508, %v507
        %v523 = vpack.c.b16 %v510, %v509
        %v524 = vpack.c.b16 %v512, %v511
        %v525 = vpack.c.b16 %v514, %v513
        %v526 = vpack.c.b16 %v516, %v515
        %v527 = vpack.c.b16 %v518, %v517
        %v528 = vpack.c.b16 %v520, %v519
        %537 = vmatprep.subr.bf16.mxu0 0
        %538 = vmatpush1.bf16.msra.mxu0 %v528
        %539 = vmatprep.subr.bf16.mxu0 0
        %540 = vmatpush1.bf16.msra.mxu0 %v527
        %541 = vmatprep.subr.bf16.mxu0 0
        %542 = vmatpush1.bf16.msra.mxu0 %v526
        %543 = vmatprep.subr.bf16.mxu0 0
        %544 = vmatpush1.bf16.msra.mxu0 %v525
        %545 = vmatprep.subr.bf16.mxu0 0
        %546 = vmatpush1.bf16.msra.mxu0 %v524
        %547 = vmatprep.subr.bf16.mxu0 0
        %548 = vmatpush1.bf16.msra.mxu0 %v523
        %549 = vmatprep.subr.bf16.mxu0 0
        %550 = vmatpush1.bf16.msra.mxu0 %v522
        %551 = vmatprep.subr.bf16.mxu0 0
        %552 = vmatpush1.bf16.msra.mxu0 %v521
        %553 = vmatprep.subr.bf16.mxu0 0
        %554 = vmatpush2.bf16.msra.mxu0 0
        %555 = vmatprep.subr.bf16.mxu0 0
        %556 = vmatpush2.bf16.msra.mxu0 0
        %557 = vmatprep.subr.bf16.mxu0 0
        %558 = vmatpush2.bf16.msra.mxu0 0
        %559 = vmatprep.subr.bf16.mxu0 0
        %560 = vmatpush2.bf16.msra.mxu0 0
        %561 = vmatprep.subr.bf16.mxu0 0
        %562 = vmatpush2.bf16.msra.mxu0 0
        %563 = vmatprep.subr.bf16.mxu0 0
        %564 = vmatpush2.bf16.msra.mxu0 0
        %565 = vmatprep.subr.bf16.mxu0 0
        %566 = vmatpush2.bf16.msra.mxu0 0
        %567 = vmatprep.subr.bf16.mxu0 0
        %568 = vmatpush2.bf16.msra.mxu0 0
        %569 = vmatprep.mubr.bf16.mxu0 0
        %570 = vmatmul.mubr.bf16.gmra.mxu0 %v457
        %v571 = vpop.f32.mrf.mxu0
        %v572 = vadd.f32 0.0, %v571
        %v573 = vpop.f32.mrf.mxu0
        %v574 = vpop.f32.mrf.mxu0
        %v575 = vadd.f32 0.0, %v574
        %v576 = vpop.f32.mrf.mxu0
        %577 = vmatprep.mubr.bf16.mxu0 0
        %578 = vmatmul.mubr.bf16.gmra.mxu0 %v458
        %v579 = vpop.f32.mrf.mxu0
        %v580 = vadd.f32 0.0, %v579
        %v581 = vpop.f32.mrf.mxu0
        %v582 = vpop.f32.mrf.mxu0
        %v583 = vadd.f32 0.0, %v582
        %v584 = vpop.f32.mrf.mxu0
        %585 = vmatprep.mubr.bf16.mxu0 0
        %586 = vmatmul.mubr.bf16.gmra.mxu0 %v459
        %v587 = vpop.f32.mrf.mxu0
        %v588 = vadd.f32 0.0, %v587
        %v589 = vpop.f32.mrf.mxu0
        %v590 = vpop.f32.mrf.mxu0
        %v591 = vadd.f32 0.0, %v590
        %v592 = vpop.f32.mrf.mxu0
        %593 = vmatprep.mubr.bf16.mxu0 0
        %594 = vmatmul.mubr.bf16.gmra.mxu0 %v460
        %v595 = vpop.f32.mrf.mxu0
        %v596 = vadd.f32 0.0, %v595
        %v597 = vpop.f32.mrf.mxu0
        %v598 = vpop.f32.mrf.mxu0
        %v599 = vadd.f32 0.0, %v598
        %v600 = vpop.f32.mrf.mxu0
        %601 = vmatprep.mubr.bf16.mxu0 0
        %602 = vmatmul.mubr.bf16.gmra.mxu0 %v461
        %v603 = vpop.f32.mrf.mxu0
        %v604 = vadd.f32 0.0, %v603
        %v605 = vpop.f32.mrf.mxu0
        %v606 = vpop.f32.mrf.mxu0
        %v607 = vadd.f32 0.0, %v606
        %v608 = vpop.f32.mrf.mxu0
        %609 = vmatprep.mubr.bf16.mxu0 0
        %610 = vmatmul.mubr.bf16.gmra.mxu0 %v462
        %v611 = vpop.f32.mrf.mxu0
        %v612 = vadd.f32 0.0, %v611
        %v613 = vpop.f32.mrf.mxu0
        %v614 = vpop.f32.mrf.mxu0
        %v615 = vadd.f32 0.0, %v614
        %v616 = vpop.f32.mrf.mxu0
        %617 = vmatprep.mubr.bf16.mxu0 0
        %618 = vmatmul.mubr.bf16.gmra.mxu0 %v463
        %v619 = vpop.f32.mrf.mxu0
        %v620 = vadd.f32 0.0, %v619
        %v621 = vpop.f32.mrf.mxu0
        %v622 = vpop.f32.mrf.mxu0
        %v623 = vadd.f32 0.0, %v622
        %v624 = vpop.f32.mrf.mxu0
        %625 = vmatprep.mubr.bf16.mxu0 0
        %626 = vmatmul.mubr.bf16.gmra.mxu0 %v464
        %v627 = vpop.f32.mrf.mxu0
        %v628 = vadd.f32 0.0, %v627
        %v629 = vpop.f32.mrf.mxu0
        %v630 = vpop.f32.mrf.mxu0
        %v631 = vadd.f32 0.0, %v630
        %v632 = vpop.f32.mrf.mxu0
        %633 = vmatprep.mubr.bf16.mxu0 0
        %634 = vmatmul.mubr.bf16.gmra.mxu0 %v465
        %v635 = vpop.f32.mrf.mxu0
        %v636 = vadd.f32 0.0, %v635
        %v637 = vpop.f32.mrf.mxu0
        %v638 = vpop.f32.mrf.mxu0
        %v639 = vadd.f32 0.0, %v638
        %v640 = vpop.f32.mrf.mxu0
        %641 = vmatprep.mubr.bf16.mxu0 0
        %642 = vmatmul.mubr.bf16.gmra.mxu0 %v466
        %v643 = vpop.f32.mrf.mxu0
        %v644 = vadd.f32 0.0, %v643
        %v645 = vpop.f32.mrf.mxu0
        %v646 = vpop.f32.mrf.mxu0
        %v647 = vadd.f32 0.0, %v646
        %v648 = vpop.f32.mrf.mxu0
        %649 = vmatprep.mubr.bf16.mxu0 0
        %650 = vmatmul.mubr.bf16.gmra.mxu0 %v467
        %v651 = vpop.f32.mrf.mxu0
        %v652 = vadd.f32 0.0, %v651
        %v653 = vpop.f32.mrf.mxu0
        %v654 = vpop.f32.mrf.mxu0
        %v655 = vadd.f32 0.0, %v654
        %v656 = vpop.f32.mrf.mxu0
        %657 = vmatprep.mubr.bf16.mxu0 0
        %658 = vmatmul.mubr.bf16.gmra.mxu0 %v468
        %v659 = vpop.f32.mrf.mxu0
        %v660 = vadd.f32 0.0, %v659
        %v661 = vpop.f32.mrf.mxu0
        %v662 = vpop.f32.mrf.mxu0
        %v663 = vadd.f32 0.0, %v662
        %v664 = vpop.f32.mrf.mxu0
        %665 = vmatprep.mubr.bf16.mxu0 0
        %666 = vmatmul.mubr.bf16.gmra.mxu0 %v469
        %v667 = vpop.f32.mrf.mxu0
        %v668 = vadd.f32 0.0, %v667
        %v669 = vpop.f32.mrf.mxu0
        %v670 = vpop.f32.mrf.mxu0
        %v671 = vadd.f32 0.0, %v670
        %v672 = vpop.f32.mrf.mxu0
        %673 = vmatprep.mubr.bf16.mxu0 0
        %674 = vmatmul.mubr.bf16.gmra.mxu0 %v470
        %v675 = vpop.f32.mrf.mxu0
        %v676 = vadd.f32 0.0, %v675
        %v677 = vpop.f32.mrf.mxu0
        %v678 = vpop.f32.mrf.mxu0
        %v679 = vadd.f32 0.0, %v678
        %v680 = vpop.f32.mrf.mxu0
        %681 = vmatprep.mubr.bf16.mxu0 0
        %682 = vmatmul.mubr.bf16.gmra.mxu0 %v471
        %v683 = vpop.f32.mrf.mxu0
        %v684 = vadd.f32 0.0, %v683
        %v685 = vpop.f32.mrf.mxu0
        %v686 = vpop.f32.mrf.mxu0
        %v687 = vadd.f32 0.0, %v686
        %v688 = vpop.f32.mrf.mxu0
        %689 = vmatprep.mubr.bf16.mxu0 0
        %690 = vmatmul.mubr.bf16.gmra.mxu0 %v472
        %v691 = vpop.f32.mrf.mxu0
        %v692 = vadd.f32 0.0, %v691
        %v693 = vpop.f32.mrf.mxu0
        %v694 = vpop.f32.mrf.mxu0
        %v695 = vadd.f32 0.0, %v694
        %v696 = vpop.f32.mrf.mxu0
        %697 = vdwg.mxu0
        %v698 = vld [vmem:[%s2] sm:$0x1]
        %v700 = vlaneseq
        %v701 = vshrl.u32 %v700, 7
        %v702 = vsub.s32 0, %v701
        %v703 = vrot.slane %v698, %v702
        %v705 = vmul.f32 %v572, %v703
        %v706 = vmul.f32 %v575, %v703
        %v707 = vmul.f32 %v580, %v703
        %v708 = vmul.f32 %v583, %v703
        %v709 = vmul.f32 %v588, %v703
        %v710 = vmul.f32 %v591, %v703
        %v711 = vmul.f32 %v596, %v703
        %v712 = vmul.f32 %v599, %v703
        %v713 = vmul.f32 %v604, %v703
        %v714 = vmul.f32 %v607, %v703
        %v715 = vmul.f32 %v612, %v703
        %v716 = vmul.f32 %v615, %v703
        %v717 = vmul.f32 %v620, %v703
        %v718 = vmul.f32 %v623, %v703
        %v719 = vmul.f32 %v628, %v703
        %v720 = vmul.f32 %v631, %v703
        %v721 = vmul.f32 %v636, %v703
        %v722 = vmul.f32 %v639, %v703
        %v723 = vmul.f32 %v644, %v703
        %v724 = vmul.f32 %v647, %v703
        %v725 = vmul.f32 %v652, %v703
        %v726 = vmul.f32 %v655, %v703
        %v727 = vmul.f32 %v660, %v703
        %v728 = vmul.f32 %v663, %v703
        %v729 = vmul.f32 %v668, %v703
        %v730 = vmul.f32 %v671, %v703
        %v731 = vmul.f32 %v676, %v703
        %v732 = vmul.f32 %v679, %v703
        %v733 = vmul.f32 %v684, %v703
        %v734 = vmul.f32 %v687, %v703
        %v735 = vmul.f32 %v692, %v703
        %v736 = vmul.f32 %v695, %v703
        %v737 = vld [vmem:[%s3] sm:$0x1]
        %v739 = vlaneseq
        %v740 = vshrl.u32 %v739, 7
        %v741 = vsub.s32 0, %v740
        %v742 = vrot.slane %v737, %v741
        %v744 = vadd.f32 %v705, %v742
        %v745 = vadd.f32 %v706, %v742
        %v746 = vadd.f32 %v707, %v742
        %v747 = vadd.f32 %v708, %v742
        %v748 = vadd.f32 %v709, %v742
        %v749 = vadd.f32 %v710, %v742
        %v750 = vadd.f32 %v711, %v742
        %v751 = vadd.f32 %v712, %v742
        %v752 = vadd.f32 %v713, %v742
        %v753 = vadd.f32 %v714, %v742
        %v754 = vadd.f32 %v715, %v742
        %v755 = vadd.f32 %v716, %v742
        %v756 = vadd.f32 %v717, %v742
        %v757 = vadd.f32 %v718, %v742
        %v758 = vadd.f32 %v719, %v742
        %v759 = vadd.f32 %v720, %v742
        %v760 = vadd.f32 %v721, %v742
        %v761 = vadd.f32 %v722, %v742
        %v762 = vadd.f32 %v723, %v742
        %v763 = vadd.f32 %v724, %v742
        %v764 = vadd.f32 %v725, %v742
        %v765 = vadd.f32 %v726, %v742
        %v766 = vadd.f32 %v727, %v742
        %v767 = vadd.f32 %v728, %v742
        %v768 = vadd.f32 %v729, %v742
        %v769 = vadd.f32 %v730, %v742
        %v770 = vadd.f32 %v731, %v742
        %v771 = vadd.f32 %v732, %v742
        %v772 = vadd.f32 %v733, %v742
        %v773 = vadd.f32 %v734, %v742
        %v774 = vadd.f32 %v735, %v742
        %v775 = vadd.f32 %v736, %v742
        %v776 = vmax.f32 %v744, 0.0
        %v777 = vmax.f32 %v745, 0.0
        %v778 = vmax.f32 %v746, 0.0
        %v779 = vmax.f32 %v747, 0.0
        %v780 = vmax.f32 %v748, 0.0
        %v781 = vmax.f32 %v749, 0.0
        %v782 = vmax.f32 %v750, 0.0
        %v783 = vmax.f32 %v751, 0.0
        %v784 = vmax.f32 %v752, 0.0
        %v785 = vmax.f32 %v753, 0.0
        %v786 = vmax.f32 %v754, 0.0
        %v787 = vmax.f32 %v755, 0.0
        %v788 = vmax.f32 %v756, 0.0
        %v789 = vmax.f32 %v757, 0.0
        %v790 = vmax.f32 %v758, 0.0
        %v791 = vmax.f32 %v759, 0.0
        %v792 = vmax.f32 %v760, 0.0
        %v793 = vmax.f32 %v761, 0.0
        %v794 = vmax.f32 %v762, 0.0
        %v795 = vmax.f32 %v763, 0.0
        %v796 = vmax.f32 %v764, 0.0
        %v797 = vmax.f32 %v765, 0.0
        %v798 = vmax.f32 %v766, 0.0
        %v799 = vmax.f32 %v767, 0.0
        %v800 = vmax.f32 %v768, 0.0
        %v801 = vmax.f32 %v769, 0.0
        %v802 = vmax.f32 %v770, 0.0
        %v803 = vmax.f32 %v771, 0.0
        %v804 = vmax.f32 %v772, 0.0
        %v805 = vmax.f32 %v773, 0.0
        %v806 = vmax.f32 %v774, 0.0
        %v807 = vmax.f32 %v775, 0.0
        %808 = vst [vmem:[#allocation2] sm:$0xf] 0
        %809 = vst [vmem:[#allocation2 + $0x4] sm:$0xf] 0
        %810 = vst [vmem:[#allocation2 + $0x88] sm:$0xf] 0
        %811 = vst [vmem:[#allocation2 + $0x8c] sm:$0xf] 0
        %v812 = vpack.c.bf16 %v777, %v776
        %v813 = vpack.c.bf16 %v779, %v778
        %v814 = vpack.c.bf16 %v781, %v780
        %v815 = vpack.c.bf16 %v783, %v782
        %v816 = vpack.c.bf16 %v785, %v784
        %v817 = vpack.c.bf16 %v787, %v786
        %v818 = vpack.c.bf16 %v789, %v788
        %v819 = vpack.c.bf16 %v791, %v790
        %v820 = vpack.c.bf16 %v793, %v792
        %v821 = vpack.c.bf16 %v795, %v794
        %v822 = vpack.c.bf16 %v797, %v796
        %v823 = vpack.c.bf16 %v799, %v798
        %v824 = vpack.c.bf16 %v801, %v800
        %v825 = vpack.c.bf16 %v803, %v802
        %v826 = vpack.c.bf16 %v805, %v804
        %v827 = vpack.c.bf16 %v807, %v806
        %v844 = vunpack.c.l.b16 %v812
        %v845 = vunpack.c.h.b16 %v812
        %v846 = vunpack.c.l.b16 %v813
        %v847 = vunpack.c.h.b16 %v813
        %v848 = vunpack.c.l.b16 %v814
        %v849 = vunpack.c.h.b16 %v814
        %v850 = vunpack.c.l.b16 %v815
        %v851 = vunpack.c.h.b16 %v815
        %v852 = vunpack.c.l.b16 %v816
        %v853 = vunpack.c.h.b16 %v816
        %v854 = vunpack.c.l.b16 %v817
        %v855 = vunpack.c.h.b16 %v817
        %v856 = vunpack.c.l.b16 %v818
        %v857 = vunpack.c.h.b16 %v818
        %v858 = vunpack.c.l.b16 %v819
        %v859 = vunpack.c.h.b16 %v819
        %v860 = vunpack.c.l.b16 %v820
        %v861 = vunpack.c.h.b16 %v820
        %v862 = vunpack.c.l.b16 %v821
        %v863 = vunpack.c.h.b16 %v821
        %v864 = vunpack.c.l.b16 %v822
        %v865 = vunpack.c.h.b16 %v822
        %v866 = vunpack.c.l.b16 %v823
        %v867 = vunpack.c.h.b16 %v823
        %v868 = vunpack.c.l.b16 %v824
        %v869 = vunpack.c.h.b16 %v824
        %v870 = vunpack.c.l.b16 %v825
        %v871 = vunpack.c.h.b16 %v825
        %v872 = vunpack.c.l.b16 %v826
        %v873 = vunpack.c.h.b16 %v826
        %v874 = vunpack.c.l.b16 %v827
        %v875 = vunpack.c.h.b16 %v827
        %v876 = vpack.c.b16 %v844, %v844
        %v877 = vpack.c.b16 %v845, %v845
        %v878 = vpack.c.b16 %v846, %v846
        %v879 = vpack.c.b16 %v847, %v847
        %v880 = vpack.c.b16 %v848, %v848
        %v881 = vpack.c.b16 %v849, %v849
        %v882 = vpack.c.b16 %v850, %v850
        %v883 = vpack.c.b16 %v851, %v851
        %v884 = vpack.c.b16 %v852, %v852
        %v885 = vpack.c.b16 %v853, %v853
        %v886 = vpack.c.b16 %v854, %v854
        %v887 = vpack.c.b16 %v855, %v855
        %v888 = vpack.c.b16 %v856, %v856
        %v889 = vpack.c.b16 %v857, %v857
        %v890 = vpack.c.b16 %v858, %v858
        %v891 = vpack.c.b16 %v859, %v859
        %v892 = vpack.c.b16 %v860, %v860
        %v893 = vpack.c.b16 %v861, %v861
        %v894 = vpack.c.b16 %v862, %v862
        %v895 = vpack.c.b16 %v863, %v863
        %v896 = vpack.c.b16 %v864, %v864
        %v897 = vpack.c.b16 %v865, %v865
        %v898 = vpack.c.b16 %v866, %v866
        %v899 = vpack.c.b16 %v867, %v867
        %v900 = vpack.c.b16 %v868, %v868
        %v901 = vpack.c.b16 %v869, %v869
        %v902 = vpack.c.b16 %v870, %v870
        %v903 = vpack.c.b16 %v871, %v871
        %v904 = vpack.c.b16 %v872, %v872
        %v905 = vpack.c.b16 %v873, %v873
        %v906 = vpack.c.b16 %v874, %v874
        %v907 = vpack.c.b16 %v875, %v875
        %940 = vst [vmem:[#allocation2 + $0x8] sm:$0xf] %v876
        %941 = vst [vmem:[#allocation2 + $0xc] sm:$0xf] %v877
        %942 = vst [vmem:[#allocation2 + $0x10] sm:$0xf] %v878
        %943 = vst [vmem:[#allocation2 + $0x14] sm:$0xf] %v879
        %944 = vst [vmem:[#allocation2 + $0x18] sm:$0xf] %v880
        %945 = vst [vmem:[#allocation2 + $0x1c] sm:$0xf] %v881
        %946 = vst [vmem:[#allocation2 + $0x20] sm:$0xf] %v882
        %947 = vst [vmem:[#allocation2 + $0x24] sm:$0xf] %v883
        %948 = vst [vmem:[#allocation2 + $0x28] sm:$0xf] %v884
        %949 = vst [vmem:[#allocation2 + $0x2c] sm:$0xf] %v885
        %950 = vst [vmem:[#allocation2 + $0x30] sm:$0xf] %v886
        %951 = vst [vmem:[#allocation2 + $0x34] sm:$0xf] %v887
        %952 = vst [vmem:[#allocation2 + $0x38] sm:$0xf] %v888
        %953 = vst [vmem:[#allocation2 + $0x3c] sm:$0xf] %v889
        %954 = vst [vmem:[#allocation2 + $0x40] sm:$0xf] %v890
        %955 = vst [vmem:[#allocation2 + $0x44] sm:$0xf] %v891
        %956 = vst [vmem:[#allocation2 + $0x48] sm:$0xf] %v892
        %957 = vst [vmem:[#allocation2 + $0x4c] sm:$0xf] %v893
        %958 = vst [vmem:[#allocation2 + $0x50] sm:$0xf] %v894
        %959 = vst [vmem:[#allocation2 + $0x54] sm:$0xf] %v895
        %960 = vst [vmem:[#allocation2 + $0x58] sm:$0xf] %v896
        %961 = vst [vmem:[#allocation2 + $0x5c] sm:$0xf] %v897
        %962 = vst [vmem:[#allocation2 + $0x60] sm:$0xf] %v898
        %963 = vst [vmem:[#allocation2 + $0x64] sm:$0xf] %v899
        %964 = vst [vmem:[#allocation2 + $0x68] sm:$0xf] %v900
        %965 = vst [vmem:[#allocation2 + $0x6c] sm:$0xf] %v901
        %966 = vst [vmem:[#allocation2 + $0x70] sm:$0xf] %v902
        %967 = vst [vmem:[#allocation2 + $0x74] sm:$0xf] %v903
        %968 = vst [vmem:[#allocation2 + $0x78] sm:$0xf] %v904
        %969 = vst [vmem:[#allocation2 + $0x7c] sm:$0xf] %v905
        %970 = vst [vmem:[#allocation2 + $0x80] sm:$0xf] %v906
        %971 = vst [vmem:[#allocation2 + $0x84] sm:$0xf] %v907
        %v972 = vlaneseq
        %v973 = vshrl.u32 %v972, 7
        %v974 = vadd.s32 %v973, 8
        %v975 = vadd.s32 %v973, 16
        %v976 = vadd.s32 %v973, 24
        %v977 = vadd.s32 %v973, 32
        %v978 = vadd.s32 %v973, 40
        %v979 = vadd.s32 %v973, 48
        %v980 = vadd.s32 %v973, 56
        %v981 = vadd.s32 %v973, 64
        %v982 = vadd.s32 %v973, 72
        %v983 = vadd.s32 %v973, 80
        %v984 = vadd.s32 %v973, 88
        %v985 = vadd.s32 %v973, 96
        %v986 = vadd.s32 %v973, 104
        %v987 = vadd.s32 %v973, 112
        %v988 = vadd.s32 %v973, 120
        %v989 = vadd.s32 %v973, 128
        %v990 = vadd.s32 %v973, 136
        %v991 = vadd.s32 %v973, 144
        %v992 = vadd.s32 %v973, 152
        %v993 = vadd.s32 %v973, 160
        %v994 = vadd.s32 %v973, 168
        %v995 = vadd.s32 %v973, 176
        %v996 = vadd.s32 %v973, 184
        %v997 = vadd.s32 %v973, 192
        %v998 = vadd.s32 %v973, 200
        %v999 = vadd.s32 %v973, 208
        %v1000 = vadd.s32 %v973, 216
        %v1001 = vadd.s32 %v973, 224
        %v1002 = vadd.s32 %v973, 232
        %v1003 = vadd.s32 %v973, 240
        %v1004 = vadd.s32 %v973, 248
        %vm1005 = vcmp.lt.s32.totalorder %v973, 0
        %v1006 = vsub.s32 0, %v973
        %v1007 = vsel %vm1005, %v1006, %v973
        %v1008 = vshrl.u32 %v1007, 4
        %v1009 = vand.u32 %v1007, 15
        %v1010 = vsub.s32 0, %v1009
        %v1011 = vsel %vm1005, %v1010, %v1009
        %vm1012 = vcmp.lt.s32.totalorder %v974, 0
        %v1013 = vsub.s32 0, %v974
        %v1014 = vsel %vm1012, %v1013, %v974
        %v1015 = vshrl.u32 %v1014, 4
        %v1016 = vand.u32 %v1014, 15
        %v1017 = vsub.s32 0, %v1016
        %v1018 = vsel %vm1012, %v1017, %v1016
        %vm1019 = vcmp.lt.s32.totalorder %v975, 0
        %v1020 = vsub.s32 0, %v975
        %v1021 = vsel %vm1019, %v1020, %v975
        %v1022 = vshrl.u32 %v1021, 4
        %v1023 = vand.u32 %v1021, 15
        %v1024 = vsub.s32 0, %v1023
        %v1025 = vsel %vm1019, %v1024, %v1023
        %vm1026 = vcmp.lt.s32.totalorder %v976, 0
        %v1027 = vsub.s32 0, %v976
        %v1028 = vsel %vm1026, %v1027, %v976
        %v1029 = vshrl.u32 %v1028, 4
        %v1030 = vand.u32 %v1028, 15
        %v1031 = vsub.s32 0, %v1030
        %v1032 = vsel %vm1026, %v1031, %v1030
        %vm1033 = vcmp.lt.s32.totalorder %v977, 0
        %v1034 = vsub.s32 0, %v977
        %v1035 = vsel %vm1033, %v1034, %v977
        %v1036 = vshrl.u32 %v1035, 4
        %v1037 = vand.u32 %v1035, 15
        %v1038 = vsub.s32 0, %v1037
        %v1039 = vsel %vm1033, %v1038, %v1037
        %vm1040 = vcmp.lt.s32.totalorder %v978, 0
        %v1041 = vsub.s32 0, %v978
        %v1042 = vsel %vm1040, %v1041, %v978
        %v1043 = vshrl.u32 %v1042, 4
        %v1044 = vand.u32 %v1042, 15
        %v1045 = vsub.s32 0, %v1044
        %v1046 = vsel %vm1040, %v1045, %v1044
        %vm1047 = vcmp.lt.s32.totalorder %v979, 0
        %v1048 = vsub.s32 0, %v979
        %v1049 = vsel %vm1047, %v1048, %v979
        %v1050 = vshrl.u32 %v1049, 4
        %v1051 = vand.u32 %v1049, 15
        %v1052 = vsub.s32 0, %v1051
        %v1053 = vsel %vm1047, %v1052, %v1051
        %vm1054 = vcmp.lt.s32.totalorder %v980, 0
        %v1055 = vsub.s32 0, %v980
        %v1056 = vsel %vm1054, %v1055, %v980
        %v1057 = vshrl.u32 %v1056, 4
        %v1058 = vand.u32 %v1056, 15
        %v1059 = vsub.s32 0, %v1058
        %v1060 = vsel %vm1054, %v1059, %v1058
        %vm1061 = vcmp.lt.s32.totalorder %v981, 0
        %v1062 = vsub.s32 0, %v981
        %v1063 = vsel %vm1061, %v1062, %v981
        %v1064 = vshrl.u32 %v1063, 4
        %v1065 = vand.u32 %v1063, 15
        %v1066 = vsub.s32 0, %v1065
        %v1067 = vsel %vm1061, %v1066, %v1065
        %vm1068 = vcmp.lt.s32.totalorder %v982, 0
        %v1069 = vsub.s32 0, %v982
        %v1070 = vsel %vm1068, %v1069, %v982
        %v1071 = vshrl.u32 %v1070, 4
        %v1072 = vand.u32 %v1070, 15
        %v1073 = vsub.s32 0, %v1072
        %v1074 = vsel %vm1068, %v1073, %v1072
        %vm1075 = vcmp.lt.s32.totalorder %v983, 0
        %v1076 = vsub.s32 0, %v983
        %v1077 = vsel %vm1075, %v1076, %v983
        %v1078 = vshrl.u32 %v1077, 4
        %v1079 = vand.u32 %v1077, 15
        %v1080 = vsub.s32 0, %v1079
        %v1081 = vsel %vm1075, %v1080, %v1079
        %vm1082 = vcmp.lt.s32.totalorder %v984, 0
        %v1083 = vsub.s32 0, %v984
        %v1084 = vsel %vm1082, %v1083, %v984
        %v1085 = vshrl.u32 %v1084, 4
        %v1086 = vand.u32 %v1084, 15
        %v1087 = vsub.s32 0, %v1086
        %v1088 = vsel %vm1082, %v1087, %v1086
        %vm1089 = vcmp.lt.s32.totalorder %v985, 0
        %v1090 = vsub.s32 0, %v985
        %v1091 = vsel %vm1089, %v1090, %v985
        %v1092 = vshrl.u32 %v1091, 4
        %v1093 = vand.u32 %v1091, 15
        %v1094 = vsub.s32 0, %v1093
        %v1095 = vsel %vm1089, %v1094, %v1093
        %vm1096 = vcmp.lt.s32.totalorder %v986, 0
        %v1097 = vsub.s32 0, %v986
        %v1098 = vsel %vm1096, %v1097, %v986
        %v1099 = vshrl.u32 %v1098, 4
        %v1100 = vand.u32 %v1098, 15
        %v1101 = vsub.s32 0, %v1100
        %v1102 = vsel %vm1096, %v1101, %v1100
        %vm1103 = vcmp.lt.s32.totalorder %v987, 0
        %v1104 = vsub.s32 0, %v987
        %v1105 = vsel %vm1103, %v1104, %v987
        %v1106 = vshrl.u32 %v1105, 4
        %v1107 = vand.u32 %v1105, 15
        %v1108 = vsub.s32 0, %v1107
        %v1109 = vsel %vm1103, %v1108, %v1107
        %vm1110 = vcmp.lt.s32.totalorder %v988, 0
        %v1111 = vsub.s32 0, %v988
        %v1112 = vsel %vm1110, %v1111, %v988
        %v1113 = vshrl.u32 %v1112, 4
        %v1114 = vand.u32 %v1112, 15
        %v1115 = vsub.s32 0, %v1114
        %v1116 = vsel %vm1110, %v1115, %v1114
        %vm1117 = vcmp.lt.s32.totalorder %v989, 0
        %v1118 = vsub.s32 0, %v989
        %v1119 = vsel %vm1117, %v1118, %v989
        %v1120 = vshrl.u32 %v1119, 4
        %v1121 = vand.u32 %v1119, 15
        %v1122 = vsub.s32 0, %v1121
        %v1123 = vsel %vm1117, %v1122, %v1121
        %vm1124 = vcmp.lt.s32.totalorder %v990, 0
        %v1125 = vsub.s32 0, %v990
        %v1126 = vsel %vm1124, %v1125, %v990
        %v1127 = vshrl.u32 %v1126, 4
        %v1128 = vand.u32 %v1126, 15
        %v1129 = vsub.s32 0, %v1128
        %v1130 = vsel %vm1124, %v1129, %v1128
        %vm1131 = vcmp.lt.s32.totalorder %v991, 0
        %v1132 = vsub.s32 0, %v991
        %v1133 = vsel %vm1131, %v1132, %v991
        %v1134 = vshrl.u32 %v1133, 4
        %v1135 = vand.u32 %v1133, 15
        %v1136 = vsub.s32 0, %v1135
        %v1137 = vsel %vm1131, %v1136, %v1135
        %vm1138 = vcmp.lt.s32.totalorder %v992, 0
        %v1139 = vsub.s32 0, %v992
        %v1140 = vsel %vm1138, %v1139, %v992
        %v1141 = vshrl.u32 %v1140, 4
        %v1142 = vand.u32 %v1140, 15
        %v1143 = vsub.s32 0, %v1142
        %v1144 = vsel %vm1138, %v1143, %v1142
        %vm1145 = vcmp.lt.s32.totalorder %v993, 0
        %v1146 = vsub.s32 0, %v993
        %v1147 = vsel %vm1145, %v1146, %v993
        %v1148 = vshrl.u32 %v1147, 4
        %v1149 = vand.u32 %v1147, 15
        %v1150 = vsub.s32 0, %v1149
        %v1151 = vsel %vm1145, %v1150, %v1149
        %vm1152 = vcmp.lt.s32.totalorder %v994, 0
        %v1153 = vsub.s32 0, %v994
        %v1154 = vsel %vm1152, %v1153, %v994
        %v1155 = vshrl.u32 %v1154, 4
        %v1156 = vand.u32 %v1154, 15
        %v1157 = vsub.s32 0, %v1156
        %v1158 = vsel %vm1152, %v1157, %v1156
        %vm1159 = vcmp.lt.s32.totalorder %v995, 0
        %v1160 = vsub.s32 0, %v995
        %v1161 = vsel %vm1159, %v1160, %v995
        %v1162 = vshrl.u32 %v1161, 4
        %v1163 = vand.u32 %v1161, 15
        %v1164 = vsub.s32 0, %v1163
        %v1165 = vsel %vm1159, %v1164, %v1163
        %vm1166 = vcmp.lt.s32.totalorder %v996, 0
        %v1167 = vsub.s32 0, %v996
        %v1168 = vsel %vm1166, %v1167, %v996
        %v1169 = vshrl.u32 %v1168, 4
        %v1170 = vand.u32 %v1168, 15
        %v1171 = vsub.s32 0, %v1170
        %v1172 = vsel %vm1166, %v1171, %v1170
        %vm1173 = vcmp.lt.s32.totalorder %v997, 0
        %v1174 = vsub.s32 0, %v997
        %v1175 = vsel %vm1173, %v1174, %v997
        %v1176 = vshrl.u32 %v1175, 4
        %v1177 = vand.u32 %v1175, 15
        %v1178 = vsub.s32 0, %v1177
        %v1179 = vsel %vm1173, %v1178, %v1177
        %vm1180 = vcmp.lt.s32.totalorder %v998, 0
        %v1181 = vsub.s32 0, %v998
        %v1182 = vsel %vm1180, %v1181, %v998
        %v1183 = vshrl.u32 %v1182, 4
        %v1184 = vand.u32 %v1182, 15
        %v1185 = vsub.s32 0, %v1184
        %v1186 = vsel %vm1180, %v1185, %v1184
        %vm1187 = vcmp.lt.s32.totalorder %v999, 0
        %v1188 = vsub.s32 0, %v999
        %v1189 = vsel %vm1187, %v1188, %v999
        %v1190 = vshrl.u32 %v1189, 4
        %v1191 = vand.u32 %v1189, 15
        %v1192 = vsub.s32 0, %v1191
        %v1193 = vsel %vm1187, %v1192, %v1191
        %vm1194 = vcmp.lt.s32.totalorder %v1000, 0
        %v1195 = vsub.s32 0, %v1000
        %v1196 = vsel %vm1194, %v1195, %v1000
        %v1197 = vshrl.u32 %v1196, 4
        %v1198 = vand.u32 %v1196, 15
        %v1199 = vsub.s32 0, %v1198
        %v1200 = vsel %vm1194, %v1199, %v1198
        %vm1201 = vcmp.lt.s32.totalorder %v1001, 0
        %v1202 = vsub.s32 0, %v1001
        %v1203 = vsel %vm1201, %v1202, %v1001
        %v1204 = vshrl.u32 %v1203, 4
        %v1205 = vand.u32 %v1203, 15
        %v1206 = vsub.s32 0, %v1205
        %v1207 = vsel %vm1201, %v1206, %v1205
        %vm1208 = vcmp.lt.s32.totalorder %v1002, 0
        %v1209 = vsub.s32 0, %v1002
        %v1210 = vsel %vm1208, %v1209, %v1002
        %v1211 = vshrl.u32 %v1210, 4
        %v1212 = vand.u32 %v1210, 15
        %v1213 = vsub.s32 0, %v1212
        %v1214 = vsel %vm1208, %v1213, %v1212
        %vm1215 = vcmp.lt.s32.totalorder %v1003, 0
        %v1216 = vsub.s32 0, %v1003
        %v1217 = vsel %vm1215, %v1216, %v1003
        %v1218 = vshrl.u32 %v1217, 4
        %v1219 = vand.u32 %v1217, 15
        %v1220 = vsub.s32 0, %v1219
        %v1221 = vsel %vm1215, %v1220, %v1219
        %vm1222 = vcmp.lt.s32.totalorder %v1004, 0
        %v1223 = vsub.s32 0, %v1004
        %v1224 = vsel %vm1222, %v1223, %v1004
        %v1225 = vshrl.u32 %v1224, 4
        %v1226 = vand.u32 %v1224, 15
        %v1227 = vsub.s32 0, %v1226
        %v1228 = vsel %vm1222, %v1227, %v1226
        %vm1229 = vcmp.ne.s32.totalorder %v1011, 0
        %vm1230 = vcmp.ne.s32.totalorder %v1018, 0
        %vm1231 = vcmp.ne.s32.totalorder %v1025, 0
        %vm1232 = vcmp.ne.s32.totalorder %v1032, 0
        %vm1233 = vcmp.ne.s32.totalorder %v1039, 0
        %vm1234 = vcmp.ne.s32.totalorder %v1046, 0
        %vm1235 = vcmp.ne.s32.totalorder %v1053, 0
        %vm1236 = vcmp.ne.s32.totalorder %v1060, 0
        %vm1237 = vcmp.ne.s32.totalorder %v1067, 0
        %vm1238 = vcmp.ne.s32.totalorder %v1074, 0
        %vm1239 = vcmp.ne.s32.totalorder %v1081, 0
        %vm1240 = vcmp.ne.s32.totalorder %v1088, 0
        %vm1241 = vcmp.ne.s32.totalorder %v1095, 0
        %vm1242 = vcmp.ne.s32.totalorder %v1102, 0
        %vm1243 = vcmp.ne.s32.totalorder %v1109, 0
        %vm1244 = vcmp.ne.s32.totalorder %v1116, 0
        %vm1245 = vcmp.ne.s32.totalorder %v1123, 0
        %vm1246 = vcmp.ne.s32.totalorder %v1130, 0
        %vm1247 = vcmp.ne.s32.totalorder %v1137, 0
        %vm1248 = vcmp.ne.s32.totalorder %v1144, 0
        %vm1249 = vcmp.ne.s32.totalorder %v1151, 0
        %vm1250 = vcmp.ne.s32.totalorder %v1158, 0
        %vm1251 = vcmp.ne.s32.totalorder %v1165, 0
        %vm1252 = vcmp.ne.s32.totalorder %v1172, 0
        %vm1253 = vcmp.ne.s32.totalorder %v1179, 0
        %vm1254 = vcmp.ne.s32.totalorder %v1186, 0
        %vm1255 = vcmp.ne.s32.totalorder %v1193, 0
        %vm1256 = vcmp.ne.s32.totalorder %v1200, 0
        %vm1257 = vcmp.ne.s32.totalorder %v1207, 0
        %vm1258 = vcmp.ne.s32.totalorder %v1214, 0
        %vm1259 = vcmp.ne.s32.totalorder %v1221, 0
        %vm1260 = vcmp.ne.s32.totalorder %v1228, 0
        %vm1261 = vcmp.lt.s32.totalorder %v1011, 0
        %vm1262 = vcmp.lt.s32.totalorder %v1018, 0
        %vm1263 = vcmp.lt.s32.totalorder %v1025, 0
        %vm1264 = vcmp.lt.s32.totalorder %v1032, 0
        %vm1265 = vcmp.lt.s32.totalorder %v1039, 0
        %vm1266 = vcmp.lt.s32.totalorder %v1046, 0
        %vm1267 = vcmp.lt.s32.totalorder %v1053, 0
        %vm1268 = vcmp.lt.s32.totalorder %v1060, 0
        %vm1269 = vcmp.lt.s32.totalorder %v1067, 0
        %vm1270 = vcmp.lt.s32.totalorder %v1074, 0
        %vm1271 = vcmp.lt.s32.totalorder %v1081, 0
        %vm1272 = vcmp.lt.s32.totalorder %v1088, 0
        %vm1273 = vcmp.lt.s32.totalorder %v1095, 0
        %vm1274 = vcmp.lt.s32.totalorder %v1102, 0
        %vm1275 = vcmp.lt.s32.totalorder %v1109, 0
        %vm1276 = vcmp.lt.s32.totalorder %v1116, 0
        %vm1277 = vcmp.lt.s32.totalorder %v1123, 0
        %vm1278 = vcmp.lt.s32.totalorder %v1130, 0
        %vm1279 = vcmp.lt.s32.totalorder %v1137, 0
        %vm1280 = vcmp.lt.s32.totalorder %v1144, 0
        %vm1281 = vcmp.lt.s32.totalorder %v1151, 0
        %vm1282 = vcmp.lt.s32.totalorder %v1158, 0
        %vm1283 = vcmp.lt.s32.totalorder %v1165, 0
        %vm1284 = vcmp.lt.s32.totalorder %v1172, 0
        %vm1285 = vcmp.lt.s32.totalorder %v1179, 0
        %vm1286 = vcmp.lt.s32.totalorder %v1186, 0
        %vm1287 = vcmp.lt.s32.totalorder %v1193, 0
        %vm1288 = vcmp.lt.s32.totalorder %v1200, 0
        %vm1289 = vcmp.lt.s32.totalorder %v1207, 0
        %vm1290 = vcmp.lt.s32.totalorder %v1214, 0
        %vm1291 = vcmp.lt.s32.totalorder %v1221, 0
        %vm1292 = vcmp.lt.s32.totalorder %v1228, 0
        %vm1293 = vmand %vm1261, %vm1229
        %vm1294 = vmand %vm1262, %vm1230
        %vm1295 = vmand %vm1263, %vm1231
        %vm1296 = vmand %vm1264, %vm1232
        %vm1297 = vmand %vm1265, %vm1233
        %vm1298 = vmand %vm1266, %vm1234
        %vm1299 = vmand %vm1267, %vm1235
        %vm1300 = vmand %vm1268, %vm1236
        %vm1301 = vmand %vm1269, %vm1237
        %vm1302 = vmand %vm1270, %vm1238
        %vm1303 = vmand %vm1271, %vm1239
        %vm1304 = vmand %vm1272, %vm1240
        %vm1305 = vmand %vm1273, %vm1241
        %vm1306 = vmand %vm1274, %vm1242
        %vm1307 = vmand %vm1275, %vm1243
        %vm1308 = vmand %vm1276, %vm1244
        %vm1309 = vmand %vm1277, %vm1245
        %vm1310 = vmand %vm1278, %vm1246
        %vm1311 = vmand %vm1279, %vm1247
        %vm1312 = vmand %vm1280, %vm1248
        %vm1313 = vmand %vm1281, %vm1249
        %vm1314 = vmand %vm1282, %vm1250
        %vm1315 = vmand %vm1283, %vm1251
        %vm1316 = vmand %vm1284, %vm1252
        %vm1317 = vmand %vm1285, %vm1253
        %vm1318 = vmand %vm1286, %vm1254
        %vm1319 = vmand %vm1287, %vm1255
        %vm1320 = vmand %vm1288, %vm1256
        %vm1321 = vmand %vm1289, %vm1257
        %vm1322 = vmand %vm1290, %vm1258
        %vm1323 = vmand %vm1291, %vm1259
        %vm1324 = vmand %vm1292, %vm1260
        %v1325 = vadd.s32 %v1011, 16
        %v1326 = vadd.s32 %v1018, 16
        %v1327 = vadd.s32 %v1025, 16
        %v1328 = vadd.s32 %v1032, 16
        %v1329 = vadd.s32 %v1039, 16
        %v1330 = vadd.s32 %v1046, 16
        %v1331 = vadd.s32 %v1053, 16
        %v1332 = vadd.s32 %v1060, 16
        %v1333 = vadd.s32 %v1067, 16
        %v1334 = vadd.s32 %v1074, 16
        %v1335 = vadd.s32 %v1081, 16
        %v1336 = vadd.s32 %v1088, 16
        %v1337 = vadd.s32 %v1095, 16
        %v1338 = vadd.s32 %v1102, 16
        %v1339 = vadd.s32 %v1109, 16
        %v1340 = vadd.s32 %v1116, 16
        %v1341 = vadd.s32 %v1123, 16
        %v1342 = vadd.s32 %v1130, 16
        %v1343 = vadd.s32 %v1137, 16
        %v1344 = vadd.s32 %v1144, 16
        %v1345 = vadd.s32 %v1151, 16
        %v1346 = vadd.s32 %v1158, 16
        %v1347 = vadd.s32 %v1165, 16
        %v1348 = vadd.s32 %v1172, 16
        %v1349 = vadd.s32 %v1179, 16
        %v1350 = vadd.s32 %v1186, 16
        %v1351 = vadd.s32 %v1193, 16
        %v1352 = vadd.s32 %v1200, 16
        %v1353 = vadd.s32 %v1207, 16
        %v1354 = vadd.s32 %v1214, 16
        %v1355 = vadd.s32 %v1221, 16
        %v1356 = vadd.s32 %v1228, 16
        %v1357 = vsel %vm1293, %v1325, %v1011
        %v1358 = vsel %vm1294, %v1326, %v1018
        %v1359 = vsel %vm1295, %v1327, %v1025
        %v1360 = vsel %vm1296, %v1328, %v1032
        %v1361 = vsel %vm1297, %v1329, %v1039
        %v1362 = vsel %vm1298, %v1330, %v1046
        %v1363 = vsel %vm1299, %v1331, %v1053
        %v1364 = vsel %vm1300, %v1332, %v1060
        %v1365 = vsel %vm1301, %v1333, %v1067
        %v1366 = vsel %vm1302, %v1334, %v1074
        %v1367 = vsel %vm1303, %v1335, %v1081
        %v1368 = vsel %vm1304, %v1336, %v1088
        %v1369 = vsel %vm1305, %v1337, %v1095
        %v1370 = vsel %vm1306, %v1338, %v1102
        %v1371 = vsel %vm1307, %v1339, %v1109
        %v1372 = vsel %vm1308, %v1340, %v1116
        %v1373 = vsel %vm1309, %v1341, %v1123
        %v1374 = vsel %vm1310, %v1342, %v1130
        %v1375 = vsel %vm1311, %v1343, %v1137
        %v1376 = vsel %vm1312, %v1344, %v1144
        %v1377 = vsel %vm1313, %v1345, %v1151
        %v1378 = vsel %vm1314, %v1346, %v1158
        %v1379 = vsel %vm1315, %v1347, %v1165
        %v1380 = vsel %vm1316, %v1348, %v1172
        %v1381 = vsel %vm1317, %v1349, %v1179
        %v1382 = vsel %vm1318, %v1350, %v1186
        %v1383 = vsel %vm1319, %v1351, %v1193
        %v1384 = vsel %vm1320, %v1352, %v1200
        %v1385 = vsel %vm1321, %v1353, %v1207
        %v1386 = vsel %vm1322, %v1354, %v1214
        %v1387 = vsel %vm1323, %v1355, %v1221
        %v1388 = vsel %vm1324, %v1356, %v1228
        %v1389 = vld [vmem:[#allocation2 + $0x4] sm:$0x8]
        %v1390 = vld [vmem:[#allocation2 + $0x8] sm:$0xf]
        %v1391 = vld [vmem:[#allocation2 + $0xc] sm:$0xf]
        %v1392 = vld [vmem:[#allocation2 + $0x10] sm:$0xf]
        %v1393 = vld [vmem:[#allocation2 + $0x14] sm:$0xf]
        %v1394 = vld [vmem:[#allocation2 + $0x18] sm:$0xf]
        %v1395 = vld [vmem:[#allocation2 + $0x1c] sm:$0xf]
        %v1396 = vld [vmem:[#allocation2 + $0x20] sm:$0xf]
        %v1397 = vld [vmem:[#allocation2 + $0x24] sm:$0xf]
        %v1398 = vld [vmem:[#allocation2 + $0x28] sm:$0xf]
        %v1399 = vld [vmem:[#allocation2 + $0x2c] sm:$0xf]
        %v1400 = vld [vmem:[#allocation2 + $0x30] sm:$0xf]
        %v1401 = vld [vmem:[#allocation2 + $0x34] sm:$0xf]
        %v1402 = vld [vmem:[#allocation2 + $0x38] sm:$0xf]
        %v1403 = vld [vmem:[#allocation2 + $0x3c] sm:$0xf]
        %v1404 = vld [vmem:[#allocation2 + $0x40] sm:$0xf]
        %v1405 = vld [vmem:[#allocation2 + $0x44] sm:$0xf]
        %v1406 = vld [vmem:[#allocation2 + $0x48] sm:$0xf]
        %v1407 = vld [vmem:[#allocation2 + $0x4c] sm:$0xf]
        %v1408 = vld [vmem:[#allocation2 + $0x50] sm:$0xf]
        %v1409 = vld [vmem:[#allocation2 + $0x54] sm:$0xf]
        %v1410 = vld [vmem:[#allocation2 + $0x58] sm:$0xf]
        %v1411 = vld [vmem:[#allocation2 + $0x5c] sm:$0xf]
        %v1412 = vld [vmem:[#allocation2 + $0x60] sm:$0xf]
        %v1413 = vld [vmem:[#allocation2 + $0x64] sm:$0xf]
        %v1414 = vld [vmem:[#allocation2 + $0x68] sm:$0xf]
        %v1415 = vld [vmem:[#allocation2 + $0x6c] sm:$0xf]
        %v1416 = vld [vmem:[#allocation2 + $0x70] sm:$0xf]
        %v1417 = vld [vmem:[#allocation2 + $0x74] sm:$0xf]
        %v1418 = vld [vmem:[#allocation2 + $0x78] sm:$0xf]
        %v1419 = vld [vmem:[#allocation2 + $0x7c] sm:$0xf]
        %v1420 = vld [vmem:[#allocation2 + $0x80] sm:$0xf]
        %v1421 = vld [vmem:[#allocation2 + $0x84] sm:$0xf]
        %1422 = vst [vmem:[#allocation3] sm:$0xf] 0
        %1423 = vst [vmem:[#allocation3 + $0x4] sm:$0xf] 0
        %1424 = vst [vmem:[#allocation3 + $0x88] sm:$0xf] 0
        %1425 = vst [vmem:[#allocation3 + $0x8c] sm:$0xf] 0
        %vm1426 = vcmp.ge.s32.totalorder %v1357, 1
        %vm1427 = vcmp.ge.s32.totalorder %v1358, 1
        %vm1428 = vcmp.ge.s32.totalorder %v1359, 1
        %vm1429 = vcmp.ge.s32.totalorder %v1360, 1
        %vm1430 = vcmp.ge.s32.totalorder %v1361, 1
        %vm1431 = vcmp.ge.s32.totalorder %v1362, 1
        %vm1432 = vcmp.ge.s32.totalorder %v1363, 1
        %vm1433 = vcmp.ge.s32.totalorder %v1364, 1
        %vm1434 = vcmp.ge.s32.totalorder %v1365, 1
        %vm1435 = vcmp.ge.s32.totalorder %v1366, 1
        %vm1436 = vcmp.ge.s32.totalorder %v1367, 1
        %vm1437 = vcmp.ge.s32.totalorder %v1368, 1
        %vm1438 = vcmp.ge.s32.totalorder %v1369, 1
        %vm1439 = vcmp.ge.s32.totalorder %v1370, 1
        %vm1440 = vcmp.ge.s32.totalorder %v1371, 1
        %vm1441 = vcmp.ge.s32.totalorder %v1372, 1
        %vm1442 = vcmp.ge.s32.totalorder %v1373, 1
        %vm1443 = vcmp.ge.s32.totalorder %v1374, 1
        %vm1444 = vcmp.ge.s32.totalorder %v1375, 1
        %vm1445 = vcmp.ge.s32.totalorder %v1376, 1
        %vm1446 = vcmp.ge.s32.totalorder %v1377, 1
        %vm1447 = vcmp.ge.s32.totalorder %v1378, 1
        %vm1448 = vcmp.ge.s32.totalorder %v1379, 1
        %vm1449 = vcmp.ge.s32.totalorder %v1380, 1
        %vm1450 = vcmp.ge.s32.totalorder %v1381, 1
        %vm1451 = vcmp.ge.s32.totalorder %v1382, 1
        %vm1452 = vcmp.ge.s32.totalorder %v1383, 1
        %vm1453 = vcmp.ge.s32.totalorder %v1384, 1
        %vm1454 = vcmp.ge.s32.totalorder %v1385, 1
        %vm1455 = vcmp.ge.s32.totalorder %v1386, 1
        %vm1456 = vcmp.ge.s32.totalorder %v1387, 1
        %vm1457 = vcmp.ge.s32.totalorder %v1388, 1
        %v1458 = vsel %vm1426, 1, 0
        %v1459 = vsel %vm1427, 1, 0
        %v1460 = vsel %vm1428, 1, 0
        %v1461 = vsel %vm1429, 1, 0
        %v1462 = vsel %vm1430, 1, 0
        %v1463 = vsel %vm1431, 1, 0
        %v1464 = vsel %vm1432, 1, 0
        %v1465 = vsel %vm1433, 1, 0
        %v1466 = vsel %vm1434, 1, 0
        %v1467 = vsel %vm1435, 1, 0
        %v1468 = vsel %vm1436, 1, 0
        %v1469 = vsel %vm1437, 1, 0
        %v1470 = vsel %vm1438, 1, 0
        %v1471 = vsel %vm1439, 1, 0
        %v1472 = vsel %vm1440, 1, 0
        %v1473 = vsel %vm1441, 1, 0
        %v1474 = vsel %vm1442, 1, 0
        %v1475 = vsel %vm1443, 1, 0
        %v1476 = vsel %vm1444, 1, 0
        %v1477 = vsel %vm1445, 1, 0
        %v1478 = vsel %vm1446, 1, 0
        %v1479 = vsel %vm1447, 1, 0
        %v1480 = vsel %vm1448, 1, 0
        %v1481 = vsel %vm1449, 1, 0
        %v1482 = vsel %vm1450, 1, 0
        %v1483 = vsel %vm1451, 1, 0
        %v1484 = vsel %vm1452, 1, 0
        %v1485 = vsel %vm1453, 1, 0
        %v1486 = vsel %vm1454, 1, 0
        %v1487 = vsel %vm1455, 1, 0
        %v1488 = vsel %vm1456, 1, 0
        %v1489 = vsel %vm1457, 1, 0
        %vm1490 = vcmp.eq.s32.totalorder %v1458, 1
        %vm1491 = vcmp.eq.s32.totalorder %v1459, 1
        %vm1492 = vcmp.eq.s32.totalorder %v1460, 1
        %vm1493 = vcmp.eq.s32.totalorder %v1461, 1
        %vm1494 = vcmp.eq.s32.totalorder %v1462, 1
        %vm1495 = vcmp.eq.s32.totalorder %v1463, 1
        %vm1496 = vcmp.eq.s32.totalorder %v1464, 1
        %vm1497 = vcmp.eq.s32.totalorder %v1465, 1
        %vm1498 = vcmp.eq.s32.totalorder %v1466, 1
        %vm1499 = vcmp.eq.s32.totalorder %v1467, 1
        %vm1500 = vcmp.eq.s32.totalorder %v1468, 1
        %vm1501 = vcmp.eq.s32.totalorder %v1469, 1
        %vm1502 = vcmp.eq.s32.totalorder %v1470, 1
        %vm1503 = vcmp.eq.s32.totalorder %v1471, 1
        %vm1504 = vcmp.eq.s32.totalorder %v1472, 1
        %vm1505 = vcmp.eq.s32.totalorder %v1473, 1
        %vm1506 = vcmp.eq.s32.totalorder %v1474, 1
        %vm1507 = vcmp.eq.s32.totalorder %v1475, 1
        %vm1508 = vcmp.eq.s32.totalorder %v1476, 1
        %vm1509 = vcmp.eq.s32.totalorder %v1477, 1
        %vm1510 = vcmp.eq.s32.totalorder %v1478, 1
        %vm1511 = vcmp.eq.s32.totalorder %v1479, 1
        %vm1512 = vcmp.eq.s32.totalorder %v1480, 1
        %vm1513 = vcmp.eq.s32.totalorder %v1481, 1
        %vm1514 = vcmp.eq.s32.totalorder %v1482, 1
        %vm1515 = vcmp.eq.s32.totalorder %v1483, 1
        %vm1516 = vcmp.eq.s32.totalorder %v1484, 1
        %vm1517 = vcmp.eq.s32.totalorder %v1485, 1
        %vm1518 = vcmp.eq.s32.totalorder %v1486, 1
        %vm1519 = vcmp.eq.s32.totalorder %v1487, 1
        %vm1520 = vcmp.eq.s32.totalorder %v1488, 1
        %vm1521 = vcmp.eq.s32.totalorder %v1489, 1
        %vm1522 = vmpackc.low %vm1490, %vm1490
        %vm1523 = vmpackc.low %vm1491, %vm1491
        %vm1524 = vmpackc.low %vm1492, %vm1492
        %vm1525 = vmpackc.low %vm1493, %vm1493
        %vm1526 = vmpackc.low %vm1494, %vm1494
        %vm1527 = vmpackc.low %vm1495, %vm1495
        %vm1528 = vmpackc.low %vm1496, %vm1496
        %vm1529 = vmpackc.low %vm1497, %vm1497
        %vm1530 = vmpackc.low %vm1498, %vm1498
        %vm1531 = vmpackc.low %vm1499, %vm1499
        %vm1532 = vmpackc.low %vm1500, %vm1500
        %vm1533 = vmpackc.low %vm1501, %vm1501
        %vm1534 = vmpackc.low %vm1502, %vm1502
        %vm1535 = vmpackc.low %vm1503, %vm1503
        %vm1536 = vmpackc.low %vm1504, %vm1504
        %vm1537 = vmpackc.low %vm1505, %vm1505
        %vm1538 = vmpackc.low %vm1506, %vm1506
        %vm1539 = vmpackc.low %vm1507, %vm1507
        %vm1540 = vmpackc.low %vm1508, %vm1508
        %vm1541 = vmpackc.low %vm1509, %vm1509
        %vm1542 = vmpackc.low %vm1510, %vm1510
        %vm1543 = vmpackc.low %vm1511, %vm1511
        %vm1544 = vmpackc.low %vm1512, %vm1512
        %vm1545 = vmpackc.low %vm1513, %vm1513
        %vm1546 = vmpackc.low %vm1514, %vm1514
        %vm1547 = vmpackc.low %vm1515, %vm1515
        %vm1548 = vmpackc.low %vm1516, %vm1516
        %vm1549 = vmpackc.low %vm1517, %vm1517
        %vm1550 = vmpackc.low %vm1518, %vm1518
        %vm1551 = vmpackc.low %vm1519, %vm1519
        %vm1552 = vmpackc.low %vm1520, %vm1520
        %vm1553 = vmpackc.low %vm1521, %vm1521
        %v1554 = vsel %vm1522, 65537, 0
        %v1555 = vsel %vm1523, 65537, 0
        %v1556 = vsel %vm1524, 65537, 0
        %v1557 = vsel %vm1525, 65537, 0
        %v1558 = vsel %vm1526, 65537, 0
        %v1559 = vsel %vm1527, 65537, 0
        %v1560 = vsel %vm1528, 65537, 0
        %v1561 = vsel %vm1529, 65537, 0
        %v1562 = vsel %vm1530, 65537, 0
        %v1563 = vsel %vm1531, 65537, 0
        %v1564 = vsel %vm1532, 65537, 0
        %v1565 = vsel %vm1533, 65537, 0
        %v1566 = vsel %vm1534, 65537, 0
        %v1567 = vsel %vm1535, 65537, 0
        %v1568 = vsel %vm1536, 65537, 0
        %v1569 = vsel %vm1537, 65537, 0
        %v1570 = vsel %vm1538, 65537, 0
        %v1571 = vsel %vm1539, 65537, 0
        %v1572 = vsel %vm1540, 65537, 0
        %v1573 = vsel %vm1541, 65537, 0
        %v1574 = vsel %vm1542, 65537, 0
        %v1575 = vsel %vm1543, 65537, 0
        %v1576 = vsel %vm1544, 65537, 0
        %v1577 = vsel %vm1545, 65537, 0
        %v1578 = vsel %vm1546, 65537, 0
        %v1579 = vsel %vm1547, 65537, 0
        %v1580 = vsel %vm1548, 65537, 0
        %v1581 = vsel %vm1549, 65537, 0
        %v1582 = vsel %vm1550, 65537, 0
        %v1583 = vsel %vm1551, 65537, 0
        %v1584 = vsel %vm1552, 65537, 0
        %v1585 = vsel %vm1553, 65537, 0
        %vm1586 = vsmask.f32 3328
        %vm1587 = vsmask.f32 7440
        %vm1588 = vmor %vm1586, %vm1587
        %v1590 = vshll.u32 %v1554, 16
        %v1592 = vrot.slane %v1590, 5
        %v1593 = vshrl.u32 %v1554, 16
        %v1595 = vrot.slane %v1593, 4
        %v1596 = vor.u32 %v1595, %v1592
        %v1597 = vrot.slane %v1596, 4
        %v1599 = vshll.u32 %v1555, 16
        %v1601 = vrot.slane %v1599, 5
        %v1602 = vsel %vm1588, %v1597, %v1601
        %v1603 = vshrl.u32 %v1555, 16
        %v1605 = vrot.slane %v1603, 4
        %v1606 = vor.u32 %v1605, %v1601
        %v1607 = vrot.slane %v1606, 4
        %v1609 = vshll.u32 %v1556, 16
        %v1611 = vrot.slane %v1609, 5
        %v1612 = vsel %vm1588, %v1607, %v1611
        %v1613 = vshrl.u32 %v1556, 16
        %v1615 = vrot.slane %v1613, 4
        %v1616 = vor.u32 %v1615, %v1611
        %v1617 = vrot.slane %v1616, 4
        %v1619 = vshll.u32 %v1557, 16
        %v1621 = vrot.slane %v1619, 5
        %v1622 = vsel %vm1588, %v1617, %v1621
        %v1623 = vshrl.u32 %v1557, 16
        %v1625 = vrot.slane %v1623, 4
        %v1626 = vor.u32 %v1625, %v1621
        %v1627 = vrot.slane %v1626, 4
        %v1629 = vshll.u32 %v1558, 16
        %v1631 = vrot.slane %v1629, 5
        %v1632 = vsel %vm1588, %v1627, %v1631
        %v1633 = vshrl.u32 %v1558, 16
        %v1635 = vrot.slane %v1633, 4
        %v1636 = vor.u32 %v1635, %v1631
        %v1637 = vrot.slane %v1636, 4
        %v1639 = vshll.u32 %v1559, 16
        %v1641 = vrot.slane %v1639, 5
        %v1642 = vsel %vm1588, %v1637, %v1641
        %v1643 = vshrl.u32 %v1559, 16
        %v1645 = vrot.slane %v1643, 4
        %v1646 = vor.u32 %v1645, %v1641
        %v1647 = vrot.slane %v1646, 4
        %v1649 = vshll.u32 %v1560, 16
        %v1651 = vrot.slane %v1649, 5
        %v1652 = vsel %vm1588, %v1647, %v1651
        %v1653 = vshrl.u32 %v1560, 16
        %v1655 = vrot.slane %v1653, 4
        %v1656 = vor.u32 %v1655, %v1651
        %v1657 = vrot.slane %v1656, 4
        %v1659 = vshll.u32 %v1561, 16
        %v1661 = vrot.slane %v1659, 5
        %v1662 = vsel %vm1588, %v1657, %v1661
        %v1663 = vshrl.u32 %v1561, 16
        %v1665 = vrot.slane %v1663, 4
        %v1666 = vor.u32 %v1665, %v1661
        %v1667 = vrot.slane %v1666, 4
        %v1669 = vshll.u32 %v1562, 16
        %v1671 = vrot.slane %v1669, 5
        %v1672 = vsel %vm1588, %v1667, %v1671
        %v1673 = vshrl.u32 %v1562, 16
        %v1675 = vrot.slane %v1673, 4
        %v1676 = vor.u32 %v1675, %v1671
        %v1677 = vrot.slane %v1676, 4
        %v1679 = vshll.u32 %v1563, 16
        %v1681 = vrot.slane %v1679, 5
        %v1682 = vsel %vm1588, %v1677, %v1681
        %v1683 = vshrl.u32 %v1563, 16
        %v1685 = vrot.slane %v1683, 4
        %v1686 = vor.u32 %v1685, %v1681
        %v1687 = vrot.slane %v1686, 4
        %v1689 = vshll.u32 %v1564, 16
        %v1691 = vrot.slane %v1689, 5
        %v1692 = vsel %vm1588, %v1687, %v1691
        %v1693 = vshrl.u32 %v1564, 16
        %v1695 = vrot.slane %v1693, 4
        %v1696 = vor.u32 %v1695, %v1691
        %v1697 = vrot.slane %v1696, 4
        %v1699 = vshll.u32 %v1565, 16
        %v1701 = vrot.slane %v1699, 5
        %v1702 = vsel %vm1588, %v1697, %v1701
        %v1703 = vshrl.u32 %v1565, 16
        %v1705 = vrot.slane %v1703, 4
        %v1706 = vor.u32 %v1705, %v1701
        %v1707 = vrot.slane %v1706, 4
        %v1709 = vshll.u32 %v1566, 16
        %v1711 = vrot.slane %v1709, 5
        %v1712 = vsel %vm1588, %v1707, %v1711
        %v1713 = vshrl.u32 %v1566, 16
        %v1715 = vrot.slane %v1713, 4
        %v1716 = vor.u32 %v1715, %v1711
        %v1717 = vrot.slane %v1716, 4
        %v1719 = vshll.u32 %v1567, 16
        %v1721 = vrot.slane %v1719, 5
        %v1722 = vsel %vm1588, %v1717, %v1721
        %v1723 = vshrl.u32 %v1567, 16
        %v1725 = vrot.slane %v1723, 4
        %v1726 = vor.u32 %v1725, %v1721
        %v1727 = vrot.slane %v1726, 4
        %v1729 = vshll.u32 %v1568, 16
        %v1731 = vrot.slane %v1729, 5
        %v1732 = vsel %vm1588, %v1727, %v1731
        %v1733 = vshrl.u32 %v1568, 16
        %v1735 = vrot.slane %v1733, 4
        %v1736 = vor.u32 %v1735, %v1731
        %v1737 = vrot.slane %v1736, 4
        %v1739 = vshll.u32 %v1569, 16
        %v1741 = vrot.slane %v1739, 5
        %v1742 = vsel %vm1588, %v1737, %v1741
        %v1743 = vshrl.u32 %v1569, 16
        %v1745 = vrot.slane %v1743, 4
        %v1746 = vor.u32 %v1745, %v1741
        %v1747 = vrot.slane %v1746, 4
        %v1749 = vshll.u32 %v1570, 16
        %v1751 = vrot.slane %v1749, 5
        %v1752 = vsel %vm1588, %v1747, %v1751
        %v1753 = vshrl.u32 %v1570, 16
        %v1755 = vrot.slane %v1753, 4
        %v1756 = vor.u32 %v1755, %v1751
        %v1757 = vrot.slane %v1756, 4
        %v1759 = vshll.u32 %v1571, 16
        %v1761 = vrot.slane %v1759, 5
        %v1762 = vsel %vm1588, %v1757, %v1761
        %v1763 = vshrl.u32 %v1571, 16
        %v1765 = vrot.slane %v1763, 4
        %v1766 = vor.u32 %v1765, %v1761
        %v1767 = vrot.slane %v1766, 4
        %v1769 = vshll.u32 %v1572, 16
        %v1771 = vrot.slane %v1769, 5
        %v1772 = vsel %vm1588, %v1767, %v1771
        %v1773 = vshrl.u32 %v1572, 16
        %v1775 = vrot.slane %v1773, 4
        %v1776 = vor.u32 %v1775, %v1771
        %v1777 = vrot.slane %v1776, 4
        %v1779 = vshll.u32 %v1573, 16
        %v1781 = vrot.slane %v1779, 5
        %v1782 = vsel %vm1588, %v1777, %v1781
        %v1783 = vshrl.u32 %v1573, 16
        %v1785 = vrot.slane %v1783, 4
        %v1786 = vor.u32 %v1785, %v1781
        %v1787 = vrot.slane %v1786, 4
        %v1789 = vshll.u32 %v1574, 16
        %v1791 = vrot.slane %v1789, 5
        %v1792 = vsel %vm1588, %v1787, %v1791
        %v1793 = vshrl.u32 %v1574, 16
        %v1795 = vrot.slane %v1793, 4
        %v1796 = vor.u32 %v1795, %v1791
        %v1797 = vrot.slane %v1796, 4
        %v1799 = vshll.u32 %v1575, 16
        %v1801 = vrot.slane %v1799, 5
        %v1802 = vsel %vm1588, %v1797, %v1801
        %v1803 = vshrl.u32 %v1575, 16
        %v1805 = vrot.slane %v1803, 4
        %v1806 = vor.u32 %v1805, %v1801
        %v1807 = vrot.slane %v1806, 4
        %v1809 = vshll.u32 %v1576, 16
        %v1811 = vrot.slane %v1809, 5
        %v1812 = vsel %vm1588, %v1807, %v1811
        %v1813 = vshrl.u32 %v1576, 16
        %v1815 = vrot.slane %v1813, 4
        %v1816 = vor.u32 %v1815, %v1811
        %v1817 = vrot.slane %v1816, 4
        %v1819 = vshll.u32 %v1577, 16
        %v1821 = vrot.slane %v1819, 5
        %v1822 = vsel %vm1588, %v1817, %v1821
        %v1823 = vshrl.u32 %v1577, 16
        %v1825 = vrot.slane %v1823, 4
        %v1826 = vor.u32 %v1825, %v1821
        %v1827 = vrot.slane %v1826, 4
        %v1829 = vshll.u32 %v1578, 16
        %v1831 = vrot.slane %v1829, 5
        %v1832 = vsel %vm1588, %v1827, %v1831
        %v1833 = vshrl.u32 %v1578, 16
        %v1835 = vrot.slane %v1833, 4
        %v1836 = vor.u32 %v1835, %v1831
        %v1837 = vrot.slane %v1836, 4
        %v1839 = vshll.u32 %v1579, 16
        %v1841 = vrot.slane %v1839, 5
        %v1842 = vsel %vm1588, %v1837, %v1841
        %v1843 = vshrl.u32 %v1579, 16
        %v1845 = vrot.slane %v1843, 4
        %v1846 = vor.u32 %v1845, %v1841
        %v1847 = vrot.slane %v1846, 4
        %v1849 = vshll.u32 %v1580, 16
        %v1851 = vrot.slane %v1849, 5
        %v1852 = vsel %vm1588, %v1847, %v1851
        %v1853 = vshrl.u32 %v1580, 16
        %v1855 = vrot.slane %v1853, 4
        %v1856 = vor.u32 %v1855, %v1851
        %v1857 = vrot.slane %v1856, 4
        %v1859 = vshll.u32 %v1581, 16
        %v1861 = vrot.slane %v1859, 5
        %v1862 = vsel %vm1588, %v1857, %v1861
        %v1863 = vshrl.u32 %v1581, 16
        %v1865 = vrot.slane %v1863, 4
        %v1866 = vor.u32 %v1865, %v1861
        %v1867 = vrot.slane %v1866, 4
        %v1869 = vshll.u32 %v1582, 16
        %v1871 = vrot.slane %v1869, 5
        %v1872 = vsel %vm1588, %v1867, %v1871
        %v1873 = vshrl.u32 %v1582, 16
        %v1875 = vrot.slane %v1873, 4
        %v1876 = vor.u32 %v1875, %v1871
        %v1877 = vrot.slane %v1876, 4
        %v1879 = vshll.u32 %v1583, 16
        %v1881 = vrot.slane %v1879, 5
        %v1882 = vsel %vm1588, %v1877, %v1881
        %v1883 = vshrl.u32 %v1583, 16
        %v1885 = vrot.slane %v1883, 4
        %v1886 = vor.u32 %v1885, %v1881
        %v1887 = vrot.slane %v1886, 4
        %v1889 = vshll.u32 %v1584, 16
        %v1891 = vrot.slane %v1889, 5
        %v1892 = vsel %vm1588, %v1887, %v1891
        %v1893 = vshrl.u32 %v1584, 16
        %v1895 = vrot.slane %v1893, 4
        %v1896 = vor.u32 %v1895, %v1891
        %v1897 = vrot.slane %v1896, 4
        %v1899 = vshll.u32 %v1585, 16
        %v1901 = vrot.slane %v1899, 5
        %v1902 = vsel %vm1588, %v1897, %v1901
        %v1903 = vshrl.u32 %v1585, 16
        %v1905 = vrot.slane %v1903, 4
        %v1906 = vor.u32 %v1905, %v1901
        %v1907 = vrot.slane %v1906, 4
        %vm1908 = vcmp.ne.s16.totalorder %v1592, 0
        %vm1909 = vcmp.ne.s16.totalorder %v1602, 0
        %vm1910 = vcmp.ne.s16.totalorder %v1612, 0
        %vm1911 = vcmp.ne.s16.totalorder %v1622, 0
        %vm1912 = vcmp.ne.s16.totalorder %v1632, 0
        %vm1913 = vcmp.ne.s16.totalorder %v1642, 0
        %vm1914 = vcmp.ne.s16.totalorder %v1652, 0
        %vm1915 = vcmp.ne.s16.totalorder %v1662, 0
        %vm1916 = vcmp.ne.s16.totalorder %v1672, 0
        %vm1917 = vcmp.ne.s16.totalorder %v1682, 0
        %vm1918 = vcmp.ne.s16.totalorder %v1692, 0
        %vm1919 = vcmp.ne.s16.totalorder %v1702, 0
        %vm1920 = vcmp.ne.s16.totalorder %v1712, 0
        %vm1921 = vcmp.ne.s16.totalorder %v1722, 0
        %vm1922 = vcmp.ne.s16.totalorder %v1732, 0
        %vm1923 = vcmp.ne.s16.totalorder %v1742, 0
        %vm1924 = vcmp.ne.s16.totalorder %v1752, 0
        %vm1925 = vcmp.ne.s16.totalorder %v1762, 0
        %vm1926 = vcmp.ne.s16.totalorder %v1772, 0
        %vm1927 = vcmp.ne.s16.totalorder %v1782, 0
        %vm1928 = vcmp.ne.s16.totalorder %v1792, 0
        %vm1929 = vcmp.ne.s16.totalorder %v1802, 0
        %vm1930 = vcmp.ne.s16.totalorder %v1812, 0
        %vm1931 = vcmp.ne.s16.totalorder %v1822, 0
        %vm1932 = vcmp.ne.s16.totalorder %v1832, 0
        %vm1933 = vcmp.ne.s16.totalorder %v1842, 0
        %vm1934 = vcmp.ne.s16.totalorder %v1852, 0
        %vm1935 = vcmp.ne.s16.totalorder %v1862, 0
        %vm1936 = vcmp.ne.s16.totalorder %v1872, 0
        %vm1937 = vcmp.ne.s16.totalorder %v1882, 0
        %vm1938 = vcmp.ne.s16.totalorder %v1892, 0
        %vm1939 = vcmp.ne.s16.totalorder %v1902, 0
        %vm1940 = vcmp.ne.s16.totalorder %v1907, 0
        %v1941 = vsel %vm1908, %v1389, 0
        %v1942 = vsel %vm1909, %v1390, 0
        %v1943 = vsel %vm1910, %v1391, 0
        %v1944 = vsel %vm1911, %v1392, 0
        %v1945 = vsel %vm1912, %v1393, 0
        %v1946 = vsel %vm1913, %v1394, 0
        %v1947 = vsel %vm1914, %v1395, 0
        %v1948 = vsel %vm1915, %v1396, 0
        %v1949 = vsel %vm1916, %v1397, 0
        %v1950 = vsel %vm1917, %v1398, 0
        %v1951 = vsel %vm1918, %v1399, 0
        %v1952 = vsel %vm1919, %v1400, 0
        %v1953 = vsel %vm1920, %v1401, 0
        %v1954 = vsel %vm1921, %v1402, 0
        %v1955 = vsel %vm1922, %v1403, 0
        %v1956 = vsel %vm1923, %v1404, 0
        %v1957 = vsel %vm1924, %v1405, 0
        %v1958 = vsel %vm1925, %v1406, 0
        %v1959 = vsel %vm1926, %v1407, 0
        %v1960 = vsel %vm1927, %v1408, 0
        %v1961 = vsel %vm1928, %v1409, 0
        %v1962 = vsel %vm1929, %v1410, 0
        %v1963 = vsel %vm1930, %v1411, 0
        %v1964 = vsel %vm1931, %v1412, 0
        %v1965 = vsel %vm1932, %v1413, 0
        %v1966 = vsel %vm1933, %v1414, 0
        %v1967 = vsel %vm1934, %v1415, 0
        %v1968 = vsel %vm1935, %v1416, 0
        %v1969 = vsel %vm1936, %v1417, 0
        %v1970 = vsel %vm1937, %v1418, 0
        %v1971 = vsel %vm1938, %v1419, 0
        %v1972 = vsel %vm1939, %v1420, 0
        %v1973 = vsel %vm1940, %v1421, 0
        %vm1974 = vsmask.f32 256
        %vm1975 = vsmask.f32 4368
        %vm1976 = vmor %vm1974, %vm1975
        %v1978 = vshrl.u32 %v1941, 16
        %v1980 = vrot.slane %v1978, 7
        %v1981 = vrot.slane %v1980, 4
        %v1983 = vshrl.u32 %v1942, 16
        %v1985 = vrot.slane %v1983, 7
        %v1986 = vshll.u32 %v1942, 16
        %v1988 = vor.u32 %v1985, %v1986
        %v1989 = vsel %vm1976, %v1981, %v1988
        %v1990 = vrot.slane %v1985, 4
        %v1992 = vshrl.u32 %v1943, 16
        %v1994 = vrot.slane %v1992, 7
        %v1995 = vshll.u32 %v1943, 16
        %v1997 = vor.u32 %v1994, %v1995
        %v1998 = vsel %vm1976, %v1990, %v1997
        %v1999 = vrot.slane %v1994, 4
        %v2001 = vshrl.u32 %v1944, 16
        %v2003 = vrot.slane %v2001, 7
        %v2004 = vshll.u32 %v1944, 16
        %v2006 = vor.u32 %v2003, %v2004
        %v2007 = vsel %vm1976, %v1999, %v2006
        %v2008 = vrot.slane %v2003, 4
        %v2010 = vshrl.u32 %v1945, 16
        %v2012 = vrot.slane %v2010, 7
        %v2013 = vshll.u32 %v1945, 16
        %v2015 = vor.u32 %v2012, %v2013
        %v2016 = vsel %vm1976, %v2008, %v2015
        %v2017 = vrot.slane %v2012, 4
        %v2019 = vshrl.u32 %v1946, 16
        %v2021 = vrot.slane %v2019, 7
        %v2022 = vshll.u32 %v1946, 16
        %v2024 = vor.u32 %v2021, %v2022
        %v2025 = vsel %vm1976, %v2017, %v2024
        %v2026 = vrot.slane %v2021, 4
        %v2028 = vshrl.u32 %v1947, 16
        %v2030 = vrot.slane %v2028, 7
        %v2031 = vshll.u32 %v1947, 16
        %v2033 = vor.u32 %v2030, %v2031
        %v2034 = vsel %vm1976, %v2026, %v2033
        %v2035 = vrot.slane %v2030, 4
        %v2037 = vshrl.u32 %v1948, 16
        %v2039 = vrot.slane %v2037, 7
        %v2040 = vshll.u32 %v1948, 16
        %v2042 = vor.u32 %v2039, %v2040
        %v2043 = vsel %vm1976, %v2035, %v2042
        %v2044 = vrot.slane %v2039, 4
        %v2046 = vshrl.u32 %v1949, 16
        %v2048 = vrot.slane %v2046, 7
        %v2049 = vshll.u32 %v1949, 16
        %v2051 = vor.u32 %v2048, %v2049
        %v2052 = vsel %vm1976, %v2044, %v2051
        %v2053 = vrot.slane %v2048, 4
        %v2055 = vshrl.u32 %v1950, 16
        %v2057 = vrot.slane %v2055, 7
        %v2058 = vshll.u32 %v1950, 16
        %v2060 = vor.u32 %v2057, %v2058
        %v2061 = vsel %vm1976, %v2053, %v2060
        %v2062 = vrot.slane %v2057, 4
        %v2064 = vshrl.u32 %v1951, 16
        %v2066 = vrot.slane %v2064, 7
        %v2067 = vshll.u32 %v1951, 16
        %v2069 = vor.u32 %v2066, %v2067
        %v2070 = vsel %vm1976, %v2062, %v2069
        %v2071 = vrot.slane %v2066, 4
        %v2073 = vshrl.u32 %v1952, 16
        %v2075 = vrot.slane %v2073, 7
        %v2076 = vshll.u32 %v1952, 16
        %v2078 = vor.u32 %v2075, %v2076
        %v2079 = vsel %vm1976, %v2071, %v2078
        %v2080 = vrot.slane %v2075, 4
        %v2082 = vshrl.u32 %v1953, 16
        %v2084 = vrot.slane %v2082, 7
        %v2085 = vshll.u32 %v1953, 16
        %v2087 = vor.u32 %v2084, %v2085
        %v2088 = vsel %vm1976, %v2080, %v2087
        %v2089 = vrot.slane %v2084, 4
        %v2091 = vshrl.u32 %v1954, 16
        %v2093 = vrot.slane %v2091, 7
        %v2094 = vshll.u32 %v1954, 16
        %v2096 = vor.u32 %v2093, %v2094
        %v2097 = vsel %vm1976, %v2089, %v2096
        %v2098 = vrot.slane %v2093, 4
        %v2100 = vshrl.u32 %v1955, 16
        %v2102 = vrot.slane %v2100, 7
        %v2103 = vshll.u32 %v1955, 16
        %v2105 = vor.u32 %v2102, %v2103
        %v2106 = vsel %vm1976, %v2098, %v2105
        %v2107 = vrot.slane %v2102, 4
        %v2109 = vshrl.u32 %v1956, 16
        %v2111 = vrot.slane %v2109, 7
        %v2112 = vshll.u32 %v1956, 16
        %v2114 = vor.u32 %v2111, %v2112
        %v2115 = vsel %vm1976, %v2107, %v2114
        %v2116 = vrot.slane %v2111, 4
        %v2118 = vshrl.u32 %v1957, 16
        %v2120 = vrot.slane %v2118, 7
        %v2121 = vshll.u32 %v1957, 16
        %v2123 = vor.u32 %v2120, %v2121
        %v2124 = vsel %vm1976, %v2116, %v2123
        %v2125 = vrot.slane %v2120, 4
        %v2127 = vshrl.u32 %v1958, 16
        %v2129 = vrot.slane %v2127, 7
        %v2130 = vshll.u32 %v1958, 16
        %v2132 = vor.u32 %v2129, %v2130
        %v2133 = vsel %vm1976, %v2125, %v2132
        %v2134 = vrot.slane %v2129, 4
        %v2136 = vshrl.u32 %v1959, 16
        %v2138 = vrot.slane %v2136, 7
        %v2139 = vshll.u32 %v1959, 16
        %v2141 = vor.u32 %v2138, %v2139
        %v2142 = vsel %vm1976, %v2134, %v2141
        %v2143 = vrot.slane %v2138, 4
        %v2145 = vshrl.u32 %v1960, 16
        %v2147 = vrot.slane %v2145, 7
        %v2148 = vshll.u32 %v1960, 16
        %v2150 = vor.u32 %v2147, %v2148
        %v2151 = vsel %vm1976, %v2143, %v2150
        %v2152 = vrot.slane %v2147, 4
        %v2154 = vshrl.u32 %v1961, 16
        %v2156 = vrot.slane %v2154, 7
        %v2157 = vshll.u32 %v1961, 16
        %v2159 = vor.u32 %v2156, %v2157
        %v2160 = vsel %vm1976, %v2152, %v2159
        %v2161 = vrot.slane %v2156, 4
        %v2163 = vshrl.u32 %v1962, 16
        %v2165 = vrot.slane %v2163, 7
        %v2166 = vshll.u32 %v1962, 16
        %v2168 = vor.u32 %v2165, %v2166
        %v2169 = vsel %vm1976, %v2161, %v2168
        %v2170 = vrot.slane %v2165, 4
        %v2172 = vshrl.u32 %v1963, 16
        %v2174 = vrot.slane %v2172, 7
        %v2175 = vshll.u32 %v1963, 16
        %v2177 = vor.u32 %v2174, %v2175
        %v2178 = vsel %vm1976, %v2170, %v2177
        %v2179 = vrot.slane %v2174, 4
        %v2181 = vshrl.u32 %v1964, 16
        %v2183 = vrot.slane %v2181, 7
        %v2184 = vshll.u32 %v1964, 16
        %v2186 = vor.u32 %v2183, %v2184
        %v2187 = vsel %vm1976, %v2179, %v2186
        %v2188 = vrot.slane %v2183, 4
        %v2190 = vshrl.u32 %v1965, 16
        %v2192 = vrot.slane %v2190, 7
        %v2193 = vshll.u32 %v1965, 16
        %v2195 = vor.u32 %v2192, %v2193
        %v2196 = vsel %vm1976, %v2188, %v2195
        %v2197 = vrot.slane %v2192, 4
        %v2199 = vshrl.u32 %v1966, 16
        %v2201 = vrot.slane %v2199, 7
        %v2202 = vshll.u32 %v1966, 16
        %v2204 = vor.u32 %v2201, %v2202
        %v2205 = vsel %vm1976, %v2197, %v2204
        %v2206 = vrot.slane %v2201, 4
        %v2208 = vshrl.u32 %v1967, 16
        %v2210 = vrot.slane %v2208, 7
        %v2211 = vshll.u32 %v1967, 16
        %v2213 = vor.u32 %v2210, %v2211
        %v2214 = vsel %vm1976, %v2206, %v2213
        %v2215 = vrot.slane %v2210, 4
        %v2217 = vshrl.u32 %v1968, 16
        %v2219 = vrot.slane %v2217, 7
        %v2220 = vshll.u32 %v1968, 16
        %v2222 = vor.u32 %v2219, %v2220
        %v2223 = vsel %vm1976, %v2215, %v2222
        %v2224 = vrot.slane %v2219, 4
        %v2226 = vshrl.u32 %v1969, 16
        %v2228 = vrot.slane %v2226, 7
        %v2229 = vshll.u32 %v1969, 16
        %v2231 = vor.u32 %v2228, %v2229
        %v2232 = vsel %vm1976, %v2224, %v2231
        %v2233 = vrot.slane %v2228, 4
        %v2235 = vshrl.u32 %v1970, 16
        %v2237 = vrot.slane %v2235, 7
        %v2238 = vshll.u32 %v1970, 16
        %v2240 = vor.u32 %v2237, %v2238
        %v2241 = vsel %vm1976, %v2233, %v2240
        %v2242 = vrot.slane %v2237, 4
        %v2244 = vshrl.u32 %v1971, 16
        %v2246 = vrot.slane %v2244, 7
        %v2247 = vshll.u32 %v1971, 16
        %v2249 = vor.u32 %v2246, %v2247
        %v2250 = vsel %vm1976, %v2242, %v2249
        %v2251 = vrot.slane %v2246, 4
        %v2253 = vshrl.u32 %v1972, 16
        %v2255 = vrot.slane %v2253, 7
        %v2256 = vshll.u32 %v1972, 16
        %v2258 = vor.u32 %v2255, %v2256
        %v2259 = vsel %vm1976, %v2251, %v2258
        %v2260 = vrot.slane %v2255, 4
        %v2262 = vshrl.u32 %v1973, 16
        %v2264 = vrot.slane %v2262, 7
        %v2265 = vshll.u32 %v1973, 16
        %v2267 = vor.u32 %v2264, %v2265
        %v2268 = vsel %vm1976, %v2260, %v2267
        %2301 = vst [vmem:[#allocation3 + $0x8] sm:$0xf] %v1989
        %2302 = vst [vmem:[#allocation3 + $0xc] sm:$0xf] %v1998
        %2303 = vst [vmem:[#allocation3 + $0x10] sm:$0xf] %v2007
        %2304 = vst [vmem:[#allocation3 + $0x14] sm:$0xf] %v2016
        %2305 = vst [vmem:[#allocation3 + $0x18] sm:$0xf] %v2025
        %2306 = vst [vmem:[#allocation3 + $0x1c] sm:$0xf] %v2034
        %2307 = vst [vmem:[#allocation3 + $0x20] sm:$0xf] %v2043
        %2308 = vst [vmem:[#allocation3 + $0x24] sm:$0xf] %v2052
        %2309 = vst [vmem:[#allocation3 + $0x28] sm:$0xf] %v2061
        %2310 = vst [vmem:[#allocation3 + $0x2c] sm:$0xf] %v2070
        %2311 = vst [vmem:[#allocation3 + $0x30] sm:$0xf] %v2079
        %2312 = vst [vmem:[#allocation3 + $0x34] sm:$0xf] %v2088
        %2313 = vst [vmem:[#allocation3 + $0x38] sm:$0xf] %v2097
        %2314 = vst [vmem:[#allocation3 + $0x3c] sm:$0xf] %v2106
        %2315 = vst [vmem:[#allocation3 + $0x40] sm:$0xf] %v2115
        %2316 = vst [vmem:[#allocation3 + $0x44] sm:$0xf] %v2124
        %2317 = vst [vmem:[#allocation3 + $0x48] sm:$0xf] %v2133
        %2318 = vst [vmem:[#allocation3 + $0x4c] sm:$0xf] %v2142
        %2319 = vst [vmem:[#allocation3 + $0x50] sm:$0xf] %v2151
        %2320 = vst [vmem:[#allocation3 + $0x54] sm:$0xf] %v2160
        %2321 = vst [vmem:[#allocation3 + $0x58] sm:$0xf] %v2169
        %2322 = vst [vmem:[#allocation3 + $0x5c] sm:$0xf] %v2178
        %2323 = vst [vmem:[#allocation3 + $0x60] sm:$0xf] %v2187
        %2324 = vst [vmem:[#allocation3 + $0x64] sm:$0xf] %v2196
        %2325 = vst [vmem:[#allocation3 + $0x68] sm:$0xf] %v2205
        %2326 = vst [vmem:[#allocation3 + $0x6c] sm:$0xf] %v2214
        %2327 = vst [vmem:[#allocation3 + $0x70] sm:$0xf] %v2223
        %2328 = vst [vmem:[#allocation3 + $0x74] sm:$0xf] %v2232
        %2329 = vst [vmem:[#allocation3 + $0x78] sm:$0xf] %v2241
        %2330 = vst [vmem:[#allocation3 + $0x7c] sm:$0xf] %v2250
        %2331 = vst [vmem:[#allocation3 + $0x80] sm:$0xf] %v2259
        %2332 = vst [vmem:[#allocation3 + $0x84] sm:$0xf] %v2268
        %v2333 = vld [vmem:[#allocation2 + $0x8] sm:$0xf]
        %v2334 = vld [vmem:[#allocation2 + $0xc] sm:$0xf]
        %v2335 = vld [vmem:[#allocation2 + $0x10] sm:$0xf]
        %v2336 = vld [vmem:[#allocation2 + $0x14] sm:$0xf]
        %v2337 = vld [vmem:[#allocation2 + $0x18] sm:$0xf]
        %v2338 = vld [vmem:[#allocation2 + $0x1c] sm:$0xf]
        %v2339 = vld [vmem:[#allocation2 + $0x20] sm:$0xf]
        %v2340 = vld [vmem:[#allocation2 + $0x24] sm:$0xf]
        %v2341 = vld [vmem:[#allocation2 + $0x28] sm:$0xf]
        %v2342 = vld [vmem:[#allocation2 + $0x2c] sm:$0xf]
        %v2343 = vld [vmem:[#allocation2 + $0x30] sm:$0xf]
        %v2344 = vld [vmem:[#allocation2 + $0x34] sm:$0xf]
        %v2345 = vld [vmem:[#allocation2 + $0x38] sm:$0xf]
        %v2346 = vld [vmem:[#allocation2 + $0x3c] sm:$0xf]
        %v2347 = vld [vmem:[#allocation2 + $0x40] sm:$0xf]
        %v2348 = vld [vmem:[#allocation2 + $0x44] sm:$0xf]
        %v2349 = vld [vmem:[#allocation2 + $0x48] sm:$0xf]
        %v2350 = vld [vmem:[#allocation2 + $0x4c] sm:$0xf]
        %v2351 = vld [vmem:[#allocation2 + $0x50] sm:$0xf]
        %v2352 = vld [vmem:[#allocation2 + $0x54] sm:$0xf]
        %v2353 = vld [vmem:[#allocation2 + $0x58] sm:$0xf]
        %v2354 = vld [vmem:[#allocation2 + $0x5c] sm:$0xf]
        %v2355 = vld [vmem:[#allocation2 + $0x60] sm:$0xf]
        %v2356 = vld [vmem:[#allocation2 + $0x64] sm:$0xf]
        %v2357 = vld [vmem:[#allocation2 + $0x68] sm:$0xf]
        %v2358 = vld [vmem:[#allocation2 + $0x6c] sm:$0xf]
        %v2359 = vld [vmem:[#allocation2 + $0x70] sm:$0xf]
        %v2360 = vld [vmem:[#allocation2 + $0x74] sm:$0xf]
        %v2361 = vld [vmem:[#allocation2 + $0x78] sm:$0xf]
        %v2362 = vld [vmem:[#allocation2 + $0x7c] sm:$0xf]
        %v2363 = vld [vmem:[#allocation2 + $0x80] sm:$0xf]
        %v2364 = vld [vmem:[#allocation2 + $0x84] sm:$0xf]
        %v2365 = vld [vmem:[#allocation2 + $0x88] sm:$0x1]
        %2366 = vst [vmem:[#allocation4] sm:$0xf] 0
        %2367 = vst [vmem:[#allocation4 + $0x4] sm:$0xf] 0
        %2368 = vst [vmem:[#allocation4 + $0x88] sm:$0xf] 0
        %2369 = vst [vmem:[#allocation4 + $0x8c] sm:$0xf] 0
        %vm2370 = vcmp.le.s32.totalorder %v1357, 14
        %vm2371 = vcmp.le.s32.totalorder %v1358, 14
        %vm2372 = vcmp.le.s32.totalorder %v1359, 14
        %vm2373 = vcmp.le.s32.totalorder %v1360, 14
        %vm2374 = vcmp.le.s32.totalorder %v1361, 14
        %vm2375 = vcmp.le.s32.totalorder %v1362, 14
        %vm2376 = vcmp.le.s32.totalorder %v1363, 14
        %vm2377 = vcmp.le.s32.totalorder %v1364, 14
        %vm2378 = vcmp.le.s32.totalorder %v1365, 14
        %vm2379 = vcmp.le.s32.totalorder %v1366, 14
        %vm2380 = vcmp.le.s32.totalorder %v1367, 14
        %vm2381 = vcmp.le.s32.totalorder %v1368, 14
        %vm2382 = vcmp.le.s32.totalorder %v1369, 14
        %vm2383 = vcmp.le.s32.totalorder %v1370, 14
        %vm2384 = vcmp.le.s32.totalorder %v1371, 14
        %vm2385 = vcmp.le.s32.totalorder %v1372, 14
        %vm2386 = vcmp.le.s32.totalorder %v1373, 14
        %vm2387 = vcmp.le.s32.totalorder %v1374, 14
        %vm2388 = vcmp.le.s32.totalorder %v1375, 14
        %vm2389 = vcmp.le.s32.totalorder %v1376, 14
        %vm2390 = vcmp.le.s32.totalorder %v1377, 14
        %vm2391 = vcmp.le.s32.totalorder %v1378, 14
        %vm2392 = vcmp.le.s32.totalorder %v1379, 14
        %vm2393 = vcmp.le.s32.totalorder %v1380, 14
        %vm2394 = vcmp.le.s32.totalorder %v1381, 14
        %vm2395 = vcmp.le.s32.totalorder %v1382, 14
        %vm2396 = vcmp.le.s32.totalorder %v1383, 14
        %vm2397 = vcmp.le.s32.totalorder %v1384, 14
        %vm2398 = vcmp.le.s32.totalorder %v1385, 14
        %vm2399 = vcmp.le.s32.totalorder %v1386, 14
        %vm2400 = vcmp.le.s32.totalorder %v1387, 14
        %vm2401 = vcmp.le.s32.totalorder %v1388, 14
        %v2402 = vsel %vm2370, 1, 0
        %v2403 = vsel %vm2371, 1, 0
        %v2404 = vsel %vm2372, 1, 0
        %v2405 = vsel %vm2373, 1, 0
        %v2406 = vsel %vm2374, 1, 0
        %v2407 = vsel %vm2375, 1, 0
        %v2408 = vsel %vm2376, 1, 0
        %v2409 = vsel %vm2377, 1, 0
        %v2410 = vsel %vm2378, 1, 0
        %v2411 = vsel %vm2379, 1, 0
        %v2412 = vsel %vm2380, 1, 0
        %v2413 = vsel %vm2381, 1, 0
        %v2414 = vsel %vm2382, 1, 0
        %v2415 = vsel %vm2383, 1, 0
        %v2416 = vsel %vm2384, 1, 0
        %v2417 = vsel %vm2385, 1, 0
        %v2418 = vsel %vm2386, 1, 0
        %v2419 = vsel %vm2387, 1, 0
        %v2420 = vsel %vm2388, 1, 0
        %v2421 = vsel %vm2389, 1, 0
        %v2422 = vsel %vm2390, 1, 0
        %v2423 = vsel %vm2391, 1, 0
        %v2424 = vsel %vm2392, 1, 0
        %v2425 = vsel %vm2393, 1, 0
        %v2426 = vsel %vm2394, 1, 0
        %v2427 = vsel %vm2395, 1, 0
        %v2428 = vsel %vm2396, 1, 0
        %v2429 = vsel %vm2397, 1, 0
        %v2430 = vsel %vm2398, 1, 0
        %v2431 = vsel %vm2399, 1, 0
        %v2432 = vsel %vm2400, 1, 0
        %v2433 = vsel %vm2401, 1, 0
        %vm2434 = vcmp.eq.s32.totalorder %v2402, 1
        %vm2435 = vcmp.eq.s32.totalorder %v2403, 1
        %vm2436 = vcmp.eq.s32.totalorder %v2404, 1
        %vm2437 = vcmp.eq.s32.totalorder %v2405, 1
        %vm2438 = vcmp.eq.s32.totalorder %v2406, 1
        %vm2439 = vcmp.eq.s32.totalorder %v2407, 1
        %vm2440 = vcmp.eq.s32.totalorder %v2408, 1
        %vm2441 = vcmp.eq.s32.totalorder %v2409, 1
        %vm2442 = vcmp.eq.s32.totalorder %v2410, 1
        %vm2443 = vcmp.eq.s32.totalorder %v2411, 1
        %vm2444 = vcmp.eq.s32.totalorder %v2412, 1
        %vm2445 = vcmp.eq.s32.totalorder %v2413, 1
        %vm2446 = vcmp.eq.s32.totalorder %v2414, 1
        %vm2447 = vcmp.eq.s32.totalorder %v2415, 1
        %vm2448 = vcmp.eq.s32.totalorder %v2416, 1
        %vm2449 = vcmp.eq.s32.totalorder %v2417, 1
        %vm2450 = vcmp.eq.s32.totalorder %v2418, 1
        %vm2451 = vcmp.eq.s32.totalorder %v2419, 1
        %vm2452 = vcmp.eq.s32.totalorder %v2420, 1
        %vm2453 = vcmp.eq.s32.totalorder %v2421, 1
        %vm2454 = vcmp.eq.s32.totalorder %v2422, 1
        %vm2455 = vcmp.eq.s32.totalorder %v2423, 1
        %vm2456 = vcmp.eq.s32.totalorder %v2424, 1
        %vm2457 = vcmp.eq.s32.totalorder %v2425, 1
        %vm2458 = vcmp.eq.s32.totalorder %v2426, 1
        %vm2459 = vcmp.eq.s32.totalorder %v2427, 1
        %vm2460 = vcmp.eq.s32.totalorder %v2428, 1
        %vm2461 = vcmp.eq.s32.totalorder %v2429, 1
        %vm2462 = vcmp.eq.s32.totalorder %v2430, 1
        %vm2463 = vcmp.eq.s32.totalorder %v2431, 1
        %vm2464 = vcmp.eq.s32.totalorder %v2432, 1
        %vm2465 = vcmp.eq.s32.totalorder %v2433, 1
        %vm2466 = vmpackc.low %vm2434, %vm2434
        %vm2467 = vmpackc.low %vm2435, %vm2435
        %vm2468 = vmpackc.low %vm2436, %vm2436
        %vm2469 = vmpackc.low %vm2437, %vm2437
        %vm2470 = vmpackc.low %vm2438, %vm2438
        %vm2471 = vmpackc.low %vm2439, %vm2439
        %vm2472 = vmpackc.low %vm2440, %vm2440
        %vm2473 = vmpackc.low %vm2441, %vm2441
        %vm2474 = vmpackc.low %vm2442, %vm2442
        %vm2475 = vmpackc.low %vm2443, %vm2443
        %vm2476 = vmpackc.low %vm2444, %vm2444
        %vm2477 = vmpackc.low %vm2445, %vm2445
        %vm2478 = vmpackc.low %vm2446, %vm2446
        %vm2479 = vmpackc.low %vm2447, %vm2447
        %vm2480 = vmpackc.low %vm2448, %vm2448
        %vm2481 = vmpackc.low %vm2449, %vm2449
        %vm2482 = vmpackc.low %vm2450, %vm2450
        %vm2483 = vmpackc.low %vm2451, %vm2451
        %vm2484 = vmpackc.low %vm2452, %vm2452
        %vm2485 = vmpackc.low %vm2453, %vm2453
        %vm2486 = vmpackc.low %vm2454, %vm2454
        %vm2487 = vmpackc.low %vm2455, %vm2455
        %vm2488 = vmpackc.low %vm2456, %vm2456
        %vm2489 = vmpackc.low %vm2457, %vm2457
        %vm2490 = vmpackc.low %vm2458, %vm2458
        %vm2491 = vmpackc.low %vm2459, %vm2459
        %vm2492 = vmpackc.low %vm2460, %vm2460
        %vm2493 = vmpackc.low %vm2461, %vm2461
        %vm2494 = vmpackc.low %vm2462, %vm2462
        %vm2495 = vmpackc.low %vm2463, %vm2463
        %vm2496 = vmpackc.low %vm2464, %vm2464
        %vm2497 = vmpackc.low %vm2465, %vm2465
        %v2498 = vsel %vm2466, 65537, 0
        %v2499 = vsel %vm2467, 65537, 0
        %v2500 = vsel %vm2468, 65537, 0
        %v2501 = vsel %vm2469, 65537, 0
        %v2502 = vsel %vm2470, 65537, 0
        %v2503 = vsel %vm2471, 65537, 0
        %v2504 = vsel %vm2472, 65537, 0
        %v2505 = vsel %vm2473, 65537, 0
        %v2506 = vsel %vm2474, 65537, 0
        %v2507 = vsel %vm2475, 65537, 0
        %v2508 = vsel %vm2476, 65537, 0
        %v2509 = vsel %vm2477, 65537, 0
        %v2510 = vsel %vm2478, 65537, 0
        %v2511 = vsel %vm2479, 65537, 0
        %v2512 = vsel %vm2480, 65537, 0
        %v2513 = vsel %vm2481, 65537, 0
        %v2514 = vsel %vm2482, 65537, 0
        %v2515 = vsel %vm2483, 65537, 0
        %v2516 = vsel %vm2484, 65537, 0
        %v2517 = vsel %vm2485, 65537, 0
        %v2518 = vsel %vm2486, 65537, 0
        %v2519 = vsel %vm2487, 65537, 0
        %v2520 = vsel %vm2488, 65537, 0
        %v2521 = vsel %vm2489, 65537, 0
        %v2522 = vsel %vm2490, 65537, 0
        %v2523 = vsel %vm2491, 65537, 0
        %v2524 = vsel %vm2492, 65537, 0
        %v2525 = vsel %vm2493, 65537, 0
        %v2526 = vsel %vm2494, 65537, 0
        %v2527 = vsel %vm2495, 65537, 0
        %v2528 = vsel %vm2496, 65537, 0
        %v2529 = vsel %vm2497, 65537, 0
        %v2531 = vshrl.u32 %v2498, 16
        %v2533 = vrot.slane %v2531, 7
        %v2534 = vshll.u32 %v2498, 16
        %v2536 = vor.u32 %v2533, %v2534
        %v2537 = vrot.slane %v2533, 4
        %v2539 = vshrl.u32 %v2499, 16
        %v2541 = vrot.slane %v2539, 7
        %v2542 = vshll.u32 %v2499, 16
        %v2544 = vor.u32 %v2541, %v2542
        %v2545 = vsel %vm1976, %v2537, %v2544
        %v2546 = vrot.slane %v2541, 4
        %v2548 = vshrl.u32 %v2500, 16
        %v2550 = vrot.slane %v2548, 7
        %v2551 = vshll.u32 %v2500, 16
        %v2553 = vor.u32 %v2550, %v2551
        %v2554 = vsel %vm1976, %v2546, %v2553
        %v2555 = vrot.slane %v2550, 4
        %v2557 = vshrl.u32 %v2501, 16
        %v2559 = vrot.slane %v2557, 7
        %v2560 = vshll.u32 %v2501, 16
        %v2562 = vor.u32 %v2559, %v2560
        %v2563 = vsel %vm1976, %v2555, %v2562
        %v2564 = vrot.slane %v2559, 4
        %v2566 = vshrl.u32 %v2502, 16
        %v2568 = vrot.slane %v2566, 7
        %v2569 = vshll.u32 %v2502, 16
        %v2571 = vor.u32 %v2568, %v2569
        %v2572 = vsel %vm1976, %v2564, %v2571
        %v2573 = vrot.slane %v2568, 4
        %v2575 = vshrl.u32 %v2503, 16
        %v2577 = vrot.slane %v2575, 7
        %v2578 = vshll.u32 %v2503, 16
        %v2580 = vor.u32 %v2577, %v2578
        %v2581 = vsel %vm1976, %v2573, %v2580
        %v2582 = vrot.slane %v2577, 4
        %v2584 = vshrl.u32 %v2504, 16
        %v2586 = vrot.slane %v2584, 7
        %v2587 = vshll.u32 %v2504, 16
        %v2589 = vor.u32 %v2586, %v2587
        %v2590 = vsel %vm1976, %v2582, %v2589
        %v2591 = vrot.slane %v2586, 4
        %v2593 = vshrl.u32 %v2505, 16
        %v2595 = vrot.slane %v2593, 7
        %v2596 = vshll.u32 %v2505, 16
        %v2598 = vor.u32 %v2595, %v2596
        %v2599 = vsel %vm1976, %v2591, %v2598
        %v2600 = vrot.slane %v2595, 4
        %v2602 = vshrl.u32 %v2506, 16
        %v2604 = vrot.slane %v2602, 7
        %v2605 = vshll.u32 %v2506, 16
        %v2607 = vor.u32 %v2604, %v2605
        %v2608 = vsel %vm1976, %v2600, %v2607
        %v2609 = vrot.slane %v2604, 4
        %v2611 = vshrl.u32 %v2507, 16
        %v2613 = vrot.slane %v2611, 7
        %v2614 = vshll.u32 %v2507, 16
        %v2616 = vor.u32 %v2613, %v2614
        %v2617 = vsel %vm1976, %v2609, %v2616
        %v2618 = vrot.slane %v2613, 4
        %v2620 = vshrl.u32 %v2508, 16
        %v2622 = vrot.slane %v2620, 7
        %v2623 = vshll.u32 %v2508, 16
        %v2625 = vor.u32 %v2622, %v2623
        %v2626 = vsel %vm1976, %v2618, %v2625
        %v2627 = vrot.slane %v2622, 4
        %v2629 = vshrl.u32 %v2509, 16
        %v2631 = vrot.slane %v2629, 7
        %v2632 = vshll.u32 %v2509, 16
        %v2634 = vor.u32 %v2631, %v2632
        %v2635 = vsel %vm1976, %v2627, %v2634
        %v2636 = vrot.slane %v2631, 4
        %v2638 = vshrl.u32 %v2510, 16
        %v2640 = vrot.slane %v2638, 7
        %v2641 = vshll.u32 %v2510, 16
        %v2643 = vor.u32 %v2640, %v2641
        %v2644 = vsel %vm1976, %v2636, %v2643
        %v2645 = vrot.slane %v2640, 4
        %v2647 = vshrl.u32 %v2511, 16
        %v2649 = vrot.slane %v2647, 7
        %v2650 = vshll.u32 %v2511, 16
        %v2652 = vor.u32 %v2649, %v2650
        %v2653 = vsel %vm1976, %v2645, %v2652
        %v2654 = vrot.slane %v2649, 4
        %v2656 = vshrl.u32 %v2512, 16
        %v2658 = vrot.slane %v2656, 7
        %v2659 = vshll.u32 %v2512, 16
        %v2661 = vor.u32 %v2658, %v2659
        %v2662 = vsel %vm1976, %v2654, %v2661
        %v2663 = vrot.slane %v2658, 4
        %v2665 = vshrl.u32 %v2513, 16
        %v2667 = vrot.slane %v2665, 7
        %v2668 = vshll.u32 %v2513, 16
        %v2670 = vor.u32 %v2667, %v2668
        %v2671 = vsel %vm1976, %v2663, %v2670
        %v2672 = vrot.slane %v2667, 4
        %v2674 = vshrl.u32 %v2514, 16
        %v2676 = vrot.slane %v2674, 7
        %v2677 = vshll.u32 %v2514, 16
        %v2679 = vor.u32 %v2676, %v2677
        %v2680 = vsel %vm1976, %v2672, %v2679
        %v2681 = vrot.slane %v2676, 4
        %v2683 = vshrl.u32 %v2515, 16
        %v2685 = vrot.slane %v2683, 7
        %v2686 = vshll.u32 %v2515, 16
        %v2688 = vor.u32 %v2685, %v2686
        %v2689 = vsel %vm1976, %v2681, %v2688
        %v2690 = vrot.slane %v2685, 4
        %v2692 = vshrl.u32 %v2516, 16
        %v2694 = vrot.slane %v2692, 7
        %v2695 = vshll.u32 %v2516, 16
        %v2697 = vor.u32 %v2694, %v2695
        %v2698 = vsel %vm1976, %v2690, %v2697
        %v2699 = vrot.slane %v2694, 4
        %v2701 = vshrl.u32 %v2517, 16
        %v2703 = vrot.slane %v2701, 7
        %v2704 = vshll.u32 %v2517, 16
        %v2706 = vor.u32 %v2703, %v2704
        %v2707 = vsel %vm1976, %v2699, %v2706
        %v2708 = vrot.slane %v2703, 4
        %v2710 = vshrl.u32 %v2518, 16
        %v2712 = vrot.slane %v2710, 7
        %v2713 = vshll.u32 %v2518, 16
        %v2715 = vor.u32 %v2712, %v2713
        %v2716 = vsel %vm1976, %v2708, %v2715
        %v2717 = vrot.slane %v2712, 4
        %v2719 = vshrl.u32 %v2519, 16
        %v2721 = vrot.slane %v2719, 7
        %v2722 = vshll.u32 %v2519, 16
        %v2724 = vor.u32 %v2721, %v2722
        %v2725 = vsel %vm1976, %v2717, %v2724
        %v2726 = vrot.slane %v2721, 4
        %v2728 = vshrl.u32 %v2520, 16
        %v2730 = vrot.slane %v2728, 7
        %v2731 = vshll.u32 %v2520, 16
        %v2733 = vor.u32 %v2730, %v2731
        %v2734 = vsel %vm1976, %v2726, %v2733
        %v2735 = vrot.slane %v2730, 4
        %v2737 = vshrl.u32 %v2521, 16
        %v2739 = vrot.slane %v2737, 7
        %v2740 = vshll.u32 %v2521, 16
        %v2742 = vor.u32 %v2739, %v2740
        %v2743 = vsel %vm1976, %v2735, %v2742
        %v2744 = vrot.slane %v2739, 4
        %v2746 = vshrl.u32 %v2522, 16
        %v2748 = vrot.slane %v2746, 7
        %v2749 = vshll.u32 %v2522, 16
        %v2751 = vor.u32 %v2748, %v2749
        %v2752 = vsel %vm1976, %v2744, %v2751
        %v2753 = vrot.slane %v2748, 4
        %v2755 = vshrl.u32 %v2523, 16
        %v2757 = vrot.slane %v2755, 7
        %v2758 = vshll.u32 %v2523, 16
        %v2760 = vor.u32 %v2757, %v2758
        %v2761 = vsel %vm1976, %v2753, %v2760
        %v2762 = vrot.slane %v2757, 4
        %v2764 = vshrl.u32 %v2524, 16
        %v2766 = vrot.slane %v2764, 7
        %v2767 = vshll.u32 %v2524, 16
        %v2769 = vor.u32 %v2766, %v2767
        %v2770 = vsel %vm1976, %v2762, %v2769
        %v2771 = vrot.slane %v2766, 4
        %v2773 = vshrl.u32 %v2525, 16
        %v2775 = vrot.slane %v2773, 7
        %v2776 = vshll.u32 %v2525, 16
        %v2778 = vor.u32 %v2775, %v2776
        %v2779 = vsel %vm1976, %v2771, %v2778
        %v2780 = vrot.slane %v2775, 4
        %v2782 = vshrl.u32 %v2526, 16
        %v2784 = vrot.slane %v2782, 7
        %v2785 = vshll.u32 %v2526, 16
        %v2787 = vor.u32 %v2784, %v2785
        %v2788 = vsel %vm1976, %v2780, %v2787
        %v2789 = vrot.slane %v2784, 4
        %v2791 = vshrl.u32 %v2527, 16
        %v2793 = vrot.slane %v2791, 7
        %v2794 = vshll.u32 %v2527, 16
        %v2796 = vor.u32 %v2793, %v2794
        %v2797 = vsel %vm1976, %v2789, %v2796
        %v2798 = vrot.slane %v2793, 4
        %v2800 = vshrl.u32 %v2528, 16
        %v2802 = vrot.slane %v2800, 7
        %v2803 = vshll.u32 %v2528, 16
        %v2805 = vor.u32 %v2802, %v2803
        %v2806 = vsel %vm1976, %v2798, %v2805
        %v2807 = vrot.slane %v2802, 4
        %v2809 = vshrl.u32 %v2529, 16
        %v2811 = vrot.slane %v2809, 7
        %v2812 = vshll.u32 %v2529, 16
        %v2814 = vor.u32 %v2811, %v2812
        %v2815 = vsel %vm1976, %v2807, %v2814
        %v2816 = vrot.slane %v2811, 4
        %vm2817 = vcmp.ne.s16.totalorder %v2536, 0
        %vm2818 = vcmp.ne.s16.totalorder %v2545, 0
        %vm2819 = vcmp.ne.s16.totalorder %v2554, 0
        %vm2820 = vcmp.ne.s16.totalorder %v2563, 0
        %vm2821 = vcmp.ne.s16.totalorder %v2572, 0
        %vm2822 = vcmp.ne.s16.totalorder %v2581, 0
        %vm2823 = vcmp.ne.s16.totalorder %v2590, 0
        %vm2824 = vcmp.ne.s16.totalorder %v2599, 0
        %vm2825 = vcmp.ne.s16.totalorder %v2608, 0
        %vm2826 = vcmp.ne.s16.totalorder %v2617, 0
        %vm2827 = vcmp.ne.s16.totalorder %v2626, 0
        %vm2828 = vcmp.ne.s16.totalorder %v2635, 0
        %vm2829 = vcmp.ne.s16.totalorder %v2644, 0
        %vm2830 = vcmp.ne.s16.totalorder %v2653, 0
        %vm2831 = vcmp.ne.s16.totalorder %v2662, 0
        %vm2832 = vcmp.ne.s16.totalorder %v2671, 0
        %vm2833 = vcmp.ne.s16.totalorder %v2680, 0
        %vm2834 = vcmp.ne.s16.totalorder %v2689, 0
        %vm2835 = vcmp.ne.s16.totalorder %v2698, 0
        %vm2836 = vcmp.ne.s16.totalorder %v2707, 0
        %vm2837 = vcmp.ne.s16.totalorder %v2716, 0
        %vm2838 = vcmp.ne.s16.totalorder %v2725, 0
        %vm2839 = vcmp.ne.s16.totalorder %v2734, 0
        %vm2840 = vcmp.ne.s16.totalorder %v2743, 0
        %vm2841 = vcmp.ne.s16.totalorder %v2752, 0
        %vm2842 = vcmp.ne.s16.totalorder %v2761, 0
        %vm2843 = vcmp.ne.s16.totalorder %v2770, 0
        %vm2844 = vcmp.ne.s16.totalorder %v2779, 0
        %vm2845 = vcmp.ne.s16.totalorder %v2788, 0
        %vm2846 = vcmp.ne.s16.totalorder %v2797, 0
        %vm2847 = vcmp.ne.s16.totalorder %v2806, 0
        %vm2848 = vcmp.ne.s16.totalorder %v2815, 0
        %vm2849 = vcmp.ne.s16.totalorder %v2816, 0
        %v2850 = vsel %vm2817, %v2333, 0
        %v2851 = vsel %vm2818, %v2334, 0
        %v2852 = vsel %vm2819, %v2335, 0
        %v2853 = vsel %vm2820, %v2336, 0
        %v2854 = vsel %vm2821, %v2337, 0
        %v2855 = vsel %vm2822, %v2338, 0
        %v2856 = vsel %vm2823, %v2339, 0
        %v2857 = vsel %vm2824, %v2340, 0
        %v2858 = vsel %vm2825, %v2341, 0
        %v2859 = vsel %vm2826, %v2342, 0
        %v2860 = vsel %vm2827, %v2343, 0
        %v2861 = vsel %vm2828, %v2344, 0
        %v2862 = vsel %vm2829, %v2345, 0
        %v2863 = vsel %vm2830, %v2346, 0
        %v2864 = vsel %vm2831, %v2347, 0
        %v2865 = vsel %vm2832, %v2348, 0
        %v2866 = vsel %vm2833, %v2349, 0
        %v2867 = vsel %vm2834, %v2350, 0
        %v2868 = vsel %vm2835, %v2351, 0
        %v2869 = vsel %vm2836, %v2352, 0
        %v2870 = vsel %vm2837, %v2353, 0
        %v2871 = vsel %vm2838, %v2354, 0
        %v2872 = vsel %vm2839, %v2355, 0
        %v2873 = vsel %vm2840, %v2356, 0
        %v2874 = vsel %vm2841, %v2357, 0
        %v2875 = vsel %vm2842, %v2358, 0
        %v2876 = vsel %vm2843, %v2359, 0
        %v2877 = vsel %vm2844, %v2360, 0
        %v2878 = vsel %vm2845, %v2361, 0
        %v2879 = vsel %vm2846, %v2362, 0
        %v2880 = vsel %vm2847, %v2363, 0
        %v2881 = vsel %vm2848, %v2364, 0
        %v2882 = vsel %vm2849, %v2365, 0
        %v2884 = vshrl.u32 %v2850, 16
        %v2886 = vrot.slane %v2884, 4
        %v2887 = vshll.u32 %v2850, 16
        %v2889 = vrot.slane %v2887, 5
        %v2890 = vor.u32 %v2886, %v2889
        %v2891 = vrot.slane %v2890, 4
        %v2893 = vshll.u32 %v2851, 16
        %v2895 = vrot.slane %v2893, 5
        %v2896 = vsel %vm1588, %v2891, %v2895
        %v2897 = vshrl.u32 %v2851, 16
        %v2899 = vrot.slane %v2897, 4
        %v2900 = vor.u32 %v2899, %v2895
        %v2901 = vrot.slane %v2900, 4
        %v2903 = vshll.u32 %v2852, 16
        %v2905 = vrot.slane %v2903, 5
        %v2906 = vsel %vm1588, %v2901, %v2905
        %v2907 = vshrl.u32 %v2852, 16
        %v2909 = vrot.slane %v2907, 4
        %v2910 = vor.u32 %v2909, %v2905
        %v2911 = vrot.slane %v2910, 4
        %v2913 = vshll.u32 %v2853, 16
        %v2915 = vrot.slane %v2913, 5
        %v2916 = vsel %vm1588, %v2911, %v2915
        %v2917 = vshrl.u32 %v2853, 16
        %v2919 = vrot.slane %v2917, 4
        %v2920 = vor.u32 %v2919, %v2915
        %v2921 = vrot.slane %v2920, 4
        %v2923 = vshll.u32 %v2854, 16
        %v2925 = vrot.slane %v2923, 5
        %v2926 = vsel %vm1588, %v2921, %v2925
        %v2927 = vshrl.u32 %v2854, 16
        %v2929 = vrot.slane %v2927, 4
        %v2930 = vor.u32 %v2929, %v2925
        %v2931 = vrot.slane %v2930, 4
        %v2933 = vshll.u32 %v2855, 16
        %v2935 = vrot.slane %v2933, 5
        %v2936 = vsel %vm1588, %v2931, %v2935
        %v2937 = vshrl.u32 %v2855, 16
        %v2939 = vrot.slane %v2937, 4
        %v2940 = vor.u32 %v2939, %v2935
        %v2941 = vrot.slane %v2940, 4
        %v2943 = vshll.u32 %v2856, 16
        %v2945 = vrot.slane %v2943, 5
        %v2946 = vsel %vm1588, %v2941, %v2945
        %v2947 = vshrl.u32 %v2856, 16
        %v2949 = vrot.slane %v2947, 4
        %v2950 = vor.u32 %v2949, %v2945
        %v2951 = vrot.slane %v2950, 4
        %v2953 = vshll.u32 %v2857, 16
        %v2955 = vrot.slane %v2953, 5
        %v2956 = vsel %vm1588, %v2951, %v2955
        %v2957 = vshrl.u32 %v2857, 16
        %v2959 = vrot.slane %v2957, 4
        %v2960 = vor.u32 %v2959, %v2955
        %v2961 = vrot.slane %v2960, 4
        %v2963 = vshll.u32 %v2858, 16
        %v2965 = vrot.slane %v2963, 5
        %v2966 = vsel %vm1588, %v2961, %v2965
        %v2967 = vshrl.u32 %v2858, 16
        %v2969 = vrot.slane %v2967, 4
        %v2970 = vor.u32 %v2969, %v2965
        %v2971 = vrot.slane %v2970, 4
        %v2973 = vshll.u32 %v2859, 16
        %v2975 = vrot.slane %v2973, 5
        %v2976 = vsel %vm1588, %v2971, %v2975
        %v2977 = vshrl.u32 %v2859, 16
        %v2979 = vrot.slane %v2977, 4
        %v2980 = vor.u32 %v2979, %v2975
        %v2981 = vrot.slane %v2980, 4
        %v2983 = vshll.u32 %v2860, 16
        %v2985 = vrot.slane %v2983, 5
        %v2986 = vsel %vm1588, %v2981, %v2985
        %v2987 = vshrl.u32 %v2860, 16
        %v2989 = vrot.slane %v2987, 4
        %v2990 = vor.u32 %v2989, %v2985
        %v2991 = vrot.slane %v2990, 4
        %v2993 = vshll.u32 %v2861, 16
        %v2995 = vrot.slane %v2993, 5
        %v2996 = vsel %vm1588, %v2991, %v2995
        %v2997 = vshrl.u32 %v2861, 16
        %v2999 = vrot.slane %v2997, 4
        %v3000 = vor.u32 %v2999, %v2995
        %v3001 = vrot.slane %v3000, 4
        %v3003 = vshll.u32 %v2862, 16
        %v3005 = vrot.slane %v3003, 5
        %v3006 = vsel %vm1588, %v3001, %v3005
        %v3007 = vshrl.u32 %v2862, 16
        %v3009 = vrot.slane %v3007, 4
        %v3010 = vor.u32 %v3009, %v3005
        %v3011 = vrot.slane %v3010, 4
        %v3013 = vshll.u32 %v2863, 16
        %v3015 = vrot.slane %v3013, 5
        %v3016 = vsel %vm1588, %v3011, %v3015
        %v3017 = vshrl.u32 %v2863, 16
        %v3019 = vrot.slane %v3017, 4
        %v3020 = vor.u32 %v3019, %v3015
        %v3021 = vrot.slane %v3020, 4
        %v3023 = vshll.u32 %v2864, 16
        %v3025 = vrot.slane %v3023, 5
        %v3026 = vsel %vm1588, %v3021, %v3025
        %v3027 = vshrl.u32 %v2864, 16
        %v3029 = vrot.slane %v3027, 4
        %v3030 = vor.u32 %v3029, %v3025
        %v3031 = vrot.slane %v3030, 4
        %v3033 = vshll.u32 %v2865, 16
        %v3035 = vrot.slane %v3033, 5
        %v3036 = vsel %vm1588, %v3031, %v3035
        %v3037 = vshrl.u32 %v2865, 16
        %v3039 = vrot.slane %v3037, 4
        %v3040 = vor.u32 %v3039, %v3035
        %v3041 = vrot.slane %v3040, 4
        %v3043 = vshll.u32 %v2866, 16
        %v3045 = vrot.slane %v3043, 5
        %v3046 = vsel %vm1588, %v3041, %v3045
        %v3047 = vshrl.u32 %v2866, 16
        %v3049 = vrot.slane %v3047, 4
        %v3050 = vor.u32 %v3049, %v3045
        %v3051 = vrot.slane %v3050, 4
        %v3053 = vshll.u32 %v2867, 16
        %v3055 = vrot.slane %v3053, 5
        %v3056 = vsel %vm1588, %v3051, %v3055
        %v3057 = vshrl.u32 %v2867, 16
        %v3059 = vrot.slane %v3057, 4
        %v3060 = vor.u32 %v3059, %v3055
        %v3061 = vrot.slane %v3060, 4
        %v3063 = vshll.u32 %v2868, 16
        %v3065 = vrot.slane %v3063, 5
        %v3066 = vsel %vm1588, %v3061, %v3065
        %v3067 = vshrl.u32 %v2868, 16
        %v3069 = vrot.slane %v3067, 4
        %v3070 = vor.u32 %v3069, %v3065
        %v3071 = vrot.slane %v3070, 4
        %v3073 = vshll.u32 %v2869, 16
        %v3075 = vrot.slane %v3073, 5
        %v3076 = vsel %vm1588, %v3071, %v3075
        %v3077 = vshrl.u32 %v2869, 16
        %v3079 = vrot.slane %v3077, 4
        %v3080 = vor.u32 %v3079, %v3075
        %v3081 = vrot.slane %v3080, 4
        %v3083 = vshll.u32 %v2870, 16
        %v3085 = vrot.slane %v3083, 5
        %v3086 = vsel %vm1588, %v3081, %v3085
        %v3087 = vshrl.u32 %v2870, 16
        %v3089 = vrot.slane %v3087, 4
        %v3090 = vor.u32 %v3089, %v3085
        %v3091 = vrot.slane %v3090, 4
        %v3093 = vshll.u32 %v2871, 16
        %v3095 = vrot.slane %v3093, 5
        %v3096 = vsel %vm1588, %v3091, %v3095
        %v3097 = vshrl.u32 %v2871, 16
        %v3099 = vrot.slane %v3097, 4
        %v3100 = vor.u32 %v3099, %v3095
        %v3101 = vrot.slane %v3100, 4
        %v3103 = vshll.u32 %v2872, 16
        %v3105 = vrot.slane %v3103, 5
        %v3106 = vsel %vm1588, %v3101, %v3105
        %v3107 = vshrl.u32 %v2872, 16
        %v3109 = vrot.slane %v3107, 4
        %v3110 = vor.u32 %v3109, %v3105
        %v3111 = vrot.slane %v3110, 4
        %v3113 = vshll.u32 %v2873, 16
        %v3115 = vrot.slane %v3113, 5
        %v3116 = vsel %vm1588, %v3111, %v3115
        %v3117 = vshrl.u32 %v2873, 16
        %v3119 = vrot.slane %v3117, 4
        %v3120 = vor.u32 %v3119, %v3115
        %v3121 = vrot.slane %v3120, 4
        %v3123 = vshll.u32 %v2874, 16
        %v3125 = vrot.slane %v3123, 5
        %v3126 = vsel %vm1588, %v3121, %v3125
        %v3127 = vshrl.u32 %v2874, 16
        %v3129 = vrot.slane %v3127, 4
        %v3130 = vor.u32 %v3129, %v3125
        %v3131 = vrot.slane %v3130, 4
        %v3133 = vshll.u32 %v2875, 16
        %v3135 = vrot.slane %v3133, 5
        %v3136 = vsel %vm1588, %v3131, %v3135
        %v3137 = vshrl.u32 %v2875, 16
        %v3139 = vrot.slane %v3137, 4
        %v3140 = vor.u32 %v3139, %v3135
        %v3141 = vrot.slane %v3140, 4
        %v3143 = vshll.u32 %v2876, 16
        %v3145 = vrot.slane %v3143, 5
        %v3146 = vsel %vm1588, %v3141, %v3145
        %v3147 = vshrl.u32 %v2876, 16
        %v3149 = vrot.slane %v3147, 4
        %v3150 = vor.u32 %v3149, %v3145
        %v3151 = vrot.slane %v3150, 4
        %v3153 = vshll.u32 %v2877, 16
        %v3155 = vrot.slane %v3153, 5
        %v3156 = vsel %vm1588, %v3151, %v3155
        %v3157 = vshrl.u32 %v2877, 16
        %v3159 = vrot.slane %v3157, 4
        %v3160 = vor.u32 %v3159, %v3155
        %v3161 = vrot.slane %v3160, 4
        %v3163 = vshll.u32 %v2878, 16
        %v3165 = vrot.slane %v3163, 5
        %v3166 = vsel %vm1588, %v3161, %v3165
        %v3167 = vshrl.u32 %v2878, 16
        %v3169 = vrot.slane %v3167, 4
        %v3170 = vor.u32 %v3169, %v3165
        %v3171 = vrot.slane %v3170, 4
        %v3173 = vshll.u32 %v2879, 16
        %v3175 = vrot.slane %v3173, 5
        %v3176 = vsel %vm1588, %v3171, %v3175
        %v3177 = vshrl.u32 %v2879, 16
        %v3179 = vrot.slane %v3177, 4
        %v3180 = vor.u32 %v3179, %v3175
        %v3181 = vrot.slane %v3180, 4
        %v3183 = vshll.u32 %v2880, 16
        %v3185 = vrot.slane %v3183, 5
        %v3186 = vsel %vm1588, %v3181, %v3185
        %v3187 = vshrl.u32 %v2880, 16
        %v3189 = vrot.slane %v3187, 4
        %v3190 = vor.u32 %v3189, %v3185
        %v3191 = vrot.slane %v3190, 4
        %v3193 = vshll.u32 %v2881, 16
        %v3195 = vrot.slane %v3193, 5
        %v3196 = vsel %vm1588, %v3191, %v3195
        %v3197 = vshrl.u32 %v2881, 16
        %v3199 = vrot.slane %v3197, 4
        %v3200 = vor.u32 %v3199, %v3195
        %v3201 = vrot.slane %v3200, 4
        %v3203 = vshll.u32 %v2882, 16
        %v3205 = vrot.slane %v3203, 5
        %v3206 = vsel %vm1588, %v3201, %v3205
        %3239 = vst [vmem:[#allocation4 + $0x8] sm:$0xf] %v2896
        %3240 = vst [vmem:[#allocation4 + $0xc] sm:$0xf] %v2906
        %3241 = vst [vmem:[#allocation4 + $0x10] sm:$0xf] %v2916
        %3242 = vst [vmem:[#allocation4 + $0x14] sm:$0xf] %v2926
        %3243 = vst [vmem:[#allocation4 + $0x18] sm:$0xf] %v2936
        %3244 = vst [vmem:[#allocation4 + $0x1c] sm:$0xf] %v2946
        %3245 = vst [vmem:[#allocation4 + $0x20] sm:$0xf] %v2956
        %3246 = vst [vmem:[#allocation4 + $0x24] sm:$0xf] %v2966
        %3247 = vst [vmem:[#allocation4 + $0x28] sm:$0xf] %v2976
        %3248 = vst [vmem:[#allocation4 + $0x2c] sm:$0xf] %v2986
        %3249 = vst [vmem:[#allocation4 + $0x30] sm:$0xf] %v2996
        %3250 = vst [vmem:[#allocation4 + $0x34] sm:$0xf] %v3006
        %3251 = vst [vmem:[#allocation4 + $0x38] sm:$0xf] %v3016
        %3252 = vst [vmem:[#allocation4 + $0x3c] sm:$0xf] %v3026
        %3253 = vst [vmem:[#allocation4 + $0x40] sm:$0xf] %v3036
        %3254 = vst [vmem:[#allocation4 + $0x44] sm:$0xf] %v3046
        %3255 = vst [vmem:[#allocation4 + $0x48] sm:$0xf] %v3056
        %3256 = vst [vmem:[#allocation4 + $0x4c] sm:$0xf] %v3066
        %3257 = vst [vmem:[#allocation4 + $0x50] sm:$0xf] %v3076
        %3258 = vst [vmem:[#allocation4 + $0x54] sm:$0xf] %v3086
        %3259 = vst [vmem:[#allocation4 + $0x58] sm:$0xf] %v3096
        %3260 = vst [vmem:[#allocation4 + $0x5c] sm:$0xf] %v3106
        %3261 = vst [vmem:[#allocation4 + $0x60] sm:$0xf] %v3116
        %3262 = vst [vmem:[#allocation4 + $0x64] sm:$0xf] %v3126
        %3263 = vst [vmem:[#allocation4 + $0x68] sm:$0xf] %v3136
        %3264 = vst [vmem:[#allocation4 + $0x6c] sm:$0xf] %v3146
        %3265 = vst [vmem:[#allocation4 + $0x70] sm:$0xf] %v3156
        %3266 = vst [vmem:[#allocation4 + $0x74] sm:$0xf] %v3166
        %3267 = vst [vmem:[#allocation4 + $0x78] sm:$0xf] %v3176
        %3268 = vst [vmem:[#allocation4 + $0x7c] sm:$0xf] %v3186
        %3269 = vst [vmem:[#allocation4 + $0x80] sm:$0xf] %v3196
        %3270 = vst [vmem:[#allocation4 + $0x84] sm:$0xf] %v3206
        %v3271 = vld [vmem:[#allocation3] sm:$0xf]
        %v3272 = vld [vmem:[#allocation3 + $0x4] sm:$0xf]
        %v3273 = vld [vmem:[#allocation3 + $0x8] sm:$0xf]
        %v3274 = vld [vmem:[#allocation3 + $0xc] sm:$0xf]
        %v3275 = vld [vmem:[#allocation3 + $0x10] sm:$0xf]
        %v3276 = vld [vmem:[#allocation3 + $0x14] sm:$0xf]
        %v3277 = vld [vmem:[#allocation3 + $0x18] sm:$0xf]
        %v3278 = vld [vmem:[#allocation3 + $0x1c] sm:$0xf]
        %v3279 = vld [vmem:[#allocation3 + $0x20] sm:$0xf]
        %v3280 = vld [vmem:[#allocation3 + $0x24] sm:$0xf]
        %v3281 = vld [vmem:[#allocation3 + $0x28] sm:$0xf]
        %v3282 = vld [vmem:[#allocation3 + $0x2c] sm:$0xf]
        %v3283 = vld [vmem:[#allocation3 + $0x30] sm:$0xf]
        %v3284 = vld [vmem:[#allocation3 + $0x34] sm:$0xf]
        %v3285 = vld [vmem:[#allocation3 + $0x38] sm:$0xf]
        %v3286 = vld [vmem:[#allocation3 + $0x3c] sm:$0xf]
        %v3287 = vld [vmem:[#allocation3 + $0x40] sm:$0xf]
        %v3288 = vld [vmem:[#allocation3 + $0x44] sm:$0xf]
        %v3289 = vld [vmem:[#allocation3 + $0x48] sm:$0xf]
        %v3290 = vld [vmem:[#allocation3 + $0x4c] sm:$0xf]
        %v3291 = vld [vmem:[#allocation3 + $0x50] sm:$0xf]
        %v3292 = vld [vmem:[#allocation3 + $0x54] sm:$0xf]
        %v3293 = vld [vmem:[#allocation3 + $0x58] sm:$0xf]
        %v3294 = vld [vmem:[#allocation3 + $0x5c] sm:$0xf]
        %v3295 = vld [vmem:[#allocation3 + $0x60] sm:$0xf]
        %v3296 = vld [vmem:[#allocation3 + $0x64] sm:$0xf]
        %v3297 = vld [vmem:[#allocation3 + $0x68] sm:$0xf]
        %v3298 = vld [vmem:[#allocation3 + $0x6c] sm:$0xf]
        %v3299 = vld [vmem:[#allocation3 + $0x70] sm:$0xf]
        %v3300 = vld [vmem:[#allocation3 + $0x74] sm:$0xf]
        %v3301 = vld [vmem:[#allocation3 + $0x78] sm:$0xf]
        %v3302 = vld [vmem:[#allocation3 + $0x7c] sm:$0xf]
        %v3303 = vld [vmem:[#allocation10] sm:$0xf]
        %v3304 = vld [vmem:[#allocation10 + $0x4] sm:$0xf]
        %v3305 = vld [vmem:[#allocation10 + $0x8] sm:$0xf]
        %v3306 = vld [vmem:[#allocation10 + $0xc] sm:$0xf]
        %v3307 = vld [vmem:[#allocation10 + $0x10] sm:$0xf]
        %v3308 = vld [vmem:[#allocation10 + $0x14] sm:$0xf]
        %v3309 = vld [vmem:[#allocation10 + $0x18] sm:$0xf]
        %v3310 = vld [vmem:[#allocation10 + $0x1c] sm:$0xf]
        %v3311 = vld [vmem:[#allocation10 + $0x20] sm:$0xf]
        %v3312 = vld [vmem:[#allocation10 + $0x24] sm:$0xf]
        %v3313 = vld [vmem:[#allocation10 + $0x28] sm:$0xf]
        %v3314 = vld [vmem:[#allocation10 + $0x2c] sm:$0xf]
        %v3315 = vld [vmem:[#allocation10 + $0x30] sm:$0xf]
        %v3316 = vld [vmem:[#allocation10 + $0x34] sm:$0xf]
        %v3317 = vld [vmem:[#allocation10 + $0x38] sm:$0xf]
        %v3318 = vld [vmem:[#allocation10 + $0x3c] sm:$0xf]
        %v3319 = vld [vmem:[#allocation2] sm:$0xf]
        %v3320 = vld [vmem:[#allocation2 + $0x4] sm:$0xf]
        %v3321 = vld [vmem:[#allocation2 + $0x8] sm:$0xf]
        %v3322 = vld [vmem:[#allocation2 + $0xc] sm:$0xf]
        %v3323 = vld [vmem:[#allocation2 + $0x10] sm:$0xf]
        %v3324 = vld [vmem:[#allocation2 + $0x14] sm:$0xf]
        %v3325 = vld [vmem:[#allocation2 + $0x18] sm:$0xf]
        %v3326 = vld [vmem:[#allocation2 + $0x1c] sm:$0xf]
        %v3327 = vld [vmem:[#allocation2 + $0x20] sm:$0xf]
        %v3328 = vld [vmem:[#allocation2 + $0x24] sm:$0xf]
        %v3329 = vld [vmem:[#allocation2 + $0x28] sm:$0xf]
        %v3330 = vld [vmem:[#allocation2 + $0x2c] sm:$0xf]
        %v3331 = vld [vmem:[#allocation2 + $0x30] sm:$0xf]
        %v3332 = vld [vmem:[#allocation2 + $0x34] sm:$0xf]
        %v3333 = vld [vmem:[#allocation2 + $0x38] sm:$0xf]
        %v3334 = vld [vmem:[#allocation2 + $0x3c] sm:$0xf]
        %v3335 = vld [vmem:[#allocation2 + $0x40] sm:$0xf]
        %v3336 = vld [vmem:[#allocation2 + $0x44] sm:$0xf]
        %v3337 = vld [vmem:[#allocation2 + $0x48] sm:$0xf]
        %v3338 = vld [vmem:[#allocation2 + $0x4c] sm:$0xf]
        %v3339 = vld [vmem:[#allocation2 + $0x50] sm:$0xf]
        %v3340 = vld [vmem:[#allocation2 + $0x54] sm:$0xf]
        %v3341 = vld [vmem:[#allocation2 + $0x58] sm:$0xf]
        %v3342 = vld [vmem:[#allocation2 + $0x5c] sm:$0xf]
        %v3343 = vld [vmem:[#allocation2 + $0x60] sm:$0xf]
        %v3344 = vld [vmem:[#allocation2 + $0x64] sm:$0xf]
        %v3345 = vld [vmem:[#allocation2 + $0x68] sm:$0xf]
        %v3346 = vld [vmem:[#allocation2 + $0x6c] sm:$0xf]
        %v3347 = vld [vmem:[#allocation2 + $0x70] sm:$0xf]
        %v3348 = vld [vmem:[#allocation2 + $0x74] sm:$0xf]
        %v3349 = vld [vmem:[#allocation2 + $0x78] sm:$0xf]
        %v3350 = vld [vmem:[#allocation2 + $0x7c] sm:$0xf]
        %v3351 = vld [vmem:[#allocation10 + $0x40] sm:$0xf]
        %v3352 = vld [vmem:[#allocation10 + $0x44] sm:$0xf]
        %v3353 = vld [vmem:[#allocation10 + $0x48] sm:$0xf]
        %v3354 = vld [vmem:[#allocation10 + $0x4c] sm:$0xf]
        %v3355 = vld [vmem:[#allocation10 + $0x50] sm:$0xf]
        %v3356 = vld [vmem:[#allocation10 + $0x54] sm:$0xf]
        %v3357 = vld [vmem:[#allocation10 + $0x58] sm:$0xf]
        %v3358 = vld [vmem:[#allocation10 + $0x5c] sm:$0xf]
        %v3359 = vld [vmem:[#allocation10 + $0x60] sm:$0xf]
        %v3360 = vld [vmem:[#allocation10 + $0x64] sm:$0xf]
        %v3361 = vld [vmem:[#allocation10 + $0x68] sm:$0xf]
        %v3362 = vld [vmem:[#allocation10 + $0x6c] sm:$0xf]
        %v3363 = vld [vmem:[#allocation10 + $0x70] sm:$0xf]
        %v3364 = vld [vmem:[#allocation10 + $0x74] sm:$0xf]
        %v3365 = vld [vmem:[#allocation10 + $0x78] sm:$0xf]
        %v3366 = vld [vmem:[#allocation10 + $0x7c] sm:$0xf]
        %v3399 = vunpack.c.l.b16 %v3319
        %v3400 = vunpack.c.l.b16 %v3320
        %v3401 = vunpack.c.l.b16 %v3321
        %v3402 = vunpack.c.l.b16 %v3322
        %v3403 = vunpack.c.l.b16 %v3323
        %v3404 = vunpack.c.l.b16 %v3324
        %v3405 = vunpack.c.l.b16 %v3325
        %v3406 = vunpack.c.l.b16 %v3326
        %v3407 = vunpack.c.l.b16 %v3327
        %v3408 = vunpack.c.l.b16 %v3328
        %v3409 = vunpack.c.l.b16 %v3329
        %v3410 = vunpack.c.l.b16 %v3330
        %v3411 = vunpack.c.l.b16 %v3331
        %v3412 = vunpack.c.l.b16 %v3332
        %v3413 = vunpack.c.l.b16 %v3333
        %v3414 = vunpack.c.l.b16 %v3334
        %v3415 = vunpack.c.l.b16 %v3335
        %v3416 = vunpack.c.l.b16 %v3336
        %v3417 = vunpack.c.l.b16 %v3337
        %v3418 = vunpack.c.l.b16 %v3338
        %v3419 = vunpack.c.l.b16 %v3339
        %v3420 = vunpack.c.l.b16 %v3340
        %v3421 = vunpack.c.l.b16 %v3341
        %v3422 = vunpack.c.l.b16 %v3342
        %v3423 = vunpack.c.l.b16 %v3343
        %v3424 = vunpack.c.l.b16 %v3344
        %v3425 = vunpack.c.l.b16 %v3345
        %v3426 = vunpack.c.l.b16 %v3346
        %v3427 = vunpack.c.l.b16 %v3347
        %v3428 = vunpack.c.l.b16 %v3348
        %v3429 = vunpack.c.l.b16 %v3349
        %v3430 = vunpack.c.l.b16 %v3350
        %v3431 = vpack.c.b16 %v3400, %v3399
        %v3432 = vpack.c.b16 %v3402, %v3401
        %v3433 = vpack.c.b16 %v3404, %v3403
        %v3434 = vpack.c.b16 %v3406, %v3405
        %v3435 = vpack.c.b16 %v3408, %v3407
        %v3436 = vpack.c.b16 %v3410, %v3409
        %v3437 = vpack.c.b16 %v3412, %v3411
        %v3438 = vpack.c.b16 %v3414, %v3413
        %v3439 = vpack.c.b16 %v3416, %v3415
        %v3440 = vpack.c.b16 %v3418, %v3417
        %v3441 = vpack.c.b16 %v3420, %v3419
        %v3442 = vpack.c.b16 %v3422, %v3421
        %v3443 = vpack.c.b16 %v3424, %v3423
        %v3444 = vpack.c.b16 %v3426, %v3425
        %v3445 = vpack.c.b16 %v3428, %v3427
        %v3446 = vpack.c.b16 %v3430, %v3429
        %v3479 = vunpack.c.l.b16 %v3351
        %v3480 = vunpack.c.l.b16 %v3352
        %v3481 = vunpack.c.l.b16 %v3353
        %v3482 = vunpack.c.l.b16 %v3354
        %v3483 = vunpack.c.l.b16 %v3355
        %v3484 = vunpack.c.l.b16 %v3356
        %v3485 = vunpack.c.l.b16 %v3357
        %v3486 = vunpack.c.l.b16 %v3358
        %v3487 = vunpack.c.l.b16 %v3359
        %v3488 = vunpack.c.l.b16 %v3360
        %v3489 = vunpack.c.l.b16 %v3361
        %v3490 = vunpack.c.l.b16 %v3362
        %v3491 = vunpack.c.l.b16 %v3363
        %v3492 = vunpack.c.l.b16 %v3364
        %v3493 = vunpack.c.l.b16 %v3365
        %v3494 = vunpack.c.l.b16 %v3366
        %v3495 = vpack.c.b16 %v3480, %v3479
        %v3496 = vpack.c.b16 %v3482, %v3481
        %v3497 = vpack.c.b16 %v3484, %v3483
        %v3498 = vpack.c.b16 %v3486, %v3485
        %v3499 = vpack.c.b16 %v3488, %v3487
        %v3500 = vpack.c.b16 %v3490, %v3489
        %v3501 = vpack.c.b16 %v3492, %v3491
        %v3502 = vpack.c.b16 %v3494, %v3493
        %3511 = vmatprep.subr.bf16.mxu0 0
        %3512 = vmatpush1.bf16.msra.mxu0 %v3502
        %3513 = vmatprep.subr.bf16.mxu0 0
        %3514 = vmatpush1.bf16.msra.mxu0 %v3501
        %3515 = vmatprep.subr.bf16.mxu0 0
        %3516 = vmatpush1.bf16.msra.mxu0 %v3500
        %3517 = vmatprep.subr.bf16.mxu0 0
        %3518 = vmatpush1.bf16.msra.mxu0 %v3499
        %3519 = vmatprep.subr.bf16.mxu0 0
        %3520 = vmatpush1.bf16.msra.mxu0 %v3498
        %3521 = vmatprep.subr.bf16.mxu0 0
        %3522 = vmatpush1.bf16.msra.mxu0 %v3497
        %3523 = vmatprep.subr.bf16.mxu0 0
        %3524 = vmatpush1.bf16.msra.mxu0 %v3496
        %3525 = vmatprep.subr.bf16.mxu0 0
        %3526 = vmatpush1.bf16.msra.mxu0 %v3495
        %3527 = vmatprep.subr.bf16.mxu0 0
        %3528 = vmatpush2.bf16.msra.mxu0 0
        %3529 = vmatprep.subr.bf16.mxu0 0
        %3530 = vmatpush2.bf16.msra.mxu0 0
        %3531 = vmatprep.subr.bf16.mxu0 0
        %3532 = vmatpush2.bf16.msra.mxu0 0
        %3533 = vmatprep.subr.bf16.mxu0 0
        %3534 = vmatpush2.bf16.msra.mxu0 0
        %3535 = vmatprep.subr.bf16.mxu0 0
        %3536 = vmatpush2.bf16.msra.mxu0 0
        %3537 = vmatprep.subr.bf16.mxu0 0
        %3538 = vmatpush2.bf16.msra.mxu0 0
        %3539 = vmatprep.subr.bf16.mxu0 0
        %3540 = vmatpush2.bf16.msra.mxu0 0
        %3541 = vmatprep.subr.bf16.mxu0 0
        %3542 = vmatpush2.bf16.msra.mxu0 0
        %3543 = vmatprep.mubr.bf16.mxu0 0
        %3544 = vmatmul.mubr.bf16.gmra.mxu0 %v3431
        %v3545 = vpop.f32.mrf.mxu0
        %v3546 = vadd.f32 0.0, %v3545
        %v3547 = vpop.f32.mrf.mxu0
        %v3548 = vpop.f32.mrf.mxu0
        %v3549 = vadd.f32 0.0, %v3548
        %v3550 = vpop.f32.mrf.mxu0
        %3551 = vmatprep.mubr.bf16.mxu0 0
        %3552 = vmatmul.mubr.bf16.gmra.mxu0 %v3432
        %v3553 = vpop.f32.mrf.mxu0
        %v3554 = vadd.f32 0.0, %v3553
        %v3555 = vpop.f32.mrf.mxu0
        %v3556 = vpop.f32.mrf.mxu0
        %v3557 = vadd.f32 0.0, %v3556
        %v3558 = vpop.f32.mrf.mxu0
        %3559 = vmatprep.mubr.bf16.mxu0 0
        %3560 = vmatmul.mubr.bf16.gmra.mxu0 %v3433
        %v3561 = vpop.f32.mrf.mxu0
        %v3562 = vadd.f32 0.0, %v3561
        %v3563 = vpop.f32.mrf.mxu0
        %v3564 = vpop.f32.mrf.mxu0
        %v3565 = vadd.f32 0.0, %v3564
        %v3566 = vpop.f32.mrf.mxu0
        %3567 = vmatprep.mubr.bf16.mxu0 0
        %3568 = vmatmul.mubr.bf16.gmra.mxu0 %v3434
        %v3569 = vpop.f32.mrf.mxu0
        %v3570 = vadd.f32 0.0, %v3569
        %v3571 = vpop.f32.mrf.mxu0
        %v3572 = vpop.f32.mrf.mxu0
        %v3573 = vadd.f32 0.0, %v3572
        %v3574 = vpop.f32.mrf.mxu0
        %3575 = vmatprep.mubr.bf16.mxu0 0
        %3576 = vmatmul.mubr.bf16.gmra.mxu0 %v3435
        %v3577 = vpop.f32.mrf.mxu0
        %v3578 = vadd.f32 0.0, %v3577
        %v3579 = vpop.f32.mrf.mxu0
        %v3580 = vpop.f32.mrf.mxu0
        %v3581 = vadd.f32 0.0, %v3580
        %v3582 = vpop.f32.mrf.mxu0
        %3583 = vmatprep.mubr.bf16.mxu0 0
        %3584 = vmatmul.mubr.bf16.gmra.mxu0 %v3436
        %v3585 = vpop.f32.mrf.mxu0
        %v3586 = vadd.f32 0.0, %v3585
        %v3587 = vpop.f32.mrf.mxu0
        %v3588 = vpop.f32.mrf.mxu0
        %v3589 = vadd.f32 0.0, %v3588
        %v3590 = vpop.f32.mrf.mxu0
        %3591 = vmatprep.mubr.bf16.mxu0 0
        %3592 = vmatmul.mubr.bf16.gmra.mxu0 %v3437
        %v3593 = vpop.f32.mrf.mxu0
        %v3594 = vadd.f32 0.0, %v3593
        %v3595 = vpop.f32.mrf.mxu0
        %v3596 = vpop.f32.mrf.mxu0
        %v3597 = vadd.f32 0.0, %v3596
        %v3598 = vpop.f32.mrf.mxu0
        %3599 = vmatprep.mubr.bf16.mxu0 0
        %3600 = vmatmul.mubr.bf16.gmra.mxu0 %v3438
        %v3601 = vpop.f32.mrf.mxu0
        %v3602 = vadd.f32 0.0, %v3601
        %v3603 = vpop.f32.mrf.mxu0
        %v3604 = vpop.f32.mrf.mxu0
        %v3605 = vadd.f32 0.0, %v3604
        %v3606 = vpop.f32.mrf.mxu0
        %3607 = vmatprep.mubr.bf16.mxu0 0
        %3608 = vmatmul.mubr.bf16.gmra.mxu0 %v3439
        %v3609 = vpop.f32.mrf.mxu0
        %v3610 = vadd.f32 0.0, %v3609
        %v3611 = vpop.f32.mrf.mxu0
        %v3612 = vpop.f32.mrf.mxu0
        %v3613 = vadd.f32 0.0, %v3612
        %v3614 = vpop.f32.mrf.mxu0
        %3615 = vmatprep.mubr.bf16.mxu0 0
        %3616 = vmatmul.mubr.bf16.gmra.mxu0 %v3440
        %v3617 = vpop.f32.mrf.mxu0
        %v3618 = vadd.f32 0.0, %v3617
        %v3619 = vpop.f32.mrf.mxu0
        %v3620 = vpop.f32.mrf.mxu0
        %v3621 = vadd.f32 0.0, %v3620
        %v3622 = vpop.f32.mrf.mxu0
        %3623 = vmatprep.mubr.bf16.mxu0 0
        %3624 = vmatmul.mubr.bf16.gmra.mxu0 %v3441
        %v3625 = vpop.f32.mrf.mxu0
        %v3626 = vadd.f32 0.0, %v3625
        %v3627 = vpop.f32.mrf.mxu0
        %v3628 = vpop.f32.mrf.mxu0
        %v3629 = vadd.f32 0.0, %v3628
        %v3630 = vpop.f32.mrf.mxu0
        %3631 = vmatprep.mubr.bf16.mxu0 0
        %3632 = vmatmul.mubr.bf16.gmra.mxu0 %v3442
        %v3633 = vpop.f32.mrf.mxu0
        %v3634 = vadd.f32 0.0, %v3633
        %v3635 = vpop.f32.mrf.mxu0
        %v3636 = vpop.f32.mrf.mxu0
        %v3637 = vadd.f32 0.0, %v3636
        %v3638 = vpop.f32.mrf.mxu0
        %3639 = vmatprep.mubr.bf16.mxu0 0
        %3640 = vmatmul.mubr.bf16.gmra.mxu0 %v3443
        %v3641 = vpop.f32.mrf.mxu0
        %v3642 = vadd.f32 0.0, %v3641
        %v3643 = vpop.f32.mrf.mxu0
        %v3644 = vpop.f32.mrf.mxu0
        %v3645 = vadd.f32 0.0, %v3644
        %v3646 = vpop.f32.mrf.mxu0
        %3647 = vmatprep.mubr.bf16.mxu0 0
        %3648 = vmatmul.mubr.bf16.gmra.mxu0 %v3444
        %v3649 = vpop.f32.mrf.mxu0
        %v3650 = vadd.f32 0.0, %v3649
        %v3651 = vpop.f32.mrf.mxu0
        %v3652 = vpop.f32.mrf.mxu0
        %v3653 = vadd.f32 0.0, %v3652
        %v3654 = vpop.f32.mrf.mxu0
        %3655 = vmatprep.mubr.bf16.mxu0 0
        %3656 = vmatmul.mubr.bf16.gmra.mxu0 %v3445
        %v3657 = vpop.f32.mrf.mxu0
        %v3658 = vadd.f32 0.0, %v3657
        %v3659 = vpop.f32.mrf.mxu0
        %v3660 = vpop.f32.mrf.mxu0
        %v3661 = vadd.f32 0.0, %v3660
        %v3662 = vpop.f32.mrf.mxu0
        %3663 = vmatprep.mubr.bf16.mxu0 0
        %3664 = vmatmul.mubr.bf16.gmra.mxu0 %v3446
        %v3665 = vpop.f32.mrf.mxu0
        %v3666 = vadd.f32 0.0, %v3665
        %v3667 = vpop.f32.mrf.mxu0
        %v3668 = vpop.f32.mrf.mxu0
        %v3669 = vadd.f32 0.0, %v3668
        %v3670 = vpop.f32.mrf.mxu0
        %3671 = vdwg.mxu0
        %v3704 = vunpack.c.l.b16 %v3271
        %v3705 = vunpack.c.l.b16 %v3272
        %v3706 = vunpack.c.l.b16 %v3273
        %v3707 = vunpack.c.l.b16 %v3274
        %v3708 = vunpack.c.l.b16 %v3275
        %v3709 = vunpack.c.l.b16 %v3276
        %v3710 = vunpack.c.l.b16 %v3277
        %v3711 = vunpack.c.l.b16 %v3278
        %v3712 = vunpack.c.l.b16 %v3279
        %v3713 = vunpack.c.l.b16 %v3280
        %v3714 = vunpack.c.l.b16 %v3281
        %v3715 = vunpack.c.l.b16 %v3282
        %v3716 = vunpack.c.l.b16 %v3283
        %v3717 = vunpack.c.l.b16 %v3284
        %v3718 = vunpack.c.l.b16 %v3285
        %v3719 = vunpack.c.l.b16 %v3286
        %v3720 = vunpack.c.l.b16 %v3287
        %v3721 = vunpack.c.l.b16 %v3288
        %v3722 = vunpack.c.l.b16 %v3289
        %v3723 = vunpack.c.l.b16 %v3290
        %v3724 = vunpack.c.l.b16 %v3291
        %v3725 = vunpack.c.l.b16 %v3292
        %v3726 = vunpack.c.l.b16 %v3293
        %v3727 = vunpack.c.l.b16 %v3294
        %v3728 = vunpack.c.l.b16 %v3295
        %v3729 = vunpack.c.l.b16 %v3296
        %v3730 = vunpack.c.l.b16 %v3297
        %v3731 = vunpack.c.l.b16 %v3298
        %v3732 = vunpack.c.l.b16 %v3299
        %v3733 = vunpack.c.l.b16 %v3300
        %v3734 = vunpack.c.l.b16 %v3301
        %v3735 = vunpack.c.l.b16 %v3302
        %v3736 = vpack.c.b16 %v3705, %v3704
        %v3737 = vpack.c.b16 %v3707, %v3706
        %v3738 = vpack.c.b16 %v3709, %v3708
        %v3739 = vpack.c.b16 %v3711, %v3710
        %v3740 = vpack.c.b16 %v3713, %v3712
        %v3741 = vpack.c.b16 %v3715, %v3714
        %v3742 = vpack.c.b16 %v3717, %v3716
        %v3743 = vpack.c.b16 %v3719, %v3718
        %v3744 = vpack.c.b16 %v3721, %v3720
        %v3745 = vpack.c.b16 %v3723, %v3722
        %v3746 = vpack.c.b16 %v3725, %v3724
        %v3747 = vpack.c.b16 %v3727, %v3726
        %v3748 = vpack.c.b16 %v3729, %v3728
        %v3749 = vpack.c.b16 %v3731, %v3730
        %v3750 = vpack.c.b16 %v3733, %v3732
        %v3751 = vpack.c.b16 %v3735, %v3734
        %v3784 = vunpack.c.l.b16 %v3303
        %v3785 = vunpack.c.l.b16 %v3304
        %v3786 = vunpack.c.l.b16 %v3305
        %v3787 = vunpack.c.l.b16 %v3306
        %v3788 = vunpack.c.l.b16 %v3307
        %v3789 = vunpack.c.l.b16 %v3308
        %v3790 = vunpack.c.l.b16 %v3309
        %v3791 = vunpack.c.l.b16 %v3310
        %v3792 = vunpack.c.l.b16 %v3311
        %v3793 = vunpack.c.l.b16 %v3312
        %v3794 = vunpack.c.l.b16 %v3313
        %v3795 = vunpack.c.l.b16 %v3314
        %v3796 = vunpack.c.l.b16 %v3315
        %v3797 = vunpack.c.l.b16 %v3316
        %v3798 = vunpack.c.l.b16 %v3317
        %v3799 = vunpack.c.l.b16 %v3318
        %v3800 = vpack.c.b16 %v3785, %v3784
        %v3801 = vpack.c.b16 %v3787, %v3786
        %v3802 = vpack.c.b16 %v3789, %v3788
        %v3803 = vpack.c.b16 %v3791, %v3790
        %v3804 = vpack.c.b16 %v3793, %v3792
        %v3805 = vpack.c.b16 %v3795, %v3794
        %v3806 = vpack.c.b16 %v3797, %v3796
        %v3807 = vpack.c.b16 %v3799, %v3798
        %3816 = vmatprep.subr.bf16.mxu0 0
        %3817 = vmatpush1.bf16.msra.mxu0 %v3807
        %3818 = vmatprep.subr.bf16.mxu0 0
        %3819 = vmatpush1.bf16.msra.mxu0 %v3806
        %3820 = vmatprep.subr.bf16.mxu0 0
        %3821 = vmatpush1.bf16.msra.mxu0 %v3805
        %3822 = vmatprep.subr.bf16.mxu0 0
        %3823 = vmatpush1.bf16.msra.mxu0 %v3804
        %3824 = vmatprep.subr.bf16.mxu0 0
        %3825 = vmatpush1.bf16.msra.mxu0 %v3803
        %3826 = vmatprep.subr.bf16.mxu0 0
        %3827 = vmatpush1.bf16.msra.mxu0 %v3802
        %3828 = vmatprep.subr.bf16.mxu0 0
        %3829 = vmatpush1.bf16.msra.mxu0 %v3801
        %3830 = vmatprep.subr.bf16.mxu0 0
        %3831 = vmatpush1.bf16.msra.mxu0 %v3800
        %3832 = vmatprep.subr.bf16.mxu0 0
        %3833 = vmatpush2.bf16.msra.mxu0 0
        %3834 = vmatprep.subr.bf16.mxu0 0
        %3835 = vmatpush2.bf16.msra.mxu0 0
        %3836 = vmatprep.subr.bf16.mxu0 0
        %3837 = vmatpush2.bf16.msra.mxu0 0
        %3838 = vmatprep.subr.bf16.mxu0 0
        %3839 = vmatpush2.bf16.msra.mxu0 0
        %3840 = vmatprep.subr.bf16.mxu0 0
        %3841 = vmatpush2.bf16.msra.mxu0 0
        %3842 = vmatprep.subr.bf16.mxu0 0
        %3843 = vmatpush2.bf16.msra.mxu0 0
        %3844 = vmatprep.subr.bf16.mxu0 0
        %3845 = vmatpush2.bf16.msra.mxu0 0
        %3846 = vmatprep.subr.bf16.mxu0 0
        %3847 = vmatpush2.bf16.msra.mxu0 0
        %3848 = vmatprep.mubr.bf16.mxu0 0
        %3849 = vmatmul.mubr.bf16.gmra.mxu0 %v3736
        %v3850 = vpop.f32.mrf.mxu0
        %v3851 = vadd.f32 %v3546, %v3850
        %v3852 = vpop.f32.mrf.mxu0
        %v3853 = vpop.f32.mrf.mxu0
        %v3854 = vadd.f32 %v3549, %v3853
        %v3855 = vpop.f32.mrf.mxu0
        %3856 = vmatprep.mubr.bf16.mxu0 0
        %3857 = vmatmul.mubr.bf16.gmra.mxu0 %v3737
        %v3858 = vpop.f32.mrf.mxu0
        %v3859 = vadd.f32 %v3554, %v3858
        %v3860 = vpop.f32.mrf.mxu0
        %v3861 = vpop.f32.mrf.mxu0
        %v3862 = vadd.f32 %v3557, %v3861
        %v3863 = vpop.f32.mrf.mxu0
        %3864 = vmatprep.mubr.bf16.mxu0 0
        %3865 = vmatmul.mubr.bf16.gmra.mxu0 %v3738
        %v3866 = vpop.f32.mrf.mxu0
        %v3867 = vadd.f32 %v3562, %v3866
        %v3868 = vpop.f32.mrf.mxu0
        %v3869 = vpop.f32.mrf.mxu0
        %v3870 = vadd.f32 %v3565, %v3869
        %v3871 = vpop.f32.mrf.mxu0
        %3872 = vmatprep.mubr.bf16.mxu0 0
        %3873 = vmatmul.mubr.bf16.gmra.mxu0 %v3739
        %v3874 = vpop.f32.mrf.mxu0
        %v3875 = vadd.f32 %v3570, %v3874
        %v3876 = vpop.f32.mrf.mxu0
        %v3877 = vpop.f32.mrf.mxu0
        %v3878 = vadd.f32 %v3573, %v3877
        %v3879 = vpop.f32.mrf.mxu0
        %3880 = vmatprep.mubr.bf16.mxu0 0
        %3881 = vmatmul.mubr.bf16.gmra.mxu0 %v3740
        %v3882 = vpop.f32.mrf.mxu0
        %v3883 = vadd.f32 %v3578, %v3882
        %v3884 = vpop.f32.mrf.mxu0
        %v3885 = vpop.f32.mrf.mxu0
        %v3886 = vadd.f32 %v3581, %v3885
        %v3887 = vpop.f32.mrf.mxu0
        %3888 = vmatprep.mubr.bf16.mxu0 0
        %3889 = vmatmul.mubr.bf16.gmra.mxu0 %v3741
        %v3890 = vpop.f32.mrf.mxu0
        %v3891 = vadd.f32 %v3586, %v3890
        %v3892 = vpop.f32.mrf.mxu0
        %v3893 = vpop.f32.mrf.mxu0
        %v3894 = vadd.f32 %v3589, %v3893
        %v3895 = vpop.f32.mrf.mxu0
        %3896 = vmatprep.mubr.bf16.mxu0 0
        %3897 = vmatmul.mubr.bf16.gmra.mxu0 %v3742
        %v3898 = vpop.f32.mrf.mxu0
        %v3899 = vadd.f32 %v3594, %v3898
        %v3900 = vpop.f32.mrf.mxu0
        %v3901 = vpop.f32.mrf.mxu0
        %v3902 = vadd.f32 %v3597, %v3901
        %v3903 = vpop.f32.mrf.mxu0
        %3904 = vmatprep.mubr.bf16.mxu0 0
        %3905 = vmatmul.mubr.bf16.gmra.mxu0 %v3743
        %v3906 = vpop.f32.mrf.mxu0
        %v3907 = vadd.f32 %v3602, %v3906
        %v3908 = vpop.f32.mrf.mxu0
        %v3909 = vpop.f32.mrf.mxu0
        %v3910 = vadd.f32 %v3605, %v3909
        %v3911 = vpop.f32.mrf.mxu0
        %3912 = vmatprep.mubr.bf16.mxu0 0
        %3913 = vmatmul.mubr.bf16.gmra.mxu0 %v3744
        %v3914 = vpop.f32.mrf.mxu0
        %v3915 = vadd.f32 %v3610, %v3914
        %v3916 = vpop.f32.mrf.mxu0
        %v3917 = vpop.f32.mrf.mxu0
        %v3918 = vadd.f32 %v3613, %v3917
        %v3919 = vpop.f32.mrf.mxu0
        %3920 = vmatprep.mubr.bf16.mxu0 0
        %3921 = vmatmul.mubr.bf16.gmra.mxu0 %v3745
        %v3922 = vpop.f32.mrf.mxu0
        %v3923 = vadd.f32 %v3618, %v3922
        %v3924 = vpop.f32.mrf.mxu0
        %v3925 = vpop.f32.mrf.mxu0
        %v3926 = vadd.f32 %v3621, %v3925
        %v3927 = vpop.f32.mrf.mxu0
        %3928 = vmatprep.mubr.bf16.mxu0 0
        %3929 = vmatmul.mubr.bf16.gmra.mxu0 %v3746
        %v3930 = vpop.f32.mrf.mxu0
        %v3931 = vadd.f32 %v3626, %v3930
        %v3932 = vpop.f32.mrf.mxu0
        %v3933 = vpop.f32.mrf.mxu0
        %v3934 = vadd.f32 %v3629, %v3933
        %v3935 = vpop.f32.mrf.mxu0
        %3936 = vmatprep.mubr.bf16.mxu0 0
        %3937 = vmatmul.mubr.bf16.gmra.mxu0 %v3747
        %v3938 = vpop.f32.mrf.mxu0
        %v3939 = vadd.f32 %v3634, %v3938
        %v3940 = vpop.f32.mrf.mxu0
        %v3941 = vpop.f32.mrf.mxu0
        %v3942 = vadd.f32 %v3637, %v3941
        %v3943 = vpop.f32.mrf.mxu0
        %3944 = vmatprep.mubr.bf16.mxu0 0
        %3945 = vmatmul.mubr.bf16.gmra.mxu0 %v3748
        %v3946 = vpop.f32.mrf.mxu0
        %v3947 = vadd.f32 %v3642, %v3946
        %v3948 = vpop.f32.mrf.mxu0
        %v3949 = vpop.f32.mrf.mxu0
        %v3950 = vadd.f32 %v3645, %v3949
        %v3951 = vpop.f32.mrf.mxu0
        %3952 = vmatprep.mubr.bf16.mxu0 0
        %3953 = vmatmul.mubr.bf16.gmra.mxu0 %v3749
        %v3954 = vpop.f32.mrf.mxu0
        %v3955 = vadd.f32 %v3650, %v3954
        %v3956 = vpop.f32.mrf.mxu0
        %v3957 = vpop.f32.mrf.mxu0
        %v3958 = vadd.f32 %v3653, %v3957
        %v3959 = vpop.f32.mrf.mxu0
        %3960 = vmatprep.mubr.bf16.mxu0 0
        %3961 = vmatmul.mubr.bf16.gmra.mxu0 %v3750
        %v3962 = vpop.f32.mrf.mxu0
        %v3963 = vadd.f32 %v3658, %v3962
        %v3964 = vpop.f32.mrf.mxu0
        %v3965 = vpop.f32.mrf.mxu0
        %v3966 = vadd.f32 %v3661, %v3965
        %v3967 = vpop.f32.mrf.mxu0
        %3968 = vmatprep.mubr.bf16.mxu0 0
        %3969 = vmatmul.mubr.bf16.gmra.mxu0 %v3751
        %v3970 = vpop.f32.mrf.mxu0
        %v3971 = vadd.f32 %v3666, %v3970
        %v3972 = vpop.f32.mrf.mxu0
        %v3973 = vpop.f32.mrf.mxu0
        %v3974 = vadd.f32 %v3669, %v3973
        %v3975 = vpop.f32.mrf.mxu0
        %3976 = vdwg.mxu0
        %v3977 = vld [vmem:[#allocation4] sm:$0xf]
        %v3978 = vld [vmem:[#allocation4 + $0x4] sm:$0xf]
        %v3979 = vld [vmem:[#allocation4 + $0x8] sm:$0xf]
        %v3980 = vld [vmem:[#allocation4 + $0xc] sm:$0xf]
        %v3981 = vld [vmem:[#allocation4 + $0x10] sm:$0xf]
        %v3982 = vld [vmem:[#allocation4 + $0x14] sm:$0xf]
        %v3983 = vld [vmem:[#allocation4 + $0x18] sm:$0xf]
        %v3984 = vld [vmem:[#allocation4 + $0x1c] sm:$0xf]
        %v3985 = vld [vmem:[#allocation4 + $0x20] sm:$0xf]
        %v3986 = vld [vmem:[#allocation4 + $0x24] sm:$0xf]
        %v3987 = vld [vmem:[#allocation4 + $0x28] sm:$0xf]
        %v3988 = vld [vmem:[#allocation4 + $0x2c] sm:$0xf]
        %v3989 = vld [vmem:[#allocation4 + $0x30] sm:$0xf]
        %v3990 = vld [vmem:[#allocation4 + $0x34] sm:$0xf]
        %v3991 = vld [vmem:[#allocation4 + $0x38] sm:$0xf]
        %v3992 = vld [vmem:[#allocation4 + $0x3c] sm:$0xf]
        %v3993 = vld [vmem:[#allocation4 + $0x40] sm:$0xf]
        %v3994 = vld [vmem:[#allocation4 + $0x44] sm:$0xf]
        %v3995 = vld [vmem:[#allocation4 + $0x48] sm:$0xf]
        %v3996 = vld [vmem:[#allocation4 + $0x4c] sm:$0xf]
        %v3997 = vld [vmem:[#allocation4 + $0x50] sm:$0xf]
        %v3998 = vld [vmem:[#allocation4 + $0x54] sm:$0xf]
        %v3999 = vld [vmem:[#allocation4 + $0x58] sm:$0xf]
        %v4000 = vld [vmem:[#allocation4 + $0x5c] sm:$0xf]
        %v4001 = vld [vmem:[#allocation4 + $0x60] sm:$0xf]
        %v4002 = vld [vmem:[#allocation4 + $0x64] sm:$0xf]
        %v4003 = vld [vmem:[#allocation4 + $0x68] sm:$0xf]
        %v4004 = vld [vmem:[#allocation4 + $0x6c] sm:$0xf]
        %v4005 = vld [vmem:[#allocation4 + $0x70] sm:$0xf]
        %v4006 = vld [vmem:[#allocation4 + $0x74] sm:$0xf]
        %v4007 = vld [vmem:[#allocation4 + $0x78] sm:$0xf]
        %v4008 = vld [vmem:[#allocation4 + $0x7c] sm:$0xf]
        %v4009 = vld [vmem:[#allocation10 + $0x80] sm:$0xf]
        %v4010 = vld [vmem:[#allocation10 + $0x84] sm:$0xf]
        %v4011 = vld [vmem:[#allocation10 + $0x88] sm:$0xf]
        %v4012 = vld [vmem:[#allocation10 + $0x8c] sm:$0xf]
        %v4013 = vld [vmem:[#allocation10 + $0x90] sm:$0xf]
        %v4014 = vld [vmem:[#allocation10 + $0x94] sm:$0xf]
        %v4015 = vld [vmem:[#allocation10 + $0x98] sm:$0xf]
        %v4016 = vld [vmem:[#allocation10 + $0x9c] sm:$0xf]
        %v4017 = vld [vmem:[#allocation10 + $0xa0] sm:$0xf]
        %v4018 = vld [vmem:[#allocation10 + $0xa4] sm:$0xf]
        %v4019 = vld [vmem:[#allocation10 + $0xa8] sm:$0xf]
        %v4020 = vld [vmem:[#allocation10 + $0xac] sm:$0xf]
        %v4021 = vld [vmem:[#allocation10 + $0xb0] sm:$0xf]
        %v4022 = vld [vmem:[#allocation10 + $0xb4] sm:$0xf]
        %v4023 = vld [vmem:[#allocation10 + $0xb8] sm:$0xf]
        %v4024 = vld [vmem:[#allocation10 + $0xbc] sm:$0xf]
        %v4057 = vunpack.c.l.b16 %v3977
        %v4058 = vunpack.c.l.b16 %v3978
        %v4059 = vunpack.c.l.b16 %v3979
        %v4060 = vunpack.c.l.b16 %v3980
        %v4061 = vunpack.c.l.b16 %v3981
        %v4062 = vunpack.c.l.b16 %v3982
        %v4063 = vunpack.c.l.b16 %v3983
        %v4064 = vunpack.c.l.b16 %v3984
        %v4065 = vunpack.c.l.b16 %v3985
        %v4066 = vunpack.c.l.b16 %v3986
        %v4067 = vunpack.c.l.b16 %v3987
        %v4068 = vunpack.c.l.b16 %v3988
        %v4069 = vunpack.c.l.b16 %v3989
        %v4070 = vunpack.c.l.b16 %v3990
        %v4071 = vunpack.c.l.b16 %v3991
        %v4072 = vunpack.c.l.b16 %v3992
        %v4073 = vunpack.c.l.b16 %v3993
        %v4074 = vunpack.c.l.b16 %v3994
        %v4075 = vunpack.c.l.b16 %v3995
        %v4076 = vunpack.c.l.b16 %v3996
        %v4077 = vunpack.c.l.b16 %v3997
        %v4078 = vunpack.c.l.b16 %v3998
        %v4079 = vunpack.c.l.b16 %v3999
        %v4080 = vunpack.c.l.b16 %v4000
        %v4081 = vunpack.c.l.b16 %v4001
        %v4082 = vunpack.c.l.b16 %v4002
        %v4083 = vunpack.c.l.b16 %v4003
        %v4084 = vunpack.c.l.b16 %v4004
        %v4085 = vunpack.c.l.b16 %v4005
        %v4086 = vunpack.c.l.b16 %v4006
        %v4087 = vunpack.c.l.b16 %v4007
        %v4088 = vunpack.c.l.b16 %v4008
        %v4089 = vpack.c.b16 %v4058, %v4057
        %v4090 = vpack.c.b16 %v4060, %v4059
        %v4091 = vpack.c.b16 %v4062, %v4061
        %v4092 = vpack.c.b16 %v4064, %v4063
        %v4093 = vpack.c.b16 %v4066, %v4065
        %v4094 = vpack.c.b16 %v4068, %v4067
        %v4095 = vpack.c.b16 %v4070, %v4069
        %v4096 = vpack.c.b16 %v4072, %v4071
        %v4097 = vpack.c.b16 %v4074, %v4073
        %v4098 = vpack.c.b16 %v4076, %v4075
        %v4099 = vpack.c.b16 %v4078, %v4077
        %v4100 = vpack.c.b16 %v4080, %v4079
        %v4101 = vpack.c.b16 %v4082, %v4081
        %v4102 = vpack.c.b16 %v4084, %v4083
        %v4103 = vpack.c.b16 %v4086, %v4085
        %v4104 = vpack.c.b16 %v4088, %v4087
        %v4137 = vunpack.c.l.b16 %v4009
        %v4138 = vunpack.c.l.b16 %v4010
        %v4139 = vunpack.c.l.b16 %v4011
        %v4140 = vunpack.c.l.b16 %v4012
        %v4141 = vunpack.c.l.b16 %v4013
        %v4142 = vunpack.c.l.b16 %v4014
        %v4143 = vunpack.c.l.b16 %v4015
        %v4144 = vunpack.c.l.b16 %v4016
        %v4145 = vunpack.c.l.b16 %v4017
        %v4146 = vunpack.c.l.b16 %v4018
        %v4147 = vunpack.c.l.b16 %v4019
        %v4148 = vunpack.c.l.b16 %v4020
        %v4149 = vunpack.c.l.b16 %v4021
        %v4150 = vunpack.c.l.b16 %v4022
        %v4151 = vunpack.c.l.b16 %v4023
        %v4152 = vunpack.c.l.b16 %v4024
        %v4153 = vpack.c.b16 %v4138, %v4137
        %v4154 = vpack.c.b16 %v4140, %v4139
        %v4155 = vpack.c.b16 %v4142, %v4141
        %v4156 = vpack.c.b16 %v4144, %v4143
        %v4157 = vpack.c.b16 %v4146, %v4145
        %v4158 = vpack.c.b16 %v4148, %v4147
        %v4159 = vpack.c.b16 %v4150, %v4149
        %v4160 = vpack.c.b16 %v4152, %v4151
        %4169 = vmatprep.subr.bf16.mxu0 0
        %4170 = vmatpush1.bf16.msra.mxu0 %v4160
        %4171 = vmatprep.subr.bf16.mxu0 0
        %4172 = vmatpush1.bf16.msra.mxu0 %v4159
        %4173 = vmatprep.subr.bf16.mxu0 0
        %4174 = vmatpush1.bf16.msra.mxu0 %v4158
        %4175 = vmatprep.subr.bf16.mxu0 0
        %4176 = vmatpush1.bf16.msra.mxu0 %v4157
        %4177 = vmatprep.subr.bf16.mxu0 0
        %4178 = vmatpush1.bf16.msra.mxu0 %v4156
        %4179 = vmatprep.subr.bf16.mxu0 0
        %4180 = vmatpush1.bf16.msra.mxu0 %v4155
        %4181 = vmatprep.subr.bf16.mxu0 0
        %4182 = vmatpush1.bf16.msra.mxu0 %v4154
        %4183 = vmatprep.subr.bf16.mxu0 0
        %4184 = vmatpush1.bf16.msra.mxu0 %v4153
        %4185 = vmatprep.subr.bf16.mxu0 0
        %4186 = vmatpush2.bf16.msra.mxu0 0
        %4187 = vmatprep.subr.bf16.mxu0 0
        %4188 = vmatpush2.bf16.msra.mxu0 0
        %4189 = vmatprep.subr.bf16.mxu0 0
        %4190 = vmatpush2.bf16.msra.mxu0 0
        %4191 = vmatprep.subr.bf16.mxu0 0
        %4192 = vmatpush2.bf16.msra.mxu0 0
        %4193 = vmatprep.subr.bf16.mxu0 0
        %4194 = vmatpush2.bf16.msra.mxu0 0
        %4195 = vmatprep.subr.bf16.mxu0 0
        %4196 = vmatpush2.bf16.msra.mxu0 0
        %4197 = vmatprep.subr.bf16.mxu0 0
        %4198 = vmatpush2.bf16.msra.mxu0 0
        %4199 = vmatprep.subr.bf16.mxu0 0
        %4200 = vmatpush2.bf16.msra.mxu0 0
        %4201 = vmatprep.mubr.bf16.mxu0 0
        %4202 = vmatmul.mubr.bf16.gmra.mxu0 %v4089
        %v4203 = vpop.f32.mrf.mxu0
        %v4204 = vadd.f32 0.0, %v4203
        %v4205 = vpop.f32.mrf.mxu0
        %v4206 = vpop.f32.mrf.mxu0
        %v4207 = vadd.f32 0.0, %v4206
        %v4208 = vpop.f32.mrf.mxu0
        %4209 = vmatprep.mubr.bf16.mxu0 0
        %4210 = vmatmul.mubr.bf16.gmra.mxu0 %v4090
        %v4211 = vpop.f32.mrf.mxu0
        %v4212 = vadd.f32 0.0, %v4211
        %v4213 = vpop.f32.mrf.mxu0
        %v4214 = vpop.f32.mrf.mxu0
        %v4215 = vadd.f32 0.0, %v4214
        %v4216 = vpop.f32.mrf.mxu0
        %4217 = vmatprep.mubr.bf16.mxu0 0
        %4218 = vmatmul.mubr.bf16.gmra.mxu0 %v4091
        %v4219 = vpop.f32.mrf.mxu0
        %v4220 = vadd.f32 0.0, %v4219
        %v4221 = vpop.f32.mrf.mxu0
        %v4222 = vpop.f32.mrf.mxu0
        %v4223 = vadd.f32 0.0, %v4222
        %v4224 = vpop.f32.mrf.mxu0
        %4225 = vmatprep.mubr.bf16.mxu0 0
        %4226 = vmatmul.mubr.bf16.gmra.mxu0 %v4092
        %v4227 = vpop.f32.mrf.mxu0
        %v4228 = vadd.f32 0.0, %v4227
        %v4229 = vpop.f32.mrf.mxu0
        %v4230 = vpop.f32.mrf.mxu0
        %v4231 = vadd.f32 0.0, %v4230
        %v4232 = vpop.f32.mrf.mxu0
        %4233 = vmatprep.mubr.bf16.mxu0 0
        %4234 = vmatmul.mubr.bf16.gmra.mxu0 %v4093
        %v4235 = vpop.f32.mrf.mxu0
        %v4236 = vadd.f32 0.0, %v4235
        %v4237 = vpop.f32.mrf.mxu0
        %v4238 = vpop.f32.mrf.mxu0
        %v4239 = vadd.f32 0.0, %v4238
        %v4240 = vpop.f32.mrf.mxu0
        %4241 = vmatprep.mubr.bf16.mxu0 0
        %4242 = vmatmul.mubr.bf16.gmra.mxu0 %v4094
        %v4243 = vpop.f32.mrf.mxu0
        %v4244 = vadd.f32 0.0, %v4243
        %v4245 = vpop.f32.mrf.mxu0
        %v4246 = vpop.f32.mrf.mxu0
        %v4247 = vadd.f32 0.0, %v4246
        %v4248 = vpop.f32.mrf.mxu0
        %4249 = vmatprep.mubr.bf16.mxu0 0
        %4250 = vmatmul.mubr.bf16.gmra.mxu0 %v4095
        %v4251 = vpop.f32.mrf.mxu0
        %v4252 = vadd.f32 0.0, %v4251
        %v4253 = vpop.f32.mrf.mxu0
        %v4254 = vpop.f32.mrf.mxu0
        %v4255 = vadd.f32 0.0, %v4254
        %v4256 = vpop.f32.mrf.mxu0
        %4257 = vmatprep.mubr.bf16.mxu0 0
        %4258 = vmatmul.mubr.bf16.gmra.mxu0 %v4096
        %v4259 = vpop.f32.mrf.mxu0
        %v4260 = vadd.f32 0.0, %v4259
        %v4261 = vpop.f32.mrf.mxu0
        %v4262 = vpop.f32.mrf.mxu0
        %v4263 = vadd.f32 0.0, %v4262
        %v4264 = vpop.f32.mrf.mxu0
        %4265 = vmatprep.mubr.bf16.mxu0 0
        %4266 = vmatmul.mubr.bf16.gmra.mxu0 %v4097
        %v4267 = vpop.f32.mrf.mxu0
        %v4268 = vadd.f32 0.0, %v4267
        %v4269 = vpop.f32.mrf.mxu0
        %v4270 = vpop.f32.mrf.mxu0
        %v4271 = vadd.f32 0.0, %v4270
        %v4272 = vpop.f32.mrf.mxu0
        %4273 = vmatprep.mubr.bf16.mxu0 0
        %4274 = vmatmul.mubr.bf16.gmra.mxu0 %v4098
        %v4275 = vpop.f32.mrf.mxu0
        %v4276 = vadd.f32 0.0, %v4275
        %v4277 = vpop.f32.mrf.mxu0
        %v4278 = vpop.f32.mrf.mxu0
        %v4279 = vadd.f32 0.0, %v4278
        %v4280 = vpop.f32.mrf.mxu0
        %4281 = vmatprep.mubr.bf16.mxu0 0
        %4282 = vmatmul.mubr.bf16.gmra.mxu0 %v4099
        %v4283 = vpop.f32.mrf.mxu0
        %v4284 = vadd.f32 0.0, %v4283
        %v4285 = vpop.f32.mrf.mxu0
        %v4286 = vpop.f32.mrf.mxu0
        %v4287 = vadd.f32 0.0, %v4286
        %v4288 = vpop.f32.mrf.mxu0
        %4289 = vmatprep.mubr.bf16.mxu0 0
        %4290 = vmatmul.mubr.bf16.gmra.mxu0 %v4100
        %v4291 = vpop.f32.mrf.mxu0
        %v4292 = vadd.f32 0.0, %v4291
        %v4293 = vpop.f32.mrf.mxu0
        %v4294 = vpop.f32.mrf.mxu0
        %v4295 = vadd.f32 0.0, %v4294
        %v4296 = vpop.f32.mrf.mxu0
        %4297 = vmatprep.mubr.bf16.mxu0 0
        %4298 = vmatmul.mubr.bf16.gmra.mxu0 %v4101
        %v4299 = vpop.f32.mrf.mxu0
        %v4300 = vadd.f32 0.0, %v4299
        %v4301 = vpop.f32.mrf.mxu0
        %v4302 = vpop.f32.mrf.mxu0
        %v4303 = vadd.f32 0.0, %v4302
        %v4304 = vpop.f32.mrf.mxu0
        %4305 = vmatprep.mubr.bf16.mxu0 0
        %4306 = vmatmul.mubr.bf16.gmra.mxu0 %v4102
        %v4307 = vpop.f32.mrf.mxu0
        %v4308 = vadd.f32 0.0, %v4307
        %v4309 = vpop.f32.mrf.mxu0
        %v4310 = vpop.f32.mrf.mxu0
        %v4311 = vadd.f32 0.0, %v4310
        %v4312 = vpop.f32.mrf.mxu0
        %4313 = vmatprep.mubr.bf16.mxu0 0
        %4314 = vmatmul.mubr.bf16.gmra.mxu0 %v4103
        %v4315 = vpop.f32.mrf.mxu0
        %v4316 = vadd.f32 0.0, %v4315
        %v4317 = vpop.f32.mrf.mxu0
        %v4318 = vpop.f32.mrf.mxu0
        %v4319 = vadd.f32 0.0, %v4318
        %v4320 = vpop.f32.mrf.mxu0
        %4321 = vmatprep.mubr.bf16.mxu0 0
        %4322 = vmatmul.mubr.bf16.gmra.mxu0 %v4104
        %v4323 = vpop.f32.mrf.mxu0
        %v4324 = vadd.f32 0.0, %v4323
        %v4325 = vpop.f32.mrf.mxu0
        %v4326 = vpop.f32.mrf.mxu0
        %v4327 = vadd.f32 0.0, %v4326
        %v4328 = vpop.f32.mrf.mxu0
        %4329 = vdwg.mxu0
        %v4330 = vadd.f32 %v3851, %v4204
        %v4331 = vadd.f32 %v3854, %v4207
        %v4332 = vadd.f32 %v3859, %v4212
        %v4333 = vadd.f32 %v3862, %v4215
        %v4334 = vadd.f32 %v3867, %v4220
        %v4335 = vadd.f32 %v3870, %v4223
        %v4336 = vadd.f32 %v3875, %v4228
        %v4337 = vadd.f32 %v3878, %v4231
        %v4338 = vadd.f32 %v3883, %v4236
        %v4339 = vadd.f32 %v3886, %v4239
        %v4340 = vadd.f32 %v3891, %v4244
        %v4341 = vadd.f32 %v3894, %v4247
        %v4342 = vadd.f32 %v3899, %v4252
        %v4343 = vadd.f32 %v3902, %v4255
        %v4344 = vadd.f32 %v3907, %v4260
        %v4345 = vadd.f32 %v3910, %v4263
        %v4346 = vadd.f32 %v3915, %v4268
        %v4347 = vadd.f32 %v3918, %v4271
        %v4348 = vadd.f32 %v3923, %v4276
        %v4349 = vadd.f32 %v3926, %v4279
        %v4350 = vadd.f32 %v3931, %v4284
        %v4351 = vadd.f32 %v3934, %v4287
        %v4352 = vadd.f32 %v3939, %v4292
        %v4353 = vadd.f32 %v3942, %v4295
        %v4354 = vadd.f32 %v3947, %v4300
        %v4355 = vadd.f32 %v3950, %v4303
        %v4356 = vadd.f32 %v3955, %v4308
        %v4357 = vadd.f32 %v3958, %v4311
        %v4358 = vadd.f32 %v3963, %v4316
        %v4359 = vadd.f32 %v3966, %v4319
        %v4360 = vadd.f32 %v3971, %v4324
        %v4361 = vadd.f32 %v3974, %v4327
        %v4362 = vld [vmem:[#allocation3 + $0x8] sm:$0xf]
        %v4363 = vld [vmem:[#allocation3 + $0xc] sm:$0xf]
        %v4364 = vld [vmem:[#allocation3 + $0x10] sm:$0xf]
        %v4365 = vld [vmem:[#allocation3 + $0x14] sm:$0xf]
        %v4366 = vld [vmem:[#allocation3 + $0x18] sm:$0xf]
        %v4367 = vld [vmem:[#allocation3 + $0x1c] sm:$0xf]
        %v4368 = vld [vmem:[#allocation3 + $0x20] sm:$0xf]
        %v4369 = vld [vmem:[#allocation3 + $0x24] sm:$0xf]
        %v4370 = vld [vmem:[#allocation3 + $0x28] sm:$0xf]
        %v4371 = vld [vmem:[#allocation3 + $0x2c] sm:$0xf]
        %v4372 = vld [vmem:[#allocation3 + $0x30] sm:$0xf]
        %v4373 = vld [vmem:[#allocation3 + $0x34] sm:$0xf]
        %v4374 = vld [vmem:[#allocation3 + $0x38] sm:$0xf]
        %v4375 = vld [vmem:[#allocation3 + $0x3c] sm:$0xf]
        %v4376 = vld [vmem:[#allocation3 + $0x40] sm:$0xf]
        %v4377 = vld [vmem:[#allocation3 + $0x44] sm:$0xf]
        %v4378 = vld [vmem:[#allocation3 + $0x48] sm:$0xf]
        %v4379 = vld [vmem:[#allocation3 + $0x4c] sm:$0xf]
        %v4380 = vld [vmem:[#allocation3 + $0x50] sm:$0xf]
        %v4381 = vld [vmem:[#allocation3 + $0x54] sm:$0xf]
        %v4382 = vld [vmem:[#allocation3 + $0x58] sm:$0xf]
        %v4383 = vld [vmem:[#allocation3 + $0x5c] sm:$0xf]
        %v4384 = vld [vmem:[#allocation3 + $0x60] sm:$0xf]
        %v4385 = vld [vmem:[#allocation3 + $0x64] sm:$0xf]
        %v4386 = vld [vmem:[#allocation3 + $0x68] sm:$0xf]
        %v4387 = vld [vmem:[#allocation3 + $0x6c] sm:$0xf]
        %v4388 = vld [vmem:[#allocation3 + $0x70] sm:$0xf]
        %v4389 = vld [vmem:[#allocation3 + $0x74] sm:$0xf]
        %v4390 = vld [vmem:[#allocation3 + $0x78] sm:$0xf]
        %v4391 = vld [vmem:[#allocation3 + $0x7c] sm:$0xf]
        %v4392 = vld [vmem:[#allocation3 + $0x80] sm:$0xf]
        %v4393 = vld [vmem:[#allocation3 + $0x84] sm:$0xf]
        %v4394 = vld [vmem:[#allocation10 + $0xc0] sm:$0xf]
        %v4395 = vld [vmem:[#allocation10 + $0xc4] sm:$0xf]
        %v4396 = vld [vmem:[#allocation10 + $0xc8] sm:$0xf]
        %v4397 = vld [vmem:[#allocation10 + $0xcc] sm:$0xf]
        %v4398 = vld [vmem:[#allocation10 + $0xd0] sm:$0xf]
        %v4399 = vld [vmem:[#allocation10 + $0xd4] sm:$0xf]
        %v4400 = vld [vmem:[#allocation10 + $0xd8] sm:$0xf]
        %v4401 = vld [vmem:[#allocation10 + $0xdc] sm:$0xf]
        %v4402 = vld [vmem:[#allocation10 + $0xe0] sm:$0xf]
        %v4403 = vld [vmem:[#allocation10 + $0xe4] sm:$0xf]
        %v4404 = vld [vmem:[#allocation10 + $0xe8] sm:$0xf]
        %v4405 = vld [vmem:[#allocation10 + $0xec] sm:$0xf]
        %v4406 = vld [vmem:[#allocation10 + $0xf0] sm:$0xf]
        %v4407 = vld [vmem:[#allocation10 + $0xf4] sm:$0xf]
        %v4408 = vld [vmem:[#allocation10 + $0xf8] sm:$0xf]
        %v4409 = vld [vmem:[#allocation10 + $0xfc] sm:$0xf]
        %v4442 = vunpack.c.l.b16 %v4362
        %v4443 = vunpack.c.l.b16 %v4363
        %v4444 = vunpack.c.l.b16 %v4364
        %v4445 = vunpack.c.l.b16 %v4365
        %v4446 = vunpack.c.l.b16 %v4366
        %v4447 = vunpack.c.l.b16 %v4367
        %v4448 = vunpack.c.l.b16 %v4368
        %v4449 = vunpack.c.l.b16 %v4369
        %v4450 = vunpack.c.l.b16 %v4370
        %v4451 = vunpack.c.l.b16 %v4371
        %v4452 = vunpack.c.l.b16 %v4372
        %v4453 = vunpack.c.l.b16 %v4373
        %v4454 = vunpack.c.l.b16 %v4374
        %v4455 = vunpack.c.l.b16 %v4375
        %v4456 = vunpack.c.l.b16 %v4376
        %v4457 = vunpack.c.l.b16 %v4377
        %v4458 = vunpack.c.l.b16 %v4378
        %v4459 = vunpack.c.l.b16 %v4379
        %v4460 = vunpack.c.l.b16 %v4380
        %v4461 = vunpack.c.l.b16 %v4381
        %v4462 = vunpack.c.l.b16 %v4382
        %v4463 = vunpack.c.l.b16 %v4383
        %v4464 = vunpack.c.l.b16 %v4384
        %v4465 = vunpack.c.l.b16 %v4385
        %v4466 = vunpack.c.l.b16 %v4386
        %v4467 = vunpack.c.l.b16 %v4387
        %v4468 = vunpack.c.l.b16 %v4388
        %v4469 = vunpack.c.l.b16 %v4389
        %v4470 = vunpack.c.l.b16 %v4390
        %v4471 = vunpack.c.l.b16 %v4391
        %v4472 = vunpack.c.l.b16 %v4392
        %v4473 = vunpack.c.l.b16 %v4393
        %v4474 = vpack.c.b16 %v4443, %v4442
        %v4475 = vpack.c.b16 %v4445, %v4444
        %v4476 = vpack.c.b16 %v4447, %v4446
        %v4477 = vpack.c.b16 %v4449, %v4448
        %v4478 = vpack.c.b16 %v4451, %v4450
        %v4479 = vpack.c.b16 %v4453, %v4452
        %v4480 = vpack.c.b16 %v4455, %v4454
        %v4481 = vpack.c.b16 %v4457, %v4456
        %v4482 = vpack.c.b16 %v4459, %v4458
        %v4483 = vpack.c.b16 %v4461, %v4460
        %v4484 = vpack.c.b16 %v4463, %v4462
        %v4485 = vpack.c.b16 %v4465, %v4464
        %v4486 = vpack.c.b16 %v4467, %v4466
        %v4487 = vpack.c.b16 %v4469, %v4468
        %v4488 = vpack.c.b16 %v4471, %v4470
        %v4489 = vpack.c.b16 %v4473, %v4472
        %v4522 = vunpack.c.l.b16 %v4394
        %v4523 = vunpack.c.l.b16 %v4395
        %v4524 = vunpack.c.l.b16 %v4396
        %v4525 = vunpack.c.l.b16 %v4397
        %v4526 = vunpack.c.l.b16 %v4398
        %v4527 = vunpack.c.l.b16 %v4399
        %v4528 = vunpack.c.l.b16 %v4400
        %v4529 = vunpack.c.l.b16 %v4401
        %v4530 = vunpack.c.l.b16 %v4402
        %v4531 = vunpack.c.l.b16 %v4403
        %v4532 = vunpack.c.l.b16 %v4404
        %v4533 = vunpack.c.l.b16 %v4405
        %v4534 = vunpack.c.l.b16 %v4406
        %v4535 = vunpack.c.l.b16 %v4407
        %v4536 = vunpack.c.l.b16 %v4408
        %v4537 = vunpack.c.l.b16 %v4409
        %v4538 = vpack.c.b16 %v4523, %v4522
        %v4539 = vpack.c.b16 %v4525, %v4524
        %v4540 = vpack.c.b16 %v4527, %v4526
        %v4541 = vpack.c.b16 %v4529, %v4528
        %v4542 = vpack.c.b16 %v4531, %v4530
        %v4543 = vpack.c.b16 %v4533, %v4532
        %v4544 = vpack.c.b16 %v4535, %v4534
        %v4545 = vpack.c.b16 %v4537, %v4536
        %4554 = vmatprep.subr.bf16.mxu0 0
        %4555 = vmatpush1.bf16.msra.mxu0 %v4545
        %4556 = vmatprep.subr.bf16.mxu0 0
        %4557 = vmatpush1.bf16.msra.mxu0 %v4544
        %4558 = vmatprep.subr.bf16.mxu0 0
        %4559 = vmatpush1.bf16.msra.mxu0 %v4543
        %4560 = vmatprep.subr.bf16.mxu0 0
        %4561 = vmatpush1.bf16.msra.mxu0 %v4542
        %4562 = vmatprep.subr.bf16.mxu0 0
        %4563 = vmatpush1.bf16.msra.mxu0 %v4541
        %4564 = vmatprep.subr.bf16.mxu0 0
        %4565 = vmatpush1.bf16.msra.mxu0 %v4540
        %4566 = vmatprep.subr.bf16.mxu0 0
        %4567 = vmatpush1.bf16.msra.mxu0 %v4539
        %4568 = vmatprep.subr.bf16.mxu0 0
        %4569 = vmatpush1.bf16.msra.mxu0 %v4538
        %4570 = vmatprep.subr.bf16.mxu0 0
        %4571 = vmatpush2.bf16.msra.mxu0 0
        %4572 = vmatprep.subr.bf16.mxu0 0
        %4573 = vmatpush2.bf16.msra.mxu0 0
        %4574 = vmatprep.subr.bf16.mxu0 0
        %4575 = vmatpush2.bf16.msra.mxu0 0
        %4576 = vmatprep.subr.bf16.mxu0 0
        %4577 = vmatpush2.bf16.msra.mxu0 0
        %4578 = vmatprep.subr.bf16.mxu0 0
        %4579 = vmatpush2.bf16.msra.mxu0 0
        %4580 = vmatprep.subr.bf16.mxu0 0
        %4581 = vmatpush2.bf16.msra.mxu0 0
        %4582 = vmatprep.subr.bf16.mxu0 0
        %4583 = vmatpush2.bf16.msra.mxu0 0
        %4584 = vmatprep.subr.bf16.mxu0 0
        %4585 = vmatpush2.bf16.msra.mxu0 0
        %4586 = vmatprep.mubr.bf16.mxu0 0
        %4587 = vmatmul.mubr.bf16.gmra.mxu0 %v4474
        %v4588 = vpop.f32.mrf.mxu0
        %v4589 = vadd.f32 0.0, %v4588
        %v4590 = vpop.f32.mrf.mxu0
        %v4591 = vpop.f32.mrf.mxu0
        %v4592 = vadd.f32 0.0, %v4591
        %v4593 = vpop.f32.mrf.mxu0
        %4594 = vmatprep.mubr.bf16.mxu0 0
        %4595 = vmatmul.mubr.bf16.gmra.mxu0 %v4475
        %v4596 = vpop.f32.mrf.mxu0
        %v4597 = vadd.f32 0.0, %v4596
        %v4598 = vpop.f32.mrf.mxu0
        %v4599 = vpop.f32.mrf.mxu0
        %v4600 = vadd.f32 0.0, %v4599
        %v4601 = vpop.f32.mrf.mxu0
        %4602 = vmatprep.mubr.bf16.mxu0 0
        %4603 = vmatmul.mubr.bf16.gmra.mxu0 %v4476
        %v4604 = vpop.f32.mrf.mxu0
        %v4605 = vadd.f32 0.0, %v4604
        %v4606 = vpop.f32.mrf.mxu0
        %v4607 = vpop.f32.mrf.mxu0
        %v4608 = vadd.f32 0.0, %v4607
        %v4609 = vpop.f32.mrf.mxu0
        %4610 = vmatprep.mubr.bf16.mxu0 0
        %4611 = vmatmul.mubr.bf16.gmra.mxu0 %v4477
        %v4612 = vpop.f32.mrf.mxu0
        %v4613 = vadd.f32 0.0, %v4612
        %v4614 = vpop.f32.mrf.mxu0
        %v4615 = vpop.f32.mrf.mxu0
        %v4616 = vadd.f32 0.0, %v4615
        %v4617 = vpop.f32.mrf.mxu0
        %4618 = vmatprep.mubr.bf16.mxu0 0
        %4619 = vmatmul.mubr.bf16.gmra.mxu0 %v4478
        %v4620 = vpop.f32.mrf.mxu0
        %v4621 = vadd.f32 0.0, %v4620
        %v4622 = vpop.f32.mrf.mxu0
        %v4623 = vpop.f32.mrf.mxu0
        %v4624 = vadd.f32 0.0, %v4623
        %v4625 = vpop.f32.mrf.mxu0
        %4626 = vmatprep.mubr.bf16.mxu0 0
        %4627 = vmatmul.mubr.bf16.gmra.mxu0 %v4479
        %v4628 = vpop.f32.mrf.mxu0
        %v4629 = vadd.f32 0.0, %v4628
        %v4630 = vpop.f32.mrf.mxu0
        %v4631 = vpop.f32.mrf.mxu0
        %v4632 = vadd.f32 0.0, %v4631
        %v4633 = vpop.f32.mrf.mxu0
        %4634 = vmatprep.mubr.bf16.mxu0 0
        %4635 = vmatmul.mubr.bf16.gmra.mxu0 %v4480
        %v4636 = vpop.f32.mrf.mxu0
        %v4637 = vadd.f32 0.0, %v4636
        %v4638 = vpop.f32.mrf.mxu0
        %v4639 = vpop.f32.mrf.mxu0
        %v4640 = vadd.f32 0.0, %v4639
        %v4641 = vpop.f32.mrf.mxu0
        %4642 = vmatprep.mubr.bf16.mxu0 0
        %4643 = vmatmul.mubr.bf16.gmra.mxu0 %v4481
        %v4644 = vpop.f32.mrf.mxu0
        %v4645 = vadd.f32 0.0, %v4644
        %v4646 = vpop.f32.mrf.mxu0
        %v4647 = vpop.f32.mrf.mxu0
        %v4648 = vadd.f32 0.0, %v4647
        %v4649 = vpop.f32.mrf.mxu0
        %4650 = vmatprep.mubr.bf16.mxu0 0
        %4651 = vmatmul.mubr.bf16.gmra.mxu0 %v4482
        %v4652 = vpop.f32.mrf.mxu0
        %v4653 = vadd.f32 0.0, %v4652
        %v4654 = vpop.f32.mrf.mxu0
        %v4655 = vpop.f32.mrf.mxu0
        %v4656 = vadd.f32 0.0, %v4655
        %v4657 = vpop.f32.mrf.mxu0
        %4658 = vmatprep.mubr.bf16.mxu0 0
        %4659 = vmatmul.mubr.bf16.gmra.mxu0 %v4483
        %v4660 = vpop.f32.mrf.mxu0
        %v4661 = vadd.f32 0.0, %v4660
        %v4662 = vpop.f32.mrf.mxu0
        %v4663 = vpop.f32.mrf.mxu0
        %v4664 = vadd.f32 0.0, %v4663
        %v4665 = vpop.f32.mrf.mxu0
        %4666 = vmatprep.mubr.bf16.mxu0 0
        %4667 = vmatmul.mubr.bf16.gmra.mxu0 %v4484
        %v4668 = vpop.f32.mrf.mxu0
        %v4669 = vadd.f32 0.0, %v4668
        %v4670 = vpop.f32.mrf.mxu0
        %v4671 = vpop.f32.mrf.mxu0
        %v4672 = vadd.f32 0.0, %v4671
        %v4673 = vpop.f32.mrf.mxu0
        %4674 = vmatprep.mubr.bf16.mxu0 0
        %4675 = vmatmul.mubr.bf16.gmra.mxu0 %v4485
        %v4676 = vpop.f32.mrf.mxu0
        %v4677 = vadd.f32 0.0, %v4676
        %v4678 = vpop.f32.mrf.mxu0
        %v4679 = vpop.f32.mrf.mxu0
        %v4680 = vadd.f32 0.0, %v4679
        %v4681 = vpop.f32.mrf.mxu0
        %4682 = vmatprep.mubr.bf16.mxu0 0
        %4683 = vmatmul.mubr.bf16.gmra.mxu0 %v4486
        %v4684 = vpop.f32.mrf.mxu0
        %v4685 = vadd.f32 0.0, %v4684
        %v4686 = vpop.f32.mrf.mxu0
        %v4687 = vpop.f32.mrf.mxu0
        %v4688 = vadd.f32 0.0, %v4687
        %v4689 = vpop.f32.mrf.mxu0
        %4690 = vmatprep.mubr.bf16.mxu0 0
        %4691 = vmatmul.mubr.bf16.gmra.mxu0 %v4487
        %v4692 = vpop.f32.mrf.mxu0
        %v4693 = vadd.f32 0.0, %v4692
        %v4694 = vpop.f32.mrf.mxu0
        %v4695 = vpop.f32.mrf.mxu0
        %v4696 = vadd.f32 0.0, %v4695
        %v4697 = vpop.f32.mrf.mxu0
        %4698 = vmatprep.mubr.bf16.mxu0 0
        %4699 = vmatmul.mubr.bf16.gmra.mxu0 %v4488
        %v4700 = vpop.f32.mrf.mxu0
        %v4701 = vadd.f32 0.0, %v4700
        %v4702 = vpop.f32.mrf.mxu0
        %v4703 = vpop.f32.mrf.mxu0
        %v4704 = vadd.f32 0.0, %v4703
        %v4705 = vpop.f32.mrf.mxu0
        %4706 = vmatprep.mubr.bf16.mxu0 0
        %4707 = vmatmul.mubr.bf16.gmra.mxu0 %v4489
        %v4708 = vpop.f32.mrf.mxu0
        %v4709 = vadd.f32 0.0, %v4708
        %v4710 = vpop.f32.mrf.mxu0
        %v4711 = vpop.f32.mrf.mxu0
        %v4712 = vadd.f32 0.0, %v4711
        %v4713 = vpop.f32.mrf.mxu0
        %4714 = vdwg.mxu0
        %v4715 = vadd.f32 %v4330, %v4589
        %v4716 = vadd.f32 %v4331, %v4592
        %v4717 = vadd.f32 %v4332, %v4597
        %v4718 = vadd.f32 %v4333, %v4600
        %v4719 = vadd.f32 %v4334, %v4605
        %v4720 = vadd.f32 %v4335, %v4608
        %v4721 = vadd.f32 %v4336, %v4613
        %v4722 = vadd.f32 %v4337, %v4616
        %v4723 = vadd.f32 %v4338, %v4621
        %v4724 = vadd.f32 %v4339, %v4624
        %v4725 = vadd.f32 %v4340, %v4629
        %v4726 = vadd.f32 %v4341, %v4632
        %v4727 = vadd.f32 %v4342, %v4637
        %v4728 = vadd.f32 %v4343, %v4640
        %v4729 = vadd.f32 %v4344, %v4645
        %v4730 = vadd.f32 %v4345, %v4648
        %v4731 = vadd.f32 %v4346, %v4653
        %v4732 = vadd.f32 %v4347, %v4656
        %v4733 = vadd.f32 %v4348, %v4661
        %v4734 = vadd.f32 %v4349, %v4664
        %v4735 = vadd.f32 %v4350, %v4669
        %v4736 = vadd.f32 %v4351, %v4672
        %v4737 = vadd.f32 %v4352, %v4677
        %v4738 = vadd.f32 %v4353, %v4680
        %v4739 = vadd.f32 %v4354, %v4685
        %v4740 = vadd.f32 %v4355, %v4688
        %v4741 = vadd.f32 %v4356, %v4693
        %v4742 = vadd.f32 %v4357, %v4696
        %v4743 = vadd.f32 %v4358, %v4701
        %v4744 = vadd.f32 %v4359, %v4704
        %v4745 = vadd.f32 %v4360, %v4709
        %v4746 = vadd.f32 %v4361, %v4712
        %v4747 = vld [vmem:[#allocation2 + $0x8] sm:$0xf]
        %v4748 = vld [vmem:[#allocation2 + $0xc] sm:$0xf]
        %v4749 = vld [vmem:[#allocation2 + $0x10] sm:$0xf]
        %v4750 = vld [vmem:[#allocation2 + $0x14] sm:$0xf]
        %v4751 = vld [vmem:[#allocation2 + $0x18] sm:$0xf]
        %v4752 = vld [vmem:[#allocation2 + $0x1c] sm:$0xf]
        %v4753 = vld [vmem:[#allocation2 + $0x20] sm:$0xf]
        %v4754 = vld [vmem:[#allocation2 + $0x24] sm:$0xf]
        %v4755 = vld [vmem:[#allocation2 + $0x28] sm:$0xf]
        %v4756 = vld [vmem:[#allocation2 + $0x2c] sm:$0xf]
        %v4757 = vld [vmem:[#allocation2 + $0x30] sm:$0xf]
        %v4758 = vld [vmem:[#allocation2 + $0x34] sm:$0xf]
        %v4759 = vld [vmem:[#allocation2 + $0x38] sm:$0xf]
        %v4760 = vld [vmem:[#allocation2 + $0x3c] sm:$0xf]
        %v4761 = vld [vmem:[#allocation2 + $0x40] sm:$0xf]
        %v4762 = vld [vmem:[#allocation2 + $0x44] sm:$0xf]
        %v4763 = vld [vmem:[#allocation2 + $0x48] sm:$0xf]
        %v4764 = vld [vmem:[#allocation2 + $0x4c] sm:$0xf]
        %v4765 = vld [vmem:[#allocation2 + $0x50] sm:$0xf]
        %v4766 = vld [vmem:[#allocation2 + $0x54] sm:$0xf]
        %v4767 = vld [vmem:[#allocation2 + $0x58] sm:$0xf]
        %v4768 = vld [vmem:[#allocation2 + $0x5c] sm:$0xf]
        %v4769 = vld [vmem:[#allocation2 + $0x60] sm:$0xf]
        %v4770 = vld [vmem:[#allocation2 + $0x64] sm:$0xf]
        %v4771 = vld [vmem:[#allocation2 + $0x68] sm:$0xf]
        %v4772 = vld [vmem:[#allocation2 + $0x6c] sm:$0xf]
        %v4773 = vld [vmem:[#allocation2 + $0x70] sm:$0xf]
        %v4774 = vld [vmem:[#allocation2 + $0x74] sm:$0xf]
        %v4775 = vld [vmem:[#allocation2 + $0x78] sm:$0xf]
        %v4776 = vld [vmem:[#allocation2 + $0x7c] sm:$0xf]
        %v4777 = vld [vmem:[#allocation2 + $0x80] sm:$0xf]
        %v4778 = vld [vmem:[#allocation2 + $0x84] sm:$0xf]
        %v4779 = vld [vmem:[#allocation10 + $0x100] sm:$0xf]
        %v4780 = vld [vmem:[#allocation10 + $0x104] sm:$0xf]
        %v4781 = vld [vmem:[#allocation10 + $0x108] sm:$0xf]
        %v4782 = vld [vmem:[#allocation10 + $0x10c] sm:$0xf]
        %v4783 = vld [vmem:[#allocation10 + $0x110] sm:$0xf]
        %v4784 = vld [vmem:[#allocation10 + $0x114] sm:$0xf]
        %v4785 = vld [vmem:[#allocation10 + $0x118] sm:$0xf]
        %v4786 = vld [vmem:[#allocation10 + $0x11c] sm:$0xf]
        %v4787 = vld [vmem:[#allocation10 + $0x120] sm:$0xf]
        %v4788 = vld [vmem:[#allocation10 + $0x124] sm:$0xf]
        %v4789 = vld [vmem:[#allocation10 + $0x128] sm:$0xf]
        %v4790 = vld [vmem:[#allocation10 + $0x12c] sm:$0xf]
        %v4791 = vld [vmem:[#allocation10 + $0x130] sm:$0xf]
        %v4792 = vld [vmem:[#allocation10 + $0x134] sm:$0xf]
        %v4793 = vld [vmem:[#allocation10 + $0x138] sm:$0xf]
        %v4794 = vld [vmem:[#allocation10 + $0x13c] sm:$0xf]
        %v4827 = vunpack.c.l.b16 %v4747
        %v4828 = vunpack.c.l.b16 %v4748
        %v4829 = vunpack.c.l.b16 %v4749
        %v4830 = vunpack.c.l.b16 %v4750
        %v4831 = vunpack.c.l.b16 %v4751
        %v4832 = vunpack.c.l.b16 %v4752
        %v4833 = vunpack.c.l.b16 %v4753
        %v4834 = vunpack.c.l.b16 %v4754
        %v4835 = vunpack.c.l.b16 %v4755
        %v4836 = vunpack.c.l.b16 %v4756
        %v4837 = vunpack.c.l.b16 %v4757
        %v4838 = vunpack.c.l.b16 %v4758
        %v4839 = vunpack.c.l.b16 %v4759
        %v4840 = vunpack.c.l.b16 %v4760
        %v4841 = vunpack.c.l.b16 %v4761
        %v4842 = vunpack.c.l.b16 %v4762
        %v4843 = vunpack.c.l.b16 %v4763
        %v4844 = vunpack.c.l.b16 %v4764
        %v4845 = vunpack.c.l.b16 %v4765
        %v4846 = vunpack.c.l.b16 %v4766
        %v4847 = vunpack.c.l.b16 %v4767
        %v4848 = vunpack.c.l.b16 %v4768
        %v4849 = vunpack.c.l.b16 %v4769
        %v4850 = vunpack.c.l.b16 %v4770
        %v4851 = vunpack.c.l.b16 %v4771
        %v4852 = vunpack.c.l.b16 %v4772
        %v4853 = vunpack.c.l.b16 %v4773
        %v4854 = vunpack.c.l.b16 %v4774
        %v4855 = vunpack.c.l.b16 %v4775
        %v4856 = vunpack.c.l.b16 %v4776
        %v4857 = vunpack.c.l.b16 %v4777
        %v4858 = vunpack.c.l.b16 %v4778
        %v4859 = vpack.c.b16 %v4828, %v4827
        %v4860 = vpack.c.b16 %v4830, %v4829
        %v4861 = vpack.c.b16 %v4832, %v4831
        %v4862 = vpack.c.b16 %v4834, %v4833
        %v4863 = vpack.c.b16 %v4836, %v4835
        %v4864 = vpack.c.b16 %v4838, %v4837
        %v4865 = vpack.c.b16 %v4840, %v4839
        %v4866 = vpack.c.b16 %v4842, %v4841
        %v4867 = vpack.c.b16 %v4844, %v4843
        %v4868 = vpack.c.b16 %v4846, %v4845
        %v4869 = vpack.c.b16 %v4848, %v4847
        %v4870 = vpack.c.b16 %v4850, %v4849
        %v4871 = vpack.c.b16 %v4852, %v4851
        %v4872 = vpack.c.b16 %v4854, %v4853
        %v4873 = vpack.c.b16 %v4856, %v4855
        %v4874 = vpack.c.b16 %v4858, %v4857
        %v4907 = vunpack.c.l.b16 %v4779
        %v4908 = vunpack.c.l.b16 %v4780
        %v4909 = vunpack.c.l.b16 %v4781
        %v4910 = vunpack.c.l.b16 %v4782
        %v4911 = vunpack.c.l.b16 %v4783
        %v4912 = vunpack.c.l.b16 %v4784
        %v4913 = vunpack.c.l.b16 %v4785
        %v4914 = vunpack.c.l.b16 %v4786
        %v4915 = vunpack.c.l.b16 %v4787
        %v4916 = vunpack.c.l.b16 %v4788
        %v4917 = vunpack.c.l.b16 %v4789
        %v4918 = vunpack.c.l.b16 %v4790
        %v4919 = vunpack.c.l.b16 %v4791
        %v4920 = vunpack.c.l.b16 %v4792
        %v4921 = vunpack.c.l.b16 %v4793
        %v4922 = vunpack.c.l.b16 %v4794
        %v4923 = vpack.c.b16 %v4908, %v4907
        %v4924 = vpack.c.b16 %v4910, %v4909
        %v4925 = vpack.c.b16 %v4912, %v4911
        %v4926 = vpack.c.b16 %v4914, %v4913
        %v4927 = vpack.c.b16 %v4916, %v4915
        %v4928 = vpack.c.b16 %v4918, %v4917
        %v4929 = vpack.c.b16 %v4920, %v4919
        %v4930 = vpack.c.b16 %v4922, %v4921
        %4939 = vmatprep.subr.bf16.mxu0 0
        %4940 = vmatpush1.bf16.msra.mxu0 %v4930
        %4941 = vmatprep.subr.bf16.mxu0 0
        %4942 = vmatpush1.bf16.msra.mxu0 %v4929
        %4943 = vmatprep.subr.bf16.mxu0 0
        %4944 = vmatpush1.bf16.msra.mxu0 %v4928
        %4945 = vmatprep.subr.bf16.mxu0 0
        %4946 = vmatpush1.bf16.msra.mxu0 %v4927
        %4947 = vmatprep.subr.bf16.mxu0 0
        %4948 = vmatpush1.bf16.msra.mxu0 %v4926
        %4949 = vmatprep.subr.bf16.mxu0 0
        %4950 = vmatpush1.bf16.msra.mxu0 %v4925
        %4951 = vmatprep.subr.bf16.mxu0 0
        %4952 = vmatpush1.bf16.msra.mxu0 %v4924
        %4953 = vmatprep.subr.bf16.mxu0 0
        %4954 = vmatpush1.bf16.msra.mxu0 %v4923
        %4955 = vmatprep.subr.bf16.mxu0 0
        %4956 = vmatpush2.bf16.msra.mxu0 0
        %4957 = vmatprep.subr.bf16.mxu0 0
        %4958 = vmatpush2.bf16.msra.mxu0 0
        %4959 = vmatprep.subr.bf16.mxu0 0
        %4960 = vmatpush2.bf16.msra.mxu0 0
        %4961 = vmatprep.subr.bf16.mxu0 0
        %4962 = vmatpush2.bf16.msra.mxu0 0
        %4963 = vmatprep.subr.bf16.mxu0 0
        %4964 = vmatpush2.bf16.msra.mxu0 0
        %4965 = vmatprep.subr.bf16.mxu0 0
        %4966 = vmatpush2.bf16.msra.mxu0 0
        %4967 = vmatprep.subr.bf16.mxu0 0
        %4968 = vmatpush2.bf16.msra.mxu0 0
        %4969 = vmatprep.subr.bf16.mxu0 0
        %4970 = vmatpush2.bf16.msra.mxu0 0
        %4971 = vmatprep.mubr.bf16.mxu0 0
        %4972 = vmatmul.mubr.bf16.gmra.mxu0 %v4859
        %v4973 = vpop.f32.mrf.mxu0
        %v4974 = vadd.f32 0.0, %v4973
        %v4975 = vpop.f32.mrf.mxu0
        %v4976 = vpop.f32.mrf.mxu0
        %v4977 = vadd.f32 0.0, %v4976
        %v4978 = vpop.f32.mrf.mxu0
        %4979 = vmatprep.mubr.bf16.mxu0 0
        %4980 = vmatmul.mubr.bf16.gmra.mxu0 %v4860
        %v4981 = vpop.f32.mrf.mxu0
        %v4982 = vadd.f32 0.0, %v4981
        %v4983 = vpop.f32.mrf.mxu0
        %v4984 = vpop.f32.mrf.mxu0
        %v4985 = vadd.f32 0.0, %v4984
        %v4986 = vpop.f32.mrf.mxu0
        %4987 = vmatprep.mubr.bf16.mxu0 0
        %4988 = vmatmul.mubr.bf16.gmra.mxu0 %v4861
        %v4989 = vpop.f32.mrf.mxu0
        %v4990 = vadd.f32 0.0, %v4989
        %v4991 = vpop.f32.mrf.mxu0
        %v4992 = vpop.f32.mrf.mxu0
        %v4993 = vadd.f32 0.0, %v4992
        %v4994 = vpop.f32.mrf.mxu0
        %4995 = vmatprep.mubr.bf16.mxu0 0
        %4996 = vmatmul.mubr.bf16.gmra.mxu0 %v4862
        %v4997 = vpop.f32.mrf.mxu0
        %v4998 = vadd.f32 0.0, %v4997
        %v4999 = vpop.f32.mrf.mxu0
        %v5000 = vpop.f32.mrf.mxu0
        %v5001 = vadd.f32 0.0, %v5000
        %v5002 = vpop.f32.mrf.mxu0
        %5003 = vmatprep.mubr.bf16.mxu0 0
        %5004 = vmatmul.mubr.bf16.gmra.mxu0 %v4863
        %v5005 = vpop.f32.mrf.mxu0
        %v5006 = vadd.f32 0.0, %v5005
        %v5007 = vpop.f32.mrf.mxu0
        %v5008 = vpop.f32.mrf.mxu0
        %v5009 = vadd.f32 0.0, %v5008
        %v5010 = vpop.f32.mrf.mxu0
        %5011 = vmatprep.mubr.bf16.mxu0 0
        %5012 = vmatmul.mubr.bf16.gmra.mxu0 %v4864
        %v5013 = vpop.f32.mrf.mxu0
        %v5014 = vadd.f32 0.0, %v5013
        %v5015 = vpop.f32.mrf.mxu0
        %v5016 = vpop.f32.mrf.mxu0
        %v5017 = vadd.f32 0.0, %v5016
        %v5018 = vpop.f32.mrf.mxu0
        %5019 = vmatprep.mubr.bf16.mxu0 0
        %5020 = vmatmul.mubr.bf16.gmra.mxu0 %v4865
        %v5021 = vpop.f32.mrf.mxu0
        %v5022 = vadd.f32 0.0, %v5021
        %v5023 = vpop.f32.mrf.mxu0
        %v5024 = vpop.f32.mrf.mxu0
        %v5025 = vadd.f32 0.0, %v5024
        %v5026 = vpop.f32.mrf.mxu0
        %5027 = vmatprep.mubr.bf16.mxu0 0
        %5028 = vmatmul.mubr.bf16.gmra.mxu0 %v4866
        %v5029 = vpop.f32.mrf.mxu0
        %v5030 = vadd.f32 0.0, %v5029
        %v5031 = vpop.f32.mrf.mxu0
        %v5032 = vpop.f32.mrf.mxu0
        %v5033 = vadd.f32 0.0, %v5032
        %v5034 = vpop.f32.mrf.mxu0
        %5035 = vmatprep.mubr.bf16.mxu0 0
        %5036 = vmatmul.mubr.bf16.gmra.mxu0 %v4867
        %v5037 = vpop.f32.mrf.mxu0
        %v5038 = vadd.f32 0.0, %v5037
        %v5039 = vpop.f32.mrf.mxu0
        %v5040 = vpop.f32.mrf.mxu0
        %v5041 = vadd.f32 0.0, %v5040
        %v5042 = vpop.f32.mrf.mxu0
        %5043 = vmatprep.mubr.bf16.mxu0 0
        %5044 = vmatmul.mubr.bf16.gmra.mxu0 %v4868
        %v5045 = vpop.f32.mrf.mxu0
        %v5046 = vadd.f32 0.0, %v5045
        %v5047 = vpop.f32.mrf.mxu0
        %v5048 = vpop.f32.mrf.mxu0
        %v5049 = vadd.f32 0.0, %v5048
        %v5050 = vpop.f32.mrf.mxu0
        %5051 = vmatprep.mubr.bf16.mxu0 0
        %5052 = vmatmul.mubr.bf16.gmra.mxu0 %v4869
        %v5053 = vpop.f32.mrf.mxu0
        %v5054 = vadd.f32 0.0, %v5053
        %v5055 = vpop.f32.mrf.mxu0
        %v5056 = vpop.f32.mrf.mxu0
        %v5057 = vadd.f32 0.0, %v5056
        %v5058 = vpop.f32.mrf.mxu0
        %5059 = vmatprep.mubr.bf16.mxu0 0
        %5060 = vmatmul.mubr.bf16.gmra.mxu0 %v4870
        %v5061 = vpop.f32.mrf.mxu0
        %v5062 = vadd.f32 0.0, %v5061
        %v5063 = vpop.f32.mrf.mxu0
        %v5064 = vpop.f32.mrf.mxu0
        %v5065 = vadd.f32 0.0, %v5064
        %v5066 = vpop.f32.mrf.mxu0
        %5067 = vmatprep.mubr.bf16.mxu0 0
        %5068 = vmatmul.mubr.bf16.gmra.mxu0 %v4871
        %v5069 = vpop.f32.mrf.mxu0
        %v5070 = vadd.f32 0.0, %v5069
        %v5071 = vpop.f32.mrf.mxu0
        %v5072 = vpop.f32.mrf.mxu0
        %v5073 = vadd.f32 0.0, %v5072
        %v5074 = vpop.f32.mrf.mxu0
        %5075 = vmatprep.mubr.bf16.mxu0 0
        %5076 = vmatmul.mubr.bf16.gmra.mxu0 %v4872
        %v5077 = vpop.f32.mrf.mxu0
        %v5078 = vadd.f32 0.0, %v5077
        %v5079 = vpop.f32.mrf.mxu0
        %v5080 = vpop.f32.mrf.mxu0
        %v5081 = vadd.f32 0.0, %v5080
        %v5082 = vpop.f32.mrf.mxu0
        %5083 = vmatprep.mubr.bf16.mxu0 0
        %5084 = vmatmul.mubr.bf16.gmra.mxu0 %v4873
        %v5085 = vpop.f32.mrf.mxu0
        %v5086 = vadd.f32 0.0, %v5085
        %v5087 = vpop.f32.mrf.mxu0
        %v5088 = vpop.f32.mrf.mxu0
        %v5089 = vadd.f32 0.0, %v5088
        %v5090 = vpop.f32.mrf.mxu0
        %5091 = vmatprep.mubr.bf16.mxu0 0
        %5092 = vmatmul.mubr.bf16.gmra.mxu0 %v4874
        %v5093 = vpop.f32.mrf.mxu0
        %v5094 = vadd.f32 0.0, %v5093
        %v5095 = vpop.f32.mrf.mxu0
        %v5096 = vpop.f32.mrf.mxu0
        %v5097 = vadd.f32 0.0, %v5096
        %v5098 = vpop.f32.mrf.mxu0
        %5099 = vdwg.mxu0
        %v5100 = vadd.f32 %v4715, %v4974
        %v5101 = vadd.f32 %v4716, %v4977
        %v5102 = vadd.f32 %v4717, %v4982
        %v5103 = vadd.f32 %v4718, %v4985
        %v5104 = vadd.f32 %v4719, %v4990
        %v5105 = vadd.f32 %v4720, %v4993
        %v5106 = vadd.f32 %v4721, %v4998
        %v5107 = vadd.f32 %v4722, %v5001
        %v5108 = vadd.f32 %v4723, %v5006
        %v5109 = vadd.f32 %v4724, %v5009
        %v5110 = vadd.f32 %v4725, %v5014
        %v5111 = vadd.f32 %v4726, %v5017
        %v5112 = vadd.f32 %v4727, %v5022
        %v5113 = vadd.f32 %v4728, %v5025
        %v5114 = vadd.f32 %v4729, %v5030
        %v5115 = vadd.f32 %v4730, %v5033
        %v5116 = vadd.f32 %v4731, %v5038
        %v5117 = vadd.f32 %v4732, %v5041
        %v5118 = vadd.f32 %v4733, %v5046
        %v5119 = vadd.f32 %v4734, %v5049
        %v5120 = vadd.f32 %v4735, %v5054
        %v5121 = vadd.f32 %v4736, %v5057
        %v5122 = vadd.f32 %v4737, %v5062
        %v5123 = vadd.f32 %v4738, %v5065
        %v5124 = vadd.f32 %v4739, %v5070
        %v5125 = vadd.f32 %v4740, %v5073
        %v5126 = vadd.f32 %v4741, %v5078
        %v5127 = vadd.f32 %v4742, %v5081
        %v5128 = vadd.f32 %v4743, %v5086
        %v5129 = vadd.f32 %v4744, %v5089
        %v5130 = vadd.f32 %v4745, %v5094
        %v5131 = vadd.f32 %v4746, %v5097
        %v5132 = vld [vmem:[#allocation4 + $0x8] sm:$0xf]
        %v5133 = vld [vmem:[#allocation4 + $0xc] sm:$0xf]
        %v5134 = vld [vmem:[#allocation4 + $0x10] sm:$0xf]
        %v5135 = vld [vmem:[#allocation4 + $0x14] sm:$0xf]
        %v5136 = vld [vmem:[#allocation4 + $0x18] sm:$0xf]
        %v5137 = vld [vmem:[#allocation4 + $0x1c] sm:$0xf]
        %v5138 = vld [vmem:[#allocation4 + $0x20] sm:$0xf]
        %v5139 = vld [vmem:[#allocation4 + $0x24] sm:$0xf]
        %v5140 = vld [vmem:[#allocation4 + $0x28] sm:$0xf]
        %v5141 = vld [vmem:[#allocation4 + $0x2c] sm:$0xf]
        %v5142 = vld [vmem:[#allocation4 + $0x30] sm:$0xf]
        %v5143 = vld [vmem:[#allocation4 + $0x34] sm:$0xf]
        %v5144 = vld [vmem:[#allocation4 + $0x38] sm:$0xf]
        %v5145 = vld [vmem:[#allocation4 + $0x3c] sm:$0xf]
        %v5146 = vld [vmem:[#allocation4 + $0x40] sm:$0xf]
        %v5147 = vld [vmem:[#allocation4 + $0x44] sm:$0xf]
        %v5148 = vld [vmem:[#allocation4 + $0x48] sm:$0xf]
        %v5149 = vld [vmem:[#allocation4 + $0x4c] sm:$0xf]
        %v5150 = vld [vmem:[#allocation4 + $0x50] sm:$0xf]
        %v5151 = vld [vmem:[#allocation4 + $0x54] sm:$0xf]
        %v5152 = vld [vmem:[#allocation4 + $0x58] sm:$0xf]
        %v5153 = vld [vmem:[#allocation4 + $0x5c] sm:$0xf]
        %v5154 = vld [vmem:[#allocation4 + $0x60] sm:$0xf]
        %v5155 = vld [vmem:[#allocation4 + $0x64] sm:$0xf]
        %v5156 = vld [vmem:[#allocation4 + $0x68] sm:$0xf]
        %v5157 = vld [vmem:[#allocation4 + $0x6c] sm:$0xf]
        %v5158 = vld [vmem:[#allocation4 + $0x70] sm:$0xf]
        %v5159 = vld [vmem:[#allocation4 + $0x74] sm:$0xf]
        %v5160 = vld [vmem:[#allocation4 + $0x78] sm:$0xf]
        %v5161 = vld [vmem:[#allocation4 + $0x7c] sm:$0xf]
        %v5162 = vld [vmem:[#allocation4 + $0x80] sm:$0xf]
        %v5163 = vld [vmem:[#allocation4 + $0x84] sm:$0xf]
        %v5164 = vld [vmem:[#allocation10 + $0x140] sm:$0xf]
        %v5165 = vld [vmem:[#allocation10 + $0x144] sm:$0xf]
        %v5166 = vld [vmem:[#allocation10 + $0x148] sm:$0xf]
        %v5167 = vld [vmem:[#allocation10 + $0x14c] sm:$0xf]
        %v5168 = vld [vmem:[#allocation10 + $0x150] sm:$0xf]
        %v5169 = vld [vmem:[#allocation10 + $0x154] sm:$0xf]
        %v5170 = vld [vmem:[#allocation10 + $0x158] sm:$0xf]
        %v5171 = vld [vmem:[#allocation10 + $0x15c] sm:$0xf]
        %v5172 = vld [vmem:[#allocation10 + $0x160] sm:$0xf]
        %v5173 = vld [vmem:[#allocation10 + $0x164] sm:$0xf]
        %v5174 = vld [vmem:[#allocation10 + $0x168] sm:$0xf]
        %v5175 = vld [vmem:[#allocation10 + $0x16c] sm:$0xf]
        %v5176 = vld [vmem:[#allocation10 + $0x170] sm:$0xf]
        %v5177 = vld [vmem:[#allocation10 + $0x174] sm:$0xf]
        %v5178 = vld [vmem:[#allocation10 + $0x178] sm:$0xf]
        %v5179 = vld [vmem:[#allocation10 + $0x17c] sm:$0xf]
        %v5212 = vunpack.c.l.b16 %v5132
        %v5213 = vunpack.c.l.b16 %v5133
        %v5214 = vunpack.c.l.b16 %v5134
        %v5215 = vunpack.c.l.b16 %v5135
        %v5216 = vunpack.c.l.b16 %v5136
        %v5217 = vunpack.c.l.b16 %v5137
        %v5218 = vunpack.c.l.b16 %v5138
        %v5219 = vunpack.c.l.b16 %v5139
        %v5220 = vunpack.c.l.b16 %v5140
        %v5221 = vunpack.c.l.b16 %v5141
        %v5222 = vunpack.c.l.b16 %v5142
        %v5223 = vunpack.c.l.b16 %v5143
        %v5224 = vunpack.c.l.b16 %v5144
        %v5225 = vunpack.c.l.b16 %v5145
        %v5226 = vunpack.c.l.b16 %v5146
        %v5227 = vunpack.c.l.b16 %v5147
        %v5228 = vunpack.c.l.b16 %v5148
        %v5229 = vunpack.c.l.b16 %v5149
        %v5230 = vunpack.c.l.b16 %v5150
        %v5231 = vunpack.c.l.b16 %v5151
        %v5232 = vunpack.c.l.b16 %v5152
        %v5233 = vunpack.c.l.b16 %v5153
        %v5234 = vunpack.c.l.b16 %v5154
        %v5235 = vunpack.c.l.b16 %v5155
        %v5236 = vunpack.c.l.b16 %v5156
        %v5237 = vunpack.c.l.b16 %v5157
        %v5238 = vunpack.c.l.b16 %v5158
        %v5239 = vunpack.c.l.b16 %v5159
        %v5240 = vunpack.c.l.b16 %v5160
        %v5241 = vunpack.c.l.b16 %v5161
        %v5242 = vunpack.c.l.b16 %v5162
        %v5243 = vunpack.c.l.b16 %v5163
        %v5244 = vpack.c.b16 %v5213, %v5212
        %v5245 = vpack.c.b16 %v5215, %v5214
        %v5246 = vpack.c.b16 %v5217, %v5216
        %v5247 = vpack.c.b16 %v5219, %v5218
        %v5248 = vpack.c.b16 %v5221, %v5220
        %v5249 = vpack.c.b16 %v5223, %v5222
        %v5250 = vpack.c.b16 %v5225, %v5224
        %v5251 = vpack.c.b16 %v5227, %v5226
        %v5252 = vpack.c.b16 %v5229, %v5228
        %v5253 = vpack.c.b16 %v5231, %v5230
        %v5254 = vpack.c.b16 %v5233, %v5232
        %v5255 = vpack.c.b16 %v5235, %v5234
        %v5256 = vpack.c.b16 %v5237, %v5236
        %v5257 = vpack.c.b16 %v5239, %v5238
        %v5258 = vpack.c.b16 %v5241, %v5240
        %v5259 = vpack.c.b16 %v5243, %v5242
        %v5292 = vunpack.c.l.b16 %v5164
        %v5293 = vunpack.c.l.b16 %v5165
        %v5294 = vunpack.c.l.b16 %v5166
        %v5295 = vunpack.c.l.b16 %v5167
        %v5296 = vunpack.c.l.b16 %v5168
        %v5297 = vunpack.c.l.b16 %v5169
        %v5298 = vunpack.c.l.b16 %v5170
        %v5299 = vunpack.c.l.b16 %v5171
        %v5300 = vunpack.c.l.b16 %v5172
        %v5301 = vunpack.c.l.b16 %v5173
        %v5302 = vunpack.c.l.b16 %v5174
        %v5303 = vunpack.c.l.b16 %v5175
        %v5304 = vunpack.c.l.b16 %v5176
        %v5305 = vunpack.c.l.b16 %v5177
        %v5306 = vunpack.c.l.b16 %v5178
        %v5307 = vunpack.c.l.b16 %v5179
        %v5308 = vpack.c.b16 %v5293, %v5292
        %v5309 = vpack.c.b16 %v5295, %v5294
        %v5310 = vpack.c.b16 %v5297, %v5296
        %v5311 = vpack.c.b16 %v5299, %v5298
        %v5312 = vpack.c.b16 %v5301, %v5300
        %v5313 = vpack.c.b16 %v5303, %v5302
        %v5314 = vpack.c.b16 %v5305, %v5304
        %v5315 = vpack.c.b16 %v5307, %v5306
        %5324 = vmatprep.subr.bf16.mxu0 0
        %5325 = vmatpush1.bf16.msra.mxu0 %v5315
        %5326 = vmatprep.subr.bf16.mxu0 0
        %5327 = vmatpush1.bf16.msra.mxu0 %v5314
        %5328 = vmatprep.subr.bf16.mxu0 0
        %5329 = vmatpush1.bf16.msra.mxu0 %v5313
        %5330 = vmatprep.subr.bf16.mxu0 0
        %5331 = vmatpush1.bf16.msra.mxu0 %v5312
        %5332 = vmatprep.subr.bf16.mxu0 0
        %5333 = vmatpush1.bf16.msra.mxu0 %v5311
        %5334 = vmatprep.subr.bf16.mxu0 0
        %5335 = vmatpush1.bf16.msra.mxu0 %v5310
        %5336 = vmatprep.subr.bf16.mxu0 0
        %5337 = vmatpush1.bf16.msra.mxu0 %v5309
        %5338 = vmatprep.subr.bf16.mxu0 0
        %5339 = vmatpush1.bf16.msra.mxu0 %v5308
        %5340 = vmatprep.subr.bf16.mxu0 0
        %5341 = vmatpush2.bf16.msra.mxu0 0
        %5342 = vmatprep.subr.bf16.mxu0 0
        %5343 = vmatpush2.bf16.msra.mxu0 0
        %5344 = vmatprep.subr.bf16.mxu0 0
        %5345 = vmatpush2.bf16.msra.mxu0 0
        %5346 = vmatprep.subr.bf16.mxu0 0
        %5347 = vmatpush2.bf16.msra.mxu0 0
        %5348 = vmatprep.subr.bf16.mxu0 0
        %5349 = vmatpush2.bf16.msra.mxu0 0
        %5350 = vmatprep.subr.bf16.mxu0 0
        %5351 = vmatpush2.bf16.msra.mxu0 0
        %5352 = vmatprep.subr.bf16.mxu0 0
        %5353 = vmatpush2.bf16.msra.mxu0 0
        %5354 = vmatprep.subr.bf16.mxu0 0
        %5355 = vmatpush2.bf16.msra.mxu0 0
        %5356 = vmatprep.mubr.bf16.mxu0 0
        %5357 = vmatmul.mubr.bf16.gmra.mxu0 %v5244
        %v5358 = vpop.f32.mrf.mxu0
        %v5359 = vadd.f32 0.0, %v5358
        %v5360 = vpop.f32.mrf.mxu0
        %v5361 = vpop.f32.mrf.mxu0
        %v5362 = vadd.f32 0.0, %v5361
        %v5363 = vpop.f32.mrf.mxu0
        %5364 = vmatprep.mubr.bf16.mxu0 0
        %5365 = vmatmul.mubr.bf16.gmra.mxu0 %v5245
        %v5366 = vpop.f32.mrf.mxu0
        %v5367 = vadd.f32 0.0, %v5366
        %v5368 = vpop.f32.mrf.mxu0
        %v5369 = vpop.f32.mrf.mxu0
        %v5370 = vadd.f32 0.0, %v5369
        %v5371 = vpop.f32.mrf.mxu0
        %5372 = vmatprep.mubr.bf16.mxu0 0
        %5373 = vmatmul.mubr.bf16.gmra.mxu0 %v5246
        %v5374 = vpop.f32.mrf.mxu0
        %v5375 = vadd.f32 0.0, %v5374
        %v5376 = vpop.f32.mrf.mxu0
        %v5377 = vpop.f32.mrf.mxu0
        %v5378 = vadd.f32 0.0, %v5377
        %v5379 = vpop.f32.mrf.mxu0
        %5380 = vmatprep.mubr.bf16.mxu0 0
        %5381 = vmatmul.mubr.bf16.gmra.mxu0 %v5247
        %v5382 = vpop.f32.mrf.mxu0
        %v5383 = vadd.f32 0.0, %v5382
        %v5384 = vpop.f32.mrf.mxu0
        %v5385 = vpop.f32.mrf.mxu0
        %v5386 = vadd.f32 0.0, %v5385
        %v5387 = vpop.f32.mrf.mxu0
        %5388 = vmatprep.mubr.bf16.mxu0 0
        %5389 = vmatmul.mubr.bf16.gmra.mxu0 %v5248
        %v5390 = vpop.f32.mrf.mxu0
        %v5391 = vadd.f32 0.0, %v5390
        %v5392 = vpop.f32.mrf.mxu0
        %v5393 = vpop.f32.mrf.mxu0
        %v5394 = vadd.f32 0.0, %v5393
        %v5395 = vpop.f32.mrf.mxu0
        %5396 = vmatprep.mubr.bf16.mxu0 0
        %5397 = vmatmul.mubr.bf16.gmra.mxu0 %v5249
        %v5398 = vpop.f32.mrf.mxu0
        %v5399 = vadd.f32 0.0, %v5398
        %v5400 = vpop.f32.mrf.mxu0
        %v5401 = vpop.f32.mrf.mxu0
        %v5402 = vadd.f32 0.0, %v5401
        %v5403 = vpop.f32.mrf.mxu0
        %5404 = vmatprep.mubr.bf16.mxu0 0
        %5405 = vmatmul.mubr.bf16.gmra.mxu0 %v5250
        %v5406 = vpop.f32.mrf.mxu0
        %v5407 = vadd.f32 0.0, %v5406
        %v5408 = vpop.f32.mrf.mxu0
        %v5409 = vpop.f32.mrf.mxu0
        %v5410 = vadd.f32 0.0, %v5409
        %v5411 = vpop.f32.mrf.mxu0
        %5412 = vmatprep.mubr.bf16.mxu0 0
        %5413 = vmatmul.mubr.bf16.gmra.mxu0 %v5251
        %v5414 = vpop.f32.mrf.mxu0
        %v5415 = vadd.f32 0.0, %v5414
        %v5416 = vpop.f32.mrf.mxu0
        %v5417 = vpop.f32.mrf.mxu0
        %v5418 = vadd.f32 0.0, %v5417
        %v5419 = vpop.f32.mrf.mxu0
        %5420 = vmatprep.mubr.bf16.mxu0 0
        %5421 = vmatmul.mubr.bf16.gmra.mxu0 %v5252
        %v5422 = vpop.f32.mrf.mxu0
        %v5423 = vadd.f32 0.0, %v5422
        %v5424 = vpop.f32.mrf.mxu0
        %v5425 = vpop.f32.mrf.mxu0
        %v5426 = vadd.f32 0.0, %v5425
        %v5427 = vpop.f32.mrf.mxu0
        %5428 = vmatprep.mubr.bf16.mxu0 0
        %5429 = vmatmul.mubr.bf16.gmra.mxu0 %v5253
        %v5430 = vpop.f32.mrf.mxu0
        %v5431 = vadd.f32 0.0, %v5430
        %v5432 = vpop.f32.mrf.mxu0
        %v5433 = vpop.f32.mrf.mxu0
        %v5434 = vadd.f32 0.0, %v5433
        %v5435 = vpop.f32.mrf.mxu0
        %5436 = vmatprep.mubr.bf16.mxu0 0
        %5437 = vmatmul.mubr.bf16.gmra.mxu0 %v5254
        %v5438 = vpop.f32.mrf.mxu0
        %v5439 = vadd.f32 0.0, %v5438
        %v5440 = vpop.f32.mrf.mxu0
        %v5441 = vpop.f32.mrf.mxu0
        %v5442 = vadd.f32 0.0, %v5441
        %v5443 = vpop.f32.mrf.mxu0
        %5444 = vmatprep.mubr.bf16.mxu0 0
        %5445 = vmatmul.mubr.bf16.gmra.mxu0 %v5255
        %v5446 = vpop.f32.mrf.mxu0
        %v5447 = vadd.f32 0.0, %v5446
        %v5448 = vpop.f32.mrf.mxu0
        %v5449 = vpop.f32.mrf.mxu0
        %v5450 = vadd.f32 0.0, %v5449
        %v5451 = vpop.f32.mrf.mxu0
        %5452 = vmatprep.mubr.bf16.mxu0 0
        %5453 = vmatmul.mubr.bf16.gmra.mxu0 %v5256
        %v5454 = vpop.f32.mrf.mxu0
        %v5455 = vadd.f32 0.0, %v5454
        %v5456 = vpop.f32.mrf.mxu0
        %v5457 = vpop.f32.mrf.mxu0
        %v5458 = vadd.f32 0.0, %v5457
        %v5459 = vpop.f32.mrf.mxu0
        %5460 = vmatprep.mubr.bf16.mxu0 0
        %5461 = vmatmul.mubr.bf16.gmra.mxu0 %v5257
        %v5462 = vpop.f32.mrf.mxu0
        %v5463 = vadd.f32 0.0, %v5462
        %v5464 = vpop.f32.mrf.mxu0
        %v5465 = vpop.f32.mrf.mxu0
        %v5466 = vadd.f32 0.0, %v5465
        %v5467 = vpop.f32.mrf.mxu0
        %5468 = vmatprep.mubr.bf16.mxu0 0
        %5469 = vmatmul.mubr.bf16.gmra.mxu0 %v5258
        %v5470 = vpop.f32.mrf.mxu0
        %v5471 = vadd.f32 0.0, %v5470
        %v5472 = vpop.f32.mrf.mxu0
        %v5473 = vpop.f32.mrf.mxu0
        %v5474 = vadd.f32 0.0, %v5473
        %v5475 = vpop.f32.mrf.mxu0
        %5476 = vmatprep.mubr.bf16.mxu0 0
        %5477 = vmatmul.mubr.bf16.gmra.mxu0 %v5259
        %v5478 = vpop.f32.mrf.mxu0
        %v5479 = vadd.f32 0.0, %v5478
        %v5480 = vpop.f32.mrf.mxu0
        %v5481 = vpop.f32.mrf.mxu0
        %v5482 = vadd.f32 0.0, %v5481
        %v5483 = vpop.f32.mrf.mxu0
        %5484 = vdwg.mxu0
        %v5485 = vadd.f32 %v5100, %v5359
        %v5486 = vadd.f32 %v5101, %v5362
        %v5487 = vadd.f32 %v5102, %v5367
        %v5488 = vadd.f32 %v5103, %v5370
        %v5489 = vadd.f32 %v5104, %v5375
        %v5490 = vadd.f32 %v5105, %v5378
        %v5491 = vadd.f32 %v5106, %v5383
        %v5492 = vadd.f32 %v5107, %v5386
        %v5493 = vadd.f32 %v5108, %v5391
        %v5494 = vadd.f32 %v5109, %v5394
        %v5495 = vadd.f32 %v5110, %v5399
        %v5496 = vadd.f32 %v5111, %v5402
        %v5497 = vadd.f32 %v5112, %v5407
        %v5498 = vadd.f32 %v5113, %v5410
        %v5499 = vadd.f32 %v5114, %v5415
        %v5500 = vadd.f32 %v5115, %v5418
        %v5501 = vadd.f32 %v5116, %v5423
        %v5502 = vadd.f32 %v5117, %v5426
        %v5503 = vadd.f32 %v5118, %v5431
        %v5504 = vadd.f32 %v5119, %v5434
        %v5505 = vadd.f32 %v5120, %v5439
        %v5506 = vadd.f32 %v5121, %v5442
        %v5507 = vadd.f32 %v5122, %v5447
        %v5508 = vadd.f32 %v5123, %v5450
        %v5509 = vadd.f32 %v5124, %v5455
        %v5510 = vadd.f32 %v5125, %v5458
        %v5511 = vadd.f32 %v5126, %v5463
        %v5512 = vadd.f32 %v5127, %v5466
        %v5513 = vadd.f32 %v5128, %v5471
        %v5514 = vadd.f32 %v5129, %v5474
        %v5515 = vadd.f32 %v5130, %v5479
        %v5516 = vadd.f32 %v5131, %v5482
        %v5517 = vld [vmem:[#allocation3 + $0x10] sm:$0xf]
        %v5518 = vld [vmem:[#allocation3 + $0x14] sm:$0xf]
        %v5519 = vld [vmem:[#allocation3 + $0x18] sm:$0xf]
        %v5520 = vld [vmem:[#allocation3 + $0x1c] sm:$0xf]
        %v5521 = vld [vmem:[#allocation3 + $0x20] sm:$0xf]
        %v5522 = vld [vmem:[#allocation3 + $0x24] sm:$0xf]
        %v5523 = vld [vmem:[#allocation3 + $0x28] sm:$0xf]
        %v5524 = vld [vmem:[#allocation3 + $0x2c] sm:$0xf]
        %v5525 = vld [vmem:[#allocation3 + $0x30] sm:$0xf]
        %v5526 = vld [vmem:[#allocation3 + $0x34] sm:$0xf]
        %v5527 = vld [vmem:[#allocation3 + $0x38] sm:$0xf]
        %v5528 = vld [vmem:[#allocation3 + $0x3c] sm:$0xf]
        %v5529 = vld [vmem:[#allocation3 + $0x40] sm:$0xf]
        %v5530 = vld [vmem:[#allocation3 + $0x44] sm:$0xf]
        %v5531 = vld [vmem:[#allocation3 + $0x48] sm:$0xf]
        %v5532 = vld [vmem:[#allocation3 + $0x4c] sm:$0xf]
        %v5533 = vld [vmem:[#allocation3 + $0x50] sm:$0xf]
        %v5534 = vld [vmem:[#allocation3 + $0x54] sm:$0xf]
        %v5535 = vld [vmem:[#allocation3 + $0x58] sm:$0xf]
        %v5536 = vld [vmem:[#allocation3 + $0x5c] sm:$0xf]
        %v5537 = vld [vmem:[#allocation3 + $0x60] sm:$0xf]
        %v5538 = vld [vmem:[#allocation3 + $0x64] sm:$0xf]
        %v5539 = vld [vmem:[#allocation3 + $0x68] sm:$0xf]
        %v5540 = vld [vmem:[#allocation3 + $0x6c] sm:$0xf]
        %v5541 = vld [vmem:[#allocation3 + $0x70] sm:$0xf]
        %v5542 = vld [vmem:[#allocation3 + $0x74] sm:$0xf]
        %v5543 = vld [vmem:[#allocation3 + $0x78] sm:$0xf]
        %v5544 = vld [vmem:[#allocation3 + $0x7c] sm:$0xf]
        %v5545 = vld [vmem:[#allocation3 + $0x80] sm:$0xf]
        %v5546 = vld [vmem:[#allocation3 + $0x84] sm:$0xf]
        %v5547 = vld [vmem:[#allocation3 + $0x88] sm:$0xf]
        %v5548 = vld [vmem:[#allocation3 + $0x8c] sm:$0xf]
        %v5549 = vld [vmem:[#allocation10 + $0x180] sm:$0xf]
        %v5550 = vld [vmem:[#allocation10 + $0x184] sm:$0xf]
        %v5551 = vld [vmem:[#allocation10 + $0x188] sm:$0xf]
        %v5552 = vld [vmem:[#allocation10 + $0x18c] sm:$0xf]
        %v5553 = vld [vmem:[#allocation10 + $0x190] sm:$0xf]
        %v5554 = vld [vmem:[#allocation10 + $0x194] sm:$0xf]
        %v5555 = vld [vmem:[#allocation10 + $0x198] sm:$0xf]
        %v5556 = vld [vmem:[#allocation10 + $0x19c] sm:$0xf]
        %v5557 = vld [vmem:[#allocation10 + $0x1a0] sm:$0xf]
        %v5558 = vld [vmem:[#allocation10 + $0x1a4] sm:$0xf]
        %v5559 = vld [vmem:[#allocation10 + $0x1a8] sm:$0xf]
        %v5560 = vld [vmem:[#allocation10 + $0x1ac] sm:$0xf]
        %v5561 = vld [vmem:[#allocation10 + $0x1b0] sm:$0xf]
        %v5562 = vld [vmem:[#allocation10 + $0x1b4] sm:$0xf]
        %v5563 = vld [vmem:[#allocation10 + $0x1b8] sm:$0xf]
        %v5564 = vld [vmem:[#allocation10 + $0x1bc] sm:$0xf]
        %v5597 = vunpack.c.l.b16 %v5517
        %v5598 = vunpack.c.l.b16 %v5518
        %v5599 = vunpack.c.l.b16 %v5519
        %v5600 = vunpack.c.l.b16 %v5520
        %v5601 = vunpack.c.l.b16 %v5521
        %v5602 = vunpack.c.l.b16 %v5522
        %v5603 = vunpack.c.l.b16 %v5523
        %v5604 = vunpack.c.l.b16 %v5524
        %v5605 = vunpack.c.l.b16 %v5525
        %v5606 = vunpack.c.l.b16 %v5526
        %v5607 = vunpack.c.l.b16 %v5527
        %v5608 = vunpack.c.l.b16 %v5528
        %v5609 = vunpack.c.l.b16 %v5529
        %v5610 = vunpack.c.l.b16 %v5530
        %v5611 = vunpack.c.l.b16 %v5531
        %v5612 = vunpack.c.l.b16 %v5532
        %v5613 = vunpack.c.l.b16 %v5533
        %v5614 = vunpack.c.l.b16 %v5534
        %v5615 = vunpack.c.l.b16 %v5535
        %v5616 = vunpack.c.l.b16 %v5536
        %v5617 = vunpack.c.l.b16 %v5537
        %v5618 = vunpack.c.l.b16 %v5538
        %v5619 = vunpack.c.l.b16 %v5539
        %v5620 = vunpack.c.l.b16 %v5540
        %v5621 = vunpack.c.l.b16 %v5541
        %v5622 = vunpack.c.l.b16 %v5542
        %v5623 = vunpack.c.l.b16 %v5543
        %v5624 = vunpack.c.l.b16 %v5544
        %v5625 = vunpack.c.l.b16 %v5545
        %v5626 = vunpack.c.l.b16 %v5546
        %v5627 = vunpack.c.l.b16 %v5547
        %v5628 = vunpack.c.l.b16 %v5548
        %v5629 = vpack.c.b16 %v5598, %v5597
        %v5630 = vpack.c.b16 %v5600, %v5599
        %v5631 = vpack.c.b16 %v5602, %v5601
        %v5632 = vpack.c.b16 %v5604, %v5603
        %v5633 = vpack.c.b16 %v5606, %v5605
        %v5634 = vpack.c.b16 %v5608, %v5607
        %v5635 = vpack.c.b16 %v5610, %v5609
        %v5636 = vpack.c.b16 %v5612, %v5611
        %v5637 = vpack.c.b16 %v5614, %v5613
        %v5638 = vpack.c.b16 %v5616, %v5615
        %v5639 = vpack.c.b16 %v5618, %v5617
        %v5640 = vpack.c.b16 %v5620, %v5619
        %v5641 = vpack.c.b16 %v5622, %v5621
        %v5642 = vpack.c.b16 %v5624, %v5623
        %v5643 = vpack.c.b16 %v5626, %v5625
        %v5644 = vpack.c.b16 %v5628, %v5627
        %v5677 = vunpack.c.l.b16 %v5549
        %v5678 = vunpack.c.l.b16 %v5550
        %v5679 = vunpack.c.l.b16 %v5551
        %v5680 = vunpack.c.l.b16 %v5552
        %v5681 = vunpack.c.l.b16 %v5553
        %v5682 = vunpack.c.l.b16 %v5554
        %v5683 = vunpack.c.l.b16 %v5555
        %v5684 = vunpack.c.l.b16 %v5556
        %v5685 = vunpack.c.l.b16 %v5557
        %v5686 = vunpack.c.l.b16 %v5558
        %v5687 = vunpack.c.l.b16 %v5559
        %v5688 = vunpack.c.l.b16 %v5560
        %v5689 = vunpack.c.l.b16 %v5561
        %v5690 = vunpack.c.l.b16 %v5562
        %v5691 = vunpack.c.l.b16 %v5563
        %v5692 = vunpack.c.l.b16 %v5564
        %v5693 = vpack.c.b16 %v5678, %v5677
        %v5694 = vpack.c.b16 %v5680, %v5679
        %v5695 = vpack.c.b16 %v5682, %v5681
        %v5696 = vpack.c.b16 %v5684, %v5683
        %v5697 = vpack.c.b16 %v5686, %v5685
        %v5698 = vpack.c.b16 %v5688, %v5687
        %v5699 = vpack.c.b16 %v5690, %v5689
        %v5700 = vpack.c.b16 %v5692, %v5691
        %5709 = vmatprep.subr.bf16.mxu0 0
        %5710 = vmatpush1.bf16.msra.mxu0 %v5700
        %5711 = vmatprep.subr.bf16.mxu0 0
        %5712 = vmatpush1.bf16.msra.mxu0 %v5699
        %5713 = vmatprep.subr.bf16.mxu0 0
        %5714 = vmatpush1.bf16.msra.mxu0 %v5698
        %5715 = vmatprep.subr.bf16.mxu0 0
        %5716 = vmatpush1.bf16.msra.mxu0 %v5697
        %5717 = vmatprep.subr.bf16.mxu0 0
        %5718 = vmatpush1.bf16.msra.mxu0 %v5696
        %5719 = vmatprep.subr.bf16.mxu0 0
        %5720 = vmatpush1.bf16.msra.mxu0 %v5695
        %5721 = vmatprep.subr.bf16.mxu0 0
        %5722 = vmatpush1.bf16.msra.mxu0 %v5694
        %5723 = vmatprep.subr.bf16.mxu0 0
        %5724 = vmatpush1.bf16.msra.mxu0 %v5693
        %5725 = vmatprep.subr.bf16.mxu0 0
        %5726 = vmatpush2.bf16.msra.mxu0 0
        %5727 = vmatprep.subr.bf16.mxu0 0
        %5728 = vmatpush2.bf16.msra.mxu0 0
        %5729 = vmatprep.subr.bf16.mxu0 0
        %5730 = vmatpush2.bf16.msra.mxu0 0
        %5731 = vmatprep.subr.bf16.mxu0 0
        %5732 = vmatpush2.bf16.msra.mxu0 0
        %5733 = vmatprep.subr.bf16.mxu0 0
        %5734 = vmatpush2.bf16.msra.mxu0 0
        %5735 = vmatprep.subr.bf16.mxu0 0
        %5736 = vmatpush2.bf16.msra.mxu0 0
        %5737 = vmatprep.subr.bf16.mxu0 0
        %5738 = vmatpush2.bf16.msra.mxu0 0
        %5739 = vmatprep.subr.bf16.mxu0 0
        %5740 = vmatpush2.bf16.msra.mxu0 0
        %5741 = vmatprep.mubr.bf16.mxu0 0
        %5742 = vmatmul.mubr.bf16.gmra.mxu0 %v5629
        %v5743 = vpop.f32.mrf.mxu0
        %v5744 = vadd.f32 0.0, %v5743
        %v5745 = vpop.f32.mrf.mxu0
        %v5746 = vpop.f32.mrf.mxu0
        %v5747 = vadd.f32 0.0, %v5746
        %v5748 = vpop.f32.mrf.mxu0
        %5749 = vmatprep.mubr.bf16.mxu0 0
        %5750 = vmatmul.mubr.bf16.gmra.mxu0 %v5630
        %v5751 = vpop.f32.mrf.mxu0
        %v5752 = vadd.f32 0.0, %v5751
        %v5753 = vpop.f32.mrf.mxu0
        %v5754 = vpop.f32.mrf.mxu0
        %v5755 = vadd.f32 0.0, %v5754
        %v5756 = vpop.f32.mrf.mxu0
        %5757 = vmatprep.mubr.bf16.mxu0 0
        %5758 = vmatmul.mubr.bf16.gmra.mxu0 %v5631
        %v5759 = vpop.f32.mrf.mxu0
        %v5760 = vadd.f32 0.0, %v5759
        %v5761 = vpop.f32.mrf.mxu0
        %v5762 = vpop.f32.mrf.mxu0
        %v5763 = vadd.f32 0.0, %v5762
        %v5764 = vpop.f32.mrf.mxu0
        %5765 = vmatprep.mubr.bf16.mxu0 0
        %5766 = vmatmul.mubr.bf16.gmra.mxu0 %v5632
        %v5767 = vpop.f32.mrf.mxu0
        %v5768 = vadd.f32 0.0, %v5767
        %v5769 = vpop.f32.mrf.mxu0
        %v5770 = vpop.f32.mrf.mxu0
        %v5771 = vadd.f32 0.0, %v5770
        %v5772 = vpop.f32.mrf.mxu0
        %5773 = vmatprep.mubr.bf16.mxu0 0
        %5774 = vmatmul.mubr.bf16.gmra.mxu0 %v5633
        %v5775 = vpop.f32.mrf.mxu0
        %v5776 = vadd.f32 0.0, %v5775
        %v5777 = vpop.f32.mrf.mxu0
        %v5778 = vpop.f32.mrf.mxu0
        %v5779 = vadd.f32 0.0, %v5778
        %v5780 = vpop.f32.mrf.mxu0
        %5781 = vmatprep.mubr.bf16.mxu0 0
        %5782 = vmatmul.mubr.bf16.gmra.mxu0 %v5634
        %v5783 = vpop.f32.mrf.mxu0
        %v5784 = vadd.f32 0.0, %v5783
        %v5785 = vpop.f32.mrf.mxu0
        %v5786 = vpop.f32.mrf.mxu0
        %v5787 = vadd.f32 0.0, %v5786
        %v5788 = vpop.f32.mrf.mxu0
        %5789 = vmatprep.mubr.bf16.mxu0 0
        %5790 = vmatmul.mubr.bf16.gmra.mxu0 %v5635
        %v5791 = vpop.f32.mrf.mxu0
        %v5792 = vadd.f32 0.0, %v5791
        %v5793 = vpop.f32.mrf.mxu0
        %v5794 = vpop.f32.mrf.mxu0
        %v5795 = vadd.f32 0.0, %v5794
        %v5796 = vpop.f32.mrf.mxu0
        %5797 = vmatprep.mubr.bf16.mxu0 0
        %5798 = vmatmul.mubr.bf16.gmra.mxu0 %v5636
        %v5799 = vpop.f32.mrf.mxu0
        %v5800 = vadd.f32 0.0, %v5799
        %v5801 = vpop.f32.mrf.mxu0
        %v5802 = vpop.f32.mrf.mxu0
        %v5803 = vadd.f32 0.0, %v5802
        %v5804 = vpop.f32.mrf.mxu0
        %5805 = vmatprep.mubr.bf16.mxu0 0
        %5806 = vmatmul.mubr.bf16.gmra.mxu0 %v5637
        %v5807 = vpop.f32.mrf.mxu0
        %v5808 = vadd.f32 0.0, %v5807
        %v5809 = vpop.f32.mrf.mxu0
        %v5810 = vpop.f32.mrf.mxu0
        %v5811 = vadd.f32 0.0, %v5810
        %v5812 = vpop.f32.mrf.mxu0
        %5813 = vmatprep.mubr.bf16.mxu0 0
        %5814 = vmatmul.mubr.bf16.gmra.mxu0 %v5638
        %v5815 = vpop.f32.mrf.mxu0
        %v5816 = vadd.f32 0.0, %v5815
        %v5817 = vpop.f32.mrf.mxu0
        %v5818 = vpop.f32.mrf.mxu0
        %v5819 = vadd.f32 0.0, %v5818
        %v5820 = vpop.f32.mrf.mxu0
        %5821 = vmatprep.mubr.bf16.mxu0 0
        %5822 = vmatmul.mubr.bf16.gmra.mxu0 %v5639
        %v5823 = vpop.f32.mrf.mxu0
        %v5824 = vadd.f32 0.0, %v5823
        %v5825 = vpop.f32.mrf.mxu0
        %v5826 = vpop.f32.mrf.mxu0
        %v5827 = vadd.f32 0.0, %v5826
        %v5828 = vpop.f32.mrf.mxu0
        %5829 = vmatprep.mubr.bf16.mxu0 0
        %5830 = vmatmul.mubr.bf16.gmra.mxu0 %v5640
        %v5831 = vpop.f32.mrf.mxu0
        %v5832 = vadd.f32 0.0, %v5831
        %v5833 = vpop.f32.mrf.mxu0
        %v5834 = vpop.f32.mrf.mxu0
        %v5835 = vadd.f32 0.0, %v5834
        %v5836 = vpop.f32.mrf.mxu0
        %5837 = vmatprep.mubr.bf16.mxu0 0
        %5838 = vmatmul.mubr.bf16.gmra.mxu0 %v5641
        %v5839 = vpop.f32.mrf.mxu0
        %v5840 = vadd.f32 0.0, %v5839
        %v5841 = vpop.f32.mrf.mxu0
        %v5842 = vpop.f32.mrf.mxu0
        %v5843 = vadd.f32 0.0, %v5842
        %v5844 = vpop.f32.mrf.mxu0
        %5845 = vmatprep.mubr.bf16.mxu0 0
        %5846 = vmatmul.mubr.bf16.gmra.mxu0 %v5642
        %v5847 = vpop.f32.mrf.mxu0
        %v5848 = vadd.f32 0.0, %v5847
        %v5849 = vpop.f32.mrf.mxu0
        %v5850 = vpop.f32.mrf.mxu0
        %v5851 = vadd.f32 0.0, %v5850
        %v5852 = vpop.f32.mrf.mxu0
        %5853 = vmatprep.mubr.bf16.mxu0 0
        %5854 = vmatmul.mubr.bf16.gmra.mxu0 %v5643
        %v5855 = vpop.f32.mrf.mxu0
        %v5856 = vadd.f32 0.0, %v5855
        %v5857 = vpop.f32.mrf.mxu0
        %v5858 = vpop.f32.mrf.mxu0
        %v5859 = vadd.f32 0.0, %v5858
        %v5860 = vpop.f32.mrf.mxu0
        %5861 = vmatprep.mubr.bf16.mxu0 0
        %5862 = vmatmul.mubr.bf16.gmra.mxu0 %v5644
        %v5863 = vpop.f32.mrf.mxu0
        %v5864 = vadd.f32 0.0, %v5863
        %v5865 = vpop.f32.mrf.mxu0
        %v5866 = vpop.f32.mrf.mxu0
        %v5867 = vadd.f32 0.0, %v5866
        %v5868 = vpop.f32.mrf.mxu0
        %5869 = vdwg.mxu0
        %v5870 = vadd.f32 %v5485, %v5744
        %v5871 = vadd.f32 %v5486, %v5747
        %v5872 = vadd.f32 %v5487, %v5752
        %v5873 = vadd.f32 %v5488, %v5755
        %v5874 = vadd.f32 %v5489, %v5760
        %v5875 = vadd.f32 %v5490, %v5763
        %v5876 = vadd.f32 %v5491, %v5768
        %v5877 = vadd.f32 %v5492, %v5771
        %v5878 = vadd.f32 %v5493, %v5776
        %v5879 = vadd.f32 %v5494, %v5779
        %v5880 = vadd.f32 %v5495, %v5784
        %v5881 = vadd.f32 %v5496, %v5787
        %v5882 = vadd.f32 %v5497, %v5792
        %v5883 = vadd.f32 %v5498, %v5795
        %v5884 = vadd.f32 %v5499, %v5800
        %v5885 = vadd.f32 %v5500, %v5803
        %v5886 = vadd.f32 %v5501, %v5808
        %v5887 = vadd.f32 %v5502, %v5811
        %v5888 = vadd.f32 %v5503, %v5816
        %v5889 = vadd.f32 %v5504, %v5819
        %v5890 = vadd.f32 %v5505, %v5824
        %v5891 = vadd.f32 %v5506, %v5827
        %v5892 = vadd.f32 %v5507, %v5832
        %v5893 = vadd.f32 %v5508, %v5835
        %v5894 = vadd.f32 %v5509, %v5840
        %v5895 = vadd.f32 %v5510, %v5843
        %v5896 = vadd.f32 %v5511, %v5848
        %v5897 = vadd.f32 %v5512, %v5851
        %v5898 = vadd.f32 %v5513, %v5856
        %v5899 = vadd.f32 %v5514, %v5859
        %v5900 = vadd.f32 %v5515, %v5864
        %v5901 = vadd.f32 %v5516, %v5867
        %v5902 = vld [vmem:[#allocation2 + $0x10] sm:$0xf]
        %v5903 = vld [vmem:[#allocation2 + $0x14] sm:$0xf]
        %v5904 = vld [vmem:[#allocation2 + $0x18] sm:$0xf]
        %v5905 = vld [vmem:[#allocation2 + $0x1c] sm:$0xf]
        %v5906 = vld [vmem:[#allocation2 + $0x20] sm:$0xf]
        %v5907 = vld [vmem:[#allocation2 + $0x24] sm:$0xf]
        %v5908 = vld [vmem:[#allocation2 + $0x28] sm:$0xf]
        %v5909 = vld [vmem:[#allocation2 + $0x2c] sm:$0xf]
        %v5910 = vld [vmem:[#allocation2 + $0x30] sm:$0xf]
        %v5911 = vld [vmem:[#allocation2 + $0x34] sm:$0xf]
        %v5912 = vld [vmem:[#allocation2 + $0x38] sm:$0xf]
        %v5913 = vld [vmem:[#allocation2 + $0x3c] sm:$0xf]
        %v5914 = vld [vmem:[#allocation2 + $0x40] sm:$0xf]
        %v5915 = vld [vmem:[#allocation2 + $0x44] sm:$0xf]
        %v5916 = vld [vmem:[#allocation2 + $0x48] sm:$0xf]
        %v5917 = vld [vmem:[#allocation2 + $0x4c] sm:$0xf]
        %v5918 = vld [vmem:[#allocation2 + $0x50] sm:$0xf]
        %v5919 = vld [vmem:[#allocation2 + $0x54] sm:$0xf]
        %v5920 = vld [vmem:[#allocation2 + $0x58] sm:$0xf]
        %v5921 = vld [vmem:[#allocation2 + $0x5c] sm:$0xf]
        %v5922 = vld [vmem:[#allocation2 + $0x60] sm:$0xf]
        %v5923 = vld [vmem:[#allocation2 + $0x64] sm:$0xf]
        %v5924 = vld [vmem:[#allocation2 + $0x68] sm:$0xf]
        %v5925 = vld [vmem:[#allocation2 + $0x6c] sm:$0xf]
        %v5926 = vld [vmem:[#allocation2 + $0x70] sm:$0xf]
        %v5927 = vld [vmem:[#allocation2 + $0x74] sm:$0xf]
        %v5928 = vld [vmem:[#allocation2 + $0x78] sm:$0xf]
        %v5929 = vld [vmem:[#allocation2 + $0x7c] sm:$0xf]
        %v5930 = vld [vmem:[#allocation2 + $0x80] sm:$0xf]
        %v5931 = vld [vmem:[#allocation2 + $0x84] sm:$0xf]
        %v5932 = vld [vmem:[#allocation2 + $0x88] sm:$0xf]
        %v5933 = vld [vmem:[#allocation2 + $0x8c] sm:$0xf]
        %v5934 = vld [vmem:[#allocation10 + $0x1c0] sm:$0xf]
        %v5935 = vld [vmem:[#allocation10 + $0x1c4] sm:$0xf]
        %v5936 = vld [vmem:[#allocation10 + $0x1c8] sm:$0xf]
        %v5937 = vld [vmem:[#allocation10 + $0x1cc] sm:$0xf]
        %v5938 = vld [vmem:[#allocation10 + $0x1d0] sm:$0xf]
        %v5939 = vld [vmem:[#allocation10 + $0x1d4] sm:$0xf]
        %v5940 = vld [vmem:[#allocation10 + $0x1d8] sm:$0xf]
        %v5941 = vld [vmem:[#allocation10 + $0x1dc] sm:$0xf]
        %v5942 = vld [vmem:[#allocation10 + $0x1e0] sm:$0xf]
        %v5943 = vld [vmem:[#allocation10 + $0x1e4] sm:$0xf]
        %v5944 = vld [vmem:[#allocation10 + $0x1e8] sm:$0xf]
        %v5945 = vld [vmem:[#allocation10 + $0x1ec] sm:$0xf]
        %v5946 = vld [vmem:[#allocation10 + $0x1f0] sm:$0xf]
        %v5947 = vld [vmem:[#allocation10 + $0x1f4] sm:$0xf]
        %v5948 = vld [vmem:[#allocation10 + $0x1f8] sm:$0xf]
        %v5949 = vld [vmem:[#allocation10 + $0x1fc] sm:$0xf]
        %v5982 = vunpack.c.l.b16 %v5902
        %v5983 = vunpack.c.l.b16 %v5903
        %v5984 = vunpack.c.l.b16 %v5904
        %v5985 = vunpack.c.l.b16 %v5905
        %v5986 = vunpack.c.l.b16 %v5906
        %v5987 = vunpack.c.l.b16 %v5907
        %v5988 = vunpack.c.l.b16 %v5908
        %v5989 = vunpack.c.l.b16 %v5909
        %v5990 = vunpack.c.l.b16 %v5910
        %v5991 = vunpack.c.l.b16 %v5911
        %v5992 = vunpack.c.l.b16 %v5912
        %v5993 = vunpack.c.l.b16 %v5913
        %v5994 = vunpack.c.l.b16 %v5914
        %v5995 = vunpack.c.l.b16 %v5915
        %v5996 = vunpack.c.l.b16 %v5916
        %v5997 = vunpack.c.l.b16 %v5917
        %v5998 = vunpack.c.l.b16 %v5918
        %v5999 = vunpack.c.l.b16 %v5919
        %v6000 = vunpack.c.l.b16 %v5920
        %v6001 = vunpack.c.l.b16 %v5921
        %v6002 = vunpack.c.l.b16 %v5922
        %v6003 = vunpack.c.l.b16 %v5923
        %v6004 = vunpack.c.l.b16 %v5924
        %v6005 = vunpack.c.l.b16 %v5925
        %v6006 = vunpack.c.l.b16 %v5926
        %v6007 = vunpack.c.l.b16 %v5927
        %v6008 = vunpack.c.l.b16 %v5928
        %v6009 = vunpack.c.l.b16 %v5929
        %v6010 = vunpack.c.l.b16 %v5930
        %v6011 = vunpack.c.l.b16 %v5931
        %v6012 = vunpack.c.l.b16 %v5932
        %v6013 = vunpack.c.l.b16 %v5933
        %v6014 = vpack.c.b16 %v5983, %v5982
        %v6015 = vpack.c.b16 %v5985, %v5984
        %v6016 = vpack.c.b16 %v5987, %v5986
        %v6017 = vpack.c.b16 %v5989, %v5988
        %v6018 = vpack.c.b16 %v5991, %v5990
        %v6019 = vpack.c.b16 %v5993, %v5992
        %v6020 = vpack.c.b16 %v5995, %v5994
        %v6021 = vpack.c.b16 %v5997, %v5996
        %v6022 = vpack.c.b16 %v5999, %v5998
        %v6023 = vpack.c.b16 %v6001, %v6000
        %v6024 = vpack.c.b16 %v6003, %v6002
        %v6025 = vpack.c.b16 %v6005, %v6004
        %v6026 = vpack.c.b16 %v6007, %v6006
        %v6027 = vpack.c.b16 %v6009, %v6008
        %v6028 = vpack.c.b16 %v6011, %v6010
        %v6029 = vpack.c.b16 %v6013, %v6012
        %v6062 = vunpack.c.l.b16 %v5934
        %v6063 = vunpack.c.l.b16 %v5935
        %v6064 = vunpack.c.l.b16 %v5936
        %v6065 = vunpack.c.l.b16 %v5937
        %v6066 = vunpack.c.l.b16 %v5938
        %v6067 = vunpack.c.l.b16 %v5939
        %v6068 = vunpack.c.l.b16 %v5940
        %v6069 = vunpack.c.l.b16 %v5941
        %v6070 = vunpack.c.l.b16 %v5942
        %v6071 = vunpack.c.l.b16 %v5943
        %v6072 = vunpack.c.l.b16 %v5944
        %v6073 = vunpack.c.l.b16 %v5945
        %v6074 = vunpack.c.l.b16 %v5946
        %v6075 = vunpack.c.l.b16 %v5947
        %v6076 = vunpack.c.l.b16 %v5948
        %v6077 = vunpack.c.l.b16 %v5949
        %v6078 = vpack.c.b16 %v6063, %v6062
        %v6079 = vpack.c.b16 %v6065, %v6064
        %v6080 = vpack.c.b16 %v6067, %v6066
        %v6081 = vpack.c.b16 %v6069, %v6068
        %v6082 = vpack.c.b16 %v6071, %v6070
        %v6083 = vpack.c.b16 %v6073, %v6072
        %v6084 = vpack.c.b16 %v6075, %v6074
        %v6085 = vpack.c.b16 %v6077, %v6076
        %6094 = vmatprep.subr.bf16.mxu0 0
        %6095 = vmatpush1.bf16.msra.mxu0 %v6085
        %6096 = vmatprep.subr.bf16.mxu0 0
        %6097 = vmatpush1.bf16.msra.mxu0 %v6084
        %6098 = vmatprep.subr.bf16.mxu0 0
        %6099 = vmatpush1.bf16.msra.mxu0 %v6083
        %6100 = vmatprep.subr.bf16.mxu0 0
        %6101 = vmatpush1.bf16.msra.mxu0 %v6082
        %6102 = vmatprep.subr.bf16.mxu0 0
        %6103 = vmatpush1.bf16.msra.mxu0 %v6081
        %6104 = vmatprep.subr.bf16.mxu0 0
        %6105 = vmatpush1.bf16.msra.mxu0 %v6080
        %6106 = vmatprep.subr.bf16.mxu0 0
        %6107 = vmatpush1.bf16.msra.mxu0 %v6079
        %6108 = vmatprep.subr.bf16.mxu0 0
        %6109 = vmatpush1.bf16.msra.mxu0 %v6078
        %6110 = vmatprep.subr.bf16.mxu0 0
        %6111 = vmatpush2.bf16.msra.mxu0 0
        %6112 = vmatprep.subr.bf16.mxu0 0
        %6113 = vmatpush2.bf16.msra.mxu0 0
        %6114 = vmatprep.subr.bf16.mxu0 0
        %6115 = vmatpush2.bf16.msra.mxu0 0
        %6116 = vmatprep.subr.bf16.mxu0 0
        %6117 = vmatpush2.bf16.msra.mxu0 0
        %6118 = vmatprep.subr.bf16.mxu0 0
        %6119 = vmatpush2.bf16.msra.mxu0 0
        %6120 = vmatprep.subr.bf16.mxu0 0
        %6121 = vmatpush2.bf16.msra.mxu0 0
        %6122 = vmatprep.subr.bf16.mxu0 0
        %6123 = vmatpush2.bf16.msra.mxu0 0
        %6124 = vmatprep.subr.bf16.mxu0 0
        %6125 = vmatpush2.bf16.msra.mxu0 0
        %6126 = vmatprep.mubr.bf16.mxu0 0
        %6127 = vmatmul.mubr.bf16.gmra.mxu0 %v6014
        %v6128 = vpop.f32.mrf.mxu0
        %v6129 = vadd.f32 0.0, %v6128
        %v6130 = vpop.f32.mrf.mxu0
        %v6131 = vpop.f32.mrf.mxu0
        %v6132 = vadd.f32 0.0, %v6131
        %v6133 = vpop.f32.mrf.mxu0
        %6134 = vmatprep.mubr.bf16.mxu0 0
        %6135 = vmatmul.mubr.bf16.gmra.mxu0 %v6015
        %v6136 = vpop.f32.mrf.mxu0
        %v6137 = vadd.f32 0.0, %v6136
        %v6138 = vpop.f32.mrf.mxu0
        %v6139 = vpop.f32.mrf.mxu0
        %v6140 = vadd.f32 0.0, %v6139
        %v6141 = vpop.f32.mrf.mxu0
        %6142 = vmatprep.mubr.bf16.mxu0 0
        %6143 = vmatmul.mubr.bf16.gmra.mxu0 %v6016
        %v6144 = vpop.f32.mrf.mxu0
        %v6145 = vadd.f32 0.0, %v6144
        %v6146 = vpop.f32.mrf.mxu0
        %v6147 = vpop.f32.mrf.mxu0
        %v6148 = vadd.f32 0.0, %v6147
        %v6149 = vpop.f32.mrf.mxu0
        %6150 = vmatprep.mubr.bf16.mxu0 0
        %6151 = vmatmul.mubr.bf16.gmra.mxu0 %v6017
        %v6152 = vpop.f32.mrf.mxu0
        %v6153 = vadd.f32 0.0, %v6152
        %v6154 = vpop.f32.mrf.mxu0
        %v6155 = vpop.f32.mrf.mxu0
        %v6156 = vadd.f32 0.0, %v6155
        %v6157 = vpop.f32.mrf.mxu0
        %6158 = vmatprep.mubr.bf16.mxu0 0
        %6159 = vmatmul.mubr.bf16.gmra.mxu0 %v6018
        %v6160 = vpop.f32.mrf.mxu0
        %v6161 = vadd.f32 0.0, %v6160
        %v6162 = vpop.f32.mrf.mxu0
        %v6163 = vpop.f32.mrf.mxu0
        %v6164 = vadd.f32 0.0, %v6163
        %v6165 = vpop.f32.mrf.mxu0
        %6166 = vmatprep.mubr.bf16.mxu0 0
        %6167 = vmatmul.mubr.bf16.gmra.mxu0 %v6019
        %v6168 = vpop.f32.mrf.mxu0
        %v6169 = vadd.f32 0.0, %v6168
        %v6170 = vpop.f32.mrf.mxu0
        %v6171 = vpop.f32.mrf.mxu0
        %v6172 = vadd.f32 0.0, %v6171
        %v6173 = vpop.f32.mrf.mxu0
        %6174 = vmatprep.mubr.bf16.mxu0 0
        %6175 = vmatmul.mubr.bf16.gmra.mxu0 %v6020
        %v6176 = vpop.f32.mrf.mxu0
        %v6177 = vadd.f32 0.0, %v6176
        %v6178 = vpop.f32.mrf.mxu0
        %v6179 = vpop.f32.mrf.mxu0
        %v6180 = vadd.f32 0.0, %v6179
        %v6181 = vpop.f32.mrf.mxu0
        %6182 = vmatprep.mubr.bf16.mxu0 0
        %6183 = vmatmul.mubr.bf16.gmra.mxu0 %v6021
        %v6184 = vpop.f32.mrf.mxu0
        %v6185 = vadd.f32 0.0, %v6184
        %v6186 = vpop.f32.mrf.mxu0
        %v6187 = vpop.f32.mrf.mxu0
        %v6188 = vadd.f32 0.0, %v6187
        %v6189 = vpop.f32.mrf.mxu0
        %6190 = vmatprep.mubr.bf16.mxu0 0
        %6191 = vmatmul.mubr.bf16.gmra.mxu0 %v6022
        %v6192 = vpop.f32.mrf.mxu0
        %v6193 = vadd.f32 0.0, %v6192
        %v6194 = vpop.f32.mrf.mxu0
        %v6195 = vpop.f32.mrf.mxu0
        %v6196 = vadd.f32 0.0, %v6195
        %v6197 = vpop.f32.mrf.mxu0
        %6198 = vmatprep.mubr.bf16.mxu0 0
        %6199 = vmatmul.mubr.bf16.gmra.mxu0 %v6023
        %v6200 = vpop.f32.mrf.mxu0
        %v6201 = vadd.f32 0.0, %v6200
        %v6202 = vpop.f32.mrf.mxu0
        %v6203 = vpop.f32.mrf.mxu0
        %v6204 = vadd.f32 0.0, %v6203
        %v6205 = vpop.f32.mrf.mxu0
        %6206 = vmatprep.mubr.bf16.mxu0 0
        %6207 = vmatmul.mubr.bf16.gmra.mxu0 %v6024
        %v6208 = vpop.f32.mrf.mxu0
        %v6209 = vadd.f32 0.0, %v6208
        %v6210 = vpop.f32.mrf.mxu0
        %v6211 = vpop.f32.mrf.mxu0
        %v6212 = vadd.f32 0.0, %v6211
        %v6213 = vpop.f32.mrf.mxu0
        %6214 = vmatprep.mubr.bf16.mxu0 0
        %6215 = vmatmul.mubr.bf16.gmra.mxu0 %v6025
        %v6216 = vpop.f32.mrf.mxu0
        %v6217 = vadd.f32 0.0, %v6216
        %v6218 = vpop.f32.mrf.mxu0
        %v6219 = vpop.f32.mrf.mxu0
        %v6220 = vadd.f32 0.0, %v6219
        %v6221 = vpop.f32.mrf.mxu0
        %6222 = vmatprep.mubr.bf16.mxu0 0
        %6223 = vmatmul.mubr.bf16.gmra.mxu0 %v6026
        %v6224 = vpop.f32.mrf.mxu0
        %v6225 = vadd.f32 0.0, %v6224
        %v6226 = vpop.f32.mrf.mxu0
        %v6227 = vpop.f32.mrf.mxu0
        %v6228 = vadd.f32 0.0, %v6227
        %v6229 = vpop.f32.mrf.mxu0
        %6230 = vmatprep.mubr.bf16.mxu0 0
        %6231 = vmatmul.mubr.bf16.gmra.mxu0 %v6027
        %v6232 = vpop.f32.mrf.mxu0
        %v6233 = vadd.f32 0.0, %v6232
        %v6234 = vpop.f32.mrf.mxu0
        %v6235 = vpop.f32.mrf.mxu0
        %v6236 = vadd.f32 0.0, %v6235
        %v6237 = vpop.f32.mrf.mxu0
        %6238 = vmatprep.mubr.bf16.mxu0 0
        %6239 = vmatmul.mubr.bf16.gmra.mxu0 %v6028
        %v6240 = vpop.f32.mrf.mxu0
        %v6241 = vadd.f32 0.0, %v6240
        %v6242 = vpop.f32.mrf.mxu0
        %v6243 = vpop.f32.mrf.mxu0
        %v6244 = vadd.f32 0.0, %v6243
        %v6245 = vpop.f32.mrf.mxu0
        %6246 = vmatprep.mubr.bf16.mxu0 0
        %6247 = vmatmul.mubr.bf16.gmra.mxu0 %v6029
        %v6248 = vpop.f32.mrf.mxu0
        %v6249 = vadd.f32 0.0, %v6248
        %v6250 = vpop.f32.mrf.mxu0
        %v6251 = vpop.f32.mrf.mxu0
        %v6252 = vadd.f32 0.0, %v6251
        %v6253 = vpop.f32.mrf.mxu0
        %6254 = vdwg.mxu0
        %v6255 = vadd.f32 %v5870, %v6129
        %v6256 = vadd.f32 %v5871, %v6132
        %v6257 = vadd.f32 %v5872, %v6137
        %v6258 = vadd.f32 %v5873, %v6140
        %v6259 = vadd.f32 %v5874, %v6145
        %v6260 = vadd.f32 %v5875, %v6148
        %v6261 = vadd.f32 %v5876, %v6153
        %v6262 = vadd.f32 %v5877, %v6156
        %v6263 = vadd.f32 %v5878, %v6161
        %v6264 = vadd.f32 %v5879, %v6164
        %v6265 = vadd.f32 %v5880, %v6169
        %v6266 = vadd.f32 %v5881, %v6172
        %v6267 = vadd.f32 %v5882, %v6177
        %v6268 = vadd.f32 %v5883, %v6180
        %v6269 = vadd.f32 %v5884, %v6185
        %v6270 = vadd.f32 %v5885, %v6188
        %v6271 = vadd.f32 %v5886, %v6193
        %v6272 = vadd.f32 %v5887, %v6196
        %v6273 = vadd.f32 %v5888, %v6201
        %v6274 = vadd.f32 %v5889, %v6204
        %v6275 = vadd.f32 %v5890, %v6209
        %v6276 = vadd.f32 %v5891, %v6212
        %v6277 = vadd.f32 %v5892, %v6217
        %v6278 = vadd.f32 %v5893, %v6220
        %v6279 = vadd.f32 %v5894, %v6225
        %v6280 = vadd.f32 %v5895, %v6228
        %v6281 = vadd.f32 %v5896, %v6233
        %v6282 = vadd.f32 %v5897, %v6236
        %v6283 = vadd.f32 %v5898, %v6241
        %v6284 = vadd.f32 %v5899, %v6244
        %v6285 = vadd.f32 %v5900, %v6249
        %v6286 = vadd.f32 %v5901, %v6252
        %v6287 = vld [vmem:[#allocation4 + $0x10] sm:$0xf]
        %v6288 = vld [vmem:[#allocation4 + $0x14] sm:$0xf]
        %v6289 = vld [vmem:[#allocation4 + $0x18] sm:$0xf]
        %v6290 = vld [vmem:[#allocation4 + $0x1c] sm:$0xf]
        %v6291 = vld [vmem:[#allocation4 + $0x20] sm:$0xf]
        %v6292 = vld [vmem:[#allocation4 + $0x24] sm:$0xf]
        %v6293 = vld [vmem:[#allocation4 + $0x28] sm:$0xf]
        %v6294 = vld [vmem:[#allocation4 + $0x2c] sm:$0xf]
        %v6295 = vld [vmem:[#allocation4 + $0x30] sm:$0xf]
        %v6296 = vld [vmem:[#allocation4 + $0x34] sm:$0xf]
        %v6297 = vld [vmem:[#allocation4 + $0x38] sm:$0xf]
        %v6298 = vld [vmem:[#allocation4 + $0x3c] sm:$0xf]
        %v6299 = vld [vmem:[#allocation4 + $0x40] sm:$0xf]
        %v6300 = vld [vmem:[#allocation4 + $0x44] sm:$0xf]
        %v6301 = vld [vmem:[#allocation4 + $0x48] sm:$0xf]
        %v6302 = vld [vmem:[#allocation4 + $0x4c] sm:$0xf]
        %v6303 = vld [vmem:[#allocation4 + $0x50] sm:$0xf]
        %v6304 = vld [vmem:[#allocation4 + $0x54] sm:$0xf]
        %v6305 = vld [vmem:[#allocation4 + $0x58] sm:$0xf]
        %v6306 = vld [vmem:[#allocation4 + $0x5c] sm:$0xf]
        %v6307 = vld [vmem:[#allocation4 + $0x60] sm:$0xf]
        %v6308 = vld [vmem:[#allocation4 + $0x64] sm:$0xf]
        %v6309 = vld [vmem:[#allocation4 + $0x68] sm:$0xf]
        %v6310 = vld [vmem:[#allocation4 + $0x6c] sm:$0xf]
        %v6311 = vld [vmem:[#allocation4 + $0x70] sm:$0xf]
        %v6312 = vld [vmem:[#allocation4 + $0x74] sm:$0xf]
        %v6313 = vld [vmem:[#allocation4 + $0x78] sm:$0xf]
        %v6314 = vld [vmem:[#allocation4 + $0x7c] sm:$0xf]
        %v6315 = vld [vmem:[#allocation4 + $0x80] sm:$0xf]
        %v6316 = vld [vmem:[#allocation4 + $0x84] sm:$0xf]
        %v6317 = vld [vmem:[#allocation4 + $0x88] sm:$0xf]
        %v6318 = vld [vmem:[#allocation4 + $0x8c] sm:$0xf]
        %v6319 = vld [vmem:[#allocation10 + $0x200] sm:$0xf]
        %v6320 = vld [vmem:[#allocation10 + $0x204] sm:$0xf]
        %v6321 = vld [vmem:[#allocation10 + $0x208] sm:$0xf]
        %v6322 = vld [vmem:[#allocation10 + $0x20c] sm:$0xf]
        %v6323 = vld [vmem:[#allocation10 + $0x210] sm:$0xf]
        %v6324 = vld [vmem:[#allocation10 + $0x214] sm:$0xf]
        %v6325 = vld [vmem:[#allocation10 + $0x218] sm:$0xf]
        %v6326 = vld [vmem:[#allocation10 + $0x21c] sm:$0xf]
        %v6327 = vld [vmem:[#allocation10 + $0x220] sm:$0xf]
        %v6328 = vld [vmem:[#allocation10 + $0x224] sm:$0xf]
        %v6329 = vld [vmem:[#allocation10 + $0x228] sm:$0xf]
        %v6330 = vld [vmem:[#allocation10 + $0x22c] sm:$0xf]
        %v6331 = vld [vmem:[#allocation10 + $0x230] sm:$0xf]
        %v6332 = vld [vmem:[#allocation10 + $0x234] sm:$0xf]
        %v6333 = vld [vmem:[#allocation10 + $0x238] sm:$0xf]
        %v6334 = vld [vmem:[#allocation10 + $0x23c] sm:$0xf]
        %v6367 = vunpack.c.l.b16 %v6287
        %v6368 = vunpack.c.l.b16 %v6288
        %v6369 = vunpack.c.l.b16 %v6289
        %v6370 = vunpack.c.l.b16 %v6290
        %v6371 = vunpack.c.l.b16 %v6291
        %v6372 = vunpack.c.l.b16 %v6292
        %v6373 = vunpack.c.l.b16 %v6293
        %v6374 = vunpack.c.l.b16 %v6294
        %v6375 = vunpack.c.l.b16 %v6295
        %v6376 = vunpack.c.l.b16 %v6296
        %v6377 = vunpack.c.l.b16 %v6297
        %v6378 = vunpack.c.l.b16 %v6298
        %v6379 = vunpack.c.l.b16 %v6299
        %v6380 = vunpack.c.l.b16 %v6300
        %v6381 = vunpack.c.l.b16 %v6301
        %v6382 = vunpack.c.l.b16 %v6302
        %v6383 = vunpack.c.l.b16 %v6303
        %v6384 = vunpack.c.l.b16 %v6304
        %v6385 = vunpack.c.l.b16 %v6305
        %v6386 = vunpack.c.l.b16 %v6306
        %v6387 = vunpack.c.l.b16 %v6307
        %v6388 = vunpack.c.l.b16 %v6308
        %v6389 = vunpack.c.l.b16 %v6309
        %v6390 = vunpack.c.l.b16 %v6310
        %v6391 = vunpack.c.l.b16 %v6311
        %v6392 = vunpack.c.l.b16 %v6312
        %v6393 = vunpack.c.l.b16 %v6313
        %v6394 = vunpack.c.l.b16 %v6314
        %v6395 = vunpack.c.l.b16 %v6315
        %v6396 = vunpack.c.l.b16 %v6316
        %v6397 = vunpack.c.l.b16 %v6317
        %v6398 = vunpack.c.l.b16 %v6318
        %v6399 = vpack.c.b16 %v6368, %v6367
        %v6400 = vpack.c.b16 %v6370, %v6369
        %v6401 = vpack.c.b16 %v6372, %v6371
        %v6402 = vpack.c.b16 %v6374, %v6373
        %v6403 = vpack.c.b16 %v6376, %v6375
        %v6404 = vpack.c.b16 %v6378, %v6377
        %v6405 = vpack.c.b16 %v6380, %v6379
        %v6406 = vpack.c.b16 %v6382, %v6381
        %v6407 = vpack.c.b16 %v6384, %v6383
        %v6408 = vpack.c.b16 %v6386, %v6385
        %v6409 = vpack.c.b16 %v6388, %v6387
        %v6410 = vpack.c.b16 %v6390, %v6389
        %v6411 = vpack.c.b16 %v6392, %v6391
        %v6412 = vpack.c.b16 %v6394, %v6393
        %v6413 = vpack.c.b16 %v6396, %v6395
        %v6414 = vpack.c.b16 %v6398, %v6397
        %v6447 = vunpack.c.l.b16 %v6319
        %v6448 = vunpack.c.l.b16 %v6320
        %v6449 = vunpack.c.l.b16 %v6321
        %v6450 = vunpack.c.l.b16 %v6322
        %v6451 = vunpack.c.l.b16 %v6323
        %v6452 = vunpack.c.l.b16 %v6324
        %v6453 = vunpack.c.l.b16 %v6325
        %v6454 = vunpack.c.l.b16 %v6326
        %v6455 = vunpack.c.l.b16 %v6327
        %v6456 = vunpack.c.l.b16 %v6328
        %v6457 = vunpack.c.l.b16 %v6329
        %v6458 = vunpack.c.l.b16 %v6330
        %v6459 = vunpack.c.l.b16 %v6331
        %v6460 = vunpack.c.l.b16 %v6332
        %v6461 = vunpack.c.l.b16 %v6333
        %v6462 = vunpack.c.l.b16 %v6334
        %v6463 = vpack.c.b16 %v6448, %v6447
        %v6464 = vpack.c.b16 %v6450, %v6449
        %v6465 = vpack.c.b16 %v6452, %v6451
        %v6466 = vpack.c.b16 %v6454, %v6453
        %v6467 = vpack.c.b16 %v6456, %v6455
        %v6468 = vpack.c.b16 %v6458, %v6457
        %v6469 = vpack.c.b16 %v6460, %v6459
        %v6470 = vpack.c.b16 %v6462, %v6461
        %6479 = vmatprep.subr.bf16.mxu0 0
        %6480 = vmatpush1.bf16.msra.mxu0 %v6470
        %6481 = vmatprep.subr.bf16.mxu0 0
        %6482 = vmatpush1.bf16.msra.mxu0 %v6469
        %6483 = vmatprep.subr.bf16.mxu0 0
        %6484 = vmatpush1.bf16.msra.mxu0 %v6468
        %6485 = vmatprep.subr.bf16.mxu0 0
        %6486 = vmatpush1.bf16.msra.mxu0 %v6467
        %6487 = vmatprep.subr.bf16.mxu0 0
        %6488 = vmatpush1.bf16.msra.mxu0 %v6466
        %6489 = vmatprep.subr.bf16.mxu0 0
        %6490 = vmatpush1.bf16.msra.mxu0 %v6465
        %6491 = vmatprep.subr.bf16.mxu0 0
        %6492 = vmatpush1.bf16.msra.mxu0 %v6464
        %6493 = vmatprep.subr.bf16.mxu0 0
        %6494 = vmatpush1.bf16.msra.mxu0 %v6463
        %6495 = vmatprep.subr.bf16.mxu0 0
        %6496 = vmatpush2.bf16.msra.mxu0 0
        %6497 = vmatprep.subr.bf16.mxu0 0
        %6498 = vmatpush2.bf16.msra.mxu0 0
        %6499 = vmatprep.subr.bf16.mxu0 0
        %6500 = vmatpush2.bf16.msra.mxu0 0
        %6501 = vmatprep.subr.bf16.mxu0 0
        %6502 = vmatpush2.bf16.msra.mxu0 0
        %6503 = vmatprep.subr.bf16.mxu0 0
        %6504 = vmatpush2.bf16.msra.mxu0 0
        %6505 = vmatprep.subr.bf16.mxu0 0
        %6506 = vmatpush2.bf16.msra.mxu0 0
        %6507 = vmatprep.subr.bf16.mxu0 0
        %6508 = vmatpush2.bf16.msra.mxu0 0
        %6509 = vmatprep.subr.bf16.mxu0 0
        %6510 = vmatpush2.bf16.msra.mxu0 0
        %6511 = vmatprep.mubr.bf16.mxu0 0
        %6512 = vmatmul.mubr.bf16.gmra.mxu0 %v6399
        %v6513 = vpop.f32.mrf.mxu0
        %v6514 = vadd.f32 0.0, %v6513
        %v6515 = vpop.f32.mrf.mxu0
        %v6516 = vpop.f32.mrf.mxu0
        %v6517 = vadd.f32 0.0, %v6516
        %v6518 = vpop.f32.mrf.mxu0
        %6519 = vmatprep.mubr.bf16.mxu0 0
        %6520 = vmatmul.mubr.bf16.gmra.mxu0 %v6400
        %v6521 = vpop.f32.mrf.mxu0
        %v6522 = vadd.f32 0.0, %v6521
        %v6523 = vpop.f32.mrf.mxu0
        %v6524 = vpop.f32.mrf.mxu0
        %v6525 = vadd.f32 0.0, %v6524
        %v6526 = vpop.f32.mrf.mxu0
        %6527 = vmatprep.mubr.bf16.mxu0 0
        %6528 = vmatmul.mubr.bf16.gmra.mxu0 %v6401
        %v6529 = vpop.f32.mrf.mxu0
        %v6530 = vadd.f32 0.0, %v6529
        %v6531 = vpop.f32.mrf.mxu0
        %v6532 = vpop.f32.mrf.mxu0
        %v6533 = vadd.f32 0.0, %v6532
        %v6534 = vpop.f32.mrf.mxu0
        %6535 = vmatprep.mubr.bf16.mxu0 0
        %6536 = vmatmul.mubr.bf16.gmra.mxu0 %v6402
        %v6537 = vpop.f32.mrf.mxu0
        %v6538 = vadd.f32 0.0, %v6537
        %v6539 = vpop.f32.mrf.mxu0
        %v6540 = vpop.f32.mrf.mxu0
        %v6541 = vadd.f32 0.0, %v6540
        %v6542 = vpop.f32.mrf.mxu0
        %6543 = vmatprep.mubr.bf16.mxu0 0
        %6544 = vmatmul.mubr.bf16.gmra.mxu0 %v6403
        %v6545 = vpop.f32.mrf.mxu0
        %v6546 = vadd.f32 0.0, %v6545
        %v6547 = vpop.f32.mrf.mxu0
        %v6548 = vpop.f32.mrf.mxu0
        %v6549 = vadd.f32 0.0, %v6548
        %v6550 = vpop.f32.mrf.mxu0
        %6551 = vmatprep.mubr.bf16.mxu0 0
        %6552 = vmatmul.mubr.bf16.gmra.mxu0 %v6404
        %v6553 = vpop.f32.mrf.mxu0
        %v6554 = vadd.f32 0.0, %v6553
        %v6555 = vpop.f32.mrf.mxu0
        %v6556 = vpop.f32.mrf.mxu0
        %v6557 = vadd.f32 0.0, %v6556
        %v6558 = vpop.f32.mrf.mxu0
        %6559 = vmatprep.mubr.bf16.mxu0 0
        %6560 = vmatmul.mubr.bf16.gmra.mxu0 %v6405
        %v6561 = vpop.f32.mrf.mxu0
        %v6562 = vadd.f32 0.0, %v6561
        %v6563 = vpop.f32.mrf.mxu0
        %v6564 = vpop.f32.mrf.mxu0
        %v6565 = vadd.f32 0.0, %v6564
        %v6566 = vpop.f32.mrf.mxu0
        %6567 = vmatprep.mubr.bf16.mxu0 0
        %6568 = vmatmul.mubr.bf16.gmra.mxu0 %v6406
        %v6569 = vpop.f32.mrf.mxu0
        %v6570 = vadd.f32 0.0, %v6569
        %v6571 = vpop.f32.mrf.mxu0
        %v6572 = vpop.f32.mrf.mxu0
        %v6573 = vadd.f32 0.0, %v6572
        %v6574 = vpop.f32.mrf.mxu0
        %6575 = vmatprep.mubr.bf16.mxu0 0
        %6576 = vmatmul.mubr.bf16.gmra.mxu0 %v6407
        %v6577 = vpop.f32.mrf.mxu0
        %v6578 = vadd.f32 0.0, %v6577
        %v6579 = vpop.f32.mrf.mxu0
        %v6580 = vpop.f32.mrf.mxu0
        %v6581 = vadd.f32 0.0, %v6580
        %v6582 = vpop.f32.mrf.mxu0
        %6583 = vmatprep.mubr.bf16.mxu0 0
        %6584 = vmatmul.mubr.bf16.gmra.mxu0 %v6408
        %v6585 = vpop.f32.mrf.mxu0
        %v6586 = vadd.f32 0.0, %v6585
        %v6587 = vpop.f32.mrf.mxu0
        %v6588 = vpop.f32.mrf.mxu0
        %v6589 = vadd.f32 0.0, %v6588
        %v6590 = vpop.f32.mrf.mxu0
        %6591 = vmatprep.mubr.bf16.mxu0 0
        %6592 = vmatmul.mubr.bf16.gmra.mxu0 %v6409
        %v6593 = vpop.f32.mrf.mxu0
        %v6594 = vadd.f32 0.0, %v6593
        %v6595 = vpop.f32.mrf.mxu0
        %v6596 = vpop.f32.mrf.mxu0
        %v6597 = vadd.f32 0.0, %v6596
        %v6598 = vpop.f32.mrf.mxu0
        %6599 = vmatprep.mubr.bf16.mxu0 0
        %6600 = vmatmul.mubr.bf16.gmra.mxu0 %v6410
        %v6601 = vpop.f32.mrf.mxu0
        %v6602 = vadd.f32 0.0, %v6601
        %v6603 = vpop.f32.mrf.mxu0
        %v6604 = vpop.f32.mrf.mxu0
        %v6605 = vadd.f32 0.0, %v6604
        %v6606 = vpop.f32.mrf.mxu0
        %6607 = vmatprep.mubr.bf16.mxu0 0
        %6608 = vmatmul.mubr.bf16.gmra.mxu0 %v6411
        %v6609 = vpop.f32.mrf.mxu0
        %v6610 = vadd.f32 0.0, %v6609
        %v6611 = vpop.f32.mrf.mxu0
        %v6612 = vpop.f32.mrf.mxu0
        %v6613 = vadd.f32 0.0, %v6612
        %v6614 = vpop.f32.mrf.mxu0
        %6615 = vmatprep.mubr.bf16.mxu0 0
        %6616 = vmatmul.mubr.bf16.gmra.mxu0 %v6412
        %v6617 = vpop.f32.mrf.mxu0
        %v6618 = vadd.f32 0.0, %v6617
        %v6619 = vpop.f32.mrf.mxu0
        %v6620 = vpop.f32.mrf.mxu0
        %v6621 = vadd.f32 0.0, %v6620
        %v6622 = vpop.f32.mrf.mxu0
        %6623 = vmatprep.mubr.bf16.mxu0 0
        %6624 = vmatmul.mubr.bf16.gmra.mxu0 %v6413
        %v6625 = vpop.f32.mrf.mxu0
        %v6626 = vadd.f32 0.0, %v6625
        %v6627 = vpop.f32.mrf.mxu0
        %v6628 = vpop.f32.mrf.mxu0
        %v6629 = vadd.f32 0.0, %v6628
        %v6630 = vpop.f32.mrf.mxu0
        %6631 = vmatprep.mubr.bf16.mxu0 0
        %6632 = vmatmul.mubr.bf16.gmra.mxu0 %v6414
        %v6633 = vpop.f32.mrf.mxu0
        %v6634 = vadd.f32 0.0, %v6633
        %v6635 = vpop.f32.mrf.mxu0
        %v6636 = vpop.f32.mrf.mxu0
        %v6637 = vadd.f32 0.0, %v6636
        %v6638 = vpop.f32.mrf.mxu0
        %6639 = vdwg.mxu0
        %v6640 = vadd.f32 %v6255, %v6514
        %v6641 = vadd.f32 %v6256, %v6517
        %v6642 = vadd.f32 %v6257, %v6522
        %v6643 = vadd.f32 %v6258, %v6525
        %v6644 = vadd.f32 %v6259, %v6530
        %v6645 = vadd.f32 %v6260, %v6533
        %v6646 = vadd.f32 %v6261, %v6538
        %v6647 = vadd.f32 %v6262, %v6541
        %v6648 = vadd.f32 %v6263, %v6546
        %v6649 = vadd.f32 %v6264, %v6549
        %v6650 = vadd.f32 %v6265, %v6554
        %v6651 = vadd.f32 %v6266, %v6557
        %v6652 = vadd.f32 %v6267, %v6562
        %v6653 = vadd.f32 %v6268, %v6565
        %v6654 = vadd.f32 %v6269, %v6570
        %v6655 = vadd.f32 %v6270, %v6573
        %v6656 = vadd.f32 %v6271, %v6578
        %v6657 = vadd.f32 %v6272, %v6581
        %v6658 = vadd.f32 %v6273, %v6586
        %v6659 = vadd.f32 %v6274, %v6589
        %v6660 = vadd.f32 %v6275, %v6594
        %v6661 = vadd.f32 %v6276, %v6597
        %v6662 = vadd.f32 %v6277, %v6602
        %v6663 = vadd.f32 %v6278, %v6605
        %v6664 = vadd.f32 %v6279, %v6610
        %v6665 = vadd.f32 %v6280, %v6613
        %v6666 = vadd.f32 %v6281, %v6618
        %v6667 = vadd.f32 %v6282, %v6621
        %v6668 = vadd.f32 %v6283, %v6626
        %v6669 = vadd.f32 %v6284, %v6629
        %v6670 = vadd.f32 %v6285, %v6634
        %v6671 = vadd.f32 %v6286, %v6637
        %v6672 = vld [vmem:[%s5] sm:$0x1]
        %v6674 = vlaneseq
        %v6675 = vshrl.u32 %v6674, 7
        %v6676 = vsub.s32 0, %v6675
        %v6677 = vrot.slane %v6672, %v6676
        %v6679 = vmul.f32 %v6640, %v6677
        %v6680 = vmul.f32 %v6641, %v6677
        %v6681 = vmul.f32 %v6642, %v6677
        %v6682 = vmul.f32 %v6643, %v6677
        %v6683 = vmul.f32 %v6644, %v6677
        %v6684 = vmul.f32 %v6645, %v6677
        %v6685 = vmul.f32 %v6646, %v6677
        %v6686 = vmul.f32 %v6647, %v6677
        %v6687 = vmul.f32 %v6648, %v6677
        %v6688 = vmul.f32 %v6649, %v6677
        %v6689 = vmul.f32 %v6650, %v6677
        %v6690 = vmul.f32 %v6651, %v6677
        %v6691 = vmul.f32 %v6652, %v6677
        %v6692 = vmul.f32 %v6653, %v6677
        %v6693 = vmul.f32 %v6654, %v6677
        %v6694 = vmul.f32 %v6655, %v6677
        %v6695 = vmul.f32 %v6656, %v6677
        %v6696 = vmul.f32 %v6657, %v6677
        %v6697 = vmul.f32 %v6658, %v6677
        %v6698 = vmul.f32 %v6659, %v6677
        %v6699 = vmul.f32 %v6660, %v6677
        %v6700 = vmul.f32 %v6661, %v6677
        %v6701 = vmul.f32 %v6662, %v6677
        %v6702 = vmul.f32 %v6663, %v6677
        %v6703 = vmul.f32 %v6664, %v6677
        %v6704 = vmul.f32 %v6665, %v6677
        %v6705 = vmul.f32 %v6666, %v6677
        %v6706 = vmul.f32 %v6667, %v6677
        %v6707 = vmul.f32 %v6668, %v6677
        %v6708 = vmul.f32 %v6669, %v6677
        %v6709 = vmul.f32 %v6670, %v6677
        %v6710 = vmul.f32 %v6671, %v6677
        %v6711 = vld [vmem:[%s6] sm:$0x1]
        %v6713 = vlaneseq
        %v6714 = vshrl.u32 %v6713, 7
        %v6715 = vsub.s32 0, %v6714
        %v6716 = vrot.slane %v6711, %v6715
        %v6718 = vadd.f32 %v6679, %v6716
        %v6719 = vadd.f32 %v6680, %v6716
        %v6720 = vadd.f32 %v6681, %v6716
        %v6721 = vadd.f32 %v6682, %v6716
        %v6722 = vadd.f32 %v6683, %v6716
        %v6723 = vadd.f32 %v6684, %v6716
        %v6724 = vadd.f32 %v6685, %v6716
        %v6725 = vadd.f32 %v6686, %v6716
        %v6726 = vadd.f32 %v6687, %v6716
        %v6727 = vadd.f32 %v6688, %v6716
        %v6728 = vadd.f32 %v6689, %v6716
        %v6729 = vadd.f32 %v6690, %v6716
        %v6730 = vadd.f32 %v6691, %v6716
        %v6731 = vadd.f32 %v6692, %v6716
        %v6732 = vadd.f32 %v6693, %v6716
        %v6733 = vadd.f32 %v6694, %v6716
        %v6734 = vadd.f32 %v6695, %v6716
        %v6735 = vadd.f32 %v6696, %v6716
        %v6736 = vadd.f32 %v6697, %v6716
        %v6737 = vadd.f32 %v6698, %v6716
        %v6738 = vadd.f32 %v6699, %v6716
        %v6739 = vadd.f32 %v6700, %v6716
        %v6740 = vadd.f32 %v6701, %v6716
        %v6741 = vadd.f32 %v6702, %v6716
        %v6742 = vadd.f32 %v6703, %v6716
        %v6743 = vadd.f32 %v6704, %v6716
        %v6744 = vadd.f32 %v6705, %v6716
        %v6745 = vadd.f32 %v6706, %v6716
        %v6746 = vadd.f32 %v6707, %v6716
        %v6747 = vadd.f32 %v6708, %v6716
        %v6748 = vadd.f32 %v6709, %v6716
        %v6749 = vadd.f32 %v6710, %v6716
        %v6750 = vmax.f32 %v6718, 0.0
        %v6751 = vmax.f32 %v6719, 0.0
        %v6752 = vmax.f32 %v6720, 0.0
        %v6753 = vmax.f32 %v6721, 0.0
        %v6754 = vmax.f32 %v6722, 0.0
        %v6755 = vmax.f32 %v6723, 0.0
        %v6756 = vmax.f32 %v6724, 0.0
        %v6757 = vmax.f32 %v6725, 0.0
        %v6758 = vmax.f32 %v6726, 0.0
        %v6759 = vmax.f32 %v6727, 0.0
        %v6760 = vmax.f32 %v6728, 0.0
        %v6761 = vmax.f32 %v6729, 0.0
        %v6762 = vmax.f32 %v6730, 0.0
        %v6763 = vmax.f32 %v6731, 0.0
        %v6764 = vmax.f32 %v6732, 0.0
        %v6765 = vmax.f32 %v6733, 0.0
        %v6766 = vmax.f32 %v6734, 0.0
        %v6767 = vmax.f32 %v6735, 0.0
        %v6768 = vmax.f32 %v6736, 0.0
        %v6769 = vmax.f32 %v6737, 0.0
        %v6770 = vmax.f32 %v6738, 0.0
        %v6771 = vmax.f32 %v6739, 0.0
        %v6772 = vmax.f32 %v6740, 0.0
        %v6773 = vmax.f32 %v6741, 0.0
        %v6774 = vmax.f32 %v6742, 0.0
        %v6775 = vmax.f32 %v6743, 0.0
        %v6776 = vmax.f32 %v6744, 0.0
        %v6777 = vmax.f32 %v6745, 0.0
        %v6778 = vmax.f32 %v6746, 0.0
        %v6779 = vmax.f32 %v6747, 0.0
        %v6780 = vmax.f32 %v6748, 0.0
        %v6781 = vmax.f32 %v6749, 0.0
        %v6782 = vpack.c.bf16 %v6751, %v6750
        %v6783 = vpack.c.bf16 %v6753, %v6752
        %v6784 = vpack.c.bf16 %v6755, %v6754
        %v6785 = vpack.c.bf16 %v6757, %v6756
        %v6786 = vpack.c.bf16 %v6759, %v6758
        %v6787 = vpack.c.bf16 %v6761, %v6760
        %v6788 = vpack.c.bf16 %v6763, %v6762
        %v6789 = vpack.c.bf16 %v6765, %v6764
        %v6790 = vpack.c.bf16 %v6767, %v6766
        %v6791 = vpack.c.bf16 %v6769, %v6768
        %v6792 = vpack.c.bf16 %v6771, %v6770
        %v6793 = vpack.c.bf16 %v6773, %v6772
        %v6794 = vpack.c.bf16 %v6775, %v6774
        %v6795 = vpack.c.bf16 %v6777, %v6776
        %v6796 = vpack.c.bf16 %v6779, %v6778
        %v6797 = vpack.c.bf16 %v6781, %v6780
        %v6798 = vld [vmem:[#allocation11] sm:$0xf]
        %v6799 = vld [vmem:[#allocation11 + $0x4] sm:$0xf]
        %v6800 = vld [vmem:[#allocation11 + $0x8] sm:$0xf]
        %v6801 = vld [vmem:[#allocation11 + $0xc] sm:$0xf]
        %v6802 = vld [vmem:[#allocation11 + $0x10] sm:$0xf]
        %v6803 = vld [vmem:[#allocation11 + $0x14] sm:$0xf]
        %v6804 = vld [vmem:[#allocation11 + $0x18] sm:$0xf]
        %v6805 = vld [vmem:[#allocation11 + $0x1c] sm:$0xf]
        %v6806 = vld [vmem:[#allocation11 + $0x20] sm:$0xf]
        %v6807 = vld [vmem:[#allocation11 + $0x24] sm:$0xf]
        %v6808 = vld [vmem:[#allocation11 + $0x28] sm:$0xf]
        %v6809 = vld [vmem:[#allocation11 + $0x2c] sm:$0xf]
        %v6810 = vld [vmem:[#allocation11 + $0x30] sm:$0xf]
        %v6811 = vld [vmem:[#allocation11 + $0x34] sm:$0xf]
        %v6812 = vld [vmem:[#allocation11 + $0x38] sm:$0xf]
        %v6813 = vld [vmem:[#allocation11 + $0x3c] sm:$0xf]
        %v6830 = vunpack.c.l.b16 %v6798
        %v6831 = vunpack.c.l.b16 %v6799
        %v6832 = vunpack.c.l.b16 %v6800
        %v6833 = vunpack.c.l.b16 %v6801
        %v6834 = vunpack.c.l.b16 %v6802
        %v6835 = vunpack.c.l.b16 %v6803
        %v6836 = vunpack.c.l.b16 %v6804
        %v6837 = vunpack.c.l.b16 %v6805
        %v6838 = vunpack.c.l.b16 %v6806
        %v6839 = vunpack.c.l.b16 %v6807
        %v6840 = vunpack.c.l.b16 %v6808
        %v6841 = vunpack.c.l.b16 %v6809
        %v6842 = vunpack.c.l.b16 %v6810
        %v6843 = vunpack.c.l.b16 %v6811
        %v6844 = vunpack.c.l.b16 %v6812
        %v6845 = vunpack.c.l.b16 %v6813
        %v6846 = vpack.c.b16 %v6831, %v6830
        %v6847 = vpack.c.b16 %v6833, %v6832
        %v6848 = vpack.c.b16 %v6835, %v6834
        %v6849 = vpack.c.b16 %v6837, %v6836
        %v6850 = vpack.c.b16 %v6839, %v6838
        %v6851 = vpack.c.b16 %v6841, %v6840
        %v6852 = vpack.c.b16 %v6843, %v6842
        %v6853 = vpack.c.b16 %v6845, %v6844
        %6862 = vmatprep.subr.bf16.mxu0 0
        %6863 = vmatpush1.bf16.msra.mxu0 %v6853
        %6864 = vmatprep.subr.bf16.mxu0 0
        %6865 = vmatpush1.bf16.msra.mxu0 %v6852
        %6866 = vmatprep.subr.bf16.mxu0 0
        %6867 = vmatpush1.bf16.msra.mxu0 %v6851
        %6868 = vmatprep.subr.bf16.mxu0 0
        %6869 = vmatpush1.bf16.msra.mxu0 %v6850
        %6870 = vmatprep.subr.bf16.mxu0 0
        %6871 = vmatpush1.bf16.msra.mxu0 %v6849
        %6872 = vmatprep.subr.bf16.mxu0 0
        %6873 = vmatpush1.bf16.msra.mxu0 %v6848
        %6874 = vmatprep.subr.bf16.mxu0 0
        %6875 = vmatpush1.bf16.msra.mxu0 %v6847
        %6876 = vmatprep.subr.bf16.mxu0 0
        %6877 = vmatpush1.bf16.msra.mxu0 %v6846
        %6878 = vmatprep.subr.bf16.mxu0 0
        %6879 = vmatpush2.bf16.msra.mxu0 0
        %6880 = vmatprep.subr.bf16.mxu0 0
        %6881 = vmatpush2.bf16.msra.mxu0 0
        %6882 = vmatprep.subr.bf16.mxu0 0
        %6883 = vmatpush2.bf16.msra.mxu0 0
        %6884 = vmatprep.subr.bf16.mxu0 0
        %6885 = vmatpush2.bf16.msra.mxu0 0
        %6886 = vmatprep.subr.bf16.mxu0 0
        %6887 = vmatpush2.bf16.msra.mxu0 0
        %6888 = vmatprep.subr.bf16.mxu0 0
        %6889 = vmatpush2.bf16.msra.mxu0 0
        %6890 = vmatprep.subr.bf16.mxu0 0
        %6891 = vmatpush2.bf16.msra.mxu0 0
        %6892 = vmatprep.subr.bf16.mxu0 0
        %6893 = vmatpush2.bf16.msra.mxu0 0
        %6894 = vmatprep.mubr.bf16.mxu0 0
        %6895 = vmatmul.mubr.bf16.gmra.mxu0 %v6782
        %v6896 = vpop.f32.mrf.mxu0
        %v6897 = vadd.f32 0.0, %v6896
        %v6898 = vpop.f32.mrf.mxu0
        %v6899 = vpop.f32.mrf.mxu0
        %v6900 = vadd.f32 0.0, %v6899
        %v6901 = vpop.f32.mrf.mxu0
        %6902 = vmatprep.mubr.bf16.mxu0 0
        %6903 = vmatmul.mubr.bf16.gmra.mxu0 %v6783
        %v6904 = vpop.f32.mrf.mxu0
        %v6905 = vadd.f32 0.0, %v6904
        %v6906 = vpop.f32.mrf.mxu0
        %v6907 = vpop.f32.mrf.mxu0
        %v6908 = vadd.f32 0.0, %v6907
        %v6909 = vpop.f32.mrf.mxu0
        %6910 = vmatprep.mubr.bf16.mxu0 0
        %6911 = vmatmul.mubr.bf16.gmra.mxu0 %v6784
        %v6912 = vpop.f32.mrf.mxu0
        %v6913 = vadd.f32 0.0, %v6912
        %v6914 = vpop.f32.mrf.mxu0
        %v6915 = vpop.f32.mrf.mxu0
        %v6916 = vadd.f32 0.0, %v6915
        %v6917 = vpop.f32.mrf.mxu0
        %6918 = vmatprep.mubr.bf16.mxu0 0
        %6919 = vmatmul.mubr.bf16.gmra.mxu0 %v6785
        %v6920 = vpop.f32.mrf.mxu0
        %v6921 = vadd.f32 0.0, %v6920
        %v6922 = vpop.f32.mrf.mxu0
        %v6923 = vpop.f32.mrf.mxu0
        %v6924 = vadd.f32 0.0, %v6923
        %v6925 = vpop.f32.mrf.mxu0
        %6926 = vmatprep.mubr.bf16.mxu0 0
        %6927 = vmatmul.mubr.bf16.gmra.mxu0 %v6786
        %v6928 = vpop.f32.mrf.mxu0
        %v6929 = vadd.f32 0.0, %v6928
        %v6930 = vpop.f32.mrf.mxu0
        %v6931 = vpop.f32.mrf.mxu0
        %v6932 = vadd.f32 0.0, %v6931
        %v6933 = vpop.f32.mrf.mxu0
        %6934 = vmatprep.mubr.bf16.mxu0 0
        %6935 = vmatmul.mubr.bf16.gmra.mxu0 %v6787
        %v6936 = vpop.f32.mrf.mxu0
        %v6937 = vadd.f32 0.0, %v6936
        %v6938 = vpop.f32.mrf.mxu0
        %v6939 = vpop.f32.mrf.mxu0
        %v6940 = vadd.f32 0.0, %v6939
        %v6941 = vpop.f32.mrf.mxu0
        %6942 = vmatprep.mubr.bf16.mxu0 0
        %6943 = vmatmul.mubr.bf16.gmra.mxu0 %v6788
        %v6944 = vpop.f32.mrf.mxu0
        %v6945 = vadd.f32 0.0, %v6944
        %v6946 = vpop.f32.mrf.mxu0
        %v6947 = vpop.f32.mrf.mxu0
        %v6948 = vadd.f32 0.0, %v6947
        %v6949 = vpop.f32.mrf.mxu0
        %6950 = vmatprep.mubr.bf16.mxu0 0
        %6951 = vmatmul.mubr.bf16.gmra.mxu0 %v6789
        %v6952 = vpop.f32.mrf.mxu0
        %v6953 = vadd.f32 0.0, %v6952
        %v6954 = vpop.f32.mrf.mxu0
        %v6955 = vpop.f32.mrf.mxu0
        %v6956 = vadd.f32 0.0, %v6955
        %v6957 = vpop.f32.mrf.mxu0
        %6958 = vmatprep.mubr.bf16.mxu0 0
        %6959 = vmatmul.mubr.bf16.gmra.mxu0 %v6790
        %v6960 = vpop.f32.mrf.mxu0
        %v6961 = vadd.f32 0.0, %v6960
        %v6962 = vpop.f32.mrf.mxu0
        %v6963 = vpop.f32.mrf.mxu0
        %v6964 = vadd.f32 0.0, %v6963
        %v6965 = vpop.f32.mrf.mxu0
        %6966 = vmatprep.mubr.bf16.mxu0 0
        %6967 = vmatmul.mubr.bf16.gmra.mxu0 %v6791
        %v6968 = vpop.f32.mrf.mxu0
        %v6969 = vadd.f32 0.0, %v6968
        %v6970 = vpop.f32.mrf.mxu0
        %v6971 = vpop.f32.mrf.mxu0
        %v6972 = vadd.f32 0.0, %v6971
        %v6973 = vpop.f32.mrf.mxu0
        %6974 = vmatprep.mubr.bf16.mxu0 0
        %6975 = vmatmul.mubr.bf16.gmra.mxu0 %v6792
        %v6976 = vpop.f32.mrf.mxu0
        %v6977 = vadd.f32 0.0, %v6976
        %v6978 = vpop.f32.mrf.mxu0
        %v6979 = vpop.f32.mrf.mxu0
        %v6980 = vadd.f32 0.0, %v6979
        %v6981 = vpop.f32.mrf.mxu0
        %6982 = vmatprep.mubr.bf16.mxu0 0
        %6983 = vmatmul.mubr.bf16.gmra.mxu0 %v6793
        %v6984 = vpop.f32.mrf.mxu0
        %v6985 = vadd.f32 0.0, %v6984
        %v6986 = vpop.f32.mrf.mxu0
        %v6987 = vpop.f32.mrf.mxu0
        %v6988 = vadd.f32 0.0, %v6987
        %v6989 = vpop.f32.mrf.mxu0
        %6990 = vmatprep.mubr.bf16.mxu0 0
        %6991 = vmatmul.mubr.bf16.gmra.mxu0 %v6794
        %v6992 = vpop.f32.mrf.mxu0
        %v6993 = vadd.f32 0.0, %v6992
        %v6994 = vpop.f32.mrf.mxu0
        %v6995 = vpop.f32.mrf.mxu0
        %v6996 = vadd.f32 0.0, %v6995
        %v6997 = vpop.f32.mrf.mxu0
        %6998 = vmatprep.mubr.bf16.mxu0 0
        %6999 = vmatmul.mubr.bf16.gmra.mxu0 %v6795
        %v7000 = vpop.f32.mrf.mxu0
        %v7001 = vadd.f32 0.0, %v7000
        %v7002 = vpop.f32.mrf.mxu0
        %v7003 = vpop.f32.mrf.mxu0
        %v7004 = vadd.f32 0.0, %v7003
        %v7005 = vpop.f32.mrf.mxu0
        %7006 = vmatprep.mubr.bf16.mxu0 0
        %7007 = vmatmul.mubr.bf16.gmra.mxu0 %v6796
        %v7008 = vpop.f32.mrf.mxu0
        %v7009 = vadd.f32 0.0, %v7008
        %v7010 = vpop.f32.mrf.mxu0
        %v7011 = vpop.f32.mrf.mxu0
        %v7012 = vadd.f32 0.0, %v7011
        %v7013 = vpop.f32.mrf.mxu0
        %7014 = vmatprep.mubr.bf16.mxu0 0
        %7015 = vmatmul.mubr.bf16.gmra.mxu0 %v6797
        %v7016 = vpop.f32.mrf.mxu0
        %v7017 = vadd.f32 0.0, %v7016
        %v7018 = vpop.f32.mrf.mxu0
        %v7019 = vpop.f32.mrf.mxu0
        %v7020 = vadd.f32 0.0, %v7019
        %v7021 = vpop.f32.mrf.mxu0
        %7022 = vdwg.mxu0
        %v7023 = vld [vmem:[%s8] sm:$0x1]
        %v7025 = vlaneseq
        %v7026 = vshrl.u32 %v7025, 7
        %v7027 = vsub.s32 0, %v7026
        %v7028 = vrot.slane %v7023, %v7027
        %v7030 = vmul.f32 %v6897, %v7028
        %v7031 = vmul.f32 %v6900, %v7028
        %v7032 = vmul.f32 %v6905, %v7028
        %v7033 = vmul.f32 %v6908, %v7028
        %v7034 = vmul.f32 %v6913, %v7028
        %v7035 = vmul.f32 %v6916, %v7028
        %v7036 = vmul.f32 %v6921, %v7028
        %v7037 = vmul.f32 %v6924, %v7028
        %v7038 = vmul.f32 %v6929, %v7028
        %v7039 = vmul.f32 %v6932, %v7028
        %v7040 = vmul.f32 %v6937, %v7028
        %v7041 = vmul.f32 %v6940, %v7028
        %v7042 = vmul.f32 %v6945, %v7028
        %v7043 = vmul.f32 %v6948, %v7028
        %v7044 = vmul.f32 %v6953, %v7028
        %v7045 = vmul.f32 %v6956, %v7028
        %v7046 = vmul.f32 %v6961, %v7028
        %v7047 = vmul.f32 %v6964, %v7028
        %v7048 = vmul.f32 %v6969, %v7028
        %v7049 = vmul.f32 %v6972, %v7028
        %v7050 = vmul.f32 %v6977, %v7028
        %v7051 = vmul.f32 %v6980, %v7028
        %v7052 = vmul.f32 %v6985, %v7028
        %v7053 = vmul.f32 %v6988, %v7028
        %v7054 = vmul.f32 %v6993, %v7028
        %v7055 = vmul.f32 %v6996, %v7028
        %v7056 = vmul.f32 %v7001, %v7028
        %v7057 = vmul.f32 %v7004, %v7028
        %v7058 = vmul.f32 %v7009, %v7028
        %v7059 = vmul.f32 %v7012, %v7028
        %v7060 = vmul.f32 %v7017, %v7028
        %v7061 = vmul.f32 %v7020, %v7028
        %v7062 = vld [vmem:[%s9] sm:$0x1]
        %v7064 = vlaneseq
        %v7065 = vshrl.u32 %v7064, 7
        %v7066 = vsub.s32 0, %v7065
        %v7067 = vrot.slane %v7062, %v7066
        %v7069 = vadd.f32 %v7030, %v7067
        %v7070 = vadd.f32 %v7031, %v7067
        %v7071 = vadd.f32 %v7032, %v7067
        %v7072 = vadd.f32 %v7033, %v7067
        %v7073 = vadd.f32 %v7034, %v7067
        %v7074 = vadd.f32 %v7035, %v7067
        %v7075 = vadd.f32 %v7036, %v7067
        %v7076 = vadd.f32 %v7037, %v7067
        %v7077 = vadd.f32 %v7038, %v7067
        %v7078 = vadd.f32 %v7039, %v7067
        %v7079 = vadd.f32 %v7040, %v7067
        %v7080 = vadd.f32 %v7041, %v7067
        %v7081 = vadd.f32 %v7042, %v7067
        %v7082 = vadd.f32 %v7043, %v7067
        %v7083 = vadd.f32 %v7044, %v7067
        %v7084 = vadd.f32 %v7045, %v7067
        %v7085 = vadd.f32 %v7046, %v7067
        %v7086 = vadd.f32 %v7047, %v7067
        %v7087 = vadd.f32 %v7048, %v7067
        %v7088 = vadd.f32 %v7049, %v7067
        %v7089 = vadd.f32 %v7050, %v7067
        %v7090 = vadd.f32 %v7051, %v7067
        %v7091 = vadd.f32 %v7052, %v7067
        %v7092 = vadd.f32 %v7053, %v7067
        %v7093 = vadd.f32 %v7054, %v7067
        %v7094 = vadd.f32 %v7055, %v7067
        %v7095 = vadd.f32 %v7056, %v7067
        %v7096 = vadd.f32 %v7057, %v7067
        %v7097 = vadd.f32 %v7058, %v7067
        %v7098 = vadd.f32 %v7059, %v7067
        %v7099 = vadd.f32 %v7060, %v7067
        %v7100 = vadd.f32 %v7061, %v7067
        %v7101 = vadd.f32 %v7069, %v425
        %v7102 = vadd.f32 %v7070, %v426
        %v7103 = vadd.f32 %v7071, %v427
        %v7104 = vadd.f32 %v7072, %v428
        %v7105 = vadd.f32 %v7073, %v429
        %v7106 = vadd.f32 %v7074, %v430
        %v7107 = vadd.f32 %v7075, %v431
        %v7108 = vadd.f32 %v7076, %v432
        %v7109 = vadd.f32 %v7077, %v433
        %v7110 = vadd.f32 %v7078, %v434
        %v7111 = vadd.f32 %v7079, %v435
        %v7112 = vadd.f32 %v7080, %v436
        %v7113 = vadd.f32 %v7081, %v437
        %v7114 = vadd.f32 %v7082, %v438
        %v7115 = vadd.f32 %v7083, %v439
        %v7116 = vadd.f32 %v7084, %v440
        %v7117 = vadd.f32 %v7085, %v441
        %v7118 = vadd.f32 %v7086, %v442
        %v7119 = vadd.f32 %v7087, %v443
        %v7120 = vadd.f32 %v7088, %v444
        %v7121 = vadd.f32 %v7089, %v445
        %v7122 = vadd.f32 %v7090, %v446
        %v7123 = vadd.f32 %v7091, %v447
        %v7124 = vadd.f32 %v7092, %v448
        %v7125 = vadd.f32 %v7093, %v449
        %v7126 = vadd.f32 %v7094, %v450
        %v7127 = vadd.f32 %v7095, %v451
        %v7128 = vadd.f32 %v7096, %v452
        %v7129 = vadd.f32 %v7097, %v453
        %v7130 = vadd.f32 %v7098, %v454
        %v7131 = vadd.f32 %v7099, %v455
        %v7132 = vadd.f32 %v7100, %v456
        %v7133 = vmax.f32 %v7101, 0.0
        %v7134 = vmax.f32 %v7102, 0.0
        %v7135 = vmax.f32 %v7103, 0.0
        %v7136 = vmax.f32 %v7104, 0.0
        %v7137 = vmax.f32 %v7105, 0.0
        %v7138 = vmax.f32 %v7106, 0.0
        %v7139 = vmax.f32 %v7107, 0.0
        %v7140 = vmax.f32 %v7108, 0.0
        %v7141 = vmax.f32 %v7109, 0.0
        %v7142 = vmax.f32 %v7110, 0.0
        %v7143 = vmax.f32 %v7111, 0.0
        %v7144 = vmax.f32 %v7112, 0.0
        %v7145 = vmax.f32 %v7113, 0.0
        %v7146 = vmax.f32 %v7114, 0.0
        %v7147 = vmax.f32 %v7115, 0.0
        %v7148 = vmax.f32 %v7116, 0.0
        %v7149 = vmax.f32 %v7117, 0.0
        %v7150 = vmax.f32 %v7118, 0.0
        %v7151 = vmax.f32 %v7119, 0.0
        %v7152 = vmax.f32 %v7120, 0.0
        %v7153 = vmax.f32 %v7121, 0.0
        %v7154 = vmax.f32 %v7122, 0.0
        %v7155 = vmax.f32 %v7123, 0.0
        %v7156 = vmax.f32 %v7124, 0.0
        %v7157 = vmax.f32 %v7125, 0.0
        %v7158 = vmax.f32 %v7126, 0.0
        %v7159 = vmax.f32 %v7127, 0.0
        %v7160 = vmax.f32 %v7128, 0.0
        %v7161 = vmax.f32 %v7129, 0.0
        %v7162 = vmax.f32 %v7130, 0.0
        %v7163 = vmax.f32 %v7131, 0.0
        %v7164 = vmax.f32 %v7132, 0.0
        %7165 = vst [vmem:[%s421] sm:$0xff] %v7133
        %7166 = vst [vmem:[%s421 + $0x8] sm:$0xff] %v7134
        %7167 = vst [vmem:[%s421 + $0x10] sm:$0xff] %v7135
        %7168 = vst [vmem:[%s421 + $0x18] sm:$0xff] %v7136
        %7169 = vst [vmem:[%s421 + $0x20] sm:$0xff] %v7137
        %7170 = vst [vmem:[%s421 + $0x28] sm:$0xff] %v7138
        %7171 = vst [vmem:[%s421 + $0x30] sm:$0xff] %v7139
        %7172 = vst [vmem:[%s421 + $0x38] sm:$0xff] %v7140
        %7173 = vst [vmem:[%s421 + $0x40] sm:$0xff] %v7141
        %7174 = vst [vmem:[%s421 + $0x48] sm:$0xff] %v7142
        %7175 = vst [vmem:[%s421 + $0x50] sm:$0xff] %v7143
        %7176 = vst [vmem:[%s421 + $0x58] sm:$0xff] %v7144
        %7177 = vst [vmem:[%s421 + $0x60] sm:$0xff] %v7145
        %7178 = vst [vmem:[%s421 + $0x68] sm:$0xff] %v7146
        %7179 = vst [vmem:[%s421 + $0x70] sm:$0xff] %v7147
        %7180 = vst [vmem:[%s421 + $0x78] sm:$0xff] %v7148
        %7181 = vst [vmem:[%s421 + $0x80] sm:$0xff] %v7149
        %7182 = vst [vmem:[%s421 + $0x88] sm:$0xff] %v7150
        %7183 = vst [vmem:[%s421 + $0x90] sm:$0xff] %v7151
        %7184 = vst [vmem:[%s421 + $0x98] sm:$0xff] %v7152
        %7185 = vst [vmem:[%s421 + $0xa0] sm:$0xff] %v7153
        %7186 = vst [vmem:[%s421 + $0xa8] sm:$0xff] %v7154
        %7187 = vst [vmem:[%s421 + $0xb0] sm:$0xff] %v7155
        %7188 = vst [vmem:[%s421 + $0xb8] sm:$0xff] %v7156
        %7189 = vst [vmem:[%s421 + $0xc0] sm:$0xff] %v7157
        %7190 = vst [vmem:[%s421 + $0xc8] sm:$0xff] %v7158
        %7191 = vst [vmem:[%s421 + $0xd0] sm:$0xff] %v7159
        %7192 = vst [vmem:[%s421 + $0xd8] sm:$0xff] %v7160
        %7193 = vst [vmem:[%s421 + $0xe0] sm:$0xff] %v7161
        %7194 = vst [vmem:[%s421 + $0xe8] sm:$0xff] %v7162
        %7195 = vst [vmem:[%s421 + $0xf0] sm:$0xff] %v7163
        %7196 = vst [vmem:[%s421 + $0xf8] sm:$0xff] %v7164
        %s7197 = sand.u32 %s252, 1
        %s7198 = scalar_lea.sflag [#allocation7], %s7197
        %s7199 = sand.u32 %s252, 1
        %s7200 = smul.addr %s7199, 256
        %s7201 = scalar_lea.vmem [#allocation13], %s7200
        // Predicated region
        $region77: #{tpu_custom_call.1} parent=59 // pred_check
          %p7202 = pneg %p262
        $region78: #{tpu_custom_call.1} parent=59 // pred_check_branch
          %7204 = sbr.rel (%p7202) target = $region80
        $region79: #{tpu_custom_call.1} parent=59 // pred_region
          %s7206 = ssub.s32 4096, 4096
          %7207 = vsyncadd %s7198, %s7206
          %s7208 = smul.addr %s29, 32
          %s7209 = smul.addr %s7208, 128
          %s7210 = scalar_lea.hbm %s10, %s7209
          %s7211 = sshll.u32 %s7201, 4
          %s7212 = int_to_ptr.vmem [resolvable:$true] %s7211
          %7217 = dma.vmem_to_hbm [thread:$0]  %s7212, 4096, %s7210, %s7198, 128, 128, 8
        $region80: #{tpu_custom_call.1} parent=59 // pred_fallthru
          _
      $region60: #{tpu_custom_call.1} parent=5 // pred_fallthru
        _
      %p7218 = scmp.le.s32.totalorder 2, %s24
      // Predicated region
      $region81: #{tpu_custom_call.1} parent=5 // pred_check
        %p7219 = pneg %p7218
      $region82: #{tpu_custom_call.1} parent=5 // pred_check_branch
        %7221 = sbr.rel (%p7219) target = $region84
      $region83: #{tpu_custom_call.1} parent=5 // pred_region
        %s7222 = ssub.s32 %s24, 2
        // Predicated region
        $region85: #{tpu_custom_call.1} parent=83 // pred_check
          %p7223 = pneg %p268
        $region86: #{tpu_custom_call.1} parent=83 // pred_check_branch
          %7225 = sbr.rel (%p7223) target = $region88
        $region87: #{tpu_custom_call.1} parent=83 // pred_region
          %s7226 = sand.u32 %s253, 1
          %s7227 = scalar_lea.sflag [#allocation7], %s7226
          %s7228 = sand.u32 %s253, 1
          %s7229 = smul.addr %s7228, 256
          %s7230 = scalar_lea.vmem [#allocation13], %s7229
          %7231 = dma.done %s7227, 4096
        $region88: #{tpu_custom_call.1} parent=83 // pred_fallthru
          _
      $region84: #{tpu_custom_call.1} parent=5 // pred_fallthru
        _
    $region6: #{tpu_custom_call.1} parent=1 // loop_footer
      %s28 = sadd.s32 1, %s24
    $region7: #{tpu_custom_call.1} parent=1 // loop_footer_branch
      %23 = sbr.rel target = $region3
    $region8: #{tpu_custom_call.1} parent=1 // loop_exit
      _
    %7232 = vsyncpa [#allocation6], 1
    %s7233 = scalar_lea.sflag [#allocation6], 1
    %7234 = vsyncpa %s7233, 1
    %7235 = vsyncpa [#allocation9], 1
    %7236 = vsyncpa [#allocation12], 1
    %7237 = vsyncpa [#allocation7], 1
    %s7238 = scalar_lea.sflag [#allocation7], 1
    %7239 = vsyncpa %s7238, 1

</llo_original>
